<compile_context>
chip_gen: v7x
topology: tpu7x:2x2x1
jax: 0.10.0
libtpu: 0.0.40
codegen_flags: <defaults>
</compile_context>

<pallas_src>
import functools

import jax
import jax.numpy as jnp
from jax.experimental import pallas as pl
from jax.experimental.pallas import tpu as pltpu

# ----------------------- scaled-down CLIP-ViT config -----------------------
B, S = 2, 4                     # batch, frames per video
C, H, W = 3, 32, 32             # image channels / size
PATCH = 16
GRID_HW = H // PATCH            # 2
N_PATCH = GRID_HW * GRID_HW     # 4 patches
N_TOK = N_PATCH + 1             # +1 class token -> 5 tokens
T_PAD = 8                       # tokens padded to a full sublane tile
D = 32                          # transformer width
N_HEADS = 4
HEAD_DIM = D // N_HEADS         # 8
N_LAYERS = 2
MLP = 4 * D                     # 128
E = 16                          # output embed dim (proj)
OUT_PAD = 128                   # lane-dense output width (proj zero-padded)
CPP = C * PATCH * PATCH         # 768 = flattened patch size
M = B * S                       # number of images

# small-slab row layout (every row padded to 128 lanes)
ROW_LNPRE_G, ROW_LNPRE_B, ROW_LNPOST_G, ROW_LNPOST_B = 0, 1, 2, 3
ROWS_HEADER = 4
ROWS_PER_LAYER = 8
OFF_LN1_G, OFF_LN1_B, OFF_LN2_G, OFF_LN2_B = 0, 1, 2, 3
OFF_QKV_B, OFF_BO, OFF_B1, OFF_B2 = 4, 5, 6, 7


# ----------------------------- kernel helpers ------------------------------
def _layer_norm(x, g, b, eps=1e-5):
    mu = jnp.mean(x, axis=-1, keepdims=True)
    var = jnp.mean(x * x, axis=-1, keepdims=True) - mu * mu   # one-pass form
    return (x - mu) * jax.lax.rsqrt(var + eps) * g + b


def _quick_gelu(x):
    # CLIP uses QuickGELU: x * sigmoid(1.702 * x)
    return x * jax.nn.sigmoid(1.702 * x)


# ------------------------------- the kernel --------------------------------
def vit_encode_kernel(patches_ref,     # (GT, CPP)  bf16 padded patch slab
                      clspos_ref,      # (GT, D)    cls + pos slab
                      mask_ref,        # (GT, GT)   block-diag + key-pad mask
                      sel_ref,         # (G, GT)    cls-row selector
                      w_patch_ref,     # (CPP, D)   bf16
                      attn_w_ref,      # (L, D, 4D=128)  [wqkv (Q scaled) | wo]
                      w1_ref,          # (L, D, MLP)
                      w2_ref,          # (L, MLP, D)
                      small_ref,       # (24, 128)  LN params + folded biases
                      proj_ref,        # (D, OUT_PAD)  proj zero-padded
                      out_ref):        # (1, G, OUT_PAD)
    def srow(r, width=D):
        return small_ref[r:r + 1, :width]                      # (1, width)

    # Patch embedding for the whole image group as one bf16 MXU matmul with
    # f32 accumulation.  The host already placed each image's patches in rows
    # [i*T_PAD+1, i*T_PAD+N_TOK) (cls/pad rows zero), so the matmul also
    # scatters tokens in place.
    x = jnp.dot(patches_ref[...], w_patch_ref[...],
                preferred_element_type=jnp.float32)            # (GT, D)
    x = x + clspos_ref[...]                                    # cls + pos
    x = _layer_norm(x, srow(ROW_LNPRE_G), srow(ROW_LNPRE_B))

    mask = mask_ref[...]                                       # (GT, GT)

    # Transformer resblocks (pre-LN), statically unrolled.
    for l in range(N_LAYERS):
        base = ROWS_HEADER + l * ROWS_PER_LAYER

        # --- multi-head attention: fused QKV, per-head lane slices ---------
        h = _layer_norm(x, srow(base + OFF_LN1_G), srow(base + OFF_LN1_B))
        qkv = jnp.dot(h, attn_w_ref[l, :, :3 * D],
                      preferred_element_type=jnp.float32)      # (GT, 96)
        qkv = qkv + srow(base + OFF_QKV_B, 3 * D)              # only Q cols != 0

        heads = []
        for hd in range(N_HEADS):
            q = qkv[:, hd * HEAD_DIM:(hd + 1) * HEAD_DIM]
            k = qkv[:, D + hd * HEAD_DIM:D + (hd + 1) * HEAD_DIM]
            v = qkv[:, 2 * D + hd * HEAD_DIM:2 * D + (hd + 1) * HEAD_DIM]
            s = jax.lax.dot_general(q, k, (((1,), (1,)), ((), ())),
                                    preferred_element_type=jnp.float32)
            s = s + mask
            s = s - jnp.max(s, axis=-1, keepdims=True)
            p = jnp.exp(s)
            p = p * pl.reciprocal(jnp.sum(p, axis=-1, keepdims=True),
                                  approx=True)
            heads.append(jnp.dot(p, v, preferred_element_type=jnp.float32))
        attn = jnp.concatenate(heads, axis=-1)                 # (GT, D)
        # single output projection; bo already includes the folded V bias
        x = x + jnp.dot(attn, attn_w_ref[l, :, 3 * D:],
                        preferred_element_type=jnp.float32) + srow(base + OFF_BO)

        # --- MLP with QuickGELU --------------------------------------------
        h = _layer_norm(x, srow(base + OFF_LN2_G), srow(base + OFF_LN2_B))
        h = jnp.dot(h, w1_ref[l], preferred_element_type=jnp.float32)
        h = h + srow(base + OFF_B1, MLP)
        h = _quick_gelu(h)
        x = x + jnp.dot(h, w2_ref[l],
                        preferred_element_type=jnp.float32) + srow(base + OFF_B2)

    # Gather per-image cls rows via the host-built selector matmul, then
    # ln_post + lane-dense (128-wide) projection -> unmasked store.
    cls_tok = jnp.dot(sel_ref[...], x,
                      preferred_element_type=jnp.float32)      # (G, D)
    cls_tok = _layer_norm(cls_tok, srow(ROW_LNPOST_G), srow(ROW_LNPOST_B))
    out_ref[0] = jnp.dot(cls_tok, proj_ref[...],
                         preferred_element_type=jnp.float32)   # (G, OUT_PAD)


# ------------------------------ parameters ---------------------------------
def make_params(key):
    ks = jax.random.split(key, 16)

    def nrm(k, shape, scale=0.02):
        return (scale * jax.random.normal(k, shape)).astype(jnp.float32)

    params = [
        ("w_patch", nrm(ks[0], (CPP, D))),
        ("cls", nrm(ks[1], (1, D))),
        ("pos", nrm(ks[2], (N_TOK, D))),
        ("lnpre_g", 1.0 + nrm(ks[3], (1, D), 0.01)),
        ("lnpre_b", nrm(ks[3], (1, D), 0.01)),
        ("ln1_g", 1.0 + nrm(ks[4], (N_LAYERS, 1, D), 0.01)),
        ("ln1_b", nrm(ks[4], (N_LAYERS, 1, D), 0.01)),
        ("wqkv", nrm(ks[5], (N_LAYERS, D, 3 * D))),
        ("bqkv", nrm(ks[6], (N_LAYERS, 1, 3 * D), 0.01)),
        ("wo", nrm(ks[7], (N_LAYERS, D, D))),
        ("bo", nrm(ks[8], (N_LAYERS, 1, D), 0.01)),
        ("ln2_g", 1.0 + nrm(ks[9], (N_LAYERS, 1, D), 0.01)),
        ("ln2_b", nrm(ks[9], (N_LAYERS, 1, D), 0.01)),
        ("w1", nrm(ks[10], (N_LAYERS, D, MLP))),
        ("b1", nrm(ks[11], (N_LAYERS, 1, MLP), 0.01)),
        ("w2", nrm(ks[12], (N_LAYERS, MLP, D))),
        ("b2", nrm(ks[13], (N_LAYERS, 1, D), 0.01)),
        ("lnpost_g", 1.0 + nrm(ks[14], (1, D), 0.01)),
        ("lnpost_b", nrm(ks[14], (1, D), 0.01)),
        ("proj", nrm(ks[15], (D, E))),
    ]
    return params


# ------------------------------- wrapper ------------------------------------
def _const_map(i, nd):
    return (0,) * nd


def _num_tensorcores_per_chip():
    # v7x exposes 2 TensorCores per chip; v5e/v6e have 1.  Splitting the
    # image batch into 2 "parallel" grid steps only pays off with 2 TCs.
    try:
        kind = jax.devices()[0].device_kind.lower()
    except Exception:
        return 1
    return 2 if ("v7" in kind or "7x" in kind) else 1


def extracter_forward(images, params):
    """images: (B, S, C, H, W) float32 -> (B, S, E) float32."""
    pd = dict(params)
    b, s, c, h, w = images.shape
    m = b * s

    groups = _num_tensorcores_per_chip()
    if m % groups != 0:
        groups = 1
    g = m // groups                 # images per grid step
    gt = g * T_PAD                  # padded tokens per grid step

    # two permute(0,2,1,3,4) calls cancel -> identity; flatten (B, S)
    x = images.reshape(m, c, h, w)
    # patch extraction (layout glue): (M, C, H, W) -> (M, N_PATCH, C*p*p),
    # per-patch (C, ph, pw)-major flattening (matches Conv2d weight layout).
    x = x.reshape(m, c, GRID_HW, PATCH, GRID_HW, PATCH)
    patches = x.transpose(0, 2, 4, 1, 3, 5).reshape(m, N_PATCH, CPP)
    # pad each image's tokens to T_PAD rows: row 0 = cls slot, rows 1..4 =
    # patches, rows 5..7 = zero pad  ->  (M*T_PAD, CPP) padded patch slab
    patches_pad = jnp.pad(patches, ((0, 0), (1, T_PAD - N_TOK), (0, 0)))
    patches_pad = patches_pad.reshape(m * T_PAD, CPP).astype(jnp.bfloat16)

    # cls-token + positional-embedding slab for one group of g images
    tok = jnp.concatenate([pd["cls"] + pd["pos"][0:1], pd["pos"][1:]], axis=0)
    tok = jnp.pad(tok, ((0, T_PAD - N_TOK), (0, 0)))              # (T_PAD, D)
    clspos = jnp.tile(tok, (g, 1))                                # (gt, D)

    # host-precomputed block-diagonal + key-padding mask and cls selector
    row = jnp.arange(gt)[:, None]
    col = jnp.arange(gt)[None, :]
    valid = (row // T_PAD == col // T_PAD) & (col % T_PAD < N_TOK)
    mask = jnp.where(valid, 0.0, -1e9).astype(jnp.float32)        # (gt, gt)
    sel = (jnp.arange(gt)[None, :] ==
           (jnp.arange(g) * T_PAD)[:, None]).astype(jnp.float32)  # (g, gt)

    # fused attention weight slab: [wqkv (Q pre-scaled) | wo] -> (L, D, 128)
    scale = HEAD_DIM ** -0.5
    wqkv = jnp.concatenate(
        [pd["wqkv"][:, :, :D] * scale, pd["wqkv"][:, :, D:]], axis=-1)
    attn_w = jnp.concatenate([wqkv, pd["wo"]], axis=-1)           # (L, D, 4D)

    # exact bias folds: drop K bias, fold V bias into the output-proj bias
    bqkv = pd["bqkv"]
    qkv_bias = jnp.concatenate(
        [bqkv[:, :, :D] * scale,
         jnp.zeros_like(bqkv[:, :, D:2 * D]),
         jnp.zeros_like(bqkv[:, :, 2 * D:])], axis=-1)            # (L, 1, 3D)
    bo_fold = pd["bo"] + jnp.einsum('lrd,lde->lre',
                                    bqkv[:, :, 2 * D:], pd["wo"])  # (L, 1, D)

    # pack every LN gamma/beta and bias row into one lane-dense (24,128) slab
    def pad128(v):
        return jnp.pad(v, ((0, 0), (0, 128 - v.shape[-1])))

    rows = [pad128(pd["lnpre_g"]), pad128(pd["lnpre_b"]),
            pad128(pd["lnpost_g"]), pad128(pd["lnpost_b"])]
    for l in range(N_LAYERS):
        rows += [pad128(pd["ln1_g"][l]), pad128(pd["ln1_b"][l]),
                 pad128(pd["ln2_g"][l]), pad128(pd["ln2_b"][l]),
                 pad128(qkv_bias[l]), pad128(bo_fold[l]),
                 pad128(pd["b1"][l]), pad128(pd["b2"][l])]
    small = jnp.concatenate(rows, axis=0)
    small = jnp.pad(small, ((0, (-small.shape[0]) % 8), (0, 0)))  # (24, 128)

    w_patch = pd["w_patch"].astype(jnp.bfloat16)                  # bf16 MXU op
    proj_pad = jnp.pad(pd["proj"], ((0, 0), (0, OUT_PAD - E)))    # (D, 128)

    weight_arrays = [clspos, mask, sel, w_patch, attn_w,
                     pd["w1"], pd["w2"], small, proj_pad]

    in_specs = [pl.BlockSpec((gt, CPP), lambda i: (i, 0))]
    for arr in weight_arrays:
        in_specs.append(
            pl.BlockSpec(arr.shape, functools.partial(_const_map, nd=arr.ndim)))

    # TODO(synk): at real ViT-B/32 dims the weights (~175-350 MB) no longer
    # fit VMEM; add a per-layer grid axis ("arbitrary") with per-layer weight
    # BlockSpecs so weights stream with double-buffering.
    out = pl.pallas_call(
        vit_encode_kernel,
        out_shape=jax.ShapeDtypeStruct((groups, g, OUT_PAD), jnp.float32),
        grid=(groups,),
        in_specs=in_specs,
        out_specs=pl.BlockSpec((1, g, OUT_PAD), lambda i: (i, 0, 0)),
        compiler_params=pltpu.CompilerParams(
            dimension_semantics=("parallel",)),
    )(patches_pad, *weight_arrays)

    # (groups, g, 128) -> (M, 128) -> slice E lanes -> (B, S, E)
    return out.reshape(m, OUT_PAD)[:, :E].reshape(b, s, E)


# -------------------------- pure-JAX reference -------------------------------
def reference_forward(images, params):
    pd = dict(params)
    b, s, c, h, w = images.shape
    m = b * s
    x = images.reshape(m, c, h, w)
    x = x.reshape(m, c, GRID_HW, PATCH, GRID_HW, PATCH)
    patches = x.transpose(0, 2, 4, 1, 3, 5).reshape(m, N_PATCH, CPP)

    def ln(x, g, b, eps=1e-5):
        mu = jnp.mean(x, -1, keepdims=True)
        var = jnp.mean((x - mu) ** 2, -1, keepdims=True)
        return (x - mu) * jax.lax.rsqrt(var + eps) * g + b

    x = patches @ pd["w_patch"]
    cls = jnp.broadcast_to(pd["cls"], (m, 1, D))
    x = jnp.concatenate([cls, x], axis=1) + pd["pos"]
    x = ln(x, pd["lnpre_g"], pd["lnpre_b"])
    for l in range(N_LAYERS):
        hdd = ln(x, pd["ln1_g"][l], pd["ln1_b"][l])
        qkv = hdd @ pd["wqkv"][l] + pd["bqkv"][l]
        q, k, v = qkv[..., :D], qkv[..., D:2 * D], qkv[..., 2 * D:]

        def sh(t):
            return t.reshape(m, N_TOK, N_HEADS, HEAD_DIM).transpose(0, 2, 1, 3)
        qh, kh, vh = sh(q) * (HEAD_DIM ** -0.5), sh(k), sh(v)
        att = jax.nn.softmax(jnp.einsum('bhqd,bhkd->bhqk', qh, kh), axis=-1)
        o = jnp.einsum('bhqk,bhkd->bhqd', att, vh)
        o = o.transpose(0, 2, 1, 3).reshape(m, N_TOK, D)
        x = x + o @ pd["wo"][l] + pd["bo"][l]
        hdd = ln(x, pd["ln2_g"][l], pd["ln2_b"][l])
        hdd = hdd @ pd["w1"][l] + pd["b1"][l]
        hdd = hdd * jax.nn.sigmoid(1.702 * hdd)
        x = x + hdd @ pd["w2"][l] + pd["b2"][l]
    cls_tok = ln(x[:, 0, :], pd["lnpost_g"], pd["lnpost_b"])
    return (cls_tok @ pd["proj"]).reshape(b, s, E)


# --------------------------------- main --------------------------------------
if __name__ == "__main__":
    key = jax.random.PRNGKey(0)
    k_img, k_par = jax.random.split(key)
    images = jax.random.normal(k_img, (B, S, C, H, W), dtype=jnp.float32)
    params = make_params(k_par)

    out = extracter_forward(images, params)
    out = jax.block_until_ready(out)
    assert out.shape == (B, S, E), out.shape

    ref = reference_forward(images, params)
    max_err = float(jnp.max(jnp.abs(out - ref)))
    # tolerance covers the bf16 patch-embed operands (K=768 contraction) and
    # the EUP approx-reciprocal softmax path; bias folds are exact.
    assert jnp.allclose(out, ref, atol=1e-2, rtol=1e-2), max_err

    print("KERNEL_OK")
</pallas_src>

<mosaic_0001>
module attributes {stable_mosaic.version = 11 : i64} {
  func.func @vit_encode_kernel(%arg0: i32, %arg1: memref<64x768xbf16, #tpu.memory_space<vmem>>, %arg2: memref<64x32xf32, #tpu.memory_space<vmem>>, %arg3: memref<64x64xf32, #tpu.memory_space<vmem>>, %arg4: memref<8x64xf32, #tpu.memory_space<vmem>>, %arg5: memref<768x32xbf16, #tpu.memory_space<vmem>>, %arg6: memref<2x32x128xf32, #tpu.memory_space<vmem>>, %arg7: memref<2x32x128xf32, #tpu.memory_space<vmem>>, %arg8: memref<2x128x32xf32, #tpu.memory_space<vmem>>, %arg9: memref<24x128xf32, #tpu.memory_space<vmem>>, %arg10: memref<32x128xf32, #tpu.memory_space<vmem>>, %arg11: memref<1x8x128xf32, #tpu.memory_space<vmem>>) attributes {dimension_semantics = [#tpu.dimension_semantics<parallel>], iteration_bounds = array<i64: 1>, scalar_prefetch = 0 : i64, scratch_operands = 0 : i64, tpu.core_type = #tpu.core_type<tc>, window_params = [{transform_indices = @transform_0, window_bounds = array<i64: 64, 768>}, {pipeline_mode = #tpu.pipeline_mode<synchronous>, transform_indices = @transform_1, window_bounds = array<i64: 64, 32>}, {pipeline_mode = #tpu.pipeline_mode<synchronous>, transform_indices = @transform_2, window_bounds = array<i64: 64, 64>}, {pipeline_mode = #tpu.pipeline_mode<synchronous>, transform_indices = @transform_3, window_bounds = array<i64: 8, 64>}, {pipeline_mode = #tpu.pipeline_mode<synchronous>, transform_indices = @transform_4, window_bounds = array<i64: 768, 32>}, {pipeline_mode = #tpu.pipeline_mode<synchronous>, transform_indices = @transform_5, window_bounds = array<i64: 2, 32, 128>}, {pipeline_mode = #tpu.pipeline_mode<synchronous>, transform_indices = @transform_6, window_bounds = array<i64: 2, 32, 128>}, {pipeline_mode = #tpu.pipeline_mode<synchronous>, transform_indices = @transform_7, window_bounds = array<i64: 2, 128, 32>}, {pipeline_mode = #tpu.pipeline_mode<synchronous>, transform_indices = @transform_8, window_bounds = array<i64: 24, 128>}, {pipeline_mode = #tpu.pipeline_mode<synchronous>, transform_indices = @transform_9, window_bounds = array<i64: 32, 128>}, {transform_indices = @transform_10, window_bounds = array<i64: 1, 8, 128>}]} {
    %c0 = arith.constant 0 : index
    %c0_0 = arith.constant 0 : index
    %0 = vector.load %arg1[%c0, %c0_0] : memref<64x768xbf16, #tpu.memory_space<vmem>>, vector<64x768xbf16>
    %c0_1 = arith.constant 0 : index
    %c0_2 = arith.constant 0 : index
    %1 = vector.load %arg5[%c0_1, %c0_2] : memref<768x32xbf16, #tpu.memory_space<vmem>>, vector<768x32xbf16>
    %cst = arith.constant dense<0.000000e+00> : vector<64x32xf32>
    %2 = tpu.matmul %0, %1, %cst {dimension_numbers = #tpu.dot_dimension_numbers<[1], [0], [0], [1], [0, 0, 1, 1], [], []>} : vector<64x768xbf16>, vector<768x32xbf16>, vector<64x32xf32> -> vector<64x32xf32>
    %c0_3 = arith.constant 0 : index
    %c0_4 = arith.constant 0 : index
    %3 = vector.load %arg2[%c0_3, %c0_4] : memref<64x32xf32, #tpu.memory_space<vmem>>, vector<64x32xf32>
    %4 = arith.addf %2, %3 : vector<64x32xf32>
    %c0_5 = arith.constant 0 : index
    %c0_6 = arith.constant 0 : index
    %5 = vector.load %arg9[%c0_5, %c0_6] : memref<24x128xf32, #tpu.memory_space<vmem>>, vector<1x32xf32>
    %c1 = arith.constant 1 : index
    %c0_7 = arith.constant 0 : index
    %6 = vector.load %arg9[%c1, %c0_7] : memref<24x128xf32, #tpu.memory_space<vmem>>, vector<1x32xf32>
    %cst_8 = arith.constant dense<0.000000e+00> : vector<64xf32>
    %7 = vector.multi_reduction <add>, %4, %cst_8 [1] : vector<64x32xf32> to vector<64xf32>
    %8 = vector.shape_cast %7 : vector<64xf32> to vector<64x1xf32>
    %cst_9 = arith.constant 3.200000e+01 : f32
    %9 = vector.broadcast %cst_9 : f32 to vector<64x1xf32>
    %10 = arith.divf %8, %9 : vector<64x1xf32>
    %11 = arith.mulf %4, %4 : vector<64x32xf32>
    %cst_10 = arith.constant dense<0.000000e+00> : vector<64xf32>
    %12 = vector.multi_reduction <add>, %11, %cst_10 [1] : vector<64x32xf32> to vector<64xf32>
    %13 = vector.shape_cast %12 : vector<64xf32> to vector<64x1xf32>
    %cst_11 = arith.constant 3.200000e+01 : f32
    %14 = vector.broadcast %cst_11 : f32 to vector<64x1xf32>
    %15 = arith.divf %13, %14 : vector<64x1xf32>
    %16 = arith.mulf %10, %10 : vector<64x1xf32>
    %17 = arith.subf %15, %16 : vector<64x1xf32>
    %18 = vector.broadcast %10 : vector<64x1xf32> to vector<64x32xf32>
    %19 = arith.subf %4, %18 : vector<64x32xf32>
    %cst_12 = arith.constant 9.99999974E-6 : f32
    %20 = vector.broadcast %cst_12 : f32 to vector<64x1xf32>
    %21 = arith.addf %17, %20 : vector<64x1xf32>
    %22 = math.rsqrt %21 : vector<64x1xf32>
    %23 = vector.broadcast %22 : vector<64x1xf32> to vector<64x32xf32>
    %24 = arith.mulf %19, %23 : vector<64x32xf32>
    %25 = vector.broadcast %5 : vector<1x32xf32> to vector<64x32xf32>
    %26 = arith.mulf %24, %25 : vector<64x32xf32>
    %27 = vector.broadcast %6 : vector<1x32xf32> to vector<64x32xf32>
    %28 = arith.addf %26, %27 : vector<64x32xf32>
    %c0_13 = arith.constant 0 : index
    %c0_14 = arith.constant 0 : index
    %29 = vector.load %arg3[%c0_13, %c0_14] : memref<64x64xf32, #tpu.memory_space<vmem>>, vector<64x64xf32>
    %c4 = arith.constant 4 : index
    %c0_15 = arith.constant 0 : index
    %30 = vector.load %arg9[%c4, %c0_15] : memref<24x128xf32, #tpu.memory_space<vmem>>, vector<1x32xf32>
    %c5 = arith.constant 5 : index
    %c0_16 = arith.constant 0 : index
    %31 = vector.load %arg9[%c5, %c0_16] : memref<24x128xf32, #tpu.memory_space<vmem>>, vector<1x32xf32>
    %cst_17 = arith.constant dense<0.000000e+00> : vector<64xf32>
    %32 = vector.multi_reduction <add>, %28, %cst_17 [1] : vector<64x32xf32> to vector<64xf32>
    %33 = vector.shape_cast %32 : vector<64xf32> to vector<64x1xf32>
    %cst_18 = arith.constant 3.200000e+01 : f32
    %34 = vector.broadcast %cst_18 : f32 to vector<64x1xf32>
    %35 = arith.divf %33, %34 : vector<64x1xf32>
    %36 = arith.mulf %28, %28 : vector<64x32xf32>
    %cst_19 = arith.constant dense<0.000000e+00> : vector<64xf32>
    %37 = vector.multi_reduction <add>, %36, %cst_19 [1] : vector<64x32xf32> to vector<64xf32>
    %38 = vector.shape_cast %37 : vector<64xf32> to vector<64x1xf32>
    %cst_20 = arith.constant 3.200000e+01 : f32
    %39 = vector.broadcast %cst_20 : f32 to vector<64x1xf32>
    %40 = arith.divf %38, %39 : vector<64x1xf32>
    %41 = arith.mulf %35, %35 : vector<64x1xf32>
    %42 = arith.subf %40, %41 : vector<64x1xf32>
    %43 = vector.broadcast %35 : vector<64x1xf32> to vector<64x32xf32>
    %44 = arith.subf %28, %43 : vector<64x32xf32>
    %cst_21 = arith.constant 9.99999974E-6 : f32
    %45 = vector.broadcast %cst_21 : f32 to vector<64x1xf32>
    %46 = arith.addf %42, %45 : vector<64x1xf32>
    %47 = math.rsqrt %46 : vector<64x1xf32>
    %48 = vector.broadcast %47 : vector<64x1xf32> to vector<64x32xf32>
    %49 = arith.mulf %44, %48 : vector<64x32xf32>
    %50 = vector.broadcast %30 : vector<1x32xf32> to vector<64x32xf32>
    %51 = arith.mulf %49, %50 : vector<64x32xf32>
    %52 = vector.broadcast %31 : vector<1x32xf32> to vector<64x32xf32>
    %53 = arith.addf %51, %52 : vector<64x32xf32>
    %c0_22 = arith.constant 0 : index
    %c0_23 = arith.constant 0 : index
    %c0_24 = arith.constant 0 : index
    %54 = vector.load %arg6[%c0_22, %c0_23, %c0_24] : memref<2x32x128xf32, #tpu.memory_space<vmem>>, vector<1x32x96xf32>
    %55 = vector.shape_cast %54 : vector<1x32x96xf32> to vector<32x96xf32>
    %cst_25 = arith.constant dense<0.000000e+00> : vector<64x96xf32>
    %56 = tpu.matmul %53, %55, %cst_25 {dimension_numbers = #tpu.dot_dimension_numbers<[1], [0], [0], [1], [0, 0, 1, 1], [], []>} : vector<64x32xf32>, vector<32x96xf32>, vector<64x96xf32> -> vector<64x96xf32>
    %c8 = arith.constant 8 : index
    %c0_26 = arith.constant 0 : index
    %57 = vector.load %arg9[%c8, %c0_26] : memref<24x128xf32, #tpu.memory_space<vmem>>, vector<1x96xf32>
    %58 = vector.broadcast %57 : vector<1x96xf32> to vector<64x96xf32>
    %59 = arith.addf %56, %58 : vector<64x96xf32>
    %60 = vector.extract_strided_slice %59 {offsets = [0, 0], sizes = [64, 8], strides = [1, 1]} : vector<64x96xf32> to vector<64x8xf32>
    %61 = vector.extract_strided_slice %59 {offsets = [0, 32], sizes = [64, 8], strides = [1, 1]} : vector<64x96xf32> to vector<64x8xf32>
    %62 = vector.extract_strided_slice %59 {offsets = [0, 64], sizes = [64, 8], strides = [1, 1]} : vector<64x96xf32> to vector<64x8xf32>
    %cst_27 = arith.constant dense<0.000000e+00> : vector<64x64xf32>
    %63 = tpu.matmul %60, %61, %cst_27 {dimension_numbers = #tpu.dot_dimension_numbers<[1], [1], [0], [0], [0, 0, 1, 0], [], []>} : vector<64x8xf32>, vector<64x8xf32>, vector<64x64xf32> -> vector<64x64xf32>
    %64 = arith.addf %63, %29 : vector<64x64xf32>
    %cst_28 = arith.constant dense<0xFF800000> : vector<64xf32>
    %65 = vector.multi_reduction <maximumf>, %64, %cst_28 [1] : vector<64x64xf32> to vector<64xf32>
    %66 = vector.shape_cast %65 : vector<64xf32> to vector<64x1xf32>
    %67 = vector.broadcast %66 : vector<64x1xf32> to vector<64x64xf32>
    %68 = arith.subf %64, %67 : vector<64x64xf32>
    %69 = math.exp %68 : vector<64x64xf32>
    %cst_29 = arith.constant dense<0.000000e+00> : vector<64xf32>
    %70 = vector.multi_reduction <add>, %69, %cst_29 [1] : vector<64x64xf32> to vector<64xf32>
    %71 = vector.shape_cast %70 : vector<64xf32> to vector<64x1xf32>
    %72 = tpu.reciprocal %71 {approx = true} : vector<64x1xf32> -> vector<64x1xf32>
    %73 = vector.broadcast %72 : vector<64x1xf32> to vector<64x64xf32>
    %74 = arith.mulf %69, %73 : vector<64x64xf32>
    %cst_30 = arith.constant dense<0.000000e+00> : vector<64x8xf32>
    %75 = tpu.matmul %74, %62, %cst_30 {dimension_numbers = #tpu.dot_dimension_numbers<[1], [0], [0], [1], [0, 0, 1, 1], [], []>} : vector<64x64xf32>, vector<64x8xf32>, vector<64x8xf32> -> vector<64x8xf32>
    %76 = vector.extract_strided_slice %59 {offsets = [0, 8], sizes = [64, 8], strides = [1, 1]} : vector<64x96xf32> to vector<64x8xf32>
    %77 = vector.extract_strided_slice %59 {offsets = [0, 40], sizes = [64, 8], strides = [1, 1]} : vector<64x96xf32> to vector<64x8xf32>
    %78 = vector.extract_strided_slice %59 {offsets = [0, 72], sizes = [64, 8], strides = [1, 1]} : vector<64x96xf32> to vector<64x8xf32>
    %cst_31 = arith.constant dense<0.000000e+00> : vector<64x64xf32>
    %79 = tpu.matmul %76, %77, %cst_31 {dimension_numbers = #tpu.dot_dimension_numbers<[1], [1], [0], [0], [0, 0, 1, 0], [], []>} : vector<64x8xf32>, vector<64x8xf32>, vector<64x64xf32> -> vector<64x64xf32>
    %80 = arith.addf %79, %29 : vector<64x64xf32>
    %cst_32 = arith.constant dense<0xFF800000> : vector<64xf32>
    %81 = vector.multi_reduction <maximumf>, %80, %cst_32 [1] : vector<64x64xf32> to vector<64xf32>
    %82 = vector.shape_cast %81 : vector<64xf32> to vector<64x1xf32>
    %83 = vector.broadcast %82 : vector<64x1xf32> to vector<64x64xf32>
    %84 = arith.subf %80, %83 : vector<64x64xf32>
    %85 = math.exp %84 : vector<64x64xf32>
    %cst_33 = arith.constant dense<0.000000e+00> : vector<64xf32>
    %86 = vector.multi_reduction <add>, %85, %cst_33 [1] : vector<64x64xf32> to vector<64xf32>
    %87 = vector.shape_cast %86 : vector<64xf32> to vector<64x1xf32>
    %88 = tpu.reciprocal %87 {approx = true} : vector<64x1xf32> -> vector<64x1xf32>
    %89 = vector.broadcast %88 : vector<64x1xf32> to vector<64x64xf32>
    %90 = arith.mulf %85, %89 : vector<64x64xf32>
    %cst_34 = arith.constant dense<0.000000e+00> : vector<64x8xf32>
    %91 = tpu.matmul %90, %78, %cst_34 {dimension_numbers = #tpu.dot_dimension_numbers<[1], [0], [0], [1], [0, 0, 1, 1], [], []>} : vector<64x64xf32>, vector<64x8xf32>, vector<64x8xf32> -> vector<64x8xf32>
    %92 = vector.extract_strided_slice %59 {offsets = [0, 16], sizes = [64, 8], strides = [1, 1]} : vector<64x96xf32> to vector<64x8xf32>
    %93 = vector.extract_strided_slice %59 {offsets = [0, 48], sizes = [64, 8], strides = [1, 1]} : vector<64x96xf32> to vector<64x8xf32>
    %94 = vector.extract_strided_slice %59 {offsets = [0, 80], sizes = [64, 8], strides = [1, 1]} : vector<64x96xf32> to vector<64x8xf32>
    %cst_35 = arith.constant dense<0.000000e+00> : vector<64x64xf32>
    %95 = tpu.matmul %92, %93, %cst_35 {dimension_numbers = #tpu.dot_dimension_numbers<[1], [1], [0], [0], [0, 0, 1, 0], [], []>} : vector<64x8xf32>, vector<64x8xf32>, vector<64x64xf32> -> vector<64x64xf32>
    %96 = arith.addf %95, %29 : vector<64x64xf32>
    %cst_36 = arith.constant dense<0xFF800000> : vector<64xf32>
    %97 = vector.multi_reduction <maximumf>, %96, %cst_36 [1] : vector<64x64xf32> to vector<64xf32>
    %98 = vector.shape_cast %97 : vector<64xf32> to vector<64x1xf32>
    %99 = vector.broadcast %98 : vector<64x1xf32> to vector<64x64xf32>
    %100 = arith.subf %96, %99 : vector<64x64xf32>
    %101 = math.exp %100 : vector<64x64xf32>
    %cst_37 = arith.constant dense<0.000000e+00> : vector<64xf32>
    %102 = vector.multi_reduction <add>, %101, %cst_37 [1] : vector<64x64xf32> to vector<64xf32>
    %103 = vector.shape_cast %102 : vector<64xf32> to vector<64x1xf32>
    %104 = tpu.reciprocal %103 {approx = true} : vector<64x1xf32> -> vector<64x1xf32>
    %105 = vector.broadcast %104 : vector<64x1xf32> to vector<64x64xf32>
    %106 = arith.mulf %101, %105 : vector<64x64xf32>
    %cst_38 = arith.constant dense<0.000000e+00> : vector<64x8xf32>
    %107 = tpu.matmul %106, %94, %cst_38 {dimension_numbers = #tpu.dot_dimension_numbers<[1], [0], [0], [1], [0, 0, 1, 1], [], []>} : vector<64x64xf32>, vector<64x8xf32>, vector<64x8xf32> -> vector<64x8xf32>
    %108 = vector.extract_strided_slice %59 {offsets = [0, 24], sizes = [64, 8], strides = [1, 1]} : vector<64x96xf32> to vector<64x8xf32>
    %109 = vector.extract_strided_slice %59 {offsets = [0, 56], sizes = [64, 8], strides = [1, 1]} : vector<64x96xf32> to vector<64x8xf32>
    %110 = vector.extract_strided_slice %59 {offsets = [0, 88], sizes = [64, 8], strides = [1, 1]} : vector<64x96xf32> to vector<64x8xf32>
    %cst_39 = arith.constant dense<0.000000e+00> : vector<64x64xf32>
    %111 = tpu.matmul %108, %109, %cst_39 {dimension_numbers = #tpu.dot_dimension_numbers<[1], [1], [0], [0], [0, 0, 1, 0], [], []>} : vector<64x8xf32>, vector<64x8xf32>, vector<64x64xf32> -> vector<64x64xf32>
    %112 = arith.addf %111, %29 : vector<64x64xf32>
    %cst_40 = arith.constant dense<0xFF800000> : vector<64xf32>
    %113 = vector.multi_reduction <maximumf>, %112, %cst_40 [1] : vector<64x64xf32> to vector<64xf32>
    %114 = vector.shape_cast %113 : vector<64xf32> to vector<64x1xf32>
    %115 = vector.broadcast %114 : vector<64x1xf32> to vector<64x64xf32>
    %116 = arith.subf %112, %115 : vector<64x64xf32>
    %117 = math.exp %116 : vector<64x64xf32>
    %cst_41 = arith.constant dense<0.000000e+00> : vector<64xf32>
    %118 = vector.multi_reduction <add>, %117, %cst_41 [1] : vector<64x64xf32> to vector<64xf32>
    %119 = vector.shape_cast %118 : vector<64xf32> to vector<64x1xf32>
    %120 = tpu.reciprocal %119 {approx = true} : vector<64x1xf32> -> vector<64x1xf32>
    %121 = vector.broadcast %120 : vector<64x1xf32> to vector<64x64xf32>
    %122 = arith.mulf %117, %121 : vector<64x64xf32>
    %cst_42 = arith.constant dense<0.000000e+00> : vector<64x8xf32>
    %123 = tpu.matmul %122, %110, %cst_42 {dimension_numbers = #tpu.dot_dimension_numbers<[1], [0], [0], [1], [0, 0, 1, 1], [], []>} : vector<64x64xf32>, vector<64x8xf32>, vector<64x8xf32> -> vector<64x8xf32>
    %124 = tpu.concatenate %75, %91, %107, %123 in 1 : vector<64x8xf32>, vector<64x8xf32>, vector<64x8xf32>, vector<64x8xf32> -> vector<64x32xf32>
    %c0_43 = arith.constant 0 : index
    %c0_44 = arith.constant 0 : index
    %c96 = arith.constant 96 : index
    %125 = vector.load %arg6[%c0_43, %c0_44, %c96] : memref<2x32x128xf32, #tpu.memory_space<vmem>>, vector<1x32x32xf32>
    %126 = vector.shape_cast %125 : vector<1x32x32xf32> to vector<32x32xf32>
    %cst_45 = arith.constant dense<0.000000e+00> : vector<64x32xf32>
    %127 = tpu.matmul %124, %126, %cst_45 {dimension_numbers = #tpu.dot_dimension_numbers<[1], [0], [0], [1], [0, 0, 1, 1], [], []>} : vector<64x32xf32>, vector<32x32xf32>, vector<64x32xf32> -> vector<64x32xf32>
    %128 = arith.addf %28, %127 : vector<64x32xf32>
    %c9 = arith.constant 9 : index
    %c0_46 = arith.constant 0 : index
    %129 = vector.load %arg9[%c9, %c0_46] : memref<24x128xf32, #tpu.memory_space<vmem>>, vector<1x32xf32>
    %130 = vector.broadcast %129 : vector<1x32xf32> to vector<64x32xf32>
    %131 = arith.addf %128, %130 : vector<64x32xf32>
    %c6 = arith.constant 6 : index
    %c0_47 = arith.constant 0 : index
    %132 = vector.load %arg9[%c6, %c0_47] : memref<24x128xf32, #tpu.memory_space<vmem>>, vector<1x32xf32>
    %c7 = arith.constant 7 : index
    %c0_48 = arith.constant 0 : index
    %133 = vector.load %arg9[%c7, %c0_48] : memref<24x128xf32, #tpu.memory_space<vmem>>, vector<1x32xf32>
    %cst_49 = arith.constant dense<0.000000e+00> : vector<64xf32>
    %134 = vector.multi_reduction <add>, %131, %cst_49 [1] : vector<64x32xf32> to vector<64xf32>
    %135 = vector.shape_cast %134 : vector<64xf32> to vector<64x1xf32>
    %cst_50 = arith.constant 3.200000e+01 : f32
    %136 = vector.broadcast %cst_50 : f32 to vector<64x1xf32>
    %137 = arith.divf %135, %136 : vector<64x1xf32>
    %138 = arith.mulf %131, %131 : vector<64x32xf32>
    %cst_51 = arith.constant dense<0.000000e+00> : vector<64xf32>
    %139 = vector.multi_reduction <add>, %138, %cst_51 [1] : vector<64x32xf32> to vector<64xf32>
    %140 = vector.shape_cast %139 : vector<64xf32> to vector<64x1xf32>
    %cst_52 = arith.constant 3.200000e+01 : f32
    %141 = vector.broadcast %cst_52 : f32 to vector<64x1xf32>
    %142 = arith.divf %140, %141 : vector<64x1xf32>
    %143 = arith.mulf %137, %137 : vector<64x1xf32>
    %144 = arith.subf %142, %143 : vector<64x1xf32>
    %145 = vector.broadcast %137 : vector<64x1xf32> to vector<64x32xf32>
    %146 = arith.subf %131, %145 : vector<64x32xf32>
    %cst_53 = arith.constant 9.99999974E-6 : f32
    %147 = vector.broadcast %cst_53 : f32 to vector<64x1xf32>
    %148 = arith.addf %144, %147 : vector<64x1xf32>
    %149 = math.rsqrt %148 : vector<64x1xf32>
    %150 = vector.broadcast %149 : vector<64x1xf32> to vector<64x32xf32>
    %151 = arith.mulf %146, %150 : vector<64x32xf32>
    %152 = vector.broadcast %132 : vector<1x32xf32> to vector<64x32xf32>
    %153 = arith.mulf %151, %152 : vector<64x32xf32>
    %154 = vector.broadcast %133 : vector<1x32xf32> to vector<64x32xf32>
    %155 = arith.addf %153, %154 : vector<64x32xf32>
    %c0_54 = arith.constant 0 : index
    %c0_55 = arith.constant 0 : index
    %c0_56 = arith.constant 0 : index
    %156 = vector.load %arg7[%c0_54, %c0_55, %c0_56] : memref<2x32x128xf32, #tpu.memory_space<vmem>>, vector<1x32x128xf32>
    %157 = vector.shape_cast %156 : vector<1x32x128xf32> to vector<32x128xf32>
    %cst_57 = arith.constant dense<0.000000e+00> : vector<64x128xf32>
    %158 = tpu.matmul %155, %157, %cst_57 {dimension_numbers = #tpu.dot_dimension_numbers<[1], [0], [0], [1], [0, 0, 1, 1], [], []>} : vector<64x32xf32>, vector<32x128xf32>, vector<64x128xf32> -> vector<64x128xf32>
    %c10 = arith.constant 10 : index
    %c0_58 = arith.constant 0 : index
    %159 = vector.load %arg9[%c10, %c0_58] : memref<24x128xf32, #tpu.memory_space<vmem>>, vector<1x128xf32>
    %160 = vector.broadcast %159 : vector<1x128xf32> to vector<64x128xf32>
    %161 = arith.addf %158, %160 : vector<64x128xf32>
    %cst_59 = arith.constant 1.702000e+00 : f32
    %162 = vector.broadcast %cst_59 : f32 to vector<64x128xf32>
    %163 = arith.mulf %162, %161 : vector<64x128xf32>
    %164 = arith.negf %163 : vector<64x128xf32>
    %165 = math.exp %164 : vector<64x128xf32>
    %cst_60 = arith.constant 1.000000e+00 : f32
    %166 = vector.broadcast %cst_60 : f32 to vector<64x128xf32>
    %167 = arith.addf %166, %165 : vector<64x128xf32>
    %168 = arith.divf %166, %167 : vector<64x128xf32>
    %169 = arith.mulf %161, %168 : vector<64x128xf32>
    %c0_61 = arith.constant 0 : index
    %c0_62 = arith.constant 0 : index
    %c0_63 = arith.constant 0 : index
    %170 = vector.load %arg8[%c0_61, %c0_62, %c0_63] : memref<2x128x32xf32, #tpu.memory_space<vmem>>, vector<1x128x32xf32>
    %171 = vector.shape_cast %170 : vector<1x128x32xf32> to vector<128x32xf32>
    %cst_64 = arith.constant dense<0.000000e+00> : vector<64x32xf32>
    %172 = tpu.matmul %169, %171, %cst_64 {dimension_numbers = #tpu.dot_dimension_numbers<[1], [0], [0], [1], [0, 0, 1, 1], [], []>} : vector<64x128xf32>, vector<128x32xf32>, vector<64x32xf32> -> vector<64x32xf32>
    %173 = arith.addf %131, %172 : vector<64x32xf32>
    %c11 = arith.constant 11 : index
    %c0_65 = arith.constant 0 : index
    %174 = vector.load %arg9[%c11, %c0_65] : memref<24x128xf32, #tpu.memory_space<vmem>>, vector<1x32xf32>
    %175 = vector.broadcast %174 : vector<1x32xf32> to vector<64x32xf32>
    %176 = arith.addf %173, %175 : vector<64x32xf32>
    %c12 = arith.constant 12 : index
    %c0_66 = arith.constant 0 : index
    %177 = vector.load %arg9[%c12, %c0_66] : memref<24x128xf32, #tpu.memory_space<vmem>>, vector<1x32xf32>
    %c13 = arith.constant 13 : index
    %c0_67 = arith.constant 0 : index
    %178 = vector.load %arg9[%c13, %c0_67] : memref<24x128xf32, #tpu.memory_space<vmem>>, vector<1x32xf32>
    %cst_68 = arith.constant dense<0.000000e+00> : vector<64xf32>
    %179 = vector.multi_reduction <add>, %176, %cst_68 [1] : vector<64x32xf32> to vector<64xf32>
    %180 = vector.shape_cast %179 : vector<64xf32> to vector<64x1xf32>
    %cst_69 = arith.constant 3.200000e+01 : f32
    %181 = vector.broadcast %cst_69 : f32 to vector<64x1xf32>
    %182 = arith.divf %180, %181 : vector<64x1xf32>
    %183 = arith.mulf %176, %176 : vector<64x32xf32>
    %cst_70 = arith.constant dense<0.000000e+00> : vector<64xf32>
    %184 = vector.multi_reduction <add>, %183, %cst_70 [1] : vector<64x32xf32> to vector<64xf32>
    %185 = vector.shape_cast %184 : vector<64xf32> to vector<64x1xf32>
    %cst_71 = arith.constant 3.200000e+01 : f32
    %186 = vector.broadcast %cst_71 : f32 to vector<64x1xf32>
    %187 = arith.divf %185, %186 : vector<64x1xf32>
    %188 = arith.mulf %182, %182 : vector<64x1xf32>
    %189 = arith.subf %187, %188 : vector<64x1xf32>
    %190 = vector.broadcast %182 : vector<64x1xf32> to vector<64x32xf32>
    %191 = arith.subf %176, %190 : vector<64x32xf32>
    %cst_72 = arith.constant 9.99999974E-6 : f32
    %192 = vector.broadcast %cst_72 : f32 to vector<64x1xf32>
    %193 = arith.addf %189, %192 : vector<64x1xf32>
    %194 = math.rsqrt %193 : vector<64x1xf32>
    %195 = vector.broadcast %194 : vector<64x1xf32> to vector<64x32xf32>
    %196 = arith.mulf %191, %195 : vector<64x32xf32>
    %197 = vector.broadcast %177 : vector<1x32xf32> to vector<64x32xf32>
    %198 = arith.mulf %196, %197 : vector<64x32xf32>
    %199 = vector.broadcast %178 : vector<1x32xf32> to vector<64x32xf32>
    %200 = arith.addf %198, %199 : vector<64x32xf32>
    %c1_73 = arith.constant 1 : index
    %c0_74 = arith.constant 0 : index
    %c0_75 = arith.constant 0 : index
    %201 = vector.load %arg6[%c1_73, %c0_74, %c0_75] : memref<2x32x128xf32, #tpu.memory_space<vmem>>, vector<1x32x96xf32>
    %202 = vector.shape_cast %201 : vector<1x32x96xf32> to vector<32x96xf32>
    %cst_76 = arith.constant dense<0.000000e+00> : vector<64x96xf32>
    %203 = tpu.matmul %200, %202, %cst_76 {dimension_numbers = #tpu.dot_dimension_numbers<[1], [0], [0], [1], [0, 0, 1, 1], [], []>} : vector<64x32xf32>, vector<32x96xf32>, vector<64x96xf32> -> vector<64x96xf32>
    %c16 = arith.constant 16 : index
    %c0_77 = arith.constant 0 : index
    %204 = vector.load %arg9[%c16, %c0_77] : memref<24x128xf32, #tpu.memory_space<vmem>>, vector<1x96xf32>
    %205 = vector.broadcast %204 : vector<1x96xf32> to vector<64x96xf32>
    %206 = arith.addf %203, %205 : vector<64x96xf32>
    %207 = vector.extract_strided_slice %206 {offsets = [0, 0], sizes = [64, 8], strides = [1, 1]} : vector<64x96xf32> to vector<64x8xf32>
    %208 = vector.extract_strided_slice %206 {offsets = [0, 32], sizes = [64, 8], strides = [1, 1]} : vector<64x96xf32> to vector<64x8xf32>
    %209 = vector.extract_strided_slice %206 {offsets = [0, 64], sizes = [64, 8], strides = [1, 1]} : vector<64x96xf32> to vector<64x8xf32>
    %cst_78 = arith.constant dense<0.000000e+00> : vector<64x64xf32>
    %210 = tpu.matmul %207, %208, %cst_78 {dimension_numbers = #tpu.dot_dimension_numbers<[1], [1], [0], [0], [0, 0, 1, 0], [], []>} : vector<64x8xf32>, vector<64x8xf32>, vector<64x64xf32> -> vector<64x64xf32>
    %211 = arith.addf %210, %29 : vector<64x64xf32>
    %cst_79 = arith.constant dense<0xFF800000> : vector<64xf32>
    %212 = vector.multi_reduction <maximumf>, %211, %cst_79 [1] : vector<64x64xf32> to vector<64xf32>
    %213 = vector.shape_cast %212 : vector<64xf32> to vector<64x1xf32>
    %214 = vector.broadcast %213 : vector<64x1xf32> to vector<64x64xf32>
    %215 = arith.subf %211, %214 : vector<64x64xf32>
    %216 = math.exp %215 : vector<64x64xf32>
    %cst_80 = arith.constant dense<0.000000e+00> : vector<64xf32>
    %217 = vector.multi_reduction <add>, %216, %cst_80 [1] : vector<64x64xf32> to vector<64xf32>
    %218 = vector.shape_cast %217 : vector<64xf32> to vector<64x1xf32>
    %219 = tpu.reciprocal %218 {approx = true} : vector<64x1xf32> -> vector<64x1xf32>
    %220 = vector.broadcast %219 : vector<64x1xf32> to vector<64x64xf32>
    %221 = arith.mulf %216, %220 : vector<64x64xf32>
    %cst_81 = arith.constant dense<0.000000e+00> : vector<64x8xf32>
    %222 = tpu.matmul %221, %209, %cst_81 {dimension_numbers = #tpu.dot_dimension_numbers<[1], [0], [0], [1], [0, 0, 1, 1], [], []>} : vector<64x64xf32>, vector<64x8xf32>, vector<64x8xf32> -> vector<64x8xf32>
    %223 = vector.extract_strided_slice %206 {offsets = [0, 8], sizes = [64, 8], strides = [1, 1]} : vector<64x96xf32> to vector<64x8xf32>
    %224 = vector.extract_strided_slice %206 {offsets = [0, 40], sizes = [64, 8], strides = [1, 1]} : vector<64x96xf32> to vector<64x8xf32>
    %225 = vector.extract_strided_slice %206 {offsets = [0, 72], sizes = [64, 8], strides = [1, 1]} : vector<64x96xf32> to vector<64x8xf32>
    %cst_82 = arith.constant dense<0.000000e+00> : vector<64x64xf32>
    %226 = tpu.matmul %223, %224, %cst_82 {dimension_numbers = #tpu.dot_dimension_numbers<[1], [1], [0], [0], [0, 0, 1, 0], [], []>} : vector<64x8xf32>, vector<64x8xf32>, vector<64x64xf32> -> vector<64x64xf32>
    %227 = arith.addf %226, %29 : vector<64x64xf32>
    %cst_83 = arith.constant dense<0xFF800000> : vector<64xf32>
    %228 = vector.multi_reduction <maximumf>, %227, %cst_83 [1] : vector<64x64xf32> to vector<64xf32>
    %229 = vector.shape_cast %228 : vector<64xf32> to vector<64x1xf32>
    %230 = vector.broadcast %229 : vector<64x1xf32> to vector<64x64xf32>
    %231 = arith.subf %227, %230 : vector<64x64xf32>
    %232 = math.exp %231 : vector<64x64xf32>
    %cst_84 = arith.constant dense<0.000000e+00> : vector<64xf32>
    %233 = vector.multi_reduction <add>, %232, %cst_84 [1] : vector<64x64xf32> to vector<64xf32>
    %234 = vector.shape_cast %233 : vector<64xf32> to vector<64x1xf32>
    %235 = tpu.reciprocal %234 {approx = true} : vector<64x1xf32> -> vector<64x1xf32>
    %236 = vector.broadcast %235 : vector<64x1xf32> to vector<64x64xf32>
    %237 = arith.mulf %232, %236 : vector<64x64xf32>
    %cst_85 = arith.constant dense<0.000000e+00> : vector<64x8xf32>
    %238 = tpu.matmul %237, %225, %cst_85 {dimension_numbers = #tpu.dot_dimension_numbers<[1], [0], [0], [1], [0, 0, 1, 1], [], []>} : vector<64x64xf32>, vector<64x8xf32>, vector<64x8xf32> -> vector<64x8xf32>
    %239 = vector.extract_strided_slice %206 {offsets = [0, 16], sizes = [64, 8], strides = [1, 1]} : vector<64x96xf32> to vector<64x8xf32>
    %240 = vector.extract_strided_slice %206 {offsets = [0, 48], sizes = [64, 8], strides = [1, 1]} : vector<64x96xf32> to vector<64x8xf32>
    %241 = vector.extract_strided_slice %206 {offsets = [0, 80], sizes = [64, 8], strides = [1, 1]} : vector<64x96xf32> to vector<64x8xf32>
    %cst_86 = arith.constant dense<0.000000e+00> : vector<64x64xf32>
    %242 = tpu.matmul %239, %240, %cst_86 {dimension_numbers = #tpu.dot_dimension_numbers<[1], [1], [0], [0], [0, 0, 1, 0], [], []>} : vector<64x8xf32>, vector<64x8xf32>, vector<64x64xf32> -> vector<64x64xf32>
    %243 = arith.addf %242, %29 : vector<64x64xf32>
    %cst_87 = arith.constant dense<0xFF800000> : vector<64xf32>
    %244 = vector.multi_reduction <maximumf>, %243, %cst_87 [1] : vector<64x64xf32> to vector<64xf32>
    %245 = vector.shape_cast %244 : vector<64xf32> to vector<64x1xf32>
    %246 = vector.broadcast %245 : vector<64x1xf32> to vector<64x64xf32>
    %247 = arith.subf %243, %246 : vector<64x64xf32>
    %248 = math.exp %247 : vector<64x64xf32>
    %cst_88 = arith.constant dense<0.000000e+00> : vector<64xf32>
    %249 = vector.multi_reduction <add>, %248, %cst_88 [1] : vector<64x64xf32> to vector<64xf32>
    %250 = vector.shape_cast %249 : vector<64xf32> to vector<64x1xf32>
    %251 = tpu.reciprocal %250 {approx = true} : vector<64x1xf32> -> vector<64x1xf32>
    %252 = vector.broadcast %251 : vector<64x1xf32> to vector<64x64xf32>
    %253 = arith.mulf %248, %252 : vector<64x64xf32>
    %cst_89 = arith.constant dense<0.000000e+00> : vector<64x8xf32>
    %254 = tpu.matmul %253, %241, %cst_89 {dimension_numbers = #tpu.dot_dimension_numbers<[1], [0], [0], [1], [0, 0, 1, 1], [], []>} : vector<64x64xf32>, vector<64x8xf32>, vector<64x8xf32> -> vector<64x8xf32>
    %255 = vector.extract_strided_slice %206 {offsets = [0, 24], sizes = [64, 8], strides = [1, 1]} : vector<64x96xf32> to vector<64x8xf32>
    %256 = vector.extract_strided_slice %206 {offsets = [0, 56], sizes = [64, 8], strides = [1, 1]} : vector<64x96xf32> to vector<64x8xf32>
    %257 = vector.extract_strided_slice %206 {offsets = [0, 88], sizes = [64, 8], strides = [1, 1]} : vector<64x96xf32> to vector<64x8xf32>
    %cst_90 = arith.constant dense<0.000000e+00> : vector<64x64xf32>
    %258 = tpu.matmul %255, %256, %cst_90 {dimension_numbers = #tpu.dot_dimension_numbers<[1], [1], [0], [0], [0, 0, 1, 0], [], []>} : vector<64x8xf32>, vector<64x8xf32>, vector<64x64xf32> -> vector<64x64xf32>
    %259 = arith.addf %258, %29 : vector<64x64xf32>
    %cst_91 = arith.constant dense<0xFF800000> : vector<64xf32>
    %260 = vector.multi_reduction <maximumf>, %259, %cst_91 [1] : vector<64x64xf32> to vector<64xf32>
    %261 = vector.shape_cast %260 : vector<64xf32> to vector<64x1xf32>
    %262 = vector.broadcast %261 : vector<64x1xf32> to vector<64x64xf32>
    %263 = arith.subf %259, %262 : vector<64x64xf32>
    %264 = math.exp %263 : vector<64x64xf32>
    %cst_92 = arith.constant dense<0.000000e+00> : vector<64xf32>
    %265 = vector.multi_reduction <add>, %264, %cst_92 [1] : vector<64x64xf32> to vector<64xf32>
    %266 = vector.shape_cast %265 : vector<64xf32> to vector<64x1xf32>
    %267 = tpu.reciprocal %266 {approx = true} : vector<64x1xf32> -> vector<64x1xf32>
    %268 = vector.broadcast %267 : vector<64x1xf32> to vector<64x64xf32>
    %269 = arith.mulf %264, %268 : vector<64x64xf32>
    %cst_93 = arith.constant dense<0.000000e+00> : vector<64x8xf32>
    %270 = tpu.matmul %269, %257, %cst_93 {dimension_numbers = #tpu.dot_dimension_numbers<[1], [0], [0], [1], [0, 0, 1, 1], [], []>} : vector<64x64xf32>, vector<64x8xf32>, vector<64x8xf32> -> vector<64x8xf32>
    %271 = tpu.concatenate %222, %238, %254, %270 in 1 : vector<64x8xf32>, vector<64x8xf32>, vector<64x8xf32>, vector<64x8xf32> -> vector<64x32xf32>
    %c1_94 = arith.constant 1 : index
    %c0_95 = arith.constant 0 : index
    %c96_96 = arith.constant 96 : index
    %272 = vector.load %arg6[%c1_94, %c0_95, %c96_96] : memref<2x32x128xf32, #tpu.memory_space<vmem>>, vector<1x32x32xf32>
    %273 = vector.shape_cast %272 : vector<1x32x32xf32> to vector<32x32xf32>
    %cst_97 = arith.constant dense<0.000000e+00> : vector<64x32xf32>
    %274 = tpu.matmul %271, %273, %cst_97 {dimension_numbers = #tpu.dot_dimension_numbers<[1], [0], [0], [1], [0, 0, 1, 1], [], []>} : vector<64x32xf32>, vector<32x32xf32>, vector<64x32xf32> -> vector<64x32xf32>
    %275 = arith.addf %176, %274 : vector<64x32xf32>
    %c17 = arith.constant 17 : index
    %c0_98 = arith.constant 0 : index
    %276 = vector.load %arg9[%c17, %c0_98] : memref<24x128xf32, #tpu.memory_space<vmem>>, vector<1x32xf32>
    %277 = vector.broadcast %276 : vector<1x32xf32> to vector<64x32xf32>
    %278 = arith.addf %275, %277 : vector<64x32xf32>
    %c14 = arith.constant 14 : index
    %c0_99 = arith.constant 0 : index
    %279 = vector.load %arg9[%c14, %c0_99] : memref<24x128xf32, #tpu.memory_space<vmem>>, vector<1x32xf32>
    %c15 = arith.constant 15 : index
    %c0_100 = arith.constant 0 : index
    %280 = vector.load %arg9[%c15, %c0_100] : memref<24x128xf32, #tpu.memory_space<vmem>>, vector<1x32xf32>
    %cst_101 = arith.constant dense<0.000000e+00> : vector<64xf32>
    %281 = vector.multi_reduction <add>, %278, %cst_101 [1] : vector<64x32xf32> to vector<64xf32>
    %282 = vector.shape_cast %281 : vector<64xf32> to vector<64x1xf32>
    %cst_102 = arith.constant 3.200000e+01 : f32
    %283 = vector.broadcast %cst_102 : f32 to vector<64x1xf32>
    %284 = arith.divf %282, %283 : vector<64x1xf32>
    %285 = arith.mulf %278, %278 : vector<64x32xf32>
    %cst_103 = arith.constant dense<0.000000e+00> : vector<64xf32>
    %286 = vector.multi_reduction <add>, %285, %cst_103 [1] : vector<64x32xf32> to vector<64xf32>
    %287 = vector.shape_cast %286 : vector<64xf32> to vector<64x1xf32>
    %cst_104 = arith.constant 3.200000e+01 : f32
    %288 = vector.broadcast %cst_104 : f32 to vector<64x1xf32>
    %289 = arith.divf %287, %288 : vector<64x1xf32>
    %290 = arith.mulf %284, %284 : vector<64x1xf32>
    %291 = arith.subf %289, %290 : vector<64x1xf32>
    %292 = vector.broadcast %284 : vector<64x1xf32> to vector<64x32xf32>
    %293 = arith.subf %278, %292 : vector<64x32xf32>
    %cst_105 = arith.constant 9.99999974E-6 : f32
    %294 = vector.broadcast %cst_105 : f32 to vector<64x1xf32>
    %295 = arith.addf %291, %294 : vector<64x1xf32>
    %296 = math.rsqrt %295 : vector<64x1xf32>
    %297 = vector.broadcast %296 : vector<64x1xf32> to vector<64x32xf32>
    %298 = arith.mulf %293, %297 : vector<64x32xf32>
    %299 = vector.broadcast %279 : vector<1x32xf32> to vector<64x32xf32>
    %300 = arith.mulf %298, %299 : vector<64x32xf32>
    %301 = vector.broadcast %280 : vector<1x32xf32> to vector<64x32xf32>
    %302 = arith.addf %300, %301 : vector<64x32xf32>
    %c1_106 = arith.constant 1 : index
    %c0_107 = arith.constant 0 : index
    %c0_108 = arith.constant 0 : index
    %303 = vector.load %arg7[%c1_106, %c0_107, %c0_108] : memref<2x32x128xf32, #tpu.memory_space<vmem>>, vector<1x32x128xf32>
    %304 = vector.shape_cast %303 : vector<1x32x128xf32> to vector<32x128xf32>
    %cst_109 = arith.constant dense<0.000000e+00> : vector<64x128xf32>
    %305 = tpu.matmul %302, %304, %cst_109 {dimension_numbers = #tpu.dot_dimension_numbers<[1], [0], [0], [1], [0, 0, 1, 1], [], []>} : vector<64x32xf32>, vector<32x128xf32>, vector<64x128xf32> -> vector<64x128xf32>
    %c18 = arith.constant 18 : index
    %c0_110 = arith.constant 0 : index
    %306 = vector.load %arg9[%c18, %c0_110] : memref<24x128xf32, #tpu.memory_space<vmem>>, vector<1x128xf32>
    %307 = vector.broadcast %306 : vector<1x128xf32> to vector<64x128xf32>
    %308 = arith.addf %305, %307 : vector<64x128xf32>
    %cst_111 = arith.constant 1.702000e+00 : f32
    %309 = vector.broadcast %cst_111 : f32 to vector<64x128xf32>
    %310 = arith.mulf %309, %308 : vector<64x128xf32>
    %311 = arith.negf %310 : vector<64x128xf32>
    %312 = math.exp %311 : vector<64x128xf32>
    %cst_112 = arith.constant 1.000000e+00 : f32
    %313 = vector.broadcast %cst_112 : f32 to vector<64x128xf32>
    %314 = arith.addf %313, %312 : vector<64x128xf32>
    %315 = arith.divf %313, %314 : vector<64x128xf32>
    %316 = arith.mulf %308, %315 : vector<64x128xf32>
    %c1_113 = arith.constant 1 : index
    %c0_114 = arith.constant 0 : index
    %c0_115 = arith.constant 0 : index
    %317 = vector.load %arg8[%c1_113, %c0_114, %c0_115] : memref<2x128x32xf32, #tpu.memory_space<vmem>>, vector<1x128x32xf32>
    %318 = vector.shape_cast %317 : vector<1x128x32xf32> to vector<128x32xf32>
    %cst_116 = arith.constant dense<0.000000e+00> : vector<64x32xf32>
    %319 = tpu.matmul %316, %318, %cst_116 {dimension_numbers = #tpu.dot_dimension_numbers<[1], [0], [0], [1], [0, 0, 1, 1], [], []>} : vector<64x128xf32>, vector<128x32xf32>, vector<64x32xf32> -> vector<64x32xf32>
    %320 = arith.addf %278, %319 : vector<64x32xf32>
    %c19 = arith.constant 19 : index
    %c0_117 = arith.constant 0 : index
    %321 = vector.load %arg9[%c19, %c0_117] : memref<24x128xf32, #tpu.memory_space<vmem>>, vector<1x32xf32>
    %322 = vector.broadcast %321 : vector<1x32xf32> to vector<64x32xf32>
    %323 = arith.addf %320, %322 : vector<64x32xf32>
    %c0_118 = arith.constant 0 : index
    %c0_119 = arith.constant 0 : index
    %324 = vector.load %arg4[%c0_118, %c0_119] : memref<8x64xf32, #tpu.memory_space<vmem>>, vector<8x64xf32>
    %cst_120 = arith.constant dense<0.000000e+00> : vector<8x32xf32>
    %325 = tpu.matmul %324, %323, %cst_120 {dimension_numbers = #tpu.dot_dimension_numbers<[1], [0], [0], [1], [0, 0, 1, 1], [], []>} : vector<8x64xf32>, vector<64x32xf32>, vector<8x32xf32> -> vector<8x32xf32>
    %c2 = arith.constant 2 : index
    %c0_121 = arith.constant 0 : index
    %326 = vector.load %arg9[%c2, %c0_121] : memref<24x128xf32, #tpu.memory_space<vmem>>, vector<1x32xf32>
    %c3 = arith.constant 3 : index
    %c0_122 = arith.constant 0 : index
    %327 = vector.load %arg9[%c3, %c0_122] : memref<24x128xf32, #tpu.memory_space<vmem>>, vector<1x32xf32>
    %cst_123 = arith.constant dense<0.000000e+00> : vector<8xf32>
    %328 = vector.multi_reduction <add>, %325, %cst_123 [1] : vector<8x32xf32> to vector<8xf32>
    %329 = vector.shape_cast %328 : vector<8xf32> to vector<8x1xf32>
    %cst_124 = arith.constant 3.200000e+01 : f32
    %330 = vector.broadcast %cst_124 : f32 to vector<8x1xf32>
    %331 = arith.divf %329, %330 : vector<8x1xf32>
    %332 = arith.mulf %325, %325 : vector<8x32xf32>
    %cst_125 = arith.constant dense<0.000000e+00> : vector<8xf32>
    %333 = vector.multi_reduction <add>, %332, %cst_125 [1] : vector<8x32xf32> to vector<8xf32>
    %334 = vector.shape_cast %333 : vector<8xf32> to vector<8x1xf32>
    %cst_126 = arith.constant 3.200000e+01 : f32
    %335 = vector.broadcast %cst_126 : f32 to vector<8x1xf32>
    %336 = arith.divf %334, %335 : vector<8x1xf32>
    %337 = arith.mulf %331, %331 : vector<8x1xf32>
    %338 = arith.subf %336, %337 : vector<8x1xf32>
    %339 = vector.broadcast %331 : vector<8x1xf32> to vector<8x32xf32>
    %340 = arith.subf %325, %339 : vector<8x32xf32>
    %cst_127 = arith.constant 9.99999974E-6 : f32
    %341 = vector.broadcast %cst_127 : f32 to vector<8x1xf32>
    %342 = arith.addf %338, %341 : vector<8x1xf32>
    %343 = math.rsqrt %342 : vector<8x1xf32>
    %344 = vector.broadcast %343 : vector<8x1xf32> to vector<8x32xf32>
    %345 = arith.mulf %340, %344 : vector<8x32xf32>
    %346 = vector.broadcast %326 : vector<1x32xf32> to vector<8x32xf32>
    %347 = arith.mulf %345, %346 : vector<8x32xf32>
    %348 = vector.broadcast %327 : vector<1x32xf32> to vector<8x32xf32>
    %349 = arith.addf %347, %348 : vector<8x32xf32>
    %c0_128 = arith.constant 0 : index
    %c0_129 = arith.constant 0 : index
    %350 = vector.load %arg10[%c0_128, %c0_129] : memref<32x128xf32, #tpu.memory_space<vmem>>, vector<32x128xf32>
    %cst_130 = arith.constant dense<0.000000e+00> : vector<8x128xf32>
    %351 = tpu.matmul %349, %350, %cst_130 {dimension_numbers = #tpu.dot_dimension_numbers<[1], [0], [0], [1], [0, 0, 1, 1], [], []>} : vector<8x32xf32>, vector<32x128xf32>, vector<8x128xf32> -> vector<8x128xf32>
    %c0_131 = arith.constant 0 : index
    %c0_132 = arith.constant 0 : index
    %c0_133 = arith.constant 0 : index
    %352 = vector.load %arg11[%c0_131, %c0_132, %c0_133] : memref<1x8x128xf32, #tpu.memory_space<vmem>>, vector<1x8x128xf32>
    %353 = vector.shape_cast %352 : vector<1x8x128xf32> to vector<8x128xf32>
    %354 = vector.shape_cast %351 : vector<8x128xf32> to vector<1x8x128xf32>
    tpu.vector_store %arg11[%c0_131, %c0_132, %c0_133], %354 {strides = array<i32>} : memref<1x8x128xf32, #tpu.memory_space<vmem>>, vector<1x8x128xf32>,
    return
  }
  func.func @transform_0(%arg0: i32) -> (i32, i32) {
    %c0_i32 = arith.constant 0 : i32
    %c0_i32_0 = arith.constant 0 : i32
    return %arg0, %c0_i32 : i32, i32
  }
  func.func @transform_1(%arg0: i32) -> (i32, i32) {
    %c0_i32 = arith.constant 0 : i32
    %c0_i32_0 = arith.constant 0 : i32
    %c0_i32_1 = arith.constant 0 : i32
    return %c0_i32, %c0_i32_0 : i32, i32
  }
  func.func @transform_2(%arg0: i32) -> (i32, i32) {
    %c0_i32 = arith.constant 0 : i32
    %c0_i32_0 = arith.constant 0 : i32
    %c0_i32_1 = arith.constant 0 : i32
    return %c0_i32, %c0_i32_0 : i32, i32
  }
  func.func @transform_3(%arg0: i32) -> (i32, i32) {
    %c0_i32 = arith.constant 0 : i32
    %c0_i32_0 = arith.constant 0 : i32
    %c0_i32_1 = arith.constant 0 : i32
    return %c0_i32, %c0_i32_0 : i32, i32
  }
  func.func @transform_4(%arg0: i32) -> (i32, i32) {
    %c0_i32 = arith.constant 0 : i32
    %c0_i32_0 = arith.constant 0 : i32
    %c0_i32_1 = arith.constant 0 : i32
    return %c0_i32, %c0_i32_0 : i32, i32
  }
  func.func @transform_5(%arg0: i32) -> (i32, i32, i32) {
    %c0_i32 = arith.constant 0 : i32
    %c0_i32_0 = arith.constant 0 : i32
    %c0_i32_1 = arith.constant 0 : i32
    %c0_i32_2 = arith.constant 0 : i32
    return %c0_i32, %c0_i32_0, %c0_i32_1 : i32, i32, i32
  }
  func.func @transform_6(%arg0: i32) -> (i32, i32, i32) {
    %c0_i32 = arith.constant 0 : i32
    %c0_i32_0 = arith.constant 0 : i32
    %c0_i32_1 = arith.constant 0 : i32
    %c0_i32_2 = arith.constant 0 : i32
    return %c0_i32, %c0_i32_0, %c0_i32_1 : i32, i32, i32
  }
  func.func @transform_7(%arg0: i32) -> (i32, i32, i32) {
    %c0_i32 = arith.constant 0 : i32
    %c0_i32_0 = arith.constant 0 : i32
    %c0_i32_1 = arith.constant 0 : i32
    %c0_i32_2 = arith.constant 0 : i32
    return %c0_i32, %c0_i32_0, %c0_i32_1 : i32, i32, i32
  }
  func.func @transform_8(%arg0: i32) -> (i32, i32) {
    %c0_i32 = arith.constant 0 : i32
    %c0_i32_0 = arith.constant 0 : i32
    %c0_i32_1 = arith.constant 0 : i32
    return %c0_i32, %c0_i32_0 : i32, i32
  }
  func.func @transform_9(%arg0: i32) -> (i32, i32) {
    %c0_i32 = arith.constant 0 : i32
    %c0_i32_0 = arith.constant 0 : i32
    %c0_i32_1 = arith.constant 0 : i32
    return %c0_i32, %c0_i32_0 : i32, i32
  }
  func.func @transform_10(%arg0: i32) -> (i32, i32, i32) {
    %c0_i32 = arith.constant 0 : i32
    %c0_i32_0 = arith.constant 0 : i32
    %c0_i32_1 = arith.constant 0 : i32
    return %arg0, %c0_i32, %c0_i32_0 : i32, i32, i32
  }
}

</mosaic_0001>

<llo_original>
// kernel: tpu_custom_call.1
$region0: #{tpu_custom_call.1}
  #allocation0 [shape = 'u32[]', space=smem, size = 0x4, offset = 0x4, fixed_abs, tag = 'smem constant byte address 0x4 - core index']
  #allocation1 [shape = 'u32[144,128]{1,0:T(1,128)}', space=vmem, size = 0x12000, scoped, tag = 'internal scratch']
  %s0 = inlined_call_operand.vmem [shape: bf16[64,768], index: 0, kind: input, shape index: {}]
  %s1 = inlined_call_operand.vmem [shape: f32[64,32], index: 1, kind: input, shape index: {}]
  %s2 = inlined_call_operand.vmem [shape: f32[64,64], index: 2, kind: input, shape index: {}]
  %s3 = inlined_call_operand.vmem [shape: f32[8,64], index: 3, kind: input, shape index: {}]
  %s4 = inlined_call_operand.vmem [shape: bf16[768,32], index: 4, kind: input, shape index: {}]
  %s5 = inlined_call_operand.vmem [shape: f32[2,32,128], index: 5, kind: input, shape index: {}]
  %s6 = inlined_call_operand.vmem [shape: f32[2,32,128], index: 6, kind: input, shape index: {}]
  %s7 = inlined_call_operand.vmem [shape: f32[2,128,32], index: 7, kind: input, shape index: {}]
  %s8 = inlined_call_operand.vmem [shape: f32[24,128], index: 8, kind: input, shape index: {}]
  %s9 = inlined_call_operand.vmem [shape: f32[32,128], index: 9, kind: input, shape index: {}]
  %s10 = inlined_call_operand.hbm [shape: f32[1,8,128], index: 10, kind: output, shape index: {}]
  %s11 = sld [smem:[#allocation0]]
  $region50: #{tpu_custom_call.1} parent=0
    _
  %s13 = ssub.s32 1, %s11
  %s14 = scalar_select 0, %s13, %s11
  $region1: #{tpu_custom_call.1} parent=0
    #allocation2 [shape = 'u8[4096]{0}', space=vmem, size = 0x1000, scoped, tag = 'output window, operand 0, single buffered']
    #allocation3 [shape = 's32[1]{0}', space=sflag, size = 0x4, scoped, tag = 'scoped memory for tpu_custom_call.1']
    %15 = vsyncpa [#allocation3], 0
    // Predicated region
    $region2: #{tpu_custom_call.1} parent=1 // pred_check
      _
    $region3: #{tpu_custom_call.1} parent=1 // pred_check_branch
      %17 = sbr.rel (0) target = $region5
    $region4: #{tpu_custom_call.1} parent=1 // pred_region
      _
    $region5: #{tpu_custom_call.1} parent=1 // pred_fallthru
      _
    // Predicated region
    $region6: #{tpu_custom_call.1} parent=1 // pred_check
      _
    $region7: #{tpu_custom_call.1} parent=1 // pred_check_branch
      %19 = sbr.rel (0) target = $region9
    $region8: #{tpu_custom_call.1} parent=1 // pred_region
      _
    $region9: #{tpu_custom_call.1} parent=1 // pred_fallthru
      _
    // Predicated region
    $region10: #{tpu_custom_call.1} parent=1 // pred_check
      _
    $region11: #{tpu_custom_call.1} parent=1 // pred_check_branch
      %21 = sbr.rel (0) target = $region13
    $region12: #{tpu_custom_call.1} parent=1 // pred_region
      _
    $region13: #{tpu_custom_call.1} parent=1 // pred_fallthru
      _
    // Predicated region
    $region14: #{tpu_custom_call.1} parent=1 // pred_check
      _
    $region15: #{tpu_custom_call.1} parent=1 // pred_check_branch
      %23 = sbr.rel (0) target = $region17
    $region16: #{tpu_custom_call.1} parent=1 // pred_region
      _
    $region17: #{tpu_custom_call.1} parent=1 // pred_fallthru
      _
    // Predicated region
    $region18: #{tpu_custom_call.1} parent=1 // pred_check
      _
    $region19: #{tpu_custom_call.1} parent=1 // pred_check_branch
      %25 = sbr.rel (0) target = $region21
    $region20: #{tpu_custom_call.1} parent=1 // pred_region
      _
    $region21: #{tpu_custom_call.1} parent=1 // pred_fallthru
      _
    // Predicated region
    $region22: #{tpu_custom_call.1} parent=1 // pred_check
      _
    $region23: #{tpu_custom_call.1} parent=1 // pred_check_branch
      %27 = sbr.rel (0) target = $region25
    $region24: #{tpu_custom_call.1} parent=1 // pred_region
      _
    $region25: #{tpu_custom_call.1} parent=1 // pred_fallthru
      _
    // Predicated region
    $region26: #{tpu_custom_call.1} parent=1 // pred_check
      _
    $region27: #{tpu_custom_call.1} parent=1 // pred_check_branch
      %29 = sbr.rel (0) target = $region29
    $region28: #{tpu_custom_call.1} parent=1 // pred_region
      _
    $region29: #{tpu_custom_call.1} parent=1 // pred_fallthru
      _
    // Predicated region
    $region30: #{tpu_custom_call.1} parent=1 // pred_check
      _
    $region31: #{tpu_custom_call.1} parent=1 // pred_check_branch
      %31 = sbr.rel (0) target = $region33
    $region32: #{tpu_custom_call.1} parent=1 // pred_region
      _
    $region33: #{tpu_custom_call.1} parent=1 // pred_fallthru
      _
    // Predicated region
    $region34: #{tpu_custom_call.1} parent=1 // pred_check
      _
    $region35: #{tpu_custom_call.1} parent=1 // pred_check_branch
      %33 = sbr.rel (0) target = $region37
    $region36: #{tpu_custom_call.1} parent=1 // pred_region
      _
    $region37: #{tpu_custom_call.1} parent=1 // pred_fallthru
      _
    // Predicated region
    $region38: #{tpu_custom_call.1} parent=1 // pred_check
      _
    $region39: #{tpu_custom_call.1} parent=1 // pred_check_branch
      %35 = sbr.rel (0) target = $region41
    $region40: #{tpu_custom_call.1} parent=1 // pred_region
      _
    $region41: #{tpu_custom_call.1} parent=1 // pred_fallthru
      _
    %v37 = vld [vmem:[%s0] sm:$0xff]
    %v38 = vld [vmem:[%s0 + $0x8] sm:$0xff]
    %v39 = vld [vmem:[%s0 + $0x10] sm:$0xff]
    %v40 = vld [vmem:[%s0 + $0x18] sm:$0xff]
    %v41 = vld [vmem:[%s0 + $0x20] sm:$0xff]
    %v42 = vld [vmem:[%s0 + $0x28] sm:$0xff]
    %v43 = vld [vmem:[%s0 + $0x30] sm:$0xff]
    %v44 = vld [vmem:[%s0 + $0x38] sm:$0xff]
    %v45 = vld [vmem:[%s0 + $0x40] sm:$0xff]
    %v46 = vld [vmem:[%s0 + $0x48] sm:$0xff]
    %v47 = vld [vmem:[%s0 + $0x50] sm:$0xff]
    %v48 = vld [vmem:[%s0 + $0x58] sm:$0xff]
    %v49 = vld [vmem:[%s0 + $0x60] sm:$0xff]
    %v50 = vld [vmem:[%s0 + $0x68] sm:$0xff]
    %v51 = vld [vmem:[%s0 + $0x70] sm:$0xff]
    %v52 = vld [vmem:[%s0 + $0x78] sm:$0xff]
    %v53 = vld [vmem:[%s0 + $0x80] sm:$0xff]
    %v54 = vld [vmem:[%s0 + $0x88] sm:$0xff]
    %v55 = vld [vmem:[%s0 + $0x90] sm:$0xff]
    %v56 = vld [vmem:[%s0 + $0x98] sm:$0xff]
    %v57 = vld [vmem:[%s0 + $0xa0] sm:$0xff]
    %v58 = vld [vmem:[%s0 + $0xa8] sm:$0xff]
    %v59 = vld [vmem:[%s0 + $0xb0] sm:$0xff]
    %v60 = vld [vmem:[%s0 + $0xb8] sm:$0xff]
    %v61 = vld [vmem:[%s4] sm:$0xf]
    %v62 = vld [vmem:[%s4 + $0x4] sm:$0xf]
    %v63 = vld [vmem:[%s4 + $0x8] sm:$0xf]
    %v64 = vld [vmem:[%s4 + $0xc] sm:$0xf]
    %v65 = vld [vmem:[%s4 + $0x10] sm:$0xf]
    %v66 = vld [vmem:[%s4 + $0x14] sm:$0xf]
    %v67 = vld [vmem:[%s4 + $0x18] sm:$0xf]
    %v68 = vld [vmem:[%s4 + $0x1c] sm:$0xf]
    %v69 = vld [vmem:[%s4 + $0x20] sm:$0xf]
    %v70 = vld [vmem:[%s4 + $0x24] sm:$0xf]
    %v71 = vld [vmem:[%s4 + $0x28] sm:$0xf]
    %v72 = vld [vmem:[%s4 + $0x2c] sm:$0xf]
    %v73 = vld [vmem:[%s4 + $0x30] sm:$0xf]
    %v74 = vld [vmem:[%s4 + $0x34] sm:$0xf]
    %v75 = vld [vmem:[%s4 + $0x38] sm:$0xf]
    %v76 = vld [vmem:[%s4 + $0x3c] sm:$0xf]
    %v77 = vld [vmem:[%s4 + $0x40] sm:$0xf]
    %v78 = vld [vmem:[%s4 + $0x44] sm:$0xf]
    %v79 = vld [vmem:[%s4 + $0x48] sm:$0xf]
    %v80 = vld [vmem:[%s4 + $0x4c] sm:$0xf]
    %v81 = vld [vmem:[%s4 + $0x50] sm:$0xf]
    %v82 = vld [vmem:[%s4 + $0x54] sm:$0xf]
    %v83 = vld [vmem:[%s4 + $0x58] sm:$0xf]
    %v84 = vld [vmem:[%s4 + $0x5c] sm:$0xf]
    %v85 = vld [vmem:[%s4 + $0x60] sm:$0xf]
    %v86 = vld [vmem:[%s4 + $0x64] sm:$0xf]
    %v87 = vld [vmem:[%s4 + $0x68] sm:$0xf]
    %v88 = vld [vmem:[%s4 + $0x6c] sm:$0xf]
    %v89 = vld [vmem:[%s4 + $0x70] sm:$0xf]
    %v90 = vld [vmem:[%s4 + $0x74] sm:$0xf]
    %v91 = vld [vmem:[%s4 + $0x78] sm:$0xf]
    %v92 = vld [vmem:[%s4 + $0x7c] sm:$0xf]
    %v93 = vld [vmem:[%s4 + $0x80] sm:$0xf]
    %v94 = vld [vmem:[%s4 + $0x84] sm:$0xf]
    %v95 = vld [vmem:[%s4 + $0x88] sm:$0xf]
    %v96 = vld [vmem:[%s4 + $0x8c] sm:$0xf]
    %v97 = vld [vmem:[%s4 + $0x90] sm:$0xf]
    %v98 = vld [vmem:[%s4 + $0x94] sm:$0xf]
    %v99 = vld [vmem:[%s4 + $0x98] sm:$0xf]
    %v100 = vld [vmem:[%s4 + $0x9c] sm:$0xf]
    %v101 = vld [vmem:[%s4 + $0xa0] sm:$0xf]
    %v102 = vld [vmem:[%s4 + $0xa4] sm:$0xf]
    %v103 = vld [vmem:[%s4 + $0xa8] sm:$0xf]
    %v104 = vld [vmem:[%s4 + $0xac] sm:$0xf]
    %v105 = vld [vmem:[%s4 + $0xb0] sm:$0xf]
    %v106 = vld [vmem:[%s4 + $0xb4] sm:$0xf]
    %v107 = vld [vmem:[%s4 + $0xb8] sm:$0xf]
    %v108 = vld [vmem:[%s4 + $0xbc] sm:$0xf]
    %v109 = vld [vmem:[%s4 + $0xc0] sm:$0xf]
    %v110 = vld [vmem:[%s4 + $0xc4] sm:$0xf]
    %v111 = vld [vmem:[%s4 + $0xc8] sm:$0xf]
    %v112 = vld [vmem:[%s4 + $0xcc] sm:$0xf]
    %v113 = vld [vmem:[%s4 + $0xd0] sm:$0xf]
    %v114 = vld [vmem:[%s4 + $0xd4] sm:$0xf]
    %v115 = vld [vmem:[%s4 + $0xd8] sm:$0xf]
    %v116 = vld [vmem:[%s4 + $0xdc] sm:$0xf]
    %v117 = vld [vmem:[%s4 + $0xe0] sm:$0xf]
    %v118 = vld [vmem:[%s4 + $0xe4] sm:$0xf]
    %v119 = vld [vmem:[%s4 + $0xe8] sm:$0xf]
    %v120 = vld [vmem:[%s4 + $0xec] sm:$0xf]
    %v121 = vld [vmem:[%s4 + $0xf0] sm:$0xf]
    %v122 = vld [vmem:[%s4 + $0xf4] sm:$0xf]
    %v123 = vld [vmem:[%s4 + $0xf8] sm:$0xf]
    %v124 = vld [vmem:[%s4 + $0xfc] sm:$0xf]
    %v125 = vld [vmem:[%s4 + $0x100] sm:$0xf]
    %v126 = vld [vmem:[%s4 + $0x104] sm:$0xf]
    %v127 = vld [vmem:[%s4 + $0x108] sm:$0xf]
    %v128 = vld [vmem:[%s4 + $0x10c] sm:$0xf]
    %v129 = vld [vmem:[%s4 + $0x110] sm:$0xf]
    %v130 = vld [vmem:[%s4 + $0x114] sm:$0xf]
    %v131 = vld [vmem:[%s4 + $0x118] sm:$0xf]
    %v132 = vld [vmem:[%s4 + $0x11c] sm:$0xf]
    %v133 = vld [vmem:[%s4 + $0x120] sm:$0xf]
    %v134 = vld [vmem:[%s4 + $0x124] sm:$0xf]
    %v135 = vld [vmem:[%s4 + $0x128] sm:$0xf]
    %v136 = vld [vmem:[%s4 + $0x12c] sm:$0xf]
    %v137 = vld [vmem:[%s4 + $0x130] sm:$0xf]
    %v138 = vld [vmem:[%s4 + $0x134] sm:$0xf]
    %v139 = vld [vmem:[%s4 + $0x138] sm:$0xf]
    %v140 = vld [vmem:[%s4 + $0x13c] sm:$0xf]
    %v141 = vld [vmem:[%s4 + $0x140] sm:$0xf]
    %v142 = vld [vmem:[%s4 + $0x144] sm:$0xf]
    %v143 = vld [vmem:[%s4 + $0x148] sm:$0xf]
    %v144 = vld [vmem:[%s4 + $0x14c] sm:$0xf]
    %v145 = vld [vmem:[%s4 + $0x150] sm:$0xf]
    %v146 = vld [vmem:[%s4 + $0x154] sm:$0xf]
    %v147 = vld [vmem:[%s4 + $0x158] sm:$0xf]
    %v148 = vld [vmem:[%s4 + $0x15c] sm:$0xf]
    %v149 = vld [vmem:[%s4 + $0x160] sm:$0xf]
    %v150 = vld [vmem:[%s4 + $0x164] sm:$0xf]
    %v151 = vld [vmem:[%s4 + $0x168] sm:$0xf]
    %v152 = vld [vmem:[%s4 + $0x16c] sm:$0xf]
    %v153 = vld [vmem:[%s4 + $0x170] sm:$0xf]
    %v154 = vld [vmem:[%s4 + $0x174] sm:$0xf]
    %v155 = vld [vmem:[%s4 + $0x178] sm:$0xf]
    %v156 = vld [vmem:[%s4 + $0x17c] sm:$0xf]
    %v157 = vld [vmem:[%s1] sm:$0xff]
    %v158 = vld [vmem:[%s1 + $0x8] sm:$0xff]
    %v159 = vld [vmem:[%s1 + $0x10] sm:$0xff]
    %v160 = vld [vmem:[%s1 + $0x18] sm:$0xff]
    %v161 = vld [vmem:[%s1 + $0x20] sm:$0xff]
    %v162 = vld [vmem:[%s1 + $0x28] sm:$0xff]
    %v163 = vld [vmem:[%s1 + $0x30] sm:$0xff]
    %v164 = vld [vmem:[%s1 + $0x38] sm:$0xff]
    %v189 = vunpack.c.l.b16 %v37
    %v190 = vunpack.c.h.b16 %v37
    %v191 = vunpack.c.l.b16 %v38
    %v192 = vunpack.c.h.b16 %v38
    %v193 = vunpack.c.l.b16 %v39
    %v194 = vunpack.c.h.b16 %v39
    %v195 = vunpack.c.l.b16 %v40
    %v196 = vunpack.c.h.b16 %v40
    %v197 = vunpack.c.l.b16 %v41
    %v198 = vunpack.c.h.b16 %v41
    %v199 = vunpack.c.l.b16 %v42
    %v200 = vunpack.c.h.b16 %v42
    %v201 = vunpack.c.l.b16 %v43
    %v202 = vunpack.c.h.b16 %v43
    %v203 = vunpack.c.l.b16 %v44
    %v204 = vunpack.c.h.b16 %v44
    %v205 = vunpack.c.l.b16 %v45
    %v206 = vunpack.c.h.b16 %v45
    %v207 = vunpack.c.l.b16 %v46
    %v208 = vunpack.c.h.b16 %v46
    %v209 = vunpack.c.l.b16 %v47
    %v210 = vunpack.c.h.b16 %v47
    %v211 = vunpack.c.l.b16 %v48
    %v212 = vunpack.c.h.b16 %v48
    %v213 = vunpack.c.l.b16 %v49
    %v214 = vunpack.c.h.b16 %v49
    %v215 = vunpack.c.l.b16 %v50
    %v216 = vunpack.c.h.b16 %v50
    %v217 = vunpack.c.l.b16 %v51
    %v218 = vunpack.c.h.b16 %v51
    %v219 = vunpack.c.l.b16 %v52
    %v220 = vunpack.c.h.b16 %v52
    %v221 = vunpack.c.l.b16 %v53
    %v222 = vunpack.c.h.b16 %v53
    %v223 = vunpack.c.l.b16 %v54
    %v224 = vunpack.c.h.b16 %v54
    %v225 = vunpack.c.l.b16 %v55
    %v226 = vunpack.c.h.b16 %v55
    %v227 = vunpack.c.l.b16 %v56
    %v228 = vunpack.c.h.b16 %v56
    %v229 = vunpack.c.l.b16 %v57
    %v230 = vunpack.c.h.b16 %v57
    %v231 = vunpack.c.l.b16 %v58
    %v232 = vunpack.c.h.b16 %v58
    %v233 = vunpack.c.l.b16 %v59
    %v234 = vunpack.c.h.b16 %v59
    %v235 = vunpack.c.l.b16 %v60
    %v236 = vunpack.c.h.b16 %v60
    %v237 = vpack.c.b16 %v195, %v189
    %v238 = vpack.c.b16 %v196, %v190
    %v239 = vpack.c.b16 %v197, %v191
    %v240 = vpack.c.b16 %v198, %v192
    %v241 = vpack.c.b16 %v199, %v193
    %v242 = vpack.c.b16 %v200, %v194
    %v243 = vpack.c.b16 %v207, %v201
    %v244 = vpack.c.b16 %v208, %v202
    %v245 = vpack.c.b16 %v209, %v203
    %v246 = vpack.c.b16 %v210, %v204
    %v247 = vpack.c.b16 %v211, %v205
    %v248 = vpack.c.b16 %v212, %v206
    %v249 = vpack.c.b16 %v219, %v213
    %v250 = vpack.c.b16 %v220, %v214
    %v251 = vpack.c.b16 %v221, %v215
    %v252 = vpack.c.b16 %v222, %v216
    %v253 = vpack.c.b16 %v223, %v217
    %v254 = vpack.c.b16 %v224, %v218
    %v255 = vpack.c.b16 %v231, %v225
    %v256 = vpack.c.b16 %v232, %v226
    %v257 = vpack.c.b16 %v233, %v227
    %v258 = vpack.c.b16 %v234, %v228
    %v259 = vpack.c.b16 %v235, %v229
    %v260 = vpack.c.b16 %v236, %v230
    %v381 = vunpack.c.l.b16 %v61
    %v382 = vunpack.c.l.b16 %v62
    %v383 = vunpack.c.l.b16 %v63
    %v384 = vunpack.c.l.b16 %v64
    %v385 = vunpack.c.l.b16 %v65
    %v386 = vunpack.c.l.b16 %v66
    %v387 = vunpack.c.l.b16 %v67
    %v388 = vunpack.c.l.b16 %v68
    %v389 = vunpack.c.l.b16 %v69
    %v390 = vunpack.c.l.b16 %v70
    %v391 = vunpack.c.l.b16 %v71
    %v392 = vunpack.c.l.b16 %v72
    %v393 = vunpack.c.l.b16 %v73
    %v394 = vunpack.c.l.b16 %v74
    %v395 = vunpack.c.l.b16 %v75
    %v396 = vunpack.c.l.b16 %v76
    %v397 = vunpack.c.l.b16 %v77
    %v398 = vunpack.c.l.b16 %v78
    %v399 = vunpack.c.l.b16 %v79
    %v400 = vunpack.c.l.b16 %v80
    %v401 = vunpack.c.l.b16 %v81
    %v402 = vunpack.c.l.b16 %v82
    %v403 = vunpack.c.l.b16 %v83
    %v404 = vunpack.c.l.b16 %v84
    %v405 = vunpack.c.l.b16 %v85
    %v406 = vunpack.c.l.b16 %v86
    %v407 = vunpack.c.l.b16 %v87
    %v408 = vunpack.c.l.b16 %v88
    %v409 = vunpack.c.l.b16 %v89
    %v410 = vunpack.c.l.b16 %v90
    %v411 = vunpack.c.l.b16 %v91
    %v412 = vunpack.c.l.b16 %v92
    %v413 = vunpack.c.l.b16 %v93
    %v414 = vunpack.c.l.b16 %v94
    %v415 = vunpack.c.l.b16 %v95
    %v416 = vunpack.c.l.b16 %v96
    %v417 = vunpack.c.l.b16 %v97
    %v418 = vunpack.c.l.b16 %v98
    %v419 = vunpack.c.l.b16 %v99
    %v420 = vunpack.c.l.b16 %v100
    %v421 = vunpack.c.l.b16 %v101
    %v422 = vunpack.c.l.b16 %v102
    %v423 = vunpack.c.l.b16 %v103
    %v424 = vunpack.c.l.b16 %v104
    %v425 = vunpack.c.l.b16 %v105
    %v426 = vunpack.c.l.b16 %v106
    %v427 = vunpack.c.l.b16 %v107
    %v428 = vunpack.c.l.b16 %v108
    %v429 = vunpack.c.l.b16 %v109
    %v430 = vunpack.c.l.b16 %v110
    %v431 = vunpack.c.l.b16 %v111
    %v432 = vunpack.c.l.b16 %v112
    %v433 = vunpack.c.l.b16 %v113
    %v434 = vunpack.c.l.b16 %v114
    %v435 = vunpack.c.l.b16 %v115
    %v436 = vunpack.c.l.b16 %v116
    %v437 = vunpack.c.l.b16 %v117
    %v438 = vunpack.c.l.b16 %v118
    %v439 = vunpack.c.l.b16 %v119
    %v440 = vunpack.c.l.b16 %v120
    %v441 = vunpack.c.l.b16 %v121
    %v442 = vunpack.c.l.b16 %v122
    %v443 = vunpack.c.l.b16 %v123
    %v444 = vunpack.c.l.b16 %v124
    %v445 = vunpack.c.l.b16 %v125
    %v446 = vunpack.c.l.b16 %v126
    %v447 = vunpack.c.l.b16 %v127
    %v448 = vunpack.c.l.b16 %v128
    %v449 = vunpack.c.l.b16 %v129
    %v450 = vunpack.c.l.b16 %v130
    %v451 = vunpack.c.l.b16 %v131
    %v452 = vunpack.c.l.b16 %v132
    %v453 = vunpack.c.l.b16 %v133
    %v454 = vunpack.c.l.b16 %v134
    %v455 = vunpack.c.l.b16 %v135
    %v456 = vunpack.c.l.b16 %v136
    %v457 = vunpack.c.l.b16 %v137
    %v458 = vunpack.c.l.b16 %v138
    %v459 = vunpack.c.l.b16 %v139
    %v460 = vunpack.c.l.b16 %v140
    %v461 = vunpack.c.l.b16 %v141
    %v462 = vunpack.c.l.b16 %v142
    %v463 = vunpack.c.l.b16 %v143
    %v464 = vunpack.c.l.b16 %v144
    %v465 = vunpack.c.l.b16 %v145
    %v466 = vunpack.c.l.b16 %v146
    %v467 = vunpack.c.l.b16 %v147
    %v468 = vunpack.c.l.b16 %v148
    %v469 = vunpack.c.l.b16 %v149
    %v470 = vunpack.c.l.b16 %v150
    %v471 = vunpack.c.l.b16 %v151
    %v472 = vunpack.c.l.b16 %v152
    %v473 = vunpack.c.l.b16 %v153
    %v474 = vunpack.c.l.b16 %v154
    %v475 = vunpack.c.l.b16 %v155
    %v476 = vunpack.c.l.b16 %v156
    %v477 = vpack.c.b16 %v382, %v381
    %v478 = vpack.c.b16 %v384, %v383
    %v479 = vpack.c.b16 %v386, %v385
    %v480 = vpack.c.b16 %v388, %v387
    %v481 = vpack.c.b16 %v390, %v389
    %v482 = vpack.c.b16 %v392, %v391
    %v483 = vpack.c.b16 %v394, %v393
    %v484 = vpack.c.b16 %v396, %v395
    %v485 = vpack.c.b16 %v398, %v397
    %v486 = vpack.c.b16 %v400, %v399
    %v487 = vpack.c.b16 %v402, %v401
    %v488 = vpack.c.b16 %v404, %v403
    %v489 = vpack.c.b16 %v406, %v405
    %v490 = vpack.c.b16 %v408, %v407
    %v491 = vpack.c.b16 %v410, %v409
    %v492 = vpack.c.b16 %v412, %v411
    %v493 = vpack.c.b16 %v414, %v413
    %v494 = vpack.c.b16 %v416, %v415
    %v495 = vpack.c.b16 %v418, %v417
    %v496 = vpack.c.b16 %v420, %v419
    %v497 = vpack.c.b16 %v422, %v421
    %v498 = vpack.c.b16 %v424, %v423
    %v499 = vpack.c.b16 %v426, %v425
    %v500 = vpack.c.b16 %v428, %v427
    %v501 = vpack.c.b16 %v430, %v429
    %v502 = vpack.c.b16 %v432, %v431
    %v503 = vpack.c.b16 %v434, %v433
    %v504 = vpack.c.b16 %v436, %v435
    %v505 = vpack.c.b16 %v438, %v437
    %v506 = vpack.c.b16 %v440, %v439
    %v507 = vpack.c.b16 %v442, %v441
    %v508 = vpack.c.b16 %v444, %v443
    %v509 = vpack.c.b16 %v446, %v445
    %v510 = vpack.c.b16 %v448, %v447
    %v511 = vpack.c.b16 %v450, %v449
    %v512 = vpack.c.b16 %v452, %v451
    %v513 = vpack.c.b16 %v454, %v453
    %v514 = vpack.c.b16 %v456, %v455
    %v515 = vpack.c.b16 %v458, %v457
    %v516 = vpack.c.b16 %v460, %v459
    %v517 = vpack.c.b16 %v462, %v461
    %v518 = vpack.c.b16 %v464, %v463
    %v519 = vpack.c.b16 %v466, %v465
    %v520 = vpack.c.b16 %v468, %v467
    %v521 = vpack.c.b16 %v470, %v469
    %v522 = vpack.c.b16 %v472, %v471
    %v523 = vpack.c.b16 %v474, %v473
    %v524 = vpack.c.b16 %v476, %v475
    %573 = vmatprep.subr.bf16.mxu0 0
    %574 = vmatpush1.bf16.msra.mxu0 %v477
    %575 = vmatprep.subr.bf16.mxu0 0
    %576 = vmatpush1.bf16.msra.mxu0 %v478
    %577 = vmatprep.subr.bf16.mxu0 0
    %578 = vmatpush1.bf16.msra.mxu0 %v479
    %579 = vmatprep.subr.bf16.mxu0 0
    %580 = vmatpush1.bf16.msra.mxu0 %v480
    %581 = vmatprep.subr.bf16.mxu0 0
    %582 = vmatpush1.bf16.msra.mxu0 %v481
    %583 = vmatprep.subr.bf16.mxu0 0
    %584 = vmatpush1.bf16.msra.mxu0 %v482
    %585 = vmatprep.subr.bf16.mxu0 0
    %586 = vmatpush1.bf16.msra.mxu0 %v483
    %587 = vmatprep.subr.bf16.mxu0 0
    %588 = vmatpush1.bf16.msra.mxu0 %v484
    %589 = vmatprep.subr.bf16.mxu0 0
    %590 = vmatpush1.bf16.msra.mxu0 %v485
    %591 = vmatprep.subr.bf16.mxu0 0
    %592 = vmatpush1.bf16.msra.mxu0 %v486
    %593 = vmatprep.subr.bf16.mxu0 0
    %594 = vmatpush1.bf16.msra.mxu0 %v487
    %595 = vmatprep.subr.bf16.mxu0 0
    %596 = vmatpush1.bf16.msra.mxu0 %v488
    %597 = vmatprep.subr.bf16.mxu0 0
    %598 = vmatpush1.bf16.msra.mxu0 %v489
    %599 = vmatprep.subr.bf16.mxu0 0
    %600 = vmatpush1.bf16.msra.mxu0 %v490
    %601 = vmatprep.subr.bf16.mxu0 0
    %602 = vmatpush1.bf16.msra.mxu0 %v491
    %603 = vmatprep.subr.bf16.mxu0 0
    %604 = vmatpush1.bf16.msra.mxu0 %v492
    %605 = vmatprep.mubr.bf16.mxu0 %v238
    %606 = vmatmul.mubr.bf16.gmra.mrb[0].mxu0 %v237
    %v607 = vpop.f32.mrb[0].mxu0
    %v608 = vadd.f32 %v157, %v607
    %v609 = vpop.f32.mrb[0].mxu0
    %v610 = vpop.f32.mrb[0].mxu0
    %v611 = vadd.f32 %v158, %v610
    %v612 = vpop.f32.mrb[0].mxu0
    %613 = vmatprep.mubr.bf16.mxu0 %v244
    %614 = vmatmul.mubr.bf16.gmra.mrb[0].mxu0 %v243
    %v615 = vpop.f32.mrb[0].mxu0
    %v616 = vadd.f32 %v159, %v615
    %v617 = vpop.f32.mrb[0].mxu0
    %v618 = vpop.f32.mrb[0].mxu0
    %v619 = vadd.f32 %v160, %v618
    %v620 = vpop.f32.mrb[0].mxu0
    %621 = vmatprep.mubr.bf16.mxu0 %v250
    %622 = vmatmul.mubr.bf16.gmra.mrb[0].mxu0 %v249
    %v623 = vpop.f32.mrb[0].mxu0
    %v624 = vadd.f32 %v161, %v623
    %v625 = vpop.f32.mrb[0].mxu0
    %v626 = vpop.f32.mrb[0].mxu0
    %v627 = vadd.f32 %v162, %v626
    %v628 = vpop.f32.mrb[0].mxu0
    %629 = vmatprep.mubr.bf16.mxu0 %v256
    %630 = vmatmul.mubr.bf16.gmra.mrb[0].mxu0 %v255
    %v631 = vpop.f32.mrb[0].mxu0
    %v632 = vadd.f32 %v163, %v631
    %v633 = vpop.f32.mrb[0].mxu0
    %v634 = vpop.f32.mrb[0].mxu0
    %v635 = vadd.f32 %v164, %v634
    %v636 = vpop.f32.mrb[0].mxu0
    %637 = vdwg.mxu0
    %638 = vmatprep.subr.bf16.mxu0 0
    %639 = vmatpush1.bf16.msra.mxu0 %v493
    %640 = vmatprep.subr.bf16.mxu0 0
    %641 = vmatpush1.bf16.msra.mxu0 %v494
    %642 = vmatprep.subr.bf16.mxu0 0
    %643 = vmatpush1.bf16.msra.mxu0 %v495
    %644 = vmatprep.subr.bf16.mxu0 0
    %645 = vmatpush1.bf16.msra.mxu0 %v496
    %646 = vmatprep.subr.bf16.mxu0 0
    %647 = vmatpush1.bf16.msra.mxu0 %v497
    %648 = vmatprep.subr.bf16.mxu0 0
    %649 = vmatpush1.bf16.msra.mxu0 %v498
    %650 = vmatprep.subr.bf16.mxu0 0
    %651 = vmatpush1.bf16.msra.mxu0 %v499
    %652 = vmatprep.subr.bf16.mxu0 0
    %653 = vmatpush1.bf16.msra.mxu0 %v500
    %654 = vmatprep.subr.bf16.mxu0 0
    %655 = vmatpush1.bf16.msra.mxu0 %v501
    %656 = vmatprep.subr.bf16.mxu0 0
    %657 = vmatpush1.bf16.msra.mxu0 %v502
    %658 = vmatprep.subr.bf16.mxu0 0
    %659 = vmatpush1.bf16.msra.mxu0 %v503
    %660 = vmatprep.subr.bf16.mxu0 0
    %661 = vmatpush1.bf16.msra.mxu0 %v504
    %662 = vmatprep.subr.bf16.mxu0 0
    %663 = vmatpush1.bf16.msra.mxu0 %v505
    %664 = vmatprep.subr.bf16.mxu0 0
    %665 = vmatpush1.bf16.msra.mxu0 %v506
    %666 = vmatprep.subr.bf16.mxu0 0
    %667 = vmatpush1.bf16.msra.mxu0 %v507
    %668 = vmatprep.subr.bf16.mxu0 0
    %669 = vmatpush1.bf16.msra.mxu0 %v508
    %670 = vmatprep.mubr.bf16.mxu0 %v240
    %671 = vmatmul.mubr.bf16.gmra.mrb[0].mxu0 %v239
    %v672 = vpop.f32.mrb[0].mxu0
    %v673 = vadd.f32 %v608, %v672
    %v674 = vpop.f32.mrb[0].mxu0
    %v675 = vpop.f32.mrb[0].mxu0
    %v676 = vadd.f32 %v611, %v675
    %v677 = vpop.f32.mrb[0].mxu0
    %678 = vmatprep.mubr.bf16.mxu0 %v246
    %679 = vmatmul.mubr.bf16.gmra.mrb[0].mxu0 %v245
    %v680 = vpop.f32.mrb[0].mxu0
    %v681 = vadd.f32 %v616, %v680
    %v682 = vpop.f32.mrb[0].mxu0
    %v683 = vpop.f32.mrb[0].mxu0
    %v684 = vadd.f32 %v619, %v683
    %v685 = vpop.f32.mrb[0].mxu0
    %686 = vmatprep.mubr.bf16.mxu0 %v252
    %687 = vmatmul.mubr.bf16.gmra.mrb[0].mxu0 %v251
    %v688 = vpop.f32.mrb[0].mxu0
    %v689 = vadd.f32 %v624, %v688
    %v690 = vpop.f32.mrb[0].mxu0
    %v691 = vpop.f32.mrb[0].mxu0
    %v692 = vadd.f32 %v627, %v691
    %v693 = vpop.f32.mrb[0].mxu0
    %694 = vmatprep.mubr.bf16.mxu0 %v258
    %695 = vmatmul.mubr.bf16.gmra.mrb[0].mxu0 %v257
    %v696 = vpop.f32.mrb[0].mxu0
    %v697 = vadd.f32 %v632, %v696
    %v698 = vpop.f32.mrb[0].mxu0
    %v699 = vpop.f32.mrb[0].mxu0
    %v700 = vadd.f32 %v635, %v699
    %v701 = vpop.f32.mrb[0].mxu0
    %702 = vdwg.mxu0
    %703 = vmatprep.subr.bf16.mxu0 0
    %704 = vmatpush1.bf16.msra.mxu0 %v509
    %705 = vmatprep.subr.bf16.mxu0 0
    %706 = vmatpush1.bf16.msra.mxu0 %v510
    %707 = vmatprep.subr.bf16.mxu0 0
    %708 = vmatpush1.bf16.msra.mxu0 %v511
    %709 = vmatprep.subr.bf16.mxu0 0
    %710 = vmatpush1.bf16.msra.mxu0 %v512
    %711 = vmatprep.subr.bf16.mxu0 0
    %712 = vmatpush1.bf16.msra.mxu0 %v513
    %713 = vmatprep.subr.bf16.mxu0 0
    %714 = vmatpush1.bf16.msra.mxu0 %v514
    %715 = vmatprep.subr.bf16.mxu0 0
    %716 = vmatpush1.bf16.msra.mxu0 %v515
    %717 = vmatprep.subr.bf16.mxu0 0
    %718 = vmatpush1.bf16.msra.mxu0 %v516
    %719 = vmatprep.subr.bf16.mxu0 0
    %720 = vmatpush1.bf16.msra.mxu0 %v517
    %721 = vmatprep.subr.bf16.mxu0 0
    %722 = vmatpush1.bf16.msra.mxu0 %v518
    %723 = vmatprep.subr.bf16.mxu0 0
    %724 = vmatpush1.bf16.msra.mxu0 %v519
    %725 = vmatprep.subr.bf16.mxu0 0
    %726 = vmatpush1.bf16.msra.mxu0 %v520
    %727 = vmatprep.subr.bf16.mxu0 0
    %728 = vmatpush1.bf16.msra.mxu0 %v521
    %729 = vmatprep.subr.bf16.mxu0 0
    %730 = vmatpush1.bf16.msra.mxu0 %v522
    %731 = vmatprep.subr.bf16.mxu0 0
    %732 = vmatpush1.bf16.msra.mxu0 %v523
    %733 = vmatprep.subr.bf16.mxu0 0
    %734 = vmatpush1.bf16.msra.mxu0 %v524
    %735 = vmatprep.mubr.bf16.mxu0 %v242
    %736 = vmatmul.mubr.bf16.gmra.mrb[0].mxu0 %v241
    %v737 = vpop.f32.mrb[0].mxu0
    %v738 = vadd.f32 %v673, %v737
    %v739 = vpop.f32.mrb[0].mxu0
    %v740 = vpop.f32.mrb[0].mxu0
    %v741 = vadd.f32 %v676, %v740
    %v742 = vpop.f32.mrb[0].mxu0
    %743 = vmatprep.mubr.bf16.mxu0 %v248
    %744 = vmatmul.mubr.bf16.gmra.mrb[0].mxu0 %v247
    %v745 = vpop.f32.mrb[0].mxu0
    %v746 = vadd.f32 %v681, %v745
    %v747 = vpop.f32.mrb[0].mxu0
    %v748 = vpop.f32.mrb[0].mxu0
    %v749 = vadd.f32 %v684, %v748
    %v750 = vpop.f32.mrb[0].mxu0
    %751 = vmatprep.mubr.bf16.mxu0 %v254
    %752 = vmatmul.mubr.bf16.gmra.mrb[0].mxu0 %v253
    %v753 = vpop.f32.mrb[0].mxu0
    %v754 = vadd.f32 %v689, %v753
    %v755 = vpop.f32.mrb[0].mxu0
    %v756 = vpop.f32.mrb[0].mxu0
    %v757 = vadd.f32 %v692, %v756
    %v758 = vpop.f32.mrb[0].mxu0
    %759 = vmatprep.mubr.bf16.mxu0 %v260
    %760 = vmatmul.mubr.bf16.gmra.mrb[0].mxu0 %v259
    %v761 = vpop.f32.mrb[0].mxu0
    %v762 = vadd.f32 %v697, %v761
    %v763 = vpop.f32.mrb[0].mxu0
    %v764 = vpop.f32.mrb[0].mxu0
    %v765 = vadd.f32 %v700, %v764
    %v766 = vpop.f32.mrb[0].mxu0
    %767 = vdwg.mxu0
    %v768 = vld [vmem:[%s8] sm:$0x1]
    %v769 = vld [vmem:[%s8 + $0x1] sm:$0x1]
    %vm770 = vcmask 261120
    %v771 = vsel %vm770, %v738, 0.0
    %772 = vadd.xlane.f32.xlu0 %v771
    %v773 = vpop.xlane.xlu0 %772
    %v774 = vsel %vm770, %v741, 0.0
    %775 = vadd.xlane.f32.xlu0 %v774
    %v776 = vpop.xlane.xlu0 %775
    %v777 = vsel %vm770, %v746, 0.0
    %778 = vadd.xlane.f32.xlu0 %v777
    %v779 = vpop.xlane.xlu0 %778
    %v780 = vsel %vm770, %v749, 0.0
    %781 = vadd.xlane.f32.xlu0 %v780
    %v782 = vpop.xlane.xlu0 %781
    %v783 = vsel %vm770, %v754, 0.0
    %784 = vadd.xlane.f32.xlu0 %v783
    %v785 = vpop.xlane.xlu0 %784
    %v786 = vsel %vm770, %v757, 0.0
    %787 = vadd.xlane.f32.xlu0 %v786
    %v788 = vpop.xlane.xlu0 %787
    %v789 = vsel %vm770, %v762, 0.0
    %790 = vadd.xlane.f32.xlu0 %v789
    %v791 = vpop.xlane.xlu0 %790
    %v792 = vsel %vm770, %v765, 0.0
    %793 = vadd.xlane.f32.xlu0 %v792
    %v794 = vpop.xlane.xlu0 %793
    %v795 = vrcp.pop 32.0
    %v796 = vmul.f32 %v773, %v795
    %v797 = vmul.f32 %v776, %v795
    %v798 = vmul.f32 %v779, %v795
    %v799 = vmul.f32 %v782, %v795
    %v800 = vmul.f32 %v785, %v795
    %v801 = vmul.f32 %v788, %v795
    %v802 = vmul.f32 %v791, %v795
    %v803 = vmul.f32 %v794, %v795
    %v804 = vmul.f32 %v738, %v738
    %v805 = vmul.f32 %v741, %v741
    %v806 = vmul.f32 %v746, %v746
    %v807 = vmul.f32 %v749, %v749
    %v808 = vmul.f32 %v754, %v754
    %v809 = vmul.f32 %v757, %v757
    %v810 = vmul.f32 %v762, %v762
    %v811 = vmul.f32 %v765, %v765
    %v812 = vsel %vm770, %v804, 0.0
    %813 = vadd.xlane.f32.xlu0 %v812
    %v814 = vpop.xlane.xlu0 %813
    %v815 = vsel %vm770, %v805, 0.0
    %816 = vadd.xlane.f32.xlu0 %v815
    %v817 = vpop.xlane.xlu0 %816
    %v818 = vsel %vm770, %v806, 0.0
    %819 = vadd.xlane.f32.xlu0 %v818
    %v820 = vpop.xlane.xlu0 %819
    %v821 = vsel %vm770, %v807, 0.0
    %822 = vadd.xlane.f32.xlu0 %v821
    %v823 = vpop.xlane.xlu0 %822
    %v824 = vsel %vm770, %v808, 0.0
    %825 = vadd.xlane.f32.xlu0 %v824
    %v826 = vpop.xlane.xlu0 %825
    %v827 = vsel %vm770, %v809, 0.0
    %828 = vadd.xlane.f32.xlu0 %v827
    %v829 = vpop.xlane.xlu0 %828
    %v830 = vsel %vm770, %v810, 0.0
    %831 = vadd.xlane.f32.xlu0 %v830
    %v832 = vpop.xlane.xlu0 %831
    %v833 = vsel %vm770, %v811, 0.0
    %834 = vadd.xlane.f32.xlu0 %v833
    %v835 = vpop.xlane.xlu0 %834
    %v836 = vmul.f32 %v814, %v795
    %v837 = vmul.f32 %v817, %v795
    %v838 = vmul.f32 %v820, %v795
    %v839 = vmul.f32 %v823, %v795
    %v840 = vmul.f32 %v826, %v795
    %v841 = vmul.f32 %v829, %v795
    %v842 = vmul.f32 %v832, %v795
    %v843 = vmul.f32 %v835, %v795
    %v844 = vmul.f32 %v796, %v796
    %v845 = vmul.f32 %v797, %v797
    %v846 = vmul.f32 %v798, %v798
    %v847 = vmul.f32 %v799, %v799
    %v848 = vmul.f32 %v800, %v800
    %v849 = vmul.f32 %v801, %v801
    %v850 = vmul.f32 %v802, %v802
    %v851 = vmul.f32 %v803, %v803
    %v852 = vsub.f32 %v836, %v844
    %v853 = vsub.f32 %v837, %v845
    %v854 = vsub.f32 %v838, %v846
    %v855 = vsub.f32 %v839, %v847
    %v856 = vsub.f32 %v840, %v848
    %v857 = vsub.f32 %v841, %v849
    %v858 = vsub.f32 %v842, %v850
    %v859 = vsub.f32 %v843, %v851
    %v860 = vsub.f32 %v738, %v796
    %v861 = vsub.f32 %v741, %v797
    %v862 = vsub.f32 %v746, %v798
    %v863 = vsub.f32 %v749, %v799
    %v864 = vsub.f32 %v754, %v800
    %v865 = vsub.f32 %v757, %v801
    %v866 = vsub.f32 %v762, %v802
    %v867 = vsub.f32 %v765, %v803
    %v868 = vadd.f32 %v852, 1e-05
    %v869 = vadd.f32 %v853, 1e-05
    %v870 = vadd.f32 %v854, 1e-05
    %v871 = vadd.f32 %v855, 1e-05
    %v872 = vadd.f32 %v856, 1e-05
    %v873 = vadd.f32 %v857, 1e-05
    %v874 = vadd.f32 %v858, 1e-05
    %v875 = vadd.f32 %v859, 1e-05
    %v876 = vrsqrt.pop %v868
    %v877 = vrsqrt.pop %v869
    %v878 = vrsqrt.pop %v870
    %v879 = vrsqrt.pop %v871
    %v880 = vrsqrt.pop %v872
    %v881 = vrsqrt.pop %v873
    %v882 = vrsqrt.pop %v874
    %v883 = vrsqrt.pop %v875
    %v884 = vmul.f32 %v860, %v876
    %v885 = vmul.f32 %v861, %v877
    %v886 = vmul.f32 %v862, %v878
    %v887 = vmul.f32 %v863, %v879
    %v888 = vmul.f32 %v864, %v880
    %v889 = vmul.f32 %v865, %v881
    %v890 = vmul.f32 %v866, %v882
    %v891 = vmul.f32 %v867, %v883
    %v892 = vlaneseq
    %v893 = vshrl.u32 %v892, 7
    %v894 = vsub.s32 0, %v893
    %v895 = vrot.slane %v768, %v894
    %v896 = vmul.f32 %v884, %v895
    %v897 = vmul.f32 %v885, %v895
    %v898 = vmul.f32 %v886, %v895
    %v899 = vmul.f32 %v887, %v895
    %v900 = vmul.f32 %v888, %v895
    %v901 = vmul.f32 %v889, %v895
    %v902 = vmul.f32 %v890, %v895
    %v903 = vmul.f32 %v891, %v895
    %v904 = vlaneseq
    %v905 = vshrl.u32 %v904, 7
    %v906 = vsub.s32 0, %v905
    %v907 = vrot.slane %v769, %v906
    %v908 = vadd.f32 %v896, %v907
    %v909 = vadd.f32 %v897, %v907
    %v910 = vadd.f32 %v898, %v907
    %v911 = vadd.f32 %v899, %v907
    %v912 = vadd.f32 %v900, %v907
    %v913 = vadd.f32 %v901, %v907
    %v914 = vadd.f32 %v902, %v907
    %v915 = vadd.f32 %v903, %v907
    %v916 = vld [vmem:[%s2] sm:$0xff]
    %v917 = vld [vmem:[%s2 + $0x8] sm:$0xff]
    %v918 = vld [vmem:[%s2 + $0x10] sm:$0xff]
    %v919 = vld [vmem:[%s2 + $0x18] sm:$0xff]
    %v920 = vld [vmem:[%s2 + $0x20] sm:$0xff]
    %v921 = vld [vmem:[%s2 + $0x28] sm:$0xff]
    %v922 = vld [vmem:[%s2 + $0x30] sm:$0xff]
    %v923 = vld [vmem:[%s2 + $0x38] sm:$0xff]
    %v924 = vld [vmem:[%s8 + $0x4] sm:$0x1]
    %v925 = vld [vmem:[%s8 + $0x5] sm:$0x1]
    %v926 = vsel %vm770, %v908, 0.0
    %927 = vadd.xlane.f32.xlu0 %v926
    %v928 = vpop.xlane.xlu0 %927
    %v929 = vsel %vm770, %v909, 0.0
    %930 = vadd.xlane.f32.xlu0 %v929
    %v931 = vpop.xlane.xlu0 %930
    %v932 = vsel %vm770, %v910, 0.0
    %933 = vadd.xlane.f32.xlu0 %v932
    %v934 = vpop.xlane.xlu0 %933
    %v935 = vsel %vm770, %v911, 0.0
    %936 = vadd.xlane.f32.xlu0 %v935
    %v937 = vpop.xlane.xlu0 %936
    %v938 = vsel %vm770, %v912, 0.0
    %939 = vadd.xlane.f32.xlu0 %v938
    %v940 = vpop.xlane.xlu0 %939
    %v941 = vsel %vm770, %v913, 0.0
    %942 = vadd.xlane.f32.xlu0 %v941
    %v943 = vpop.xlane.xlu0 %942
    %v944 = vsel %vm770, %v914, 0.0
    %945 = vadd.xlane.f32.xlu0 %v944
    %v946 = vpop.xlane.xlu0 %945
    %v947 = vsel %vm770, %v915, 0.0
    %948 = vadd.xlane.f32.xlu0 %v947
    %v949 = vpop.xlane.xlu0 %948
    %v950 = vmul.f32 %v928, %v795
    %v951 = vmul.f32 %v931, %v795
    %v952 = vmul.f32 %v934, %v795
    %v953 = vmul.f32 %v937, %v795
    %v954 = vmul.f32 %v940, %v795
    %v955 = vmul.f32 %v943, %v795
    %v956 = vmul.f32 %v946, %v795
    %v957 = vmul.f32 %v949, %v795
    %v958 = vmul.f32 %v908, %v908
    %v959 = vmul.f32 %v909, %v909
    %v960 = vmul.f32 %v910, %v910
    %v961 = vmul.f32 %v911, %v911
    %v962 = vmul.f32 %v912, %v912
    %v963 = vmul.f32 %v913, %v913
    %v964 = vmul.f32 %v914, %v914
    %v965 = vmul.f32 %v915, %v915
    %v966 = vsel %vm770, %v958, 0.0
    %967 = vadd.xlane.f32.xlu0 %v966
    %v968 = vpop.xlane.xlu0 %967
    %v969 = vsel %vm770, %v959, 0.0
    %970 = vadd.xlane.f32.xlu0 %v969
    %v971 = vpop.xlane.xlu0 %970
    %v972 = vsel %vm770, %v960, 0.0
    %973 = vadd.xlane.f32.xlu0 %v972
    %v974 = vpop.xlane.xlu0 %973
    %v975 = vsel %vm770, %v961, 0.0
    %976 = vadd.xlane.f32.xlu0 %v975
    %v977 = vpop.xlane.xlu0 %976
    %v978 = vsel %vm770, %v962, 0.0
    %979 = vadd.xlane.f32.xlu0 %v978
    %v980 = vpop.xlane.xlu0 %979
    %v981 = vsel %vm770, %v963, 0.0
    %982 = vadd.xlane.f32.xlu0 %v981
    %v983 = vpop.xlane.xlu0 %982
    %v984 = vsel %vm770, %v964, 0.0
    %985 = vadd.xlane.f32.xlu0 %v984
    %v986 = vpop.xlane.xlu0 %985
    %v987 = vsel %vm770, %v965, 0.0
    %988 = vadd.xlane.f32.xlu0 %v987
    %v989 = vpop.xlane.xlu0 %988
    %v990 = vmul.f32 %v968, %v795
    %v991 = vmul.f32 %v971, %v795
    %v992 = vmul.f32 %v974, %v795
    %v993 = vmul.f32 %v977, %v795
    %v994 = vmul.f32 %v980, %v795
    %v995 = vmul.f32 %v983, %v795
    %v996 = vmul.f32 %v986, %v795
    %v997 = vmul.f32 %v989, %v795
    %v998 = vmul.f32 %v950, %v950
    %v999 = vmul.f32 %v951, %v951
    %v1000 = vmul.f32 %v952, %v952
    %v1001 = vmul.f32 %v953, %v953
    %v1002 = vmul.f32 %v954, %v954
    %v1003 = vmul.f32 %v955, %v955
    %v1004 = vmul.f32 %v956, %v956
    %v1005 = vmul.f32 %v957, %v957
    %v1006 = vsub.f32 %v990, %v998
    %v1007 = vsub.f32 %v991, %v999
    %v1008 = vsub.f32 %v992, %v1000
    %v1009 = vsub.f32 %v993, %v1001
    %v1010 = vsub.f32 %v994, %v1002
    %v1011 = vsub.f32 %v995, %v1003
    %v1012 = vsub.f32 %v996, %v1004
    %v1013 = vsub.f32 %v997, %v1005
    %v1014 = vsub.f32 %v908, %v950
    %v1015 = vsub.f32 %v909, %v951
    %v1016 = vsub.f32 %v910, %v952
    %v1017 = vsub.f32 %v911, %v953
    %v1018 = vsub.f32 %v912, %v954
    %v1019 = vsub.f32 %v913, %v955
    %v1020 = vsub.f32 %v914, %v956
    %v1021 = vsub.f32 %v915, %v957
    %v1022 = vadd.f32 %v1006, 1e-05
    %v1023 = vadd.f32 %v1007, 1e-05
    %v1024 = vadd.f32 %v1008, 1e-05
    %v1025 = vadd.f32 %v1009, 1e-05
    %v1026 = vadd.f32 %v1010, 1e-05
    %v1027 = vadd.f32 %v1011, 1e-05
    %v1028 = vadd.f32 %v1012, 1e-05
    %v1029 = vadd.f32 %v1013, 1e-05
    %v1030 = vrsqrt.pop %v1022
    %v1031 = vrsqrt.pop %v1023
    %v1032 = vrsqrt.pop %v1024
    %v1033 = vrsqrt.pop %v1025
    %v1034 = vrsqrt.pop %v1026
    %v1035 = vrsqrt.pop %v1027
    %v1036 = vrsqrt.pop %v1028
    %v1037 = vrsqrt.pop %v1029
    %v1038 = vmul.f32 %v1014, %v1030
    %v1039 = vmul.f32 %v1015, %v1031
    %v1040 = vmul.f32 %v1016, %v1032
    %v1041 = vmul.f32 %v1017, %v1033
    %v1042 = vmul.f32 %v1018, %v1034
    %v1043 = vmul.f32 %v1019, %v1035
    %v1044 = vmul.f32 %v1020, %v1036
    %v1045 = vmul.f32 %v1021, %v1037
    %v1046 = vlaneseq
    %v1047 = vshrl.u32 %v1046, 7
    %v1048 = vsub.s32 0, %v1047
    %v1049 = vrot.slane %v924, %v1048
    %v1050 = vmul.f32 %v1038, %v1049
    %v1051 = vmul.f32 %v1039, %v1049
    %v1052 = vmul.f32 %v1040, %v1049
    %v1053 = vmul.f32 %v1041, %v1049
    %v1054 = vmul.f32 %v1042, %v1049
    %v1055 = vmul.f32 %v1043, %v1049
    %v1056 = vmul.f32 %v1044, %v1049
    %v1057 = vmul.f32 %v1045, %v1049
    %v1058 = vlaneseq
    %v1059 = vshrl.u32 %v1058, 7
    %v1060 = vsub.s32 0, %v1059
    %v1061 = vrot.slane %v925, %v1060
    %v1062 = vadd.f32 %v1050, %v1061
    %v1063 = vadd.f32 %v1051, %v1061
    %v1064 = vadd.f32 %v1052, %v1061
    %v1065 = vadd.f32 %v1053, %v1061
    %v1066 = vadd.f32 %v1054, %v1061
    %v1067 = vadd.f32 %v1055, %v1061
    %v1068 = vadd.f32 %v1056, %v1061
    %v1069 = vadd.f32 %v1057, %v1061
    %v1070 = vld [vmem:[%s5] sm:$0xff]
    %v1071 = vld [vmem:[%s5 + $0x8] sm:$0xff]
    %v1072 = vld [vmem:[%s5 + $0x10] sm:$0xff]
    %v1073 = vld [vmem:[%s5 + $0x18] sm:$0xff]
    %v1074 = vld [vmem:[%s8 + $0x8] sm:$0x1]
    %v1075 = vlaneseq
    %v1076 = vshrl.u32 %v1075, 7
    %v1077 = vsub.s32 0, %v1076
    %v1078 = vrot.slane %v1074, %v1077
    %v1080 = vsel %vm770, %v1062, 0
    %v1083 = vsel %vm770, %v1063, 0
    %v1086 = vsel %vm770, %v1064, 0
    %v1089 = vsel %vm770, %v1065, 0
    %v1092 = vsel %vm770, %v1066, 0
    %v1095 = vsel %vm770, %v1067, 0
    %v1098 = vsel %vm770, %v1068, 0
    %v1101 = vsel %vm770, %v1069, 0
    %1103 = vmatprep.subr.mxu0 0.0
    %1104 = vmatpush1.msra.mxu0 %v1070
    %1105 = vmatprep.subr.mxu0 0.0
    %1106 = vmatpush1.msra.mxu0 %v1071
    %1107 = vmatprep.subr.mxu0 0.0
    %1108 = vmatpush1.msra.mxu0 %v1072
    %1109 = vmatprep.subr.mxu0 0.0
    %1110 = vmatpush1.msra.mxu0 %v1073
    %1111 = vmatprep.subr.mxu0 0.0
    %1112 = vmatpush1.msra.mxu0 0.0
    %1113 = vmatprep.subr.mxu0 0.0
    %1114 = vmatpush1.msra.mxu0 0.0
    %1115 = vmatprep.subr.mxu0 0.0
    %1116 = vmatpush1.msra.mxu0 0.0
    %1117 = vmatprep.subr.mxu0 0.0
    %1118 = vmatpush1.msra.mxu0 0.0
    %1119 = vmatprep.subr.mxu0 0.0
    %1120 = vmatpush1.msra.mxu0 0.0
    %1121 = vmatprep.subr.mxu0 0.0
    %1122 = vmatpush1.msra.mxu0 0.0
    %1123 = vmatprep.subr.mxu0 0.0
    %1124 = vmatpush1.msra.mxu0 0.0
    %1125 = vmatprep.subr.mxu0 0.0
    %1126 = vmatpush1.msra.mxu0 0.0
    %1127 = vmatprep.subr.mxu0 0.0
    %1128 = vmatpush1.msra.mxu0 0.0
    %1129 = vmatprep.subr.mxu0 0.0
    %1130 = vmatpush1.msra.mxu0 0.0
    %1131 = vmatprep.subr.mxu0 0.0
    %1132 = vmatpush1.msra.mxu0 0.0
    %1133 = vmatprep.subr.mxu0 0.0
    %1134 = vmatpush1.msra.mxu0 0.0
    %1135 = vmatprep.subr.mxu0 0.0
    %1136 = vmatpush1.msra.mxu0 0.0
    %1137 = vmatprep.subr.mxu0 0.0
    %1138 = vmatpush1.msra.mxu0 0.0
    %1139 = vmatprep.subr.mxu0 0.0
    %1140 = vmatpush1.msra.mxu0 0.0
    %1141 = vmatprep.subr.mxu0 0.0
    %1142 = vmatpush1.msra.mxu0 0.0
    %1143 = vmatprep.subr.mxu0 0.0
    %1144 = vmatpush1.msra.mxu0 0.0
    %1145 = vmatprep.subr.mxu0 0.0
    %1146 = vmatpush1.msra.mxu0 0.0
    %1147 = vmatprep.subr.mxu0 0.0
    %1148 = vmatpush1.msra.mxu0 0.0
    %1149 = vmatprep.subr.mxu0 0.0
    %1150 = vmatpush1.msra.mxu0 0.0
    %1151 = vmatprep.subr.mxu0 0.0
    %1152 = vmatpush1.msra.mxu0 0.0
    %1153 = vmatprep.subr.mxu0 0.0
    %1154 = vmatpush1.msra.mxu0 0.0
    %1155 = vmatprep.subr.mxu0 0.0
    %1156 = vmatpush1.msra.mxu0 0.0
    %1157 = vmatprep.subr.mxu0 0.0
    %1158 = vmatpush1.msra.mxu0 0.0
    %1159 = vmatprep.subr.mxu0 0.0
    %1160 = vmatpush1.msra.mxu0 0.0
    %1161 = vmatprep.subr.mxu0 0.0
    %1162 = vmatpush1.msra.mxu0 0.0
    %1163 = vmatprep.subr.mxu0 0.0
    %1164 = vmatpush1.msra.mxu0 0.0
    %1165 = vmatprep.subr.mxu0 0.0
    %1166 = vmatpush1.msra.mxu0 0.0
    %1167 = vmatprep.mubr.f32.mxu0 0.0
    %1168 = vmatmul.mubr.f32.gmra.mrb[0].mxu0 %v1080
    %v1169 = vpop.f32.mrb[0].mxu0
    %v1170 = vadd.f32 %v1078, %v1169
    %v1171 = vpop.f32.mrb[0].mxu0
    %1172 = vmatprep.mubr.f32.mxu0 0.0
    %1173 = vmatmul.mubr.f32.gmra.mrb[0].mxu0 %v1083
    %v1174 = vpop.f32.mrb[0].mxu0
    %v1175 = vadd.f32 %v1078, %v1174
    %v1176 = vpop.f32.mrb[0].mxu0
    %1177 = vmatprep.mubr.f32.mxu0 0.0
    %1178 = vmatmul.mubr.f32.gmra.mrb[0].mxu0 %v1086
    %v1179 = vpop.f32.mrb[0].mxu0
    %v1180 = vadd.f32 %v1078, %v1179
    %v1181 = vpop.f32.mrb[0].mxu0
    %1182 = vmatprep.mubr.f32.mxu0 0.0
    %1183 = vmatmul.mubr.f32.gmra.mrb[0].mxu0 %v1089
    %v1184 = vpop.f32.mrb[0].mxu0
    %v1185 = vadd.f32 %v1078, %v1184
    %v1186 = vpop.f32.mrb[0].mxu0
    %1187 = vmatprep.mubr.f32.mxu0 0.0
    %1188 = vmatmul.mubr.f32.gmra.mrb[0].mxu0 %v1092
    %v1189 = vpop.f32.mrb[0].mxu0
    %v1190 = vadd.f32 %v1078, %v1189
    %v1191 = vpop.f32.mrb[0].mxu0
    %1192 = vmatprep.mubr.f32.mxu0 0.0
    %1193 = vmatmul.mubr.f32.gmra.mrb[0].mxu0 %v1095
    %v1194 = vpop.f32.mrb[0].mxu0
    %v1195 = vadd.f32 %v1078, %v1194
    %v1196 = vpop.f32.mrb[0].mxu0
    %1197 = vmatprep.mubr.f32.mxu0 0.0
    %1198 = vmatmul.mubr.f32.gmra.mrb[0].mxu0 %v1098
    %v1199 = vpop.f32.mrb[0].mxu0
    %v1200 = vadd.f32 %v1078, %v1199
    %v1201 = vpop.f32.mrb[0].mxu0
    %1202 = vmatprep.mubr.f32.mxu0 0.0
    %1203 = vmatmul.mubr.f32.gmra.mrb[0].mxu0 %v1101
    %v1204 = vpop.f32.mrb[0].mxu0
    %v1205 = vadd.f32 %v1078, %v1204
    %v1206 = vpop.f32.mrb[0].mxu0
    %1207 = vdwg.mxu0
    %1216 = vrot.lane.b32.xlu0 %v1170, 96
    %v1217 = vpop.permute.xlu0 %1216
    %1218 = vrot.lane.b32.xlu0 %v1175, 96
    %v1219 = vpop.permute.xlu0 %1218
    %1220 = vrot.lane.b32.xlu0 %v1180, 96
    %v1221 = vpop.permute.xlu0 %1220
    %1222 = vrot.lane.b32.xlu0 %v1185, 96
    %v1223 = vpop.permute.xlu0 %1222
    %1224 = vrot.lane.b32.xlu0 %v1190, 96
    %v1225 = vpop.permute.xlu0 %1224
    %1226 = vrot.lane.b32.xlu0 %v1195, 96
    %v1227 = vpop.permute.xlu0 %1226
    %1228 = vrot.lane.b32.xlu0 %v1200, 96
    %v1229 = vpop.permute.xlu0 %1228
    %1230 = vrot.lane.b32.xlu0 %v1205, 96
    %v1231 = vpop.permute.xlu0 %1230
    %vm1232 = vcmask 64512
    %v1233 = vsel %vm1232, %v1170, 0
    %v1235 = vsel %vm1232, %v1175, 0
    %v1237 = vsel %vm1232, %v1180, 0
    %v1239 = vsel %vm1232, %v1185, 0
    %v1241 = vsel %vm1232, %v1190, 0
    %v1243 = vsel %vm1232, %v1195, 0
    %v1245 = vsel %vm1232, %v1200, 0
    %v1247 = vsel %vm1232, %v1205, 0
    %v1249 = vsel %vm1232, %v1217, 0
    %v1251 = vsel %vm1232, %v1219, 0
    %v1253 = vsel %vm1232, %v1221, 0
    %v1255 = vsel %vm1232, %v1223, 0
    %v1257 = vsel %vm1232, %v1225, 0
    %v1259 = vsel %vm1232, %v1227, 0
    %v1261 = vsel %vm1232, %v1229, 0
    %v1263 = vsel %vm1232, %v1231, 0
    %1265 = vmatprep.subr.mxu0 0.0
    %1266 = vmatpush1.xpose.msra.mxu0 %v1249
    %1267 = vmatprep.subr.mxu0 0.0
    %1268 = vmatpush1.xpose.msra.mxu0 %v1251
    %1269 = vmatprep.subr.mxu0 0.0
    %1270 = vmatpush1.xpose.msra.mxu0 %v1253
    %1271 = vmatprep.subr.mxu0 0.0
    %1272 = vmatpush1.xpose.msra.mxu0 %v1255
    %1273 = vmatprep.subr.mxu0 0.0
    %1274 = vmatpush1.xpose.msra.mxu0 %v1257
    %1275 = vmatprep.subr.mxu0 0.0
    %1276 = vmatpush1.xpose.msra.mxu0 %v1259
    %1277 = vmatprep.subr.mxu0 0.0
    %1278 = vmatpush1.xpose.msra.mxu0 %v1261
    %1279 = vmatprep.subr.mxu0 0.0
    %1280 = vmatpush1.xpose.msra.mxu0 %v1263
    %1281 = vmatprep.subr.mxu0 0.0
    %1282 = vmatpush1.xpose.msra.mxu0 0.0
    %1283 = vmatprep.subr.mxu0 0.0
    %1284 = vmatpush1.xpose.msra.mxu0 0.0
    %1285 = vmatprep.subr.mxu0 0.0
    %1286 = vmatpush1.xpose.msra.mxu0 0.0
    %1287 = vmatprep.subr.mxu0 0.0
    %1288 = vmatpush1.xpose.msra.mxu0 0.0
    %1289 = vmatprep.subr.mxu0 0.0
    %1290 = vmatpush1.xpose.msra.mxu0 0.0
    %1291 = vmatprep.subr.mxu0 0.0
    %1292 = vmatpush1.xpose.msra.mxu0 0.0
    %1293 = vmatprep.subr.mxu0 0.0
    %1294 = vmatpush1.xpose.msra.mxu0 0.0
    %1295 = vmatprep.subr.mxu0 0.0
    %1296 = vmatpush1.xpose.msra.mxu0 0.0
    %1297 = vmatprep.subr.mxu0 0.0
    %1298 = vmatpush1.xpose.msra.mxu0 0.0
    %1299 = vmatprep.subr.mxu0 0.0
    %1300 = vmatpush1.xpose.msra.mxu0 0.0
    %1301 = vmatprep.subr.mxu0 0.0
    %1302 = vmatpush1.xpose.msra.mxu0 0.0
    %1303 = vmatprep.subr.mxu0 0.0
    %1304 = vmatpush1.xpose.msra.mxu0 0.0
    %1305 = vmatprep.subr.mxu0 0.0
    %1306 = vmatpush1.xpose.msra.mxu0 0.0
    %1307 = vmatprep.subr.mxu0 0.0
    %1308 = vmatpush1.xpose.msra.mxu0 0.0
    %1309 = vmatprep.subr.mxu0 0.0
    %1310 = vmatpush1.xpose.msra.mxu0 0.0
    %1311 = vmatprep.subr.mxu0 0.0
    %1312 = vmatpush1.xpose.msra.mxu0 0.0
    %1313 = vmatprep.subr.mxu0 0.0
    %1314 = vmatpush1.xpose.msra.mxu0 0.0
    %1315 = vmatprep.subr.mxu0 0.0
    %1316 = vmatpush1.xpose.msra.mxu0 0.0
    %1317 = vmatprep.subr.mxu0 0.0
    %1318 = vmatpush1.xpose.msra.mxu0 0.0
    %1319 = vmatprep.subr.mxu0 0.0
    %1320 = vmatpush1.xpose.msra.mxu0 0.0
    %1321 = vmatprep.subr.mxu0 0.0
    %1322 = vmatpush1.xpose.msra.mxu0 0.0
    %1323 = vmatprep.subr.mxu0 0.0
    %1324 = vmatpush1.xpose.msra.mxu0 0.0
    %1325 = vmatprep.subr.mxu0 0.0
    %1326 = vmatpush1.xpose.msra.mxu0 0.0
    %1327 = vmatprep.subr.mxu0 0.0
    %1328 = vmatpush1.xpose.msra.mxu0 0.0
    %1329 = vmatprep.mubr.f32.mxu0 0.0
    %1330 = vmatmul.mubr.f32.gmra.mrb[0].mxu0 %v1233
    %v1331 = vpop.f32.mrb[0].mxu0
    %v1332 = vadd.f32 %v916, %v1331
    %v1333 = vpop.f32.mrb[0].mxu0
    %1334 = vmatprep.mubr.f32.mxu0 0.0
    %1335 = vmatmul.mubr.f32.gmra.mrb[0].mxu0 %v1235
    %v1336 = vpop.f32.mrb[0].mxu0
    %v1337 = vadd.f32 %v917, %v1336
    %v1338 = vpop.f32.mrb[0].mxu0
    %1339 = vmatprep.mubr.f32.mxu0 0.0
    %1340 = vmatmul.mubr.f32.gmra.mrb[0].mxu0 %v1237
    %v1341 = vpop.f32.mrb[0].mxu0
    %v1342 = vadd.f32 %v918, %v1341
    %v1343 = vpop.f32.mrb[0].mxu0
    %1344 = vmatprep.mubr.f32.mxu0 0.0
    %1345 = vmatmul.mubr.f32.gmra.mrb[0].mxu0 %v1239
    %v1346 = vpop.f32.mrb[0].mxu0
    %v1347 = vadd.f32 %v919, %v1346
    %v1348 = vpop.f32.mrb[0].mxu0
    %1349 = vmatprep.mubr.f32.mxu0 0.0
    %1350 = vmatmul.mubr.f32.gmra.mrb[0].mxu0 %v1241
    %v1351 = vpop.f32.mrb[0].mxu0
    %v1352 = vadd.f32 %v920, %v1351
    %v1353 = vpop.f32.mrb[0].mxu0
    %1354 = vmatprep.mubr.f32.mxu0 0.0
    %1355 = vmatmul.mubr.f32.gmra.mrb[0].mxu0 %v1243
    %v1356 = vpop.f32.mrb[0].mxu0
    %v1357 = vadd.f32 %v921, %v1356
    %v1358 = vpop.f32.mrb[0].mxu0
    %1359 = vmatprep.mubr.f32.mxu0 0.0
    %1360 = vmatmul.mubr.f32.gmra.mrb[0].mxu0 %v1245
    %v1361 = vpop.f32.mrb[0].mxu0
    %v1362 = vadd.f32 %v922, %v1361
    %v1363 = vpop.f32.mrb[0].mxu0
    %1364 = vmatprep.mubr.f32.mxu0 0.0
    %1365 = vmatmul.mubr.f32.gmra.mrb[0].mxu0 %v1247
    %v1366 = vpop.f32.mrb[0].mxu0
    %v1367 = vadd.f32 %v923, %v1366
    %v1368 = vpop.f32.mrb[0].mxu0
    %1369 = vdwg.mxu0
    %vm1370 = vcmask 523264
    %v1371 = vsel %vm1370, %v1332, -inf
    %1372 = vmax.xlane.f32.xlu0 %v1371
    %v1373 = vpop.xlane.xlu0 %1372
    %v1374 = vsel %vm1370, %v1337, -inf
    %1375 = vmax.xlane.f32.xlu0 %v1374
    %v1376 = vpop.xlane.xlu0 %1375
    %v1377 = vsel %vm1370, %v1342, -inf
    %1378 = vmax.xlane.f32.xlu0 %v1377
    %v1379 = vpop.xlane.xlu0 %1378
    %v1380 = vsel %vm1370, %v1347, -inf
    %1381 = vmax.xlane.f32.xlu0 %v1380
    %v1382 = vpop.xlane.xlu0 %1381
    %v1383 = vsel %vm1370, %v1352, -inf
    %1384 = vmax.xlane.f32.xlu0 %v1383
    %v1385 = vpop.xlane.xlu0 %1384
    %v1386 = vsel %vm1370, %v1357, -inf
    %1387 = vmax.xlane.f32.xlu0 %v1386
    %v1388 = vpop.xlane.xlu0 %1387
    %v1389 = vsel %vm1370, %v1362, -inf
    %1390 = vmax.xlane.f32.xlu0 %v1389
    %v1391 = vpop.xlane.xlu0 %1390
    %v1392 = vsel %vm1370, %v1367, -inf
    %1393 = vmax.xlane.f32.xlu0 %v1392
    %v1394 = vpop.xlane.xlu0 %1393
    %v1395 = vsub.f32 %v1332, %v1373
    %v1396 = vsub.f32 %v1337, %v1376
    %v1397 = vsub.f32 %v1342, %v1379
    %v1398 = vsub.f32 %v1347, %v1382
    %v1399 = vsub.f32 %v1352, %v1385
    %v1400 = vsub.f32 %v1357, %v1388
    %v1401 = vsub.f32 %v1362, %v1391
    %v1402 = vsub.f32 %v1367, %v1394
    %v1403 = vmul.f32 %v1395, 1.442695
    %v1404 = vpow.pop %v1403
    %v1405 = vmul.f32 %v1396, 1.442695
    %v1406 = vpow.pop %v1405
    %v1407 = vmul.f32 %v1397, 1.442695
    %v1408 = vpow.pop %v1407
    %v1409 = vmul.f32 %v1398, 1.442695
    %v1410 = vpow.pop %v1409
    %v1411 = vmul.f32 %v1399, 1.442695
    %v1412 = vpow.pop %v1411
    %v1413 = vmul.f32 %v1400, 1.442695
    %v1414 = vpow.pop %v1413
    %v1415 = vmul.f32 %v1401, 1.442695
    %v1416 = vpow.pop %v1415
    %v1417 = vmul.f32 %v1402, 1.442695
    %v1418 = vpow.pop %v1417
    %v1419 = vsel %vm1370, %v1404, 0.0
    %1420 = vadd.xlane.f32.xlu0 %v1419
    %v1421 = vpop.xlane.xlu0 %1420
    %v1422 = vsel %vm1370, %v1406, 0.0
    %1423 = vadd.xlane.f32.xlu0 %v1422
    %v1424 = vpop.xlane.xlu0 %1423
    %v1425 = vsel %vm1370, %v1408, 0.0
    %1426 = vadd.xlane.f32.xlu0 %v1425
    %v1427 = vpop.xlane.xlu0 %1426
    %v1428 = vsel %vm1370, %v1410, 0.0
    %1429 = vadd.xlane.f32.xlu0 %v1428
    %v1430 = vpop.xlane.xlu0 %1429
    %v1431 = vsel %vm1370, %v1412, 0.0
    %1432 = vadd.xlane.f32.xlu0 %v1431
    %v1433 = vpop.xlane.xlu0 %1432
    %v1434 = vsel %vm1370, %v1414, 0.0
    %1435 = vadd.xlane.f32.xlu0 %v1434
    %v1436 = vpop.xlane.xlu0 %1435
    %v1437 = vsel %vm1370, %v1416, 0.0
    %1438 = vadd.xlane.f32.xlu0 %v1437
    %v1439 = vpop.xlane.xlu0 %1438
    %v1440 = vsel %vm1370, %v1418, 0.0
    %1441 = vadd.xlane.f32.xlu0 %v1440
    %v1442 = vpop.xlane.xlu0 %1441
    %v1443 = vrcp.pop %v1421
    %v1444 = vrcp.pop %v1424
    %v1445 = vrcp.pop %v1427
    %v1446 = vrcp.pop %v1430
    %v1447 = vrcp.pop %v1433
    %v1448 = vrcp.pop %v1436
    %v1449 = vrcp.pop %v1439
    %v1450 = vrcp.pop %v1442
    %v1451 = vmul.f32 %v1404, %v1443
    %v1452 = vmul.f32 %v1406, %v1444
    %v1453 = vmul.f32 %v1408, %v1445
    %v1454 = vmul.f32 %v1410, %v1446
    %v1455 = vmul.f32 %v1412, %v1447
    %v1456 = vmul.f32 %v1414, %v1448
    %v1457 = vmul.f32 %v1416, %v1449
    %v1458 = vmul.f32 %v1418, %v1450
    %1459 = vrot.lane.b32.xlu0 %v1170, 64
    %v1460 = vpop.permute.xlu0 %1459
    %1461 = vrot.lane.b32.xlu0 %v1175, 64
    %v1462 = vpop.permute.xlu0 %1461
    %1463 = vrot.lane.b32.xlu0 %v1180, 64
    %v1464 = vpop.permute.xlu0 %1463
    %1465 = vrot.lane.b32.xlu0 %v1185, 64
    %v1466 = vpop.permute.xlu0 %1465
    %1467 = vrot.lane.b32.xlu0 %v1190, 64
    %v1468 = vpop.permute.xlu0 %1467
    %1469 = vrot.lane.b32.xlu0 %v1195, 64
    %v1470 = vpop.permute.xlu0 %1469
    %1471 = vrot.lane.b32.xlu0 %v1200, 64
    %v1472 = vpop.permute.xlu0 %1471
    %1473 = vrot.lane.b32.xlu0 %v1205, 64
    %v1474 = vpop.permute.xlu0 %1473
    %v1484 = vsel %vm1370, %v1451, 0
    %v1487 = vsel %vm1370, %v1452, 0
    %v1490 = vsel %vm1370, %v1453, 0
    %v1493 = vsel %vm1370, %v1454, 0
    %v1496 = vsel %vm1370, %v1455, 0
    %v1499 = vsel %vm1370, %v1456, 0
    %v1502 = vsel %vm1370, %v1457, 0
    %v1505 = vsel %vm1370, %v1458, 0
    %1507 = vmatprep.subr.mxu0 0.0
    %1508 = vmatpush1.msra.mxu0 %v1460
    %1509 = vmatprep.subr.mxu0 0.0
    %1510 = vmatpush1.msra.mxu0 %v1462
    %1511 = vmatprep.subr.mxu0 0.0
    %1512 = vmatpush1.msra.mxu0 %v1464
    %1513 = vmatprep.subr.mxu0 0.0
    %1514 = vmatpush1.msra.mxu0 %v1466
    %1515 = vmatprep.subr.mxu0 0.0
    %1516 = vmatpush1.msra.mxu0 %v1468
    %1517 = vmatprep.subr.mxu0 0.0
    %1518 = vmatpush1.msra.mxu0 %v1470
    %1519 = vmatprep.subr.mxu0 0.0
    %1520 = vmatpush1.msra.mxu0 %v1472
    %1521 = vmatprep.subr.mxu0 0.0
    %1522 = vmatpush1.msra.mxu0 %v1474
    %1523 = vmatprep.subr.mxu0 0.0
    %1524 = vmatpush1.msra.mxu0 0.0
    %1525 = vmatprep.subr.mxu0 0.0
    %1526 = vmatpush1.msra.mxu0 0.0
    %1527 = vmatprep.subr.mxu0 0.0
    %1528 = vmatpush1.msra.mxu0 0.0
    %1529 = vmatprep.subr.mxu0 0.0
    %1530 = vmatpush1.msra.mxu0 0.0
    %1531 = vmatprep.subr.mxu0 0.0
    %1532 = vmatpush1.msra.mxu0 0.0
    %1533 = vmatprep.subr.mxu0 0.0
    %1534 = vmatpush1.msra.mxu0 0.0
    %1535 = vmatprep.subr.mxu0 0.0
    %1536 = vmatpush1.msra.mxu0 0.0
    %1537 = vmatprep.subr.mxu0 0.0
    %1538 = vmatpush1.msra.mxu0 0.0
    %1539 = vmatprep.subr.mxu0 0.0
    %1540 = vmatpush1.msra.mxu0 0.0
    %1541 = vmatprep.subr.mxu0 0.0
    %1542 = vmatpush1.msra.mxu0 0.0
    %1543 = vmatprep.subr.mxu0 0.0
    %1544 = vmatpush1.msra.mxu0 0.0
    %1545 = vmatprep.subr.mxu0 0.0
    %1546 = vmatpush1.msra.mxu0 0.0
    %1547 = vmatprep.subr.mxu0 0.0
    %1548 = vmatpush1.msra.mxu0 0.0
    %1549 = vmatprep.subr.mxu0 0.0
    %1550 = vmatpush1.msra.mxu0 0.0
    %1551 = vmatprep.subr.mxu0 0.0
    %1552 = vmatpush1.msra.mxu0 0.0
    %1553 = vmatprep.subr.mxu0 0.0
    %1554 = vmatpush1.msra.mxu0 0.0
    %1555 = vmatprep.subr.mxu0 0.0
    %1556 = vmatpush1.msra.mxu0 0.0
    %1557 = vmatprep.subr.mxu0 0.0
    %1558 = vmatpush1.msra.mxu0 0.0
    %1559 = vmatprep.subr.mxu0 0.0
    %1560 = vmatpush1.msra.mxu0 0.0
    %1561 = vmatprep.subr.mxu0 0.0
    %1562 = vmatpush1.msra.mxu0 0.0
    %1563 = vmatprep.subr.mxu0 0.0
    %1564 = vmatpush1.msra.mxu0 0.0
    %1565 = vmatprep.subr.mxu0 0.0
    %1566 = vmatpush1.msra.mxu0 0.0
    %1567 = vmatprep.subr.mxu0 0.0
    %1568 = vmatpush1.msra.mxu0 0.0
    %1569 = vmatprep.subr.mxu0 0.0
    %1570 = vmatpush1.msra.mxu0 0.0
    %1571 = vmatprep.mubr.f32.mxu0 0.0
    %1572 = vmatmul.mubr.f32.gmra.mrb[0].mxu0 %v1484
    %v1573 = vpop.f32.mrb[0].mxu0
    %v1574 = vadd.f32 0.0, %v1573
    %v1575 = vpop.f32.mrb[0].mxu0
    %1576 = vmatprep.mubr.f32.mxu0 0.0
    %1577 = vmatmul.mubr.f32.gmra.mrb[0].mxu0 %v1487
    %v1578 = vpop.f32.mrb[0].mxu0
    %v1579 = vadd.f32 0.0, %v1578
    %v1580 = vpop.f32.mrb[0].mxu0
    %1581 = vmatprep.mubr.f32.mxu0 0.0
    %1582 = vmatmul.mubr.f32.gmra.mrb[0].mxu0 %v1490
    %v1583 = vpop.f32.mrb[0].mxu0
    %v1584 = vadd.f32 0.0, %v1583
    %v1585 = vpop.f32.mrb[0].mxu0
    %1586 = vmatprep.mubr.f32.mxu0 0.0
    %1587 = vmatmul.mubr.f32.gmra.mrb[0].mxu0 %v1493
    %v1588 = vpop.f32.mrb[0].mxu0
    %v1589 = vadd.f32 0.0, %v1588
    %v1590 = vpop.f32.mrb[0].mxu0
    %1591 = vmatprep.mubr.f32.mxu0 0.0
    %1592 = vmatmul.mubr.f32.gmra.mrb[0].mxu0 %v1496
    %v1593 = vpop.f32.mrb[0].mxu0
    %v1594 = vadd.f32 0.0, %v1593
    %v1595 = vpop.f32.mrb[0].mxu0
    %1596 = vmatprep.mubr.f32.mxu0 0.0
    %1597 = vmatmul.mubr.f32.gmra.mrb[0].mxu0 %v1499
    %v1598 = vpop.f32.mrb[0].mxu0
    %v1599 = vadd.f32 0.0, %v1598
    %v1600 = vpop.f32.mrb[0].mxu0
    %1601 = vmatprep.mubr.f32.mxu0 0.0
    %1602 = vmatmul.mubr.f32.gmra.mrb[0].mxu0 %v1502
    %v1603 = vpop.f32.mrb[0].mxu0
    %v1604 = vadd.f32 0.0, %v1603
    %v1605 = vpop.f32.mrb[0].mxu0
    %1606 = vmatprep.mubr.f32.mxu0 0.0
    %1607 = vmatmul.mubr.f32.gmra.mrb[0].mxu0 %v1505
    %v1608 = vpop.f32.mrb[0].mxu0
    %v1609 = vadd.f32 0.0, %v1608
    %v1610 = vpop.f32.mrb[0].mxu0
    %1611 = vdwg.mxu0
    %1612 = vrot.lane.b32.xlu0 %v1170, 120
    %v1613 = vpop.permute.xlu0 %1612
    %1614 = vrot.lane.b32.xlu0 %v1175, 120
    %v1615 = vpop.permute.xlu0 %1614
    %1616 = vrot.lane.b32.xlu0 %v1180, 120
    %v1617 = vpop.permute.xlu0 %1616
    %1618 = vrot.lane.b32.xlu0 %v1185, 120
    %v1619 = vpop.permute.xlu0 %1618
    %1620 = vrot.lane.b32.xlu0 %v1190, 120
    %v1621 = vpop.permute.xlu0 %1620
    %1622 = vrot.lane.b32.xlu0 %v1195, 120
    %v1623 = vpop.permute.xlu0 %1622
    %1624 = vrot.lane.b32.xlu0 %v1200, 120
    %v1625 = vpop.permute.xlu0 %1624
    %1626 = vrot.lane.b32.xlu0 %v1205, 120
    %v1627 = vpop.permute.xlu0 %1626
    %1628 = vrot.lane.b32.xlu0 %v1170, 88
    %v1629 = vpop.permute.xlu0 %1628
    %1630 = vrot.lane.b32.xlu0 %v1175, 88
    %v1631 = vpop.permute.xlu0 %1630
    %1632 = vrot.lane.b32.xlu0 %v1180, 88
    %v1633 = vpop.permute.xlu0 %1632
    %1634 = vrot.lane.b32.xlu0 %v1185, 88
    %v1635 = vpop.permute.xlu0 %1634
    %1636 = vrot.lane.b32.xlu0 %v1190, 88
    %v1637 = vpop.permute.xlu0 %1636
    %1638 = vrot.lane.b32.xlu0 %v1195, 88
    %v1639 = vpop.permute.xlu0 %1638
    %1640 = vrot.lane.b32.xlu0 %v1200, 88
    %v1641 = vpop.permute.xlu0 %1640
    %1642 = vrot.lane.b32.xlu0 %v1205, 88
    %v1643 = vpop.permute.xlu0 %1642
    %v1644 = vsel %vm1232, %v1613, 0
    %v1646 = vsel %vm1232, %v1615, 0
    %v1648 = vsel %vm1232, %v1617, 0
    %v1650 = vsel %vm1232, %v1619, 0
    %v1652 = vsel %vm1232, %v1621, 0
    %v1654 = vsel %vm1232, %v1623, 0
    %v1656 = vsel %vm1232, %v1625, 0
    %v1658 = vsel %vm1232, %v1627, 0
    %v1660 = vsel %vm1232, %v1629, 0
    %v1662 = vsel %vm1232, %v1631, 0
    %v1664 = vsel %vm1232, %v1633, 0
    %v1666 = vsel %vm1232, %v1635, 0
    %v1668 = vsel %vm1232, %v1637, 0
    %v1670 = vsel %vm1232, %v1639, 0
    %v1672 = vsel %vm1232, %v1641, 0
    %v1674 = vsel %vm1232, %v1643, 0
    %1676 = vmatprep.subr.mxu0 0.0
    %1677 = vmatpush1.xpose.msra.mxu0 %v1660
    %1678 = vmatprep.subr.mxu0 0.0
    %1679 = vmatpush1.xpose.msra.mxu0 %v1662
    %1680 = vmatprep.subr.mxu0 0.0
    %1681 = vmatpush1.xpose.msra.mxu0 %v1664
    %1682 = vmatprep.subr.mxu0 0.0
    %1683 = vmatpush1.xpose.msra.mxu0 %v1666
    %1684 = vmatprep.subr.mxu0 0.0
    %1685 = vmatpush1.xpose.msra.mxu0 %v1668
    %1686 = vmatprep.subr.mxu0 0.0
    %1687 = vmatpush1.xpose.msra.mxu0 %v1670
    %1688 = vmatprep.subr.mxu0 0.0
    %1689 = vmatpush1.xpose.msra.mxu0 %v1672
    %1690 = vmatprep.subr.mxu0 0.0
    %1691 = vmatpush1.xpose.msra.mxu0 %v1674
    %1692 = vmatprep.subr.mxu0 0.0
    %1693 = vmatpush1.xpose.msra.mxu0 0.0
    %1694 = vmatprep.subr.mxu0 0.0
    %1695 = vmatpush1.xpose.msra.mxu0 0.0
    %1696 = vmatprep.subr.mxu0 0.0
    %1697 = vmatpush1.xpose.msra.mxu0 0.0
    %1698 = vmatprep.subr.mxu0 0.0
    %1699 = vmatpush1.xpose.msra.mxu0 0.0
    %1700 = vmatprep.subr.mxu0 0.0
    %1701 = vmatpush1.xpose.msra.mxu0 0.0
    %1702 = vmatprep.subr.mxu0 0.0
    %1703 = vmatpush1.xpose.msra.mxu0 0.0
    %1704 = vmatprep.subr.mxu0 0.0
    %1705 = vmatpush1.xpose.msra.mxu0 0.0
    %1706 = vmatprep.subr.mxu0 0.0
    %1707 = vmatpush1.xpose.msra.mxu0 0.0
    %1708 = vmatprep.subr.mxu0 0.0
    %1709 = vmatpush1.xpose.msra.mxu0 0.0
    %1710 = vmatprep.subr.mxu0 0.0
    %1711 = vmatpush1.xpose.msra.mxu0 0.0
    %1712 = vmatprep.subr.mxu0 0.0
    %1713 = vmatpush1.xpose.msra.mxu0 0.0
    %1714 = vmatprep.subr.mxu0 0.0
    %1715 = vmatpush1.xpose.msra.mxu0 0.0
    %1716 = vmatprep.subr.mxu0 0.0
    %1717 = vmatpush1.xpose.msra.mxu0 0.0
    %1718 = vmatprep.subr.mxu0 0.0
    %1719 = vmatpush1.xpose.msra.mxu0 0.0
    %1720 = vmatprep.subr.mxu0 0.0
    %1721 = vmatpush1.xpose.msra.mxu0 0.0
    %1722 = vmatprep.subr.mxu0 0.0
    %1723 = vmatpush1.xpose.msra.mxu0 0.0
    %1724 = vmatprep.subr.mxu0 0.0
    %1725 = vmatpush1.xpose.msra.mxu0 0.0
    %1726 = vmatprep.subr.mxu0 0.0
    %1727 = vmatpush1.xpose.msra.mxu0 0.0
    %1728 = vmatprep.subr.mxu0 0.0
    %1729 = vmatpush1.xpose.msra.mxu0 0.0
    %1730 = vmatprep.subr.mxu0 0.0
    %1731 = vmatpush1.xpose.msra.mxu0 0.0
    %1732 = vmatprep.subr.mxu0 0.0
    %1733 = vmatpush1.xpose.msra.mxu0 0.0
    %1734 = vmatprep.subr.mxu0 0.0
    %1735 = vmatpush1.xpose.msra.mxu0 0.0
    %1736 = vmatprep.subr.mxu0 0.0
    %1737 = vmatpush1.xpose.msra.mxu0 0.0
    %1738 = vmatprep.subr.mxu0 0.0
    %1739 = vmatpush1.xpose.msra.mxu0 0.0
    %1740 = vmatprep.mubr.f32.mxu0 0.0
    %1741 = vmatmul.mubr.f32.gmra.mrb[0].mxu0 %v1644
    %v1742 = vpop.f32.mrb[0].mxu0
    %v1743 = vadd.f32 %v916, %v1742
    %v1744 = vpop.f32.mrb[0].mxu0
    %1745 = vmatprep.mubr.f32.mxu0 0.0
    %1746 = vmatmul.mubr.f32.gmra.mrb[0].mxu0 %v1646
    %v1747 = vpop.f32.mrb[0].mxu0
    %v1748 = vadd.f32 %v917, %v1747
    %v1749 = vpop.f32.mrb[0].mxu0
    %1750 = vmatprep.mubr.f32.mxu0 0.0
    %1751 = vmatmul.mubr.f32.gmra.mrb[0].mxu0 %v1648
    %v1752 = vpop.f32.mrb[0].mxu0
    %v1753 = vadd.f32 %v918, %v1752
    %v1754 = vpop.f32.mrb[0].mxu0
    %1755 = vmatprep.mubr.f32.mxu0 0.0
    %1756 = vmatmul.mubr.f32.gmra.mrb[0].mxu0 %v1650
    %v1757 = vpop.f32.mrb[0].mxu0
    %v1758 = vadd.f32 %v919, %v1757
    %v1759 = vpop.f32.mrb[0].mxu0
    %1760 = vmatprep.mubr.f32.mxu0 0.0
    %1761 = vmatmul.mubr.f32.gmra.mrb[0].mxu0 %v1652
    %v1762 = vpop.f32.mrb[0].mxu0
    %v1763 = vadd.f32 %v920, %v1762
    %v1764 = vpop.f32.mrb[0].mxu0
    %1765 = vmatprep.mubr.f32.mxu0 0.0
    %1766 = vmatmul.mubr.f32.gmra.mrb[0].mxu0 %v1654
    %v1767 = vpop.f32.mrb[0].mxu0
    %v1768 = vadd.f32 %v921, %v1767
    %v1769 = vpop.f32.mrb[0].mxu0
    %1770 = vmatprep.mubr.f32.mxu0 0.0
    %1771 = vmatmul.mubr.f32.gmra.mrb[0].mxu0 %v1656
    %v1772 = vpop.f32.mrb[0].mxu0
    %v1773 = vadd.f32 %v922, %v1772
    %v1774 = vpop.f32.mrb[0].mxu0
    %1775 = vmatprep.mubr.f32.mxu0 0.0
    %1776 = vmatmul.mubr.f32.gmra.mrb[0].mxu0 %v1658
    %v1777 = vpop.f32.mrb[0].mxu0
    %v1778 = vadd.f32 %v923, %v1777
    %v1779 = vpop.f32.mrb[0].mxu0
    %1780 = vdwg.mxu0
    %v1781 = vsel %vm1370, %v1743, -inf
    %1782 = vmax.xlane.f32.xlu0 %v1781
    %v1783 = vpop.xlane.xlu0 %1782
    %v1784 = vsel %vm1370, %v1748, -inf
    %1785 = vmax.xlane.f32.xlu0 %v1784
    %v1786 = vpop.xlane.xlu0 %1785
    %v1787 = vsel %vm1370, %v1753, -inf
    %1788 = vmax.xlane.f32.xlu0 %v1787
    %v1789 = vpop.xlane.xlu0 %1788
    %v1790 = vsel %vm1370, %v1758, -inf
    %1791 = vmax.xlane.f32.xlu0 %v1790
    %v1792 = vpop.xlane.xlu0 %1791
    %v1793 = vsel %vm1370, %v1763, -inf
    %1794 = vmax.xlane.f32.xlu0 %v1793
    %v1795 = vpop.xlane.xlu0 %1794
    %v1796 = vsel %vm1370, %v1768, -inf
    %1797 = vmax.xlane.f32.xlu0 %v1796
    %v1798 = vpop.xlane.xlu0 %1797
    %v1799 = vsel %vm1370, %v1773, -inf
    %1800 = vmax.xlane.f32.xlu0 %v1799
    %v1801 = vpop.xlane.xlu0 %1800
    %v1802 = vsel %vm1370, %v1778, -inf
    %1803 = vmax.xlane.f32.xlu0 %v1802
    %v1804 = vpop.xlane.xlu0 %1803
    %v1805 = vsub.f32 %v1743, %v1783
    %v1806 = vsub.f32 %v1748, %v1786
    %v1807 = vsub.f32 %v1753, %v1789
    %v1808 = vsub.f32 %v1758, %v1792
    %v1809 = vsub.f32 %v1763, %v1795
    %v1810 = vsub.f32 %v1768, %v1798
    %v1811 = vsub.f32 %v1773, %v1801
    %v1812 = vsub.f32 %v1778, %v1804
    %v1813 = vmul.f32 %v1805, 1.442695
    %v1814 = vpow.pop %v1813
    %v1815 = vmul.f32 %v1806, 1.442695
    %v1816 = vpow.pop %v1815
    %v1817 = vmul.f32 %v1807, 1.442695
    %v1818 = vpow.pop %v1817
    %v1819 = vmul.f32 %v1808, 1.442695
    %v1820 = vpow.pop %v1819
    %v1821 = vmul.f32 %v1809, 1.442695
    %v1822 = vpow.pop %v1821
    %v1823 = vmul.f32 %v1810, 1.442695
    %v1824 = vpow.pop %v1823
    %v1825 = vmul.f32 %v1811, 1.442695
    %v1826 = vpow.pop %v1825
    %v1827 = vmul.f32 %v1812, 1.442695
    %v1828 = vpow.pop %v1827
    %v1829 = vsel %vm1370, %v1814, 0.0
    %1830 = vadd.xlane.f32.xlu0 %v1829
    %v1831 = vpop.xlane.xlu0 %1830
    %v1832 = vsel %vm1370, %v1816, 0.0
    %1833 = vadd.xlane.f32.xlu0 %v1832
    %v1834 = vpop.xlane.xlu0 %1833
    %v1835 = vsel %vm1370, %v1818, 0.0
    %1836 = vadd.xlane.f32.xlu0 %v1835
    %v1837 = vpop.xlane.xlu0 %1836
    %v1838 = vsel %vm1370, %v1820, 0.0
    %1839 = vadd.xlane.f32.xlu0 %v1838
    %v1840 = vpop.xlane.xlu0 %1839
    %v1841 = vsel %vm1370, %v1822, 0.0
    %1842 = vadd.xlane.f32.xlu0 %v1841
    %v1843 = vpop.xlane.xlu0 %1842
    %v1844 = vsel %vm1370, %v1824, 0.0
    %1845 = vadd.xlane.f32.xlu0 %v1844
    %v1846 = vpop.xlane.xlu0 %1845
    %v1847 = vsel %vm1370, %v1826, 0.0
    %1848 = vadd.xlane.f32.xlu0 %v1847
    %v1849 = vpop.xlane.xlu0 %1848
    %v1850 = vsel %vm1370, %v1828, 0.0
    %1851 = vadd.xlane.f32.xlu0 %v1850
    %v1852 = vpop.xlane.xlu0 %1851
    %v1853 = vrcp.pop %v1831
    %v1854 = vrcp.pop %v1834
    %v1855 = vrcp.pop %v1837
    %v1856 = vrcp.pop %v1840
    %v1857 = vrcp.pop %v1843
    %v1858 = vrcp.pop %v1846
    %v1859 = vrcp.pop %v1849
    %v1860 = vrcp.pop %v1852
    %v1861 = vmul.f32 %v1814, %v1853
    %v1862 = vmul.f32 %v1816, %v1854
    %v1863 = vmul.f32 %v1818, %v1855
    %v1864 = vmul.f32 %v1820, %v1856
    %v1865 = vmul.f32 %v1822, %v1857
    %v1866 = vmul.f32 %v1824, %v1858
    %v1867 = vmul.f32 %v1826, %v1859
    %v1868 = vmul.f32 %v1828, %v1860
    %1869 = vrot.lane.b32.xlu0 %v1170, 56
    %v1870 = vpop.permute.xlu0 %1869
    %1871 = vrot.lane.b32.xlu0 %v1175, 56
    %v1872 = vpop.permute.xlu0 %1871
    %1873 = vrot.lane.b32.xlu0 %v1180, 56
    %v1874 = vpop.permute.xlu0 %1873
    %1875 = vrot.lane.b32.xlu0 %v1185, 56
    %v1876 = vpop.permute.xlu0 %1875
    %1877 = vrot.lane.b32.xlu0 %v1190, 56
    %v1878 = vpop.permute.xlu0 %1877
    %1879 = vrot.lane.b32.xlu0 %v1195, 56
    %v1880 = vpop.permute.xlu0 %1879
    %1881 = vrot.lane.b32.xlu0 %v1200, 56
    %v1882 = vpop.permute.xlu0 %1881
    %1883 = vrot.lane.b32.xlu0 %v1205, 56
    %v1884 = vpop.permute.xlu0 %1883
    %v1894 = vsel %vm1370, %v1861, 0
    %v1897 = vsel %vm1370, %v1862, 0
    %v1900 = vsel %vm1370, %v1863, 0
    %v1903 = vsel %vm1370, %v1864, 0
    %v1906 = vsel %vm1370, %v1865, 0
    %v1909 = vsel %vm1370, %v1866, 0
    %v1912 = vsel %vm1370, %v1867, 0
    %v1915 = vsel %vm1370, %v1868, 0
    %1917 = vmatprep.subr.mxu0 0.0
    %1918 = vmatpush1.msra.mxu0 %v1870
    %1919 = vmatprep.subr.mxu0 0.0
    %1920 = vmatpush1.msra.mxu0 %v1872
    %1921 = vmatprep.subr.mxu0 0.0
    %1922 = vmatpush1.msra.mxu0 %v1874
    %1923 = vmatprep.subr.mxu0 0.0
    %1924 = vmatpush1.msra.mxu0 %v1876
    %1925 = vmatprep.subr.mxu0 0.0
    %1926 = vmatpush1.msra.mxu0 %v1878
    %1927 = vmatprep.subr.mxu0 0.0
    %1928 = vmatpush1.msra.mxu0 %v1880
    %1929 = vmatprep.subr.mxu0 0.0
    %1930 = vmatpush1.msra.mxu0 %v1882
    %1931 = vmatprep.subr.mxu0 0.0
    %1932 = vmatpush1.msra.mxu0 %v1884
    %1933 = vmatprep.subr.mxu0 0.0
    %1934 = vmatpush1.msra.mxu0 0.0
    %1935 = vmatprep.subr.mxu0 0.0
    %1936 = vmatpush1.msra.mxu0 0.0
    %1937 = vmatprep.subr.mxu0 0.0
    %1938 = vmatpush1.msra.mxu0 0.0
    %1939 = vmatprep.subr.mxu0 0.0
    %1940 = vmatpush1.msra.mxu0 0.0
    %1941 = vmatprep.subr.mxu0 0.0
    %1942 = vmatpush1.msra.mxu0 0.0
    %1943 = vmatprep.subr.mxu0 0.0
    %1944 = vmatpush1.msra.mxu0 0.0
    %1945 = vmatprep.subr.mxu0 0.0
    %1946 = vmatpush1.msra.mxu0 0.0
    %1947 = vmatprep.subr.mxu0 0.0
    %1948 = vmatpush1.msra.mxu0 0.0
    %1949 = vmatprep.subr.mxu0 0.0
    %1950 = vmatpush1.msra.mxu0 0.0
    %1951 = vmatprep.subr.mxu0 0.0
    %1952 = vmatpush1.msra.mxu0 0.0
    %1953 = vmatprep.subr.mxu0 0.0
    %1954 = vmatpush1.msra.mxu0 0.0
    %1955 = vmatprep.subr.mxu0 0.0
    %1956 = vmatpush1.msra.mxu0 0.0
    %1957 = vmatprep.subr.mxu0 0.0
    %1958 = vmatpush1.msra.mxu0 0.0
    %1959 = vmatprep.subr.mxu0 0.0
    %1960 = vmatpush1.msra.mxu0 0.0
    %1961 = vmatprep.subr.mxu0 0.0
    %1962 = vmatpush1.msra.mxu0 0.0
    %1963 = vmatprep.subr.mxu0 0.0
    %1964 = vmatpush1.msra.mxu0 0.0
    %1965 = vmatprep.subr.mxu0 0.0
    %1966 = vmatpush1.msra.mxu0 0.0
    %1967 = vmatprep.subr.mxu0 0.0
    %1968 = vmatpush1.msra.mxu0 0.0
    %1969 = vmatprep.subr.mxu0 0.0
    %1970 = vmatpush1.msra.mxu0 0.0
    %1971 = vmatprep.subr.mxu0 0.0
    %1972 = vmatpush1.msra.mxu0 0.0
    %1973 = vmatprep.subr.mxu0 0.0
    %1974 = vmatpush1.msra.mxu0 0.0
    %1975 = vmatprep.subr.mxu0 0.0
    %1976 = vmatpush1.msra.mxu0 0.0
    %1977 = vmatprep.subr.mxu0 0.0
    %1978 = vmatpush1.msra.mxu0 0.0
    %1979 = vmatprep.subr.mxu0 0.0
    %1980 = vmatpush1.msra.mxu0 0.0
    %1981 = vmatprep.mubr.f32.mxu0 0.0
    %1982 = vmatmul.mubr.f32.gmra.mrb[0].mxu0 %v1894
    %v1983 = vpop.f32.mrb[0].mxu0
    %v1984 = vadd.f32 0.0, %v1983
    %v1985 = vpop.f32.mrb[0].mxu0
    %1986 = vmatprep.mubr.f32.mxu0 0.0
    %1987 = vmatmul.mubr.f32.gmra.mrb[0].mxu0 %v1897
    %v1988 = vpop.f32.mrb[0].mxu0
    %v1989 = vadd.f32 0.0, %v1988
    %v1990 = vpop.f32.mrb[0].mxu0
    %1991 = vmatprep.mubr.f32.mxu0 0.0
    %1992 = vmatmul.mubr.f32.gmra.mrb[0].mxu0 %v1900
    %v1993 = vpop.f32.mrb[0].mxu0
    %v1994 = vadd.f32 0.0, %v1993
    %v1995 = vpop.f32.mrb[0].mxu0
    %1996 = vmatprep.mubr.f32.mxu0 0.0
    %1997 = vmatmul.mubr.f32.gmra.mrb[0].mxu0 %v1903
    %v1998 = vpop.f32.mrb[0].mxu0
    %v1999 = vadd.f32 0.0, %v1998
    %v2000 = vpop.f32.mrb[0].mxu0
    %2001 = vmatprep.mubr.f32.mxu0 0.0
    %2002 = vmatmul.mubr.f32.gmra.mrb[0].mxu0 %v1906
    %v2003 = vpop.f32.mrb[0].mxu0
    %v2004 = vadd.f32 0.0, %v2003
    %v2005 = vpop.f32.mrb[0].mxu0
    %2006 = vmatprep.mubr.f32.mxu0 0.0
    %2007 = vmatmul.mubr.f32.gmra.mrb[0].mxu0 %v1909
    %v2008 = vpop.f32.mrb[0].mxu0
    %v2009 = vadd.f32 0.0, %v2008
    %v2010 = vpop.f32.mrb[0].mxu0
    %2011 = vmatprep.mubr.f32.mxu0 0.0
    %2012 = vmatmul.mubr.f32.gmra.mrb[0].mxu0 %v1912
    %v2013 = vpop.f32.mrb[0].mxu0
    %v2014 = vadd.f32 0.0, %v2013
    %v2015 = vpop.f32.mrb[0].mxu0
    %2016 = vmatprep.mubr.f32.mxu0 0.0
    %2017 = vmatmul.mubr.f32.gmra.mrb[0].mxu0 %v1915
    %v2018 = vpop.f32.mrb[0].mxu0
    %v2019 = vadd.f32 0.0, %v2018
    %v2020 = vpop.f32.mrb[0].mxu0
    %2021 = vdwg.mxu0
    %2022 = vrot.lane.b32.xlu0 %v1170, 112
    %v2023 = vpop.permute.xlu0 %2022
    %2024 = vrot.lane.b32.xlu0 %v1175, 112
    %v2025 = vpop.permute.xlu0 %2024
    %2026 = vrot.lane.b32.xlu0 %v1180, 112
    %v2027 = vpop.permute.xlu0 %2026
    %2028 = vrot.lane.b32.xlu0 %v1185, 112
    %v2029 = vpop.permute.xlu0 %2028
    %2030 = vrot.lane.b32.xlu0 %v1190, 112
    %v2031 = vpop.permute.xlu0 %2030
    %2032 = vrot.lane.b32.xlu0 %v1195, 112
    %v2033 = vpop.permute.xlu0 %2032
    %2034 = vrot.lane.b32.xlu0 %v1200, 112
    %v2035 = vpop.permute.xlu0 %2034
    %2036 = vrot.lane.b32.xlu0 %v1205, 112
    %v2037 = vpop.permute.xlu0 %2036
    %2038 = vrot.lane.b32.xlu0 %v1170, 80
    %v2039 = vpop.permute.xlu0 %2038
    %2040 = vrot.lane.b32.xlu0 %v1175, 80
    %v2041 = vpop.permute.xlu0 %2040
    %2042 = vrot.lane.b32.xlu0 %v1180, 80
    %v2043 = vpop.permute.xlu0 %2042
    %2044 = vrot.lane.b32.xlu0 %v1185, 80
    %v2045 = vpop.permute.xlu0 %2044
    %2046 = vrot.lane.b32.xlu0 %v1190, 80
    %v2047 = vpop.permute.xlu0 %2046
    %2048 = vrot.lane.b32.xlu0 %v1195, 80
    %v2049 = vpop.permute.xlu0 %2048
    %2050 = vrot.lane.b32.xlu0 %v1200, 80
    %v2051 = vpop.permute.xlu0 %2050
    %2052 = vrot.lane.b32.xlu0 %v1205, 80
    %v2053 = vpop.permute.xlu0 %2052
    %v2054 = vsel %vm1232, %v2023, 0
    %v2056 = vsel %vm1232, %v2025, 0
    %v2058 = vsel %vm1232, %v2027, 0
    %v2060 = vsel %vm1232, %v2029, 0
    %v2062 = vsel %vm1232, %v2031, 0
    %v2064 = vsel %vm1232, %v2033, 0
    %v2066 = vsel %vm1232, %v2035, 0
    %v2068 = vsel %vm1232, %v2037, 0
    %v2070 = vsel %vm1232, %v2039, 0
    %v2072 = vsel %vm1232, %v2041, 0
    %v2074 = vsel %vm1232, %v2043, 0
    %v2076 = vsel %vm1232, %v2045, 0
    %v2078 = vsel %vm1232, %v2047, 0
    %v2080 = vsel %vm1232, %v2049, 0
    %v2082 = vsel %vm1232, %v2051, 0
    %v2084 = vsel %vm1232, %v2053, 0
    %2086 = vmatprep.subr.mxu0 0.0
    %2087 = vmatpush1.xpose.msra.mxu0 %v2070
    %2088 = vmatprep.subr.mxu0 0.0
    %2089 = vmatpush1.xpose.msra.mxu0 %v2072
    %2090 = vmatprep.subr.mxu0 0.0
    %2091 = vmatpush1.xpose.msra.mxu0 %v2074
    %2092 = vmatprep.subr.mxu0 0.0
    %2093 = vmatpush1.xpose.msra.mxu0 %v2076
    %2094 = vmatprep.subr.mxu0 0.0
    %2095 = vmatpush1.xpose.msra.mxu0 %v2078
    %2096 = vmatprep.subr.mxu0 0.0
    %2097 = vmatpush1.xpose.msra.mxu0 %v2080
    %2098 = vmatprep.subr.mxu0 0.0
    %2099 = vmatpush1.xpose.msra.mxu0 %v2082
    %2100 = vmatprep.subr.mxu0 0.0
    %2101 = vmatpush1.xpose.msra.mxu0 %v2084
    %2102 = vmatprep.subr.mxu0 0.0
    %2103 = vmatpush1.xpose.msra.mxu0 0.0
    %2104 = vmatprep.subr.mxu0 0.0
    %2105 = vmatpush1.xpose.msra.mxu0 0.0
    %2106 = vmatprep.subr.mxu0 0.0
    %2107 = vmatpush1.xpose.msra.mxu0 0.0
    %2108 = vmatprep.subr.mxu0 0.0
    %2109 = vmatpush1.xpose.msra.mxu0 0.0
    %2110 = vmatprep.subr.mxu0 0.0
    %2111 = vmatpush1.xpose.msra.mxu0 0.0
    %2112 = vmatprep.subr.mxu0 0.0
    %2113 = vmatpush1.xpose.msra.mxu0 0.0
    %2114 = vmatprep.subr.mxu0 0.0
    %2115 = vmatpush1.xpose.msra.mxu0 0.0
    %2116 = vmatprep.subr.mxu0 0.0
    %2117 = vmatpush1.xpose.msra.mxu0 0.0
    %2118 = vmatprep.subr.mxu0 0.0
    %2119 = vmatpush1.xpose.msra.mxu0 0.0
    %2120 = vmatprep.subr.mxu0 0.0
    %2121 = vmatpush1.xpose.msra.mxu0 0.0
    %2122 = vmatprep.subr.mxu0 0.0
    %2123 = vmatpush1.xpose.msra.mxu0 0.0
    %2124 = vmatprep.subr.mxu0 0.0
    %2125 = vmatpush1.xpose.msra.mxu0 0.0
    %2126 = vmatprep.subr.mxu0 0.0
    %2127 = vmatpush1.xpose.msra.mxu0 0.0
    %2128 = vmatprep.subr.mxu0 0.0
    %2129 = vmatpush1.xpose.msra.mxu0 0.0
    %2130 = vmatprep.subr.mxu0 0.0
    %2131 = vmatpush1.xpose.msra.mxu0 0.0
    %2132 = vmatprep.subr.mxu0 0.0
    %2133 = vmatpush1.xpose.msra.mxu0 0.0
    %2134 = vmatprep.subr.mxu0 0.0
    %2135 = vmatpush1.xpose.msra.mxu0 0.0
    %2136 = vmatprep.subr.mxu0 0.0
    %2137 = vmatpush1.xpose.msra.mxu0 0.0
    %2138 = vmatprep.subr.mxu0 0.0
    %2139 = vmatpush1.xpose.msra.mxu0 0.0
    %2140 = vmatprep.subr.mxu0 0.0
    %2141 = vmatpush1.xpose.msra.mxu0 0.0
    %2142 = vmatprep.subr.mxu0 0.0
    %2143 = vmatpush1.xpose.msra.mxu0 0.0
    %2144 = vmatprep.subr.mxu0 0.0
    %2145 = vmatpush1.xpose.msra.mxu0 0.0
    %2146 = vmatprep.subr.mxu0 0.0
    %2147 = vmatpush1.xpose.msra.mxu0 0.0
    %2148 = vmatprep.subr.mxu0 0.0
    %2149 = vmatpush1.xpose.msra.mxu0 0.0
    %2150 = vmatprep.mubr.f32.mxu0 0.0
    %2151 = vmatmul.mubr.f32.gmra.mrb[0].mxu0 %v2054
    %v2152 = vpop.f32.mrb[0].mxu0
    %v2153 = vadd.f32 %v916, %v2152
    %v2154 = vpop.f32.mrb[0].mxu0
    %2155 = vmatprep.mubr.f32.mxu0 0.0
    %2156 = vmatmul.mubr.f32.gmra.mrb[0].mxu0 %v2056
    %v2157 = vpop.f32.mrb[0].mxu0
    %v2158 = vadd.f32 %v917, %v2157
    %v2159 = vpop.f32.mrb[0].mxu0
    %2160 = vmatprep.mubr.f32.mxu0 0.0
    %2161 = vmatmul.mubr.f32.gmra.mrb[0].mxu0 %v2058
    %v2162 = vpop.f32.mrb[0].mxu0
    %v2163 = vadd.f32 %v918, %v2162
    %v2164 = vpop.f32.mrb[0].mxu0
    %2165 = vmatprep.mubr.f32.mxu0 0.0
    %2166 = vmatmul.mubr.f32.gmra.mrb[0].mxu0 %v2060
    %v2167 = vpop.f32.mrb[0].mxu0
    %v2168 = vadd.f32 %v919, %v2167
    %v2169 = vpop.f32.mrb[0].mxu0
    %2170 = vmatprep.mubr.f32.mxu0 0.0
    %2171 = vmatmul.mubr.f32.gmra.mrb[0].mxu0 %v2062
    %v2172 = vpop.f32.mrb[0].mxu0
    %v2173 = vadd.f32 %v920, %v2172
    %v2174 = vpop.f32.mrb[0].mxu0
    %2175 = vmatprep.mubr.f32.mxu0 0.0
    %2176 = vmatmul.mubr.f32.gmra.mrb[0].mxu0 %v2064
    %v2177 = vpop.f32.mrb[0].mxu0
    %v2178 = vadd.f32 %v921, %v2177
    %v2179 = vpop.f32.mrb[0].mxu0
    %2180 = vmatprep.mubr.f32.mxu0 0.0
    %2181 = vmatmul.mubr.f32.gmra.mrb[0].mxu0 %v2066
    %v2182 = vpop.f32.mrb[0].mxu0
    %v2183 = vadd.f32 %v922, %v2182
    %v2184 = vpop.f32.mrb[0].mxu0
    %2185 = vmatprep.mubr.f32.mxu0 0.0
    %2186 = vmatmul.mubr.f32.gmra.mrb[0].mxu0 %v2068
    %v2187 = vpop.f32.mrb[0].mxu0
    %v2188 = vadd.f32 %v923, %v2187
    %v2189 = vpop.f32.mrb[0].mxu0
    %2190 = vdwg.mxu0
    %v2191 = vsel %vm1370, %v2153, -inf
    %2192 = vmax.xlane.f32.xlu0 %v2191
    %v2193 = vpop.xlane.xlu0 %2192
    %v2194 = vsel %vm1370, %v2158, -inf
    %2195 = vmax.xlane.f32.xlu0 %v2194
    %v2196 = vpop.xlane.xlu0 %2195
    %v2197 = vsel %vm1370, %v2163, -inf
    %2198 = vmax.xlane.f32.xlu0 %v2197
    %v2199 = vpop.xlane.xlu0 %2198
    %v2200 = vsel %vm1370, %v2168, -inf
    %2201 = vmax.xlane.f32.xlu0 %v2200
    %v2202 = vpop.xlane.xlu0 %2201
    %v2203 = vsel %vm1370, %v2173, -inf
    %2204 = vmax.xlane.f32.xlu0 %v2203
    %v2205 = vpop.xlane.xlu0 %2204
    %v2206 = vsel %vm1370, %v2178, -inf
    %2207 = vmax.xlane.f32.xlu0 %v2206
    %v2208 = vpop.xlane.xlu0 %2207
    %v2209 = vsel %vm1370, %v2183, -inf
    %2210 = vmax.xlane.f32.xlu0 %v2209
    %v2211 = vpop.xlane.xlu0 %2210
    %v2212 = vsel %vm1370, %v2188, -inf
    %2213 = vmax.xlane.f32.xlu0 %v2212
    %v2214 = vpop.xlane.xlu0 %2213
    %v2215 = vsub.f32 %v2153, %v2193
    %v2216 = vsub.f32 %v2158, %v2196
    %v2217 = vsub.f32 %v2163, %v2199
    %v2218 = vsub.f32 %v2168, %v2202
    %v2219 = vsub.f32 %v2173, %v2205
    %v2220 = vsub.f32 %v2178, %v2208
    %v2221 = vsub.f32 %v2183, %v2211
    %v2222 = vsub.f32 %v2188, %v2214
    %v2223 = vmul.f32 %v2215, 1.442695
    %v2224 = vpow.pop %v2223
    %v2225 = vmul.f32 %v2216, 1.442695
    %v2226 = vpow.pop %v2225
    %v2227 = vmul.f32 %v2217, 1.442695
    %v2228 = vpow.pop %v2227
    %v2229 = vmul.f32 %v2218, 1.442695
    %v2230 = vpow.pop %v2229
    %v2231 = vmul.f32 %v2219, 1.442695
    %v2232 = vpow.pop %v2231
    %v2233 = vmul.f32 %v2220, 1.442695
    %v2234 = vpow.pop %v2233
    %v2235 = vmul.f32 %v2221, 1.442695
    %v2236 = vpow.pop %v2235
    %v2237 = vmul.f32 %v2222, 1.442695
    %v2238 = vpow.pop %v2237
    %v2239 = vsel %vm1370, %v2224, 0.0
    %2240 = vadd.xlane.f32.xlu0 %v2239
    %v2241 = vpop.xlane.xlu0 %2240
    %v2242 = vsel %vm1370, %v2226, 0.0
    %2243 = vadd.xlane.f32.xlu0 %v2242
    %v2244 = vpop.xlane.xlu0 %2243
    %v2245 = vsel %vm1370, %v2228, 0.0
    %2246 = vadd.xlane.f32.xlu0 %v2245
    %v2247 = vpop.xlane.xlu0 %2246
    %v2248 = vsel %vm1370, %v2230, 0.0
    %2249 = vadd.xlane.f32.xlu0 %v2248
    %v2250 = vpop.xlane.xlu0 %2249
    %v2251 = vsel %vm1370, %v2232, 0.0
    %2252 = vadd.xlane.f32.xlu0 %v2251
    %v2253 = vpop.xlane.xlu0 %2252
    %v2254 = vsel %vm1370, %v2234, 0.0
    %2255 = vadd.xlane.f32.xlu0 %v2254
    %v2256 = vpop.xlane.xlu0 %2255
    %v2257 = vsel %vm1370, %v2236, 0.0
    %2258 = vadd.xlane.f32.xlu0 %v2257
    %v2259 = vpop.xlane.xlu0 %2258
    %v2260 = vsel %vm1370, %v2238, 0.0
    %2261 = vadd.xlane.f32.xlu0 %v2260
    %v2262 = vpop.xlane.xlu0 %2261
    %v2263 = vrcp.pop %v2241
    %v2264 = vrcp.pop %v2244
    %v2265 = vrcp.pop %v2247
    %v2266 = vrcp.pop %v2250
    %v2267 = vrcp.pop %v2253
    %v2268 = vrcp.pop %v2256
    %v2269 = vrcp.pop %v2259
    %v2270 = vrcp.pop %v2262
    %v2271 = vmul.f32 %v2224, %v2263
    %v2272 = vmul.f32 %v2226, %v2264
    %v2273 = vmul.f32 %v2228, %v2265
    %v2274 = vmul.f32 %v2230, %v2266
    %v2275 = vmul.f32 %v2232, %v2267
    %v2276 = vmul.f32 %v2234, %v2268
    %v2277 = vmul.f32 %v2236, %v2269
    %v2278 = vmul.f32 %v2238, %v2270
    %2279 = vrot.lane.b32.xlu0 %v1170, 48
    %v2280 = vpop.permute.xlu0 %2279
    %2281 = vrot.lane.b32.xlu0 %v1175, 48
    %v2282 = vpop.permute.xlu0 %2281
    %2283 = vrot.lane.b32.xlu0 %v1180, 48
    %v2284 = vpop.permute.xlu0 %2283
    %2285 = vrot.lane.b32.xlu0 %v1185, 48
    %v2286 = vpop.permute.xlu0 %2285
    %2287 = vrot.lane.b32.xlu0 %v1190, 48
    %v2288 = vpop.permute.xlu0 %2287
    %2289 = vrot.lane.b32.xlu0 %v1195, 48
    %v2290 = vpop.permute.xlu0 %2289
    %2291 = vrot.lane.b32.xlu0 %v1200, 48
    %v2292 = vpop.permute.xlu0 %2291
    %2293 = vrot.lane.b32.xlu0 %v1205, 48
    %v2294 = vpop.permute.xlu0 %2293
    %v2304 = vsel %vm1370, %v2271, 0
    %v2307 = vsel %vm1370, %v2272, 0
    %v2310 = vsel %vm1370, %v2273, 0
    %v2313 = vsel %vm1370, %v2274, 0
    %v2316 = vsel %vm1370, %v2275, 0
    %v2319 = vsel %vm1370, %v2276, 0
    %v2322 = vsel %vm1370, %v2277, 0
    %v2325 = vsel %vm1370, %v2278, 0
    %2327 = vmatprep.subr.mxu0 0.0
    %2328 = vmatpush1.msra.mxu0 %v2280
    %2329 = vmatprep.subr.mxu0 0.0
    %2330 = vmatpush1.msra.mxu0 %v2282
    %2331 = vmatprep.subr.mxu0 0.0
    %2332 = vmatpush1.msra.mxu0 %v2284
    %2333 = vmatprep.subr.mxu0 0.0
    %2334 = vmatpush1.msra.mxu0 %v2286
    %2335 = vmatprep.subr.mxu0 0.0
    %2336 = vmatpush1.msra.mxu0 %v2288
    %2337 = vmatprep.subr.mxu0 0.0
    %2338 = vmatpush1.msra.mxu0 %v2290
    %2339 = vmatprep.subr.mxu0 0.0
    %2340 = vmatpush1.msra.mxu0 %v2292
    %2341 = vmatprep.subr.mxu0 0.0
    %2342 = vmatpush1.msra.mxu0 %v2294
    %2343 = vmatprep.subr.mxu0 0.0
    %2344 = vmatpush1.msra.mxu0 0.0
    %2345 = vmatprep.subr.mxu0 0.0
    %2346 = vmatpush1.msra.mxu0 0.0
    %2347 = vmatprep.subr.mxu0 0.0
    %2348 = vmatpush1.msra.mxu0 0.0
    %2349 = vmatprep.subr.mxu0 0.0
    %2350 = vmatpush1.msra.mxu0 0.0
    %2351 = vmatprep.subr.mxu0 0.0
    %2352 = vmatpush1.msra.mxu0 0.0
    %2353 = vmatprep.subr.mxu0 0.0
    %2354 = vmatpush1.msra.mxu0 0.0
    %2355 = vmatprep.subr.mxu0 0.0
    %2356 = vmatpush1.msra.mxu0 0.0
    %2357 = vmatprep.subr.mxu0 0.0
    %2358 = vmatpush1.msra.mxu0 0.0
    %2359 = vmatprep.subr.mxu0 0.0
    %2360 = vmatpush1.msra.mxu0 0.0
    %2361 = vmatprep.subr.mxu0 0.0
    %2362 = vmatpush1.msra.mxu0 0.0
    %2363 = vmatprep.subr.mxu0 0.0
    %2364 = vmatpush1.msra.mxu0 0.0
    %2365 = vmatprep.subr.mxu0 0.0
    %2366 = vmatpush1.msra.mxu0 0.0
    %2367 = vmatprep.subr.mxu0 0.0
    %2368 = vmatpush1.msra.mxu0 0.0
    %2369 = vmatprep.subr.mxu0 0.0
    %2370 = vmatpush1.msra.mxu0 0.0
    %2371 = vmatprep.subr.mxu0 0.0
    %2372 = vmatpush1.msra.mxu0 0.0
    %2373 = vmatprep.subr.mxu0 0.0
    %2374 = vmatpush1.msra.mxu0 0.0
    %2375 = vmatprep.subr.mxu0 0.0
    %2376 = vmatpush1.msra.mxu0 0.0
    %2377 = vmatprep.subr.mxu0 0.0
    %2378 = vmatpush1.msra.mxu0 0.0
    %2379 = vmatprep.subr.mxu0 0.0
    %2380 = vmatpush1.msra.mxu0 0.0
    %2381 = vmatprep.subr.mxu0 0.0
    %2382 = vmatpush1.msra.mxu0 0.0
    %2383 = vmatprep.subr.mxu0 0.0
    %2384 = vmatpush1.msra.mxu0 0.0
    %2385 = vmatprep.subr.mxu0 0.0
    %2386 = vmatpush1.msra.mxu0 0.0
    %2387 = vmatprep.subr.mxu0 0.0
    %2388 = vmatpush1.msra.mxu0 0.0
    %2389 = vmatprep.subr.mxu0 0.0
    %2390 = vmatpush1.msra.mxu0 0.0
    %2391 = vmatprep.mubr.f32.mxu0 0.0
    %2392 = vmatmul.mubr.f32.gmra.mrb[0].mxu0 %v2304
    %v2393 = vpop.f32.mrb[0].mxu0
    %v2394 = vadd.f32 0.0, %v2393
    %v2395 = vpop.f32.mrb[0].mxu0
    %2396 = vmatprep.mubr.f32.mxu0 0.0
    %2397 = vmatmul.mubr.f32.gmra.mrb[0].mxu0 %v2307
    %v2398 = vpop.f32.mrb[0].mxu0
    %v2399 = vadd.f32 0.0, %v2398
    %v2400 = vpop.f32.mrb[0].mxu0
    %2401 = vmatprep.mubr.f32.mxu0 0.0
    %2402 = vmatmul.mubr.f32.gmra.mrb[0].mxu0 %v2310
    %v2403 = vpop.f32.mrb[0].mxu0
    %v2404 = vadd.f32 0.0, %v2403
    %v2405 = vpop.f32.mrb[0].mxu0
    %2406 = vmatprep.mubr.f32.mxu0 0.0
    %2407 = vmatmul.mubr.f32.gmra.mrb[0].mxu0 %v2313
    %v2408 = vpop.f32.mrb[0].mxu0
    %v2409 = vadd.f32 0.0, %v2408
    %v2410 = vpop.f32.mrb[0].mxu0
    %2411 = vmatprep.mubr.f32.mxu0 0.0
    %2412 = vmatmul.mubr.f32.gmra.mrb[0].mxu0 %v2316
    %v2413 = vpop.f32.mrb[0].mxu0
    %v2414 = vadd.f32 0.0, %v2413
    %v2415 = vpop.f32.mrb[0].mxu0
    %2416 = vmatprep.mubr.f32.mxu0 0.0
    %2417 = vmatmul.mubr.f32.gmra.mrb[0].mxu0 %v2319
    %v2418 = vpop.f32.mrb[0].mxu0
    %v2419 = vadd.f32 0.0, %v2418
    %v2420 = vpop.f32.mrb[0].mxu0
    %2421 = vmatprep.mubr.f32.mxu0 0.0
    %2422 = vmatmul.mubr.f32.gmra.mrb[0].mxu0 %v2322
    %v2423 = vpop.f32.mrb[0].mxu0
    %v2424 = vadd.f32 0.0, %v2423
    %v2425 = vpop.f32.mrb[0].mxu0
    %2426 = vmatprep.mubr.f32.mxu0 0.0
    %2427 = vmatmul.mubr.f32.gmra.mrb[0].mxu0 %v2325
    %v2428 = vpop.f32.mrb[0].mxu0
    %v2429 = vadd.f32 0.0, %v2428
    %v2430 = vpop.f32.mrb[0].mxu0
    %2431 = vdwg.mxu0
    %2432 = vrot.lane.b32.xlu0 %v1170, 104
    %v2433 = vpop.permute.xlu0 %2432
    %2434 = vrot.lane.b32.xlu0 %v1175, 104
    %v2435 = vpop.permute.xlu0 %2434
    %2436 = vrot.lane.b32.xlu0 %v1180, 104
    %v2437 = vpop.permute.xlu0 %2436
    %2438 = vrot.lane.b32.xlu0 %v1185, 104
    %v2439 = vpop.permute.xlu0 %2438
    %2440 = vrot.lane.b32.xlu0 %v1190, 104
    %v2441 = vpop.permute.xlu0 %2440
    %2442 = vrot.lane.b32.xlu0 %v1195, 104
    %v2443 = vpop.permute.xlu0 %2442
    %2444 = vrot.lane.b32.xlu0 %v1200, 104
    %v2445 = vpop.permute.xlu0 %2444
    %2446 = vrot.lane.b32.xlu0 %v1205, 104
    %v2447 = vpop.permute.xlu0 %2446
    %2448 = vrot.lane.b32.xlu0 %v1170, 72
    %v2449 = vpop.permute.xlu0 %2448
    %2450 = vrot.lane.b32.xlu0 %v1175, 72
    %v2451 = vpop.permute.xlu0 %2450
    %2452 = vrot.lane.b32.xlu0 %v1180, 72
    %v2453 = vpop.permute.xlu0 %2452
    %2454 = vrot.lane.b32.xlu0 %v1185, 72
    %v2455 = vpop.permute.xlu0 %2454
    %2456 = vrot.lane.b32.xlu0 %v1190, 72
    %v2457 = vpop.permute.xlu0 %2456
    %2458 = vrot.lane.b32.xlu0 %v1195, 72
    %v2459 = vpop.permute.xlu0 %2458
    %2460 = vrot.lane.b32.xlu0 %v1200, 72
    %v2461 = vpop.permute.xlu0 %2460
    %2462 = vrot.lane.b32.xlu0 %v1205, 72
    %v2463 = vpop.permute.xlu0 %2462
    %v2464 = vsel %vm1232, %v2433, 0
    %v2466 = vsel %vm1232, %v2435, 0
    %v2468 = vsel %vm1232, %v2437, 0
    %v2470 = vsel %vm1232, %v2439, 0
    %v2472 = vsel %vm1232, %v2441, 0
    %v2474 = vsel %vm1232, %v2443, 0
    %v2476 = vsel %vm1232, %v2445, 0
    %v2478 = vsel %vm1232, %v2447, 0
    %v2480 = vsel %vm1232, %v2449, 0
    %v2482 = vsel %vm1232, %v2451, 0
    %v2484 = vsel %vm1232, %v2453, 0
    %v2486 = vsel %vm1232, %v2455, 0
    %v2488 = vsel %vm1232, %v2457, 0
    %v2490 = vsel %vm1232, %v2459, 0
    %v2492 = vsel %vm1232, %v2461, 0
    %v2494 = vsel %vm1232, %v2463, 0
    %2496 = vmatprep.subr.mxu0 0.0
    %2497 = vmatpush1.xpose.msra.mxu0 %v2480
    %2498 = vmatprep.subr.mxu0 0.0
    %2499 = vmatpush1.xpose.msra.mxu0 %v2482
    %2500 = vmatprep.subr.mxu0 0.0
    %2501 = vmatpush1.xpose.msra.mxu0 %v2484
    %2502 = vmatprep.subr.mxu0 0.0
    %2503 = vmatpush1.xpose.msra.mxu0 %v2486
    %2504 = vmatprep.subr.mxu0 0.0
    %2505 = vmatpush1.xpose.msra.mxu0 %v2488
    %2506 = vmatprep.subr.mxu0 0.0
    %2507 = vmatpush1.xpose.msra.mxu0 %v2490
    %2508 = vmatprep.subr.mxu0 0.0
    %2509 = vmatpush1.xpose.msra.mxu0 %v2492
    %2510 = vmatprep.subr.mxu0 0.0
    %2511 = vmatpush1.xpose.msra.mxu0 %v2494
    %2512 = vmatprep.subr.mxu0 0.0
    %2513 = vmatpush1.xpose.msra.mxu0 0.0
    %2514 = vmatprep.subr.mxu0 0.0
    %2515 = vmatpush1.xpose.msra.mxu0 0.0
    %2516 = vmatprep.subr.mxu0 0.0
    %2517 = vmatpush1.xpose.msra.mxu0 0.0
    %2518 = vmatprep.subr.mxu0 0.0
    %2519 = vmatpush1.xpose.msra.mxu0 0.0
    %2520 = vmatprep.subr.mxu0 0.0
    %2521 = vmatpush1.xpose.msra.mxu0 0.0
    %2522 = vmatprep.subr.mxu0 0.0
    %2523 = vmatpush1.xpose.msra.mxu0 0.0
    %2524 = vmatprep.subr.mxu0 0.0
    %2525 = vmatpush1.xpose.msra.mxu0 0.0
    %2526 = vmatprep.subr.mxu0 0.0
    %2527 = vmatpush1.xpose.msra.mxu0 0.0
    %2528 = vmatprep.subr.mxu0 0.0
    %2529 = vmatpush1.xpose.msra.mxu0 0.0
    %2530 = vmatprep.subr.mxu0 0.0
    %2531 = vmatpush1.xpose.msra.mxu0 0.0
    %2532 = vmatprep.subr.mxu0 0.0
    %2533 = vmatpush1.xpose.msra.mxu0 0.0
    %2534 = vmatprep.subr.mxu0 0.0
    %2535 = vmatpush1.xpose.msra.mxu0 0.0
    %2536 = vmatprep.subr.mxu0 0.0
    %2537 = vmatpush1.xpose.msra.mxu0 0.0
    %2538 = vmatprep.subr.mxu0 0.0
    %2539 = vmatpush1.xpose.msra.mxu0 0.0
    %2540 = vmatprep.subr.mxu0 0.0
    %2541 = vmatpush1.xpose.msra.mxu0 0.0
    %2542 = vmatprep.subr.mxu0 0.0
    %2543 = vmatpush1.xpose.msra.mxu0 0.0
    %2544 = vmatprep.subr.mxu0 0.0
    %2545 = vmatpush1.xpose.msra.mxu0 0.0
    %2546 = vmatprep.subr.mxu0 0.0
    %2547 = vmatpush1.xpose.msra.mxu0 0.0
    %2548 = vmatprep.subr.mxu0 0.0
    %2549 = vmatpush1.xpose.msra.mxu0 0.0
    %2550 = vmatprep.subr.mxu0 0.0
    %2551 = vmatpush1.xpose.msra.mxu0 0.0
    %2552 = vmatprep.subr.mxu0 0.0
    %2553 = vmatpush1.xpose.msra.mxu0 0.0
    %2554 = vmatprep.subr.mxu0 0.0
    %2555 = vmatpush1.xpose.msra.mxu0 0.0
    %2556 = vmatprep.subr.mxu0 0.0
    %2557 = vmatpush1.xpose.msra.mxu0 0.0
    %2558 = vmatprep.subr.mxu0 0.0
    %2559 = vmatpush1.xpose.msra.mxu0 0.0
    %2560 = vmatprep.mubr.f32.mxu0 0.0
    %2561 = vmatmul.mubr.f32.gmra.mrb[0].mxu0 %v2464
    %v2562 = vpop.f32.mrb[0].mxu0
    %v2563 = vadd.f32 %v916, %v2562
    %v2564 = vpop.f32.mrb[0].mxu0
    %2565 = vmatprep.mubr.f32.mxu0 0.0
    %2566 = vmatmul.mubr.f32.gmra.mrb[0].mxu0 %v2466
    %v2567 = vpop.f32.mrb[0].mxu0
    %v2568 = vadd.f32 %v917, %v2567
    %v2569 = vpop.f32.mrb[0].mxu0
    %2570 = vmatprep.mubr.f32.mxu0 0.0
    %2571 = vmatmul.mubr.f32.gmra.mrb[0].mxu0 %v2468
    %v2572 = vpop.f32.mrb[0].mxu0
    %v2573 = vadd.f32 %v918, %v2572
    %v2574 = vpop.f32.mrb[0].mxu0
    %2575 = vmatprep.mubr.f32.mxu0 0.0
    %2576 = vmatmul.mubr.f32.gmra.mrb[0].mxu0 %v2470
    %v2577 = vpop.f32.mrb[0].mxu0
    %v2578 = vadd.f32 %v919, %v2577
    %v2579 = vpop.f32.mrb[0].mxu0
    %2580 = vmatprep.mubr.f32.mxu0 0.0
    %2581 = vmatmul.mubr.f32.gmra.mrb[0].mxu0 %v2472
    %v2582 = vpop.f32.mrb[0].mxu0
    %v2583 = vadd.f32 %v920, %v2582
    %v2584 = vpop.f32.mrb[0].mxu0
    %2585 = vmatprep.mubr.f32.mxu0 0.0
    %2586 = vmatmul.mubr.f32.gmra.mrb[0].mxu0 %v2474
    %v2587 = vpop.f32.mrb[0].mxu0
    %v2588 = vadd.f32 %v921, %v2587
    %v2589 = vpop.f32.mrb[0].mxu0
    %2590 = vmatprep.mubr.f32.mxu0 0.0
    %2591 = vmatmul.mubr.f32.gmra.mrb[0].mxu0 %v2476
    %v2592 = vpop.f32.mrb[0].mxu0
    %v2593 = vadd.f32 %v922, %v2592
    %v2594 = vpop.f32.mrb[0].mxu0
    %2595 = vmatprep.mubr.f32.mxu0 0.0
    %2596 = vmatmul.mubr.f32.gmra.mrb[0].mxu0 %v2478
    %v2597 = vpop.f32.mrb[0].mxu0
    %v2598 = vadd.f32 %v923, %v2597
    %v2599 = vpop.f32.mrb[0].mxu0
    %2600 = vdwg.mxu0
    %v2601 = vsel %vm1370, %v2563, -inf
    %2602 = vmax.xlane.f32.xlu0 %v2601
    %v2603 = vpop.xlane.xlu0 %2602
    %v2604 = vsel %vm1370, %v2568, -inf
    %2605 = vmax.xlane.f32.xlu0 %v2604
    %v2606 = vpop.xlane.xlu0 %2605
    %v2607 = vsel %vm1370, %v2573, -inf
    %2608 = vmax.xlane.f32.xlu0 %v2607
    %v2609 = vpop.xlane.xlu0 %2608
    %v2610 = vsel %vm1370, %v2578, -inf
    %2611 = vmax.xlane.f32.xlu0 %v2610
    %v2612 = vpop.xlane.xlu0 %2611
    %v2613 = vsel %vm1370, %v2583, -inf
    %2614 = vmax.xlane.f32.xlu0 %v2613
    %v2615 = vpop.xlane.xlu0 %2614
    %v2616 = vsel %vm1370, %v2588, -inf
    %2617 = vmax.xlane.f32.xlu0 %v2616
    %v2618 = vpop.xlane.xlu0 %2617
    %v2619 = vsel %vm1370, %v2593, -inf
    %2620 = vmax.xlane.f32.xlu0 %v2619
    %v2621 = vpop.xlane.xlu0 %2620
    %v2622 = vsel %vm1370, %v2598, -inf
    %2623 = vmax.xlane.f32.xlu0 %v2622
    %v2624 = vpop.xlane.xlu0 %2623
    %v2625 = vsub.f32 %v2563, %v2603
    %v2626 = vsub.f32 %v2568, %v2606
    %v2627 = vsub.f32 %v2573, %v2609
    %v2628 = vsub.f32 %v2578, %v2612
    %v2629 = vsub.f32 %v2583, %v2615
    %v2630 = vsub.f32 %v2588, %v2618
    %v2631 = vsub.f32 %v2593, %v2621
    %v2632 = vsub.f32 %v2598, %v2624
    %v2633 = vmul.f32 %v2625, 1.442695
    %v2634 = vpow.pop %v2633
    %v2635 = vmul.f32 %v2626, 1.442695
    %v2636 = vpow.pop %v2635
    %v2637 = vmul.f32 %v2627, 1.442695
    %v2638 = vpow.pop %v2637
    %v2639 = vmul.f32 %v2628, 1.442695
    %v2640 = vpow.pop %v2639
    %v2641 = vmul.f32 %v2629, 1.442695
    %v2642 = vpow.pop %v2641
    %v2643 = vmul.f32 %v2630, 1.442695
    %v2644 = vpow.pop %v2643
    %v2645 = vmul.f32 %v2631, 1.442695
    %v2646 = vpow.pop %v2645
    %v2647 = vmul.f32 %v2632, 1.442695
    %v2648 = vpow.pop %v2647
    %v2649 = vsel %vm1370, %v2634, 0.0
    %2650 = vadd.xlane.f32.xlu0 %v2649
    %v2651 = vpop.xlane.xlu0 %2650
    %v2652 = vsel %vm1370, %v2636, 0.0
    %2653 = vadd.xlane.f32.xlu0 %v2652
    %v2654 = vpop.xlane.xlu0 %2653
    %v2655 = vsel %vm1370, %v2638, 0.0
    %2656 = vadd.xlane.f32.xlu0 %v2655
    %v2657 = vpop.xlane.xlu0 %2656
    %v2658 = vsel %vm1370, %v2640, 0.0
    %2659 = vadd.xlane.f32.xlu0 %v2658
    %v2660 = vpop.xlane.xlu0 %2659
    %v2661 = vsel %vm1370, %v2642, 0.0
    %2662 = vadd.xlane.f32.xlu0 %v2661
    %v2663 = vpop.xlane.xlu0 %2662
    %v2664 = vsel %vm1370, %v2644, 0.0
    %2665 = vadd.xlane.f32.xlu0 %v2664
    %v2666 = vpop.xlane.xlu0 %2665
    %v2667 = vsel %vm1370, %v2646, 0.0
    %2668 = vadd.xlane.f32.xlu0 %v2667
    %v2669 = vpop.xlane.xlu0 %2668
    %v2670 = vsel %vm1370, %v2648, 0.0
    %2671 = vadd.xlane.f32.xlu0 %v2670
    %v2672 = vpop.xlane.xlu0 %2671
    %v2673 = vrcp.pop %v2651
    %v2674 = vrcp.pop %v2654
    %v2675 = vrcp.pop %v2657
    %v2676 = vrcp.pop %v2660
    %v2677 = vrcp.pop %v2663
    %v2678 = vrcp.pop %v2666
    %v2679 = vrcp.pop %v2669
    %v2680 = vrcp.pop %v2672
    %v2681 = vmul.f32 %v2634, %v2673
    %v2682 = vmul.f32 %v2636, %v2674
    %v2683 = vmul.f32 %v2638, %v2675
    %v2684 = vmul.f32 %v2640, %v2676
    %v2685 = vmul.f32 %v2642, %v2677
    %v2686 = vmul.f32 %v2644, %v2678
    %v2687 = vmul.f32 %v2646, %v2679
    %v2688 = vmul.f32 %v2648, %v2680
    %2689 = vrot.lane.b32.xlu0 %v1170, 40
    %v2690 = vpop.permute.xlu0 %2689
    %2691 = vrot.lane.b32.xlu0 %v1175, 40
    %v2692 = vpop.permute.xlu0 %2691
    %2693 = vrot.lane.b32.xlu0 %v1180, 40
    %v2694 = vpop.permute.xlu0 %2693
    %2695 = vrot.lane.b32.xlu0 %v1185, 40
    %v2696 = vpop.permute.xlu0 %2695
    %2697 = vrot.lane.b32.xlu0 %v1190, 40
    %v2698 = vpop.permute.xlu0 %2697
    %2699 = vrot.lane.b32.xlu0 %v1195, 40
    %v2700 = vpop.permute.xlu0 %2699
    %2701 = vrot.lane.b32.xlu0 %v1200, 40
    %v2702 = vpop.permute.xlu0 %2701
    %2703 = vrot.lane.b32.xlu0 %v1205, 40
    %v2704 = vpop.permute.xlu0 %2703
    %v2714 = vsel %vm1370, %v2681, 0
    %v2717 = vsel %vm1370, %v2682, 0
    %v2720 = vsel %vm1370, %v2683, 0
    %v2723 = vsel %vm1370, %v2684, 0
    %v2726 = vsel %vm1370, %v2685, 0
    %v2729 = vsel %vm1370, %v2686, 0
    %v2732 = vsel %vm1370, %v2687, 0
    %v2735 = vsel %vm1370, %v2688, 0
    %2737 = vmatprep.subr.mxu0 0.0
    %2738 = vmatpush1.msra.mxu0 %v2690
    %2739 = vmatprep.subr.mxu0 0.0
    %2740 = vmatpush1.msra.mxu0 %v2692
    %2741 = vmatprep.subr.mxu0 0.0
    %2742 = vmatpush1.msra.mxu0 %v2694
    %2743 = vmatprep.subr.mxu0 0.0
    %2744 = vmatpush1.msra.mxu0 %v2696
    %2745 = vmatprep.subr.mxu0 0.0
    %2746 = vmatpush1.msra.mxu0 %v2698
    %2747 = vmatprep.subr.mxu0 0.0
    %2748 = vmatpush1.msra.mxu0 %v2700
    %2749 = vmatprep.subr.mxu0 0.0
    %2750 = vmatpush1.msra.mxu0 %v2702
    %2751 = vmatprep.subr.mxu0 0.0
    %2752 = vmatpush1.msra.mxu0 %v2704
    %2753 = vmatprep.subr.mxu0 0.0
    %2754 = vmatpush1.msra.mxu0 0.0
    %2755 = vmatprep.subr.mxu0 0.0
    %2756 = vmatpush1.msra.mxu0 0.0
    %2757 = vmatprep.subr.mxu0 0.0
    %2758 = vmatpush1.msra.mxu0 0.0
    %2759 = vmatprep.subr.mxu0 0.0
    %2760 = vmatpush1.msra.mxu0 0.0
    %2761 = vmatprep.subr.mxu0 0.0
    %2762 = vmatpush1.msra.mxu0 0.0
    %2763 = vmatprep.subr.mxu0 0.0
    %2764 = vmatpush1.msra.mxu0 0.0
    %2765 = vmatprep.subr.mxu0 0.0
    %2766 = vmatpush1.msra.mxu0 0.0
    %2767 = vmatprep.subr.mxu0 0.0
    %2768 = vmatpush1.msra.mxu0 0.0
    %2769 = vmatprep.subr.mxu0 0.0
    %2770 = vmatpush1.msra.mxu0 0.0
    %2771 = vmatprep.subr.mxu0 0.0
    %2772 = vmatpush1.msra.mxu0 0.0
    %2773 = vmatprep.subr.mxu0 0.0
    %2774 = vmatpush1.msra.mxu0 0.0
    %2775 = vmatprep.subr.mxu0 0.0
    %2776 = vmatpush1.msra.mxu0 0.0
    %2777 = vmatprep.subr.mxu0 0.0
    %2778 = vmatpush1.msra.mxu0 0.0
    %2779 = vmatprep.subr.mxu0 0.0
    %2780 = vmatpush1.msra.mxu0 0.0
    %2781 = vmatprep.subr.mxu0 0.0
    %2782 = vmatpush1.msra.mxu0 0.0
    %2783 = vmatprep.subr.mxu0 0.0
    %2784 = vmatpush1.msra.mxu0 0.0
    %2785 = vmatprep.subr.mxu0 0.0
    %2786 = vmatpush1.msra.mxu0 0.0
    %2787 = vmatprep.subr.mxu0 0.0
    %2788 = vmatpush1.msra.mxu0 0.0
    %2789 = vmatprep.subr.mxu0 0.0
    %2790 = vmatpush1.msra.mxu0 0.0
    %2791 = vmatprep.subr.mxu0 0.0
    %2792 = vmatpush1.msra.mxu0 0.0
    %2793 = vmatprep.subr.mxu0 0.0
    %2794 = vmatpush1.msra.mxu0 0.0
    %2795 = vmatprep.subr.mxu0 0.0
    %2796 = vmatpush1.msra.mxu0 0.0
    %2797 = vmatprep.subr.mxu0 0.0
    %2798 = vmatpush1.msra.mxu0 0.0
    %2799 = vmatprep.subr.mxu0 0.0
    %2800 = vmatpush1.msra.mxu0 0.0
    %2801 = vmatprep.mubr.f32.mxu0 0.0
    %2802 = vmatmul.mubr.f32.gmra.mrb[0].mxu0 %v2714
    %v2803 = vpop.f32.mrb[0].mxu0
    %v2804 = vadd.f32 0.0, %v2803
    %v2805 = vpop.f32.mrb[0].mxu0
    %2806 = vmatprep.mubr.f32.mxu0 0.0
    %2807 = vmatmul.mubr.f32.gmra.mrb[0].mxu0 %v2717
    %v2808 = vpop.f32.mrb[0].mxu0
    %v2809 = vadd.f32 0.0, %v2808
    %v2810 = vpop.f32.mrb[0].mxu0
    %2811 = vmatprep.mubr.f32.mxu0 0.0
    %2812 = vmatmul.mubr.f32.gmra.mrb[0].mxu0 %v2720
    %v2813 = vpop.f32.mrb[0].mxu0
    %v2814 = vadd.f32 0.0, %v2813
    %v2815 = vpop.f32.mrb[0].mxu0
    %2816 = vmatprep.mubr.f32.mxu0 0.0
    %2817 = vmatmul.mubr.f32.gmra.mrb[0].mxu0 %v2723
    %v2818 = vpop.f32.mrb[0].mxu0
    %v2819 = vadd.f32 0.0, %v2818
    %v2820 = vpop.f32.mrb[0].mxu0
    %2821 = vmatprep.mubr.f32.mxu0 0.0
    %2822 = vmatmul.mubr.f32.gmra.mrb[0].mxu0 %v2726
    %v2823 = vpop.f32.mrb[0].mxu0
    %v2824 = vadd.f32 0.0, %v2823
    %v2825 = vpop.f32.mrb[0].mxu0
    %2826 = vmatprep.mubr.f32.mxu0 0.0
    %2827 = vmatmul.mubr.f32.gmra.mrb[0].mxu0 %v2729
    %v2828 = vpop.f32.mrb[0].mxu0
    %v2829 = vadd.f32 0.0, %v2828
    %v2830 = vpop.f32.mrb[0].mxu0
    %2831 = vmatprep.mubr.f32.mxu0 0.0
    %2832 = vmatmul.mubr.f32.gmra.mrb[0].mxu0 %v2732
    %v2833 = vpop.f32.mrb[0].mxu0
    %v2834 = vadd.f32 0.0, %v2833
    %v2835 = vpop.f32.mrb[0].mxu0
    %2836 = vmatprep.mubr.f32.mxu0 0.0
    %2837 = vmatmul.mubr.f32.gmra.mrb[0].mxu0 %v2735
    %v2838 = vpop.f32.mrb[0].mxu0
    %v2839 = vadd.f32 0.0, %v2838
    %v2840 = vpop.f32.mrb[0].mxu0
    %2841 = vdwg.mxu0
    %2850 = vrot.lane.b32.xlu0 %v1984, 8
    %v2851 = vpop.permute.xlu0 %2850
    %2852 = vrot.lane.b32.xlu0 %v1989, 8
    %v2853 = vpop.permute.xlu0 %2852
    %2854 = vrot.lane.b32.xlu0 %v1994, 8
    %v2855 = vpop.permute.xlu0 %2854
    %2856 = vrot.lane.b32.xlu0 %v1999, 8
    %v2857 = vpop.permute.xlu0 %2856
    %2858 = vrot.lane.b32.xlu0 %v2004, 8
    %v2859 = vpop.permute.xlu0 %2858
    %2860 = vrot.lane.b32.xlu0 %v2009, 8
    %v2861 = vpop.permute.xlu0 %2860
    %2862 = vrot.lane.b32.xlu0 %v2014, 8
    %v2863 = vpop.permute.xlu0 %2862
    %2864 = vrot.lane.b32.xlu0 %v2019, 8
    %v2865 = vpop.permute.xlu0 %2864
    %2882 = vrot.lane.b32.xlu0 %v2394, 16
    %v2883 = vpop.permute.xlu0 %2882
    %2884 = vrot.lane.b32.xlu0 %v2399, 16
    %v2885 = vpop.permute.xlu0 %2884
    %2886 = vrot.lane.b32.xlu0 %v2404, 16
    %v2887 = vpop.permute.xlu0 %2886
    %2888 = vrot.lane.b32.xlu0 %v2409, 16
    %v2889 = vpop.permute.xlu0 %2888
    %2890 = vrot.lane.b32.xlu0 %v2414, 16
    %v2891 = vpop.permute.xlu0 %2890
    %2892 = vrot.lane.b32.xlu0 %v2419, 16
    %v2893 = vpop.permute.xlu0 %2892
    %2894 = vrot.lane.b32.xlu0 %v2424, 16
    %v2895 = vpop.permute.xlu0 %2894
    %2896 = vrot.lane.b32.xlu0 %v2429, 16
    %v2897 = vpop.permute.xlu0 %2896
    %2914 = vrot.lane.b32.xlu0 %v2804, 24
    %v2915 = vpop.permute.xlu0 %2914
    %2916 = vrot.lane.b32.xlu0 %v2809, 24
    %v2917 = vpop.permute.xlu0 %2916
    %2918 = vrot.lane.b32.xlu0 %v2814, 24
    %v2919 = vpop.permute.xlu0 %2918
    %2920 = vrot.lane.b32.xlu0 %v2819, 24
    %v2921 = vpop.permute.xlu0 %2920
    %2922 = vrot.lane.b32.xlu0 %v2824, 24
    %v2923 = vpop.permute.xlu0 %2922
    %2924 = vrot.lane.b32.xlu0 %v2829, 24
    %v2925 = vpop.permute.xlu0 %2924
    %2926 = vrot.lane.b32.xlu0 %v2834, 24
    %v2927 = vpop.permute.xlu0 %2926
    %2928 = vrot.lane.b32.xlu0 %v2839, 24
    %v2929 = vpop.permute.xlu0 %2928
    %v2938 = vsel %vm1232, %v1574, %v2851
    %v2939 = vsel %vm1232, %v1579, %v2853
    %v2940 = vsel %vm1232, %v1584, %v2855
    %v2941 = vsel %vm1232, %v1589, %v2857
    %v2942 = vsel %vm1232, %v1594, %v2859
    %v2943 = vsel %vm1232, %v1599, %v2861
    %v2944 = vsel %vm1232, %v1604, %v2863
    %v2945 = vsel %vm1232, %v1609, %v2865
    %vm2946 = vcmask 130048
    %v2947 = vsel %vm2946, %v2938, %v2883
    %v2948 = vsel %vm2946, %v2939, %v2885
    %v2949 = vsel %vm2946, %v2940, %v2887
    %v2950 = vsel %vm2946, %v2941, %v2889
    %v2951 = vsel %vm2946, %v2942, %v2891
    %v2952 = vsel %vm2946, %v2943, %v2893
    %v2953 = vsel %vm2946, %v2944, %v2895
    %v2954 = vsel %vm2946, %v2945, %v2897
    %vm2955 = vcmask 195584
    %v2956 = vsel %vm2955, %v2947, %v2915
    %v2957 = vsel %vm2955, %v2948, %v2917
    %v2958 = vsel %vm2955, %v2949, %v2919
    %v2959 = vsel %vm2955, %v2950, %v2921
    %v2960 = vsel %vm2955, %v2951, %v2923
    %v2961 = vsel %vm2955, %v2952, %v2925
    %v2962 = vsel %vm2955, %v2953, %v2927
    %v2963 = vsel %vm2955, %v2954, %v2929
    %2968 = vrot.lane.b32.xlu0 %v1070, 32
    %v2969 = vpop.permute.xlu0 %2968
    %2970 = vrot.lane.b32.xlu0 %v1071, 32
    %v2971 = vpop.permute.xlu0 %2970
    %2972 = vrot.lane.b32.xlu0 %v1072, 32
    %v2973 = vpop.permute.xlu0 %2972
    %2974 = vrot.lane.b32.xlu0 %v1073, 32
    %v2975 = vpop.permute.xlu0 %2974
    %v2981 = vsel %vm770, %v2956, 0
    %v2984 = vsel %vm770, %v2957, 0
    %v2987 = vsel %vm770, %v2958, 0
    %v2990 = vsel %vm770, %v2959, 0
    %v2993 = vsel %vm770, %v2960, 0
    %v2996 = vsel %vm770, %v2961, 0
    %v2999 = vsel %vm770, %v2962, 0
    %v3002 = vsel %vm770, %v2963, 0
    %3004 = vmatprep.subr.mxu0 0.0
    %3005 = vmatpush1.msra.mxu0 %v2969
    %3006 = vmatprep.subr.mxu0 0.0
    %3007 = vmatpush1.msra.mxu0 %v2971
    %3008 = vmatprep.subr.mxu0 0.0
    %3009 = vmatpush1.msra.mxu0 %v2973
    %3010 = vmatprep.subr.mxu0 0.0
    %3011 = vmatpush1.msra.mxu0 %v2975
    %3012 = vmatprep.subr.mxu0 0.0
    %3013 = vmatpush1.msra.mxu0 0.0
    %3014 = vmatprep.subr.mxu0 0.0
    %3015 = vmatpush1.msra.mxu0 0.0
    %3016 = vmatprep.subr.mxu0 0.0
    %3017 = vmatpush1.msra.mxu0 0.0
    %3018 = vmatprep.subr.mxu0 0.0
    %3019 = vmatpush1.msra.mxu0 0.0
    %3020 = vmatprep.subr.mxu0 0.0
    %3021 = vmatpush1.msra.mxu0 0.0
    %3022 = vmatprep.subr.mxu0 0.0
    %3023 = vmatpush1.msra.mxu0 0.0
    %3024 = vmatprep.subr.mxu0 0.0
    %3025 = vmatpush1.msra.mxu0 0.0
    %3026 = vmatprep.subr.mxu0 0.0
    %3027 = vmatpush1.msra.mxu0 0.0
    %3028 = vmatprep.subr.mxu0 0.0
    %3029 = vmatpush1.msra.mxu0 0.0
    %3030 = vmatprep.subr.mxu0 0.0
    %3031 = vmatpush1.msra.mxu0 0.0
    %3032 = vmatprep.subr.mxu0 0.0
    %3033 = vmatpush1.msra.mxu0 0.0
    %3034 = vmatprep.subr.mxu0 0.0
    %3035 = vmatpush1.msra.mxu0 0.0
    %3036 = vmatprep.subr.mxu0 0.0
    %3037 = vmatpush1.msra.mxu0 0.0
    %3038 = vmatprep.subr.mxu0 0.0
    %3039 = vmatpush1.msra.mxu0 0.0
    %3040 = vmatprep.subr.mxu0 0.0
    %3041 = vmatpush1.msra.mxu0 0.0
    %3042 = vmatprep.subr.mxu0 0.0
    %3043 = vmatpush1.msra.mxu0 0.0
    %3044 = vmatprep.subr.mxu0 0.0
    %3045 = vmatpush1.msra.mxu0 0.0
    %3046 = vmatprep.subr.mxu0 0.0
    %3047 = vmatpush1.msra.mxu0 0.0
    %3048 = vmatprep.subr.mxu0 0.0
    %3049 = vmatpush1.msra.mxu0 0.0
    %3050 = vmatprep.subr.mxu0 0.0
    %3051 = vmatpush1.msra.mxu0 0.0
    %3052 = vmatprep.subr.mxu0 0.0
    %3053 = vmatpush1.msra.mxu0 0.0
    %3054 = vmatprep.subr.mxu0 0.0
    %3055 = vmatpush1.msra.mxu0 0.0
    %3056 = vmatprep.subr.mxu0 0.0
    %3057 = vmatpush1.msra.mxu0 0.0
    %3058 = vmatprep.subr.mxu0 0.0
    %3059 = vmatpush1.msra.mxu0 0.0
    %3060 = vmatprep.subr.mxu0 0.0
    %3061 = vmatpush1.msra.mxu0 0.0
    %3062 = vmatprep.subr.mxu0 0.0
    %3063 = vmatpush1.msra.mxu0 0.0
    %3064 = vmatprep.subr.mxu0 0.0
    %3065 = vmatpush1.msra.mxu0 0.0
    %3066 = vmatprep.subr.mxu0 0.0
    %3067 = vmatpush1.msra.mxu0 0.0
    %3068 = vmatprep.mubr.f32.mxu0 0.0
    %3069 = vmatmul.mubr.f32.gmra.mrb[0].mxu0 %v2981
    %v3070 = vpop.f32.mrb[0].mxu0
    %v3071 = vadd.f32 0.0, %v3070
    %v3072 = vpop.f32.mrb[0].mxu0
    %3073 = vmatprep.mubr.f32.mxu0 0.0
    %3074 = vmatmul.mubr.f32.gmra.mrb[0].mxu0 %v2984
    %v3075 = vpop.f32.mrb[0].mxu0
    %v3076 = vadd.f32 0.0, %v3075
    %v3077 = vpop.f32.mrb[0].mxu0
    %3078 = vmatprep.mubr.f32.mxu0 0.0
    %3079 = vmatmul.mubr.f32.gmra.mrb[0].mxu0 %v2987
    %v3080 = vpop.f32.mrb[0].mxu0
    %v3081 = vadd.f32 0.0, %v3080
    %v3082 = vpop.f32.mrb[0].mxu0
    %3083 = vmatprep.mubr.f32.mxu0 0.0
    %3084 = vmatmul.mubr.f32.gmra.mrb[0].mxu0 %v2990
    %v3085 = vpop.f32.mrb[0].mxu0
    %v3086 = vadd.f32 0.0, %v3085
    %v3087 = vpop.f32.mrb[0].mxu0
    %3088 = vmatprep.mubr.f32.mxu0 0.0
    %3089 = vmatmul.mubr.f32.gmra.mrb[0].mxu0 %v2993
    %v3090 = vpop.f32.mrb[0].mxu0
    %v3091 = vadd.f32 0.0, %v3090
    %v3092 = vpop.f32.mrb[0].mxu0
    %3093 = vmatprep.mubr.f32.mxu0 0.0
    %3094 = vmatmul.mubr.f32.gmra.mrb[0].mxu0 %v2996
    %v3095 = vpop.f32.mrb[0].mxu0
    %v3096 = vadd.f32 0.0, %v3095
    %v3097 = vpop.f32.mrb[0].mxu0
    %3098 = vmatprep.mubr.f32.mxu0 0.0
    %3099 = vmatmul.mubr.f32.gmra.mrb[0].mxu0 %v2999
    %v3100 = vpop.f32.mrb[0].mxu0
    %v3101 = vadd.f32 0.0, %v3100
    %v3102 = vpop.f32.mrb[0].mxu0
    %3103 = vmatprep.mubr.f32.mxu0 0.0
    %3104 = vmatmul.mubr.f32.gmra.mrb[0].mxu0 %v3002
    %v3105 = vpop.f32.mrb[0].mxu0
    %v3106 = vadd.f32 0.0, %v3105
    %v3107 = vpop.f32.mrb[0].mxu0
    %3108 = vdwg.mxu0
    %v3109 = vadd.f32 %v908, %v3071
    %v3110 = vadd.f32 %v909, %v3076
    %v3111 = vadd.f32 %v910, %v3081
    %v3112 = vadd.f32 %v911, %v3086
    %v3113 = vadd.f32 %v912, %v3091
    %v3114 = vadd.f32 %v913, %v3096
    %v3115 = vadd.f32 %v914, %v3101
    %v3116 = vadd.f32 %v915, %v3106
    %v3117 = vld [vmem:[%s8 + $0x9] sm:$0x1]
    %v3118 = vlaneseq
    %v3119 = vshrl.u32 %v3118, 7
    %v3120 = vsub.s32 0, %v3119
    %v3121 = vrot.slane %v3117, %v3120
    %v3122 = vadd.f32 %v3109, %v3121
    %v3123 = vadd.f32 %v3110, %v3121
    %v3124 = vadd.f32 %v3111, %v3121
    %v3125 = vadd.f32 %v3112, %v3121
    %v3126 = vadd.f32 %v3113, %v3121
    %v3127 = vadd.f32 %v3114, %v3121
    %v3128 = vadd.f32 %v3115, %v3121
    %v3129 = vadd.f32 %v3116, %v3121
    %v3130 = vld [vmem:[%s8 + $0x6] sm:$0x1]
    %v3131 = vld [vmem:[%s8 + $0x7] sm:$0x1]
    %v3132 = vsel %vm770, %v3122, 0.0
    %3133 = vadd.xlane.f32.xlu0 %v3132
    %v3134 = vpop.xlane.xlu0 %3133
    %v3135 = vsel %vm770, %v3123, 0.0
    %3136 = vadd.xlane.f32.xlu0 %v3135
    %v3137 = vpop.xlane.xlu0 %3136
    %v3138 = vsel %vm770, %v3124, 0.0
    %3139 = vadd.xlane.f32.xlu0 %v3138
    %v3140 = vpop.xlane.xlu0 %3139
    %v3141 = vsel %vm770, %v3125, 0.0
    %3142 = vadd.xlane.f32.xlu0 %v3141
    %v3143 = vpop.xlane.xlu0 %3142
    %v3144 = vsel %vm770, %v3126, 0.0
    %3145 = vadd.xlane.f32.xlu0 %v3144
    %v3146 = vpop.xlane.xlu0 %3145
    %v3147 = vsel %vm770, %v3127, 0.0
    %3148 = vadd.xlane.f32.xlu0 %v3147
    %v3149 = vpop.xlane.xlu0 %3148
    %v3150 = vsel %vm770, %v3128, 0.0
    %3151 = vadd.xlane.f32.xlu0 %v3150
    %v3152 = vpop.xlane.xlu0 %3151
    %v3153 = vsel %vm770, %v3129, 0.0
    %3154 = vadd.xlane.f32.xlu0 %v3153
    %v3155 = vpop.xlane.xlu0 %3154
    %v3156 = vmul.f32 %v3134, %v795
    %v3157 = vmul.f32 %v3137, %v795
    %v3158 = vmul.f32 %v3140, %v795
    %v3159 = vmul.f32 %v3143, %v795
    %v3160 = vmul.f32 %v3146, %v795
    %v3161 = vmul.f32 %v3149, %v795
    %v3162 = vmul.f32 %v3152, %v795
    %v3163 = vmul.f32 %v3155, %v795
    %v3164 = vmul.f32 %v3122, %v3122
    %v3165 = vmul.f32 %v3123, %v3123
    %v3166 = vmul.f32 %v3124, %v3124
    %v3167 = vmul.f32 %v3125, %v3125
    %v3168 = vmul.f32 %v3126, %v3126
    %v3169 = vmul.f32 %v3127, %v3127
    %v3170 = vmul.f32 %v3128, %v3128
    %v3171 = vmul.f32 %v3129, %v3129
    %v3172 = vsel %vm770, %v3164, 0.0
    %3173 = vadd.xlane.f32.xlu0 %v3172
    %v3174 = vpop.xlane.xlu0 %3173
    %v3175 = vsel %vm770, %v3165, 0.0
    %3176 = vadd.xlane.f32.xlu0 %v3175
    %v3177 = vpop.xlane.xlu0 %3176
    %v3178 = vsel %vm770, %v3166, 0.0
    %3179 = vadd.xlane.f32.xlu0 %v3178
    %v3180 = vpop.xlane.xlu0 %3179
    %v3181 = vsel %vm770, %v3167, 0.0
    %3182 = vadd.xlane.f32.xlu0 %v3181
    %v3183 = vpop.xlane.xlu0 %3182
    %v3184 = vsel %vm770, %v3168, 0.0
    %3185 = vadd.xlane.f32.xlu0 %v3184
    %v3186 = vpop.xlane.xlu0 %3185
    %v3187 = vsel %vm770, %v3169, 0.0
    %3188 = vadd.xlane.f32.xlu0 %v3187
    %v3189 = vpop.xlane.xlu0 %3188
    %v3190 = vsel %vm770, %v3170, 0.0
    %3191 = vadd.xlane.f32.xlu0 %v3190
    %v3192 = vpop.xlane.xlu0 %3191
    %v3193 = vsel %vm770, %v3171, 0.0
    %3194 = vadd.xlane.f32.xlu0 %v3193
    %v3195 = vpop.xlane.xlu0 %3194
    %v3196 = vmul.f32 %v3174, %v795
    %v3197 = vmul.f32 %v3177, %v795
    %v3198 = vmul.f32 %v3180, %v795
    %v3199 = vmul.f32 %v3183, %v795
    %v3200 = vmul.f32 %v3186, %v795
    %v3201 = vmul.f32 %v3189, %v795
    %v3202 = vmul.f32 %v3192, %v795
    %v3203 = vmul.f32 %v3195, %v795
    %v3204 = vmul.f32 %v3156, %v3156
    %v3205 = vmul.f32 %v3157, %v3157
    %v3206 = vmul.f32 %v3158, %v3158
    %v3207 = vmul.f32 %v3159, %v3159
    %v3208 = vmul.f32 %v3160, %v3160
    %v3209 = vmul.f32 %v3161, %v3161
    %v3210 = vmul.f32 %v3162, %v3162
    %v3211 = vmul.f32 %v3163, %v3163
    %v3212 = vsub.f32 %v3196, %v3204
    %v3213 = vsub.f32 %v3197, %v3205
    %v3214 = vsub.f32 %v3198, %v3206
    %v3215 = vsub.f32 %v3199, %v3207
    %v3216 = vsub.f32 %v3200, %v3208
    %v3217 = vsub.f32 %v3201, %v3209
    %v3218 = vsub.f32 %v3202, %v3210
    %v3219 = vsub.f32 %v3203, %v3211
    %v3220 = vsub.f32 %v3122, %v3156
    %v3221 = vsub.f32 %v3123, %v3157
    %v3222 = vsub.f32 %v3124, %v3158
    %v3223 = vsub.f32 %v3125, %v3159
    %v3224 = vsub.f32 %v3126, %v3160
    %v3225 = vsub.f32 %v3127, %v3161
    %v3226 = vsub.f32 %v3128, %v3162
    %v3227 = vsub.f32 %v3129, %v3163
    %v3228 = vadd.f32 %v3212, 1e-05
    %v3229 = vadd.f32 %v3213, 1e-05
    %v3230 = vadd.f32 %v3214, 1e-05
    %v3231 = vadd.f32 %v3215, 1e-05
    %v3232 = vadd.f32 %v3216, 1e-05
    %v3233 = vadd.f32 %v3217, 1e-05
    %v3234 = vadd.f32 %v3218, 1e-05
    %v3235 = vadd.f32 %v3219, 1e-05
    %v3236 = vrsqrt.pop %v3228
    %v3237 = vrsqrt.pop %v3229
    %v3238 = vrsqrt.pop %v3230
    %v3239 = vrsqrt.pop %v3231
    %v3240 = vrsqrt.pop %v3232
    %v3241 = vrsqrt.pop %v3233
    %v3242 = vrsqrt.pop %v3234
    %v3243 = vrsqrt.pop %v3235
    %v3244 = vmul.f32 %v3220, %v3236
    %v3245 = vmul.f32 %v3221, %v3237
    %v3246 = vmul.f32 %v3222, %v3238
    %v3247 = vmul.f32 %v3223, %v3239
    %v3248 = vmul.f32 %v3224, %v3240
    %v3249 = vmul.f32 %v3225, %v3241
    %v3250 = vmul.f32 %v3226, %v3242
    %v3251 = vmul.f32 %v3227, %v3243
    %v3252 = vlaneseq
    %v3253 = vshrl.u32 %v3252, 7
    %v3254 = vsub.s32 0, %v3253
    %v3255 = vrot.slane %v3130, %v3254
    %v3256 = vmul.f32 %v3244, %v3255
    %v3257 = vmul.f32 %v3245, %v3255
    %v3258 = vmul.f32 %v3246, %v3255
    %v3259 = vmul.f32 %v3247, %v3255
    %v3260 = vmul.f32 %v3248, %v3255
    %v3261 = vmul.f32 %v3249, %v3255
    %v3262 = vmul.f32 %v3250, %v3255
    %v3263 = vmul.f32 %v3251, %v3255
    %v3264 = vlaneseq
    %v3265 = vshrl.u32 %v3264, 7
    %v3266 = vsub.s32 0, %v3265
    %v3267 = vrot.slane %v3131, %v3266
    %v3268 = vadd.f32 %v3256, %v3267
    %v3269 = vadd.f32 %v3257, %v3267
    %v3270 = vadd.f32 %v3258, %v3267
    %v3271 = vadd.f32 %v3259, %v3267
    %v3272 = vadd.f32 %v3260, %v3267
    %v3273 = vadd.f32 %v3261, %v3267
    %v3274 = vadd.f32 %v3262, %v3267
    %v3275 = vadd.f32 %v3263, %v3267
    %v3276 = vld [vmem:[%s6] sm:$0xff]
    %v3277 = vld [vmem:[%s6 + $0x8] sm:$0xff]
    %v3278 = vld [vmem:[%s6 + $0x10] sm:$0xff]
    %v3279 = vld [vmem:[%s6 + $0x18] sm:$0xff]
    %v3280 = vld [vmem:[%s8 + $0xa] sm:$0x1]
    %v3281 = vlaneseq
    %v3282 = vshrl.u32 %v3281, 7
    %v3283 = vsub.s32 0, %v3282
    %v3284 = vrot.slane %v3280, %v3283
    %v3286 = vsel %vm770, %v3268, 0
    %v3289 = vsel %vm770, %v3269, 0
    %v3292 = vsel %vm770, %v3270, 0
    %v3295 = vsel %vm770, %v3271, 0
    %v3298 = vsel %vm770, %v3272, 0
    %v3301 = vsel %vm770, %v3273, 0
    %v3304 = vsel %vm770, %v3274, 0
    %v3307 = vsel %vm770, %v3275, 0
    %3309 = vmatprep.subr.mxu0 0.0
    %3310 = vmatpush1.msra.mxu0 %v3276
    %3311 = vmatprep.subr.mxu0 0.0
    %3312 = vmatpush1.msra.mxu0 %v3277
    %3313 = vmatprep.subr.mxu0 0.0
    %3314 = vmatpush1.msra.mxu0 %v3278
    %3315 = vmatprep.subr.mxu0 0.0
    %3316 = vmatpush1.msra.mxu0 %v3279
    %3317 = vmatprep.subr.mxu0 0.0
    %3318 = vmatpush1.msra.mxu0 0.0
    %3319 = vmatprep.subr.mxu0 0.0
    %3320 = vmatpush1.msra.mxu0 0.0
    %3321 = vmatprep.subr.mxu0 0.0
    %3322 = vmatpush1.msra.mxu0 0.0
    %3323 = vmatprep.subr.mxu0 0.0
    %3324 = vmatpush1.msra.mxu0 0.0
    %3325 = vmatprep.subr.mxu0 0.0
    %3326 = vmatpush1.msra.mxu0 0.0
    %3327 = vmatprep.subr.mxu0 0.0
    %3328 = vmatpush1.msra.mxu0 0.0
    %3329 = vmatprep.subr.mxu0 0.0
    %3330 = vmatpush1.msra.mxu0 0.0
    %3331 = vmatprep.subr.mxu0 0.0
    %3332 = vmatpush1.msra.mxu0 0.0
    %3333 = vmatprep.subr.mxu0 0.0
    %3334 = vmatpush1.msra.mxu0 0.0
    %3335 = vmatprep.subr.mxu0 0.0
    %3336 = vmatpush1.msra.mxu0 0.0
    %3337 = vmatprep.subr.mxu0 0.0
    %3338 = vmatpush1.msra.mxu0 0.0
    %3339 = vmatprep.subr.mxu0 0.0
    %3340 = vmatpush1.msra.mxu0 0.0
    %3341 = vmatprep.subr.mxu0 0.0
    %3342 = vmatpush1.msra.mxu0 0.0
    %3343 = vmatprep.subr.mxu0 0.0
    %3344 = vmatpush1.msra.mxu0 0.0
    %3345 = vmatprep.subr.mxu0 0.0
    %3346 = vmatpush1.msra.mxu0 0.0
    %3347 = vmatprep.subr.mxu0 0.0
    %3348 = vmatpush1.msra.mxu0 0.0
    %3349 = vmatprep.subr.mxu0 0.0
    %3350 = vmatpush1.msra.mxu0 0.0
    %3351 = vmatprep.subr.mxu0 0.0
    %3352 = vmatpush1.msra.mxu0 0.0
    %3353 = vmatprep.subr.mxu0 0.0
    %3354 = vmatpush1.msra.mxu0 0.0
    %3355 = vmatprep.subr.mxu0 0.0
    %3356 = vmatpush1.msra.mxu0 0.0
    %3357 = vmatprep.subr.mxu0 0.0
    %3358 = vmatpush1.msra.mxu0 0.0
    %3359 = vmatprep.subr.mxu0 0.0
    %3360 = vmatpush1.msra.mxu0 0.0
    %3361 = vmatprep.subr.mxu0 0.0
    %3362 = vmatpush1.msra.mxu0 0.0
    %3363 = vmatprep.subr.mxu0 0.0
    %3364 = vmatpush1.msra.mxu0 0.0
    %3365 = vmatprep.subr.mxu0 0.0
    %3366 = vmatpush1.msra.mxu0 0.0
    %3367 = vmatprep.subr.mxu0 0.0
    %3368 = vmatpush1.msra.mxu0 0.0
    %3369 = vmatprep.subr.mxu0 0.0
    %3370 = vmatpush1.msra.mxu0 0.0
    %3371 = vmatprep.subr.mxu0 0.0
    %3372 = vmatpush1.msra.mxu0 0.0
    %3373 = vmatprep.mubr.f32.mxu0 0.0
    %3374 = vmatmul.mubr.f32.gmra.mrb[0].mxu0 %v3286
    %v3375 = vpop.f32.mrb[0].mxu0
    %v3376 = vadd.f32 %v3284, %v3375
    %v3377 = vpop.f32.mrb[0].mxu0
    %3378 = vmatprep.mubr.f32.mxu0 0.0
    %3379 = vmatmul.mubr.f32.gmra.mrb[0].mxu0 %v3289
    %v3380 = vpop.f32.mrb[0].mxu0
    %v3381 = vadd.f32 %v3284, %v3380
    %v3382 = vpop.f32.mrb[0].mxu0
    %3383 = vmatprep.mubr.f32.mxu0 0.0
    %3384 = vmatmul.mubr.f32.gmra.mrb[0].mxu0 %v3292
    %v3385 = vpop.f32.mrb[0].mxu0
    %v3386 = vadd.f32 %v3284, %v3385
    %v3387 = vpop.f32.mrb[0].mxu0
    %3388 = vmatprep.mubr.f32.mxu0 0.0
    %3389 = vmatmul.mubr.f32.gmra.mrb[0].mxu0 %v3295
    %v3390 = vpop.f32.mrb[0].mxu0
    %v3391 = vadd.f32 %v3284, %v3390
    %v3392 = vpop.f32.mrb[0].mxu0
    %3393 = vmatprep.mubr.f32.mxu0 0.0
    %3394 = vmatmul.mubr.f32.gmra.mrb[0].mxu0 %v3298
    %v3395 = vpop.f32.mrb[0].mxu0
    %v3396 = vadd.f32 %v3284, %v3395
    %v3397 = vpop.f32.mrb[0].mxu0
    %3398 = vmatprep.mubr.f32.mxu0 0.0
    %3399 = vmatmul.mubr.f32.gmra.mrb[0].mxu0 %v3301
    %v3400 = vpop.f32.mrb[0].mxu0
    %v3401 = vadd.f32 %v3284, %v3400
    %v3402 = vpop.f32.mrb[0].mxu0
    %3403 = vmatprep.mubr.f32.mxu0 0.0
    %3404 = vmatmul.mubr.f32.gmra.mrb[0].mxu0 %v3304
    %v3405 = vpop.f32.mrb[0].mxu0
    %v3406 = vadd.f32 %v3284, %v3405
    %v3407 = vpop.f32.mrb[0].mxu0
    %3408 = vmatprep.mubr.f32.mxu0 0.0
    %3409 = vmatmul.mubr.f32.gmra.mrb[0].mxu0 %v3307
    %v3410 = vpop.f32.mrb[0].mxu0
    %v3411 = vadd.f32 %v3284, %v3410
    %v3412 = vpop.f32.mrb[0].mxu0
    %3413 = vdwg.mxu0
    %v3414 = vmul.f32 %v3376, 1.702
    %v3415 = vmul.f32 %v3381, 1.702
    %v3416 = vmul.f32 %v3386, 1.702
    %v3417 = vmul.f32 %v3391, 1.702
    %v3418 = vmul.f32 %v3396, 1.702
    %v3419 = vmul.f32 %v3401, 1.702
    %v3420 = vmul.f32 %v3406, 1.702
    %v3421 = vmul.f32 %v3411, 1.702
    %v3422 = vxor.u32 %v3414, 2147483648
    %v3423 = vxor.u32 %v3415, 2147483648
    %v3424 = vxor.u32 %v3416, 2147483648
    %v3425 = vxor.u32 %v3417, 2147483648
    %v3426 = vxor.u32 %v3418, 2147483648
    %v3427 = vxor.u32 %v3419, 2147483648
    %v3428 = vxor.u32 %v3420, 2147483648
    %v3429 = vxor.u32 %v3421, 2147483648
    %v3430 = vmul.f32 %v3422, 1.442695
    %v3431 = vpow.pop %v3430
    %v3432 = vmul.f32 %v3423, 1.442695
    %v3433 = vpow.pop %v3432
    %v3434 = vmul.f32 %v3424, 1.442695
    %v3435 = vpow.pop %v3434
    %v3436 = vmul.f32 %v3425, 1.442695
    %v3437 = vpow.pop %v3436
    %v3438 = vmul.f32 %v3426, 1.442695
    %v3439 = vpow.pop %v3438
    %v3440 = vmul.f32 %v3427, 1.442695
    %v3441 = vpow.pop %v3440
    %v3442 = vmul.f32 %v3428, 1.442695
    %v3443 = vpow.pop %v3442
    %v3444 = vmul.f32 %v3429, 1.442695
    %v3445 = vpow.pop %v3444
    %v3446 = vadd.f32 %v3431, 1.0
    %v3447 = vadd.f32 %v3433, 1.0
    %v3448 = vadd.f32 %v3435, 1.0
    %v3449 = vadd.f32 %v3437, 1.0
    %v3450 = vadd.f32 %v3439, 1.0
    %v3451 = vadd.f32 %v3441, 1.0
    %v3452 = vadd.f32 %v3443, 1.0
    %v3453 = vadd.f32 %v3445, 1.0
    %v3454 = vrcp.pop %v3446
    %v3455 = vmul.f32 1.0, %v3454
    %v3456 = vrcp.pop %v3447
    %v3457 = vmul.f32 1.0, %v3456
    %v3458 = vrcp.pop %v3448
    %v3459 = vmul.f32 1.0, %v3458
    %v3460 = vrcp.pop %v3449
    %v3461 = vmul.f32 1.0, %v3460
    %v3462 = vrcp.pop %v3450
    %v3463 = vmul.f32 1.0, %v3462
    %v3464 = vrcp.pop %v3451
    %v3465 = vmul.f32 1.0, %v3464
    %v3466 = vrcp.pop %v3452
    %v3467 = vmul.f32 1.0, %v3466
    %v3468 = vrcp.pop %v3453
    %v3469 = vmul.f32 1.0, %v3468
    %v3470 = vmul.f32 %v3376, %v3455
    %v3471 = vmul.f32 %v3381, %v3457
    %v3472 = vmul.f32 %v3386, %v3459
    %v3473 = vmul.f32 %v3391, %v3461
    %v3474 = vmul.f32 %v3396, %v3463
    %v3475 = vmul.f32 %v3401, %v3465
    %v3476 = vmul.f32 %v3406, %v3467
    %v3477 = vmul.f32 %v3411, %v3469
    %v3478 = vld [vmem:[%s7] sm:$0xff]
    %v3479 = vld [vmem:[%s7 + $0x8] sm:$0xff]
    %v3480 = vld [vmem:[%s7 + $0x10] sm:$0xff]
    %v3481 = vld [vmem:[%s7 + $0x18] sm:$0xff]
    %v3482 = vld [vmem:[%s7 + $0x20] sm:$0xff]
    %v3483 = vld [vmem:[%s7 + $0x28] sm:$0xff]
    %v3484 = vld [vmem:[%s7 + $0x30] sm:$0xff]
    %v3485 = vld [vmem:[%s7 + $0x38] sm:$0xff]
    %v3486 = vld [vmem:[%s7 + $0x40] sm:$0xff]
    %v3487 = vld [vmem:[%s7 + $0x48] sm:$0xff]
    %v3488 = vld [vmem:[%s7 + $0x50] sm:$0xff]
    %v3489 = vld [vmem:[%s7 + $0x58] sm:$0xff]
    %v3490 = vld [vmem:[%s7 + $0x60] sm:$0xff]
    %v3491 = vld [vmem:[%s7 + $0x68] sm:$0xff]
    %v3492 = vld [vmem:[%s7 + $0x70] sm:$0xff]
    %v3493 = vld [vmem:[%s7 + $0x78] sm:$0xff]
    %3494 = vmatprep.subr.mxu0 0.0
    %3495 = vmatpush1.msra.mxu0 %v3478
    %3496 = vmatprep.subr.mxu0 0.0
    %3497 = vmatpush1.msra.mxu0 %v3479
    %3498 = vmatprep.subr.mxu0 0.0
    %3499 = vmatpush1.msra.mxu0 %v3480
    %3500 = vmatprep.subr.mxu0 0.0
    %3501 = vmatpush1.msra.mxu0 %v3481
    %3502 = vmatprep.subr.mxu0 0.0
    %3503 = vmatpush1.msra.mxu0 %v3482
    %3504 = vmatprep.subr.mxu0 0.0
    %3505 = vmatpush1.msra.mxu0 %v3483
    %3506 = vmatprep.subr.mxu0 0.0
    %3507 = vmatpush1.msra.mxu0 %v3484
    %3508 = vmatprep.subr.mxu0 0.0
    %3509 = vmatpush1.msra.mxu0 %v3485
    %3510 = vmatprep.subr.mxu0 0.0
    %3511 = vmatpush1.msra.mxu0 %v3486
    %3512 = vmatprep.subr.mxu0 0.0
    %3513 = vmatpush1.msra.mxu0 %v3487
    %3514 = vmatprep.subr.mxu0 0.0
    %3515 = vmatpush1.msra.mxu0 %v3488
    %3516 = vmatprep.subr.mxu0 0.0
    %3517 = vmatpush1.msra.mxu0 %v3489
    %3518 = vmatprep.subr.mxu0 0.0
    %3519 = vmatpush1.msra.mxu0 %v3490
    %3520 = vmatprep.subr.mxu0 0.0
    %3521 = vmatpush1.msra.mxu0 %v3491
    %3522 = vmatprep.subr.mxu0 0.0
    %3523 = vmatpush1.msra.mxu0 %v3492
    %3524 = vmatprep.subr.mxu0 0.0
    %3525 = vmatpush1.msra.mxu0 %v3493
    %3526 = vmatprep.subr.mxu0 0.0
    %3527 = vmatpush1.msra.mxu0 0.0
    %3528 = vmatprep.subr.mxu0 0.0
    %3529 = vmatpush1.msra.mxu0 0.0
    %3530 = vmatprep.subr.mxu0 0.0
    %3531 = vmatpush1.msra.mxu0 0.0
    %3532 = vmatprep.subr.mxu0 0.0
    %3533 = vmatpush1.msra.mxu0 0.0
    %3534 = vmatprep.subr.mxu0 0.0
    %3535 = vmatpush1.msra.mxu0 0.0
    %3536 = vmatprep.subr.mxu0 0.0
    %3537 = vmatpush1.msra.mxu0 0.0
    %3538 = vmatprep.subr.mxu0 0.0
    %3539 = vmatpush1.msra.mxu0 0.0
    %3540 = vmatprep.subr.mxu0 0.0
    %3541 = vmatpush1.msra.mxu0 0.0
    %3542 = vmatprep.subr.mxu0 0.0
    %3543 = vmatpush1.msra.mxu0 0.0
    %3544 = vmatprep.subr.mxu0 0.0
    %3545 = vmatpush1.msra.mxu0 0.0
    %3546 = vmatprep.subr.mxu0 0.0
    %3547 = vmatpush1.msra.mxu0 0.0
    %3548 = vmatprep.subr.mxu0 0.0
    %3549 = vmatpush1.msra.mxu0 0.0
    %3550 = vmatprep.subr.mxu0 0.0
    %3551 = vmatpush1.msra.mxu0 0.0
    %3552 = vmatprep.subr.mxu0 0.0
    %3553 = vmatpush1.msra.mxu0 0.0
    %3554 = vmatprep.subr.mxu0 0.0
    %3555 = vmatpush1.msra.mxu0 0.0
    %3556 = vmatprep.subr.mxu0 0.0
    %3557 = vmatpush1.msra.mxu0 0.0
    %3558 = vmatprep.mubr.f32.mxu0 0.0
    %3559 = vmatmul.mubr.f32.gmra.mrb[0].mxu0 %v3470
    %v3560 = vpop.f32.mrb[0].mxu0
    %v3561 = vadd.f32 0.0, %v3560
    %v3562 = vpop.f32.mrb[0].mxu0
    %3563 = vmatprep.mubr.f32.mxu0 0.0
    %3564 = vmatmul.mubr.f32.gmra.mrb[0].mxu0 %v3471
    %v3565 = vpop.f32.mrb[0].mxu0
    %v3566 = vadd.f32 0.0, %v3565
    %v3567 = vpop.f32.mrb[0].mxu0
    %3568 = vmatprep.mubr.f32.mxu0 0.0
    %3569 = vmatmul.mubr.f32.gmra.mrb[0].mxu0 %v3472
    %v3570 = vpop.f32.mrb[0].mxu0
    %v3571 = vadd.f32 0.0, %v3570
    %v3572 = vpop.f32.mrb[0].mxu0
    %3573 = vmatprep.mubr.f32.mxu0 0.0
    %3574 = vmatmul.mubr.f32.gmra.mrb[0].mxu0 %v3473
    %v3575 = vpop.f32.mrb[0].mxu0
    %v3576 = vadd.f32 0.0, %v3575
    %v3577 = vpop.f32.mrb[0].mxu0
    %3578 = vmatprep.mubr.f32.mxu0 0.0
    %3579 = vmatmul.mubr.f32.gmra.mrb[0].mxu0 %v3474
    %v3580 = vpop.f32.mrb[0].mxu0
    %v3581 = vadd.f32 0.0, %v3580
    %v3582 = vpop.f32.mrb[0].mxu0
    %3583 = vmatprep.mubr.f32.mxu0 0.0
    %3584 = vmatmul.mubr.f32.gmra.mrb[0].mxu0 %v3475
    %v3585 = vpop.f32.mrb[0].mxu0
    %v3586 = vadd.f32 0.0, %v3585
    %v3587 = vpop.f32.mrb[0].mxu0
    %3588 = vmatprep.mubr.f32.mxu0 0.0
    %3589 = vmatmul.mubr.f32.gmra.mrb[0].mxu0 %v3476
    %v3590 = vpop.f32.mrb[0].mxu0
    %v3591 = vadd.f32 0.0, %v3590
    %v3592 = vpop.f32.mrb[0].mxu0
    %3593 = vmatprep.mubr.f32.mxu0 0.0
    %3594 = vmatmul.mubr.f32.gmra.mrb[0].mxu0 %v3477
    %v3595 = vpop.f32.mrb[0].mxu0
    %v3596 = vadd.f32 0.0, %v3595
    %v3597 = vpop.f32.mrb[0].mxu0
    %3598 = vdwg.mxu0
    %v3599 = vadd.f32 %v3122, %v3561
    %v3600 = vadd.f32 %v3123, %v3566
    %v3601 = vadd.f32 %v3124, %v3571
    %v3602 = vadd.f32 %v3125, %v3576
    %v3603 = vadd.f32 %v3126, %v3581
    %v3604 = vadd.f32 %v3127, %v3586
    %v3605 = vadd.f32 %v3128, %v3591
    %v3606 = vadd.f32 %v3129, %v3596
    %v3607 = vld [vmem:[%s8 + $0xb] sm:$0x1]
    %v3608 = vlaneseq
    %v3609 = vshrl.u32 %v3608, 7
    %v3610 = vsub.s32 0, %v3609
    %v3611 = vrot.slane %v3607, %v3610
    %v3612 = vadd.f32 %v3599, %v3611
    %v3613 = vadd.f32 %v3600, %v3611
    %v3614 = vadd.f32 %v3601, %v3611
    %v3615 = vadd.f32 %v3602, %v3611
    %v3616 = vadd.f32 %v3603, %v3611
    %v3617 = vadd.f32 %v3604, %v3611
    %v3618 = vadd.f32 %v3605, %v3611
    %v3619 = vadd.f32 %v3606, %v3611
    %v3620 = vld [vmem:[%s8 + $0xc] sm:$0x1]
    %v3621 = vld [vmem:[%s8 + $0xd] sm:$0x1]
    %v3622 = vsel %vm770, %v3612, 0.0
    %3623 = vadd.xlane.f32.xlu0 %v3622
    %v3624 = vpop.xlane.xlu0 %3623
    %v3625 = vsel %vm770, %v3613, 0.0
    %3626 = vadd.xlane.f32.xlu0 %v3625
    %v3627 = vpop.xlane.xlu0 %3626
    %v3628 = vsel %vm770, %v3614, 0.0
    %3629 = vadd.xlane.f32.xlu0 %v3628
    %v3630 = vpop.xlane.xlu0 %3629
    %v3631 = vsel %vm770, %v3615, 0.0
    %3632 = vadd.xlane.f32.xlu0 %v3631
    %v3633 = vpop.xlane.xlu0 %3632
    %v3634 = vsel %vm770, %v3616, 0.0
    %3635 = vadd.xlane.f32.xlu0 %v3634
    %v3636 = vpop.xlane.xlu0 %3635
    %v3637 = vsel %vm770, %v3617, 0.0
    %3638 = vadd.xlane.f32.xlu0 %v3637
    %v3639 = vpop.xlane.xlu0 %3638
    %v3640 = vsel %vm770, %v3618, 0.0
    %3641 = vadd.xlane.f32.xlu0 %v3640
    %v3642 = vpop.xlane.xlu0 %3641
    %v3643 = vsel %vm770, %v3619, 0.0
    %3644 = vadd.xlane.f32.xlu0 %v3643
    %v3645 = vpop.xlane.xlu0 %3644
    %v3646 = vmul.f32 %v3624, %v795
    %v3647 = vmul.f32 %v3627, %v795
    %v3648 = vmul.f32 %v3630, %v795
    %v3649 = vmul.f32 %v3633, %v795
    %v3650 = vmul.f32 %v3636, %v795
    %v3651 = vmul.f32 %v3639, %v795
    %v3652 = vmul.f32 %v3642, %v795
    %v3653 = vmul.f32 %v3645, %v795
    %v3654 = vmul.f32 %v3612, %v3612
    %v3655 = vmul.f32 %v3613, %v3613
    %v3656 = vmul.f32 %v3614, %v3614
    %v3657 = vmul.f32 %v3615, %v3615
    %v3658 = vmul.f32 %v3616, %v3616
    %v3659 = vmul.f32 %v3617, %v3617
    %v3660 = vmul.f32 %v3618, %v3618
    %v3661 = vmul.f32 %v3619, %v3619
    %v3662 = vsel %vm770, %v3654, 0.0
    %3663 = vadd.xlane.f32.xlu0 %v3662
    %v3664 = vpop.xlane.xlu0 %3663
    %v3665 = vsel %vm770, %v3655, 0.0
    %3666 = vadd.xlane.f32.xlu0 %v3665
    %v3667 = vpop.xlane.xlu0 %3666
    %v3668 = vsel %vm770, %v3656, 0.0
    %3669 = vadd.xlane.f32.xlu0 %v3668
    %v3670 = vpop.xlane.xlu0 %3669
    %v3671 = vsel %vm770, %v3657, 0.0
    %3672 = vadd.xlane.f32.xlu0 %v3671
    %v3673 = vpop.xlane.xlu0 %3672
    %v3674 = vsel %vm770, %v3658, 0.0
    %3675 = vadd.xlane.f32.xlu0 %v3674
    %v3676 = vpop.xlane.xlu0 %3675
    %v3677 = vsel %vm770, %v3659, 0.0
    %3678 = vadd.xlane.f32.xlu0 %v3677
    %v3679 = vpop.xlane.xlu0 %3678
    %v3680 = vsel %vm770, %v3660, 0.0
    %3681 = vadd.xlane.f32.xlu0 %v3680
    %v3682 = vpop.xlane.xlu0 %3681
    %v3683 = vsel %vm770, %v3661, 0.0
    %3684 = vadd.xlane.f32.xlu0 %v3683
    %v3685 = vpop.xlane.xlu0 %3684
    %v3686 = vmul.f32 %v3664, %v795
    %v3687 = vmul.f32 %v3667, %v795
    %v3688 = vmul.f32 %v3670, %v795
    %v3689 = vmul.f32 %v3673, %v795
    %v3690 = vmul.f32 %v3676, %v795
    %v3691 = vmul.f32 %v3679, %v795
    %v3692 = vmul.f32 %v3682, %v795
    %v3693 = vmul.f32 %v3685, %v795
    %v3694 = vmul.f32 %v3646, %v3646
    %v3695 = vmul.f32 %v3647, %v3647
    %v3696 = vmul.f32 %v3648, %v3648
    %v3697 = vmul.f32 %v3649, %v3649
    %v3698 = vmul.f32 %v3650, %v3650
    %v3699 = vmul.f32 %v3651, %v3651
    %v3700 = vmul.f32 %v3652, %v3652
    %v3701 = vmul.f32 %v3653, %v3653
    %v3702 = vsub.f32 %v3686, %v3694
    %v3703 = vsub.f32 %v3687, %v3695
    %v3704 = vsub.f32 %v3688, %v3696
    %v3705 = vsub.f32 %v3689, %v3697
    %v3706 = vsub.f32 %v3690, %v3698
    %v3707 = vsub.f32 %v3691, %v3699
    %v3708 = vsub.f32 %v3692, %v3700
    %v3709 = vsub.f32 %v3693, %v3701
    %v3710 = vsub.f32 %v3612, %v3646
    %v3711 = vsub.f32 %v3613, %v3647
    %v3712 = vsub.f32 %v3614, %v3648
    %v3713 = vsub.f32 %v3615, %v3649
    %v3714 = vsub.f32 %v3616, %v3650
    %v3715 = vsub.f32 %v3617, %v3651
    %v3716 = vsub.f32 %v3618, %v3652
    %v3717 = vsub.f32 %v3619, %v3653
    %v3718 = vadd.f32 %v3702, 1e-05
    %v3719 = vadd.f32 %v3703, 1e-05
    %v3720 = vadd.f32 %v3704, 1e-05
    %v3721 = vadd.f32 %v3705, 1e-05
    %v3722 = vadd.f32 %v3706, 1e-05
    %v3723 = vadd.f32 %v3707, 1e-05
    %v3724 = vadd.f32 %v3708, 1e-05
    %v3725 = vadd.f32 %v3709, 1e-05
    %v3726 = vrsqrt.pop %v3718
    %v3727 = vrsqrt.pop %v3719
    %v3728 = vrsqrt.pop %v3720
    %v3729 = vrsqrt.pop %v3721
    %v3730 = vrsqrt.pop %v3722
    %v3731 = vrsqrt.pop %v3723
    %v3732 = vrsqrt.pop %v3724
    %v3733 = vrsqrt.pop %v3725
    %v3734 = vmul.f32 %v3710, %v3726
    %v3735 = vmul.f32 %v3711, %v3727
    %v3736 = vmul.f32 %v3712, %v3728
    %v3737 = vmul.f32 %v3713, %v3729
    %v3738 = vmul.f32 %v3714, %v3730
    %v3739 = vmul.f32 %v3715, %v3731
    %v3740 = vmul.f32 %v3716, %v3732
    %v3741 = vmul.f32 %v3717, %v3733
    %v3742 = vlaneseq
    %v3743 = vshrl.u32 %v3742, 7
    %v3744 = vsub.s32 0, %v3743
    %v3745 = vrot.slane %v3620, %v3744
    %v3746 = vmul.f32 %v3734, %v3745
    %v3747 = vmul.f32 %v3735, %v3745
    %v3748 = vmul.f32 %v3736, %v3745
    %v3749 = vmul.f32 %v3737, %v3745
    %v3750 = vmul.f32 %v3738, %v3745
    %v3751 = vmul.f32 %v3739, %v3745
    %v3752 = vmul.f32 %v3740, %v3745
    %v3753 = vmul.f32 %v3741, %v3745
    %v3754 = vlaneseq
    %v3755 = vshrl.u32 %v3754, 7
    %v3756 = vsub.s32 0, %v3755
    %v3757 = vrot.slane %v3621, %v3756
    %v3758 = vadd.f32 %v3746, %v3757
    %v3759 = vadd.f32 %v3747, %v3757
    %v3760 = vadd.f32 %v3748, %v3757
    %v3761 = vadd.f32 %v3749, %v3757
    %v3762 = vadd.f32 %v3750, %v3757
    %v3763 = vadd.f32 %v3751, %v3757
    %v3764 = vadd.f32 %v3752, %v3757
    %v3765 = vadd.f32 %v3753, %v3757
    %s3766 = scalar_lea.vmem %s5, 32
    %v3767 = vld [vmem:[%s3766] sm:$0xff]
    %v3768 = vld [vmem:[%s3766 + $0x8] sm:$0xff]
    %v3769 = vld [vmem:[%s3766 + $0x10] sm:$0xff]
    %v3770 = vld [vmem:[%s3766 + $0x18] sm:$0xff]
    %v3771 = vld [vmem:[%s8 + $0x10] sm:$0x1]
    %v3772 = vlaneseq
    %v3773 = vshrl.u32 %v3772, 7
    %v3774 = vsub.s32 0, %v3773
    %v3775 = vrot.slane %v3771, %v3774
    %v3777 = vsel %vm770, %v3758, 0
    %v3780 = vsel %vm770, %v3759, 0
    %v3783 = vsel %vm770, %v3760, 0
    %v3786 = vsel %vm770, %v3761, 0
    %v3789 = vsel %vm770, %v3762, 0
    %v3792 = vsel %vm770, %v3763, 0
    %v3795 = vsel %vm770, %v3764, 0
    %v3798 = vsel %vm770, %v3765, 0
    %3800 = vmatprep.subr.mxu0 0.0
    %3801 = vmatpush1.msra.mxu0 %v3767
    %3802 = vmatprep.subr.mxu0 0.0
    %3803 = vmatpush1.msra.mxu0 %v3768
    %3804 = vmatprep.subr.mxu0 0.0
    %3805 = vmatpush1.msra.mxu0 %v3769
    %3806 = vmatprep.subr.mxu0 0.0
    %3807 = vmatpush1.msra.mxu0 %v3770
    %3808 = vmatprep.subr.mxu0 0.0
    %3809 = vmatpush1.msra.mxu0 0.0
    %3810 = vmatprep.subr.mxu0 0.0
    %3811 = vmatpush1.msra.mxu0 0.0
    %3812 = vmatprep.subr.mxu0 0.0
    %3813 = vmatpush1.msra.mxu0 0.0
    %3814 = vmatprep.subr.mxu0 0.0
    %3815 = vmatpush1.msra.mxu0 0.0
    %3816 = vmatprep.subr.mxu0 0.0
    %3817 = vmatpush1.msra.mxu0 0.0
    %3818 = vmatprep.subr.mxu0 0.0
    %3819 = vmatpush1.msra.mxu0 0.0
    %3820 = vmatprep.subr.mxu0 0.0
    %3821 = vmatpush1.msra.mxu0 0.0
    %3822 = vmatprep.subr.mxu0 0.0
    %3823 = vmatpush1.msra.mxu0 0.0
    %3824 = vmatprep.subr.mxu0 0.0
    %3825 = vmatpush1.msra.mxu0 0.0
    %3826 = vmatprep.subr.mxu0 0.0
    %3827 = vmatpush1.msra.mxu0 0.0
    %3828 = vmatprep.subr.mxu0 0.0
    %3829 = vmatpush1.msra.mxu0 0.0
    %3830 = vmatprep.subr.mxu0 0.0
    %3831 = vmatpush1.msra.mxu0 0.0
    %3832 = vmatprep.subr.mxu0 0.0
    %3833 = vmatpush1.msra.mxu0 0.0
    %3834 = vmatprep.subr.mxu0 0.0
    %3835 = vmatpush1.msra.mxu0 0.0
    %3836 = vmatprep.subr.mxu0 0.0
    %3837 = vmatpush1.msra.mxu0 0.0
    %3838 = vmatprep.subr.mxu0 0.0
    %3839 = vmatpush1.msra.mxu0 0.0
    %3840 = vmatprep.subr.mxu0 0.0
    %3841 = vmatpush1.msra.mxu0 0.0
    %3842 = vmatprep.subr.mxu0 0.0
    %3843 = vmatpush1.msra.mxu0 0.0
    %3844 = vmatprep.subr.mxu0 0.0
    %3845 = vmatpush1.msra.mxu0 0.0
    %3846 = vmatprep.subr.mxu0 0.0
    %3847 = vmatpush1.msra.mxu0 0.0
    %3848 = vmatprep.subr.mxu0 0.0
    %3849 = vmatpush1.msra.mxu0 0.0
    %3850 = vmatprep.subr.mxu0 0.0
    %3851 = vmatpush1.msra.mxu0 0.0
    %3852 = vmatprep.subr.mxu0 0.0
    %3853 = vmatpush1.msra.mxu0 0.0
    %3854 = vmatprep.subr.mxu0 0.0
    %3855 = vmatpush1.msra.mxu0 0.0
    %3856 = vmatprep.subr.mxu0 0.0
    %3857 = vmatpush1.msra.mxu0 0.0
    %3858 = vmatprep.subr.mxu0 0.0
    %3859 = vmatpush1.msra.mxu0 0.0
    %3860 = vmatprep.subr.mxu0 0.0
    %3861 = vmatpush1.msra.mxu0 0.0
    %3862 = vmatprep.subr.mxu0 0.0
    %3863 = vmatpush1.msra.mxu0 0.0
    %3864 = vmatprep.mubr.f32.mxu0 0.0
    %3865 = vmatmul.mubr.f32.gmra.mrb[0].mxu0 %v3777
    %v3866 = vpop.f32.mrb[0].mxu0
    %v3867 = vadd.f32 %v3775, %v3866
    %v3868 = vpop.f32.mrb[0].mxu0
    %3869 = vmatprep.mubr.f32.mxu0 0.0
    %3870 = vmatmul.mubr.f32.gmra.mrb[0].mxu0 %v3780
    %v3871 = vpop.f32.mrb[0].mxu0
    %v3872 = vadd.f32 %v3775, %v3871
    %v3873 = vpop.f32.mrb[0].mxu0
    %3874 = vmatprep.mubr.f32.mxu0 0.0
    %3875 = vmatmul.mubr.f32.gmra.mrb[0].mxu0 %v3783
    %v3876 = vpop.f32.mrb[0].mxu0
    %v3877 = vadd.f32 %v3775, %v3876
    %v3878 = vpop.f32.mrb[0].mxu0
    %3879 = vmatprep.mubr.f32.mxu0 0.0
    %3880 = vmatmul.mubr.f32.gmra.mrb[0].mxu0 %v3786
    %v3881 = vpop.f32.mrb[0].mxu0
    %v3882 = vadd.f32 %v3775, %v3881
    %v3883 = vpop.f32.mrb[0].mxu0
    %3884 = vmatprep.mubr.f32.mxu0 0.0
    %3885 = vmatmul.mubr.f32.gmra.mrb[0].mxu0 %v3789
    %v3886 = vpop.f32.mrb[0].mxu0
    %v3887 = vadd.f32 %v3775, %v3886
    %v3888 = vpop.f32.mrb[0].mxu0
    %3889 = vmatprep.mubr.f32.mxu0 0.0
    %3890 = vmatmul.mubr.f32.gmra.mrb[0].mxu0 %v3792
    %v3891 = vpop.f32.mrb[0].mxu0
    %v3892 = vadd.f32 %v3775, %v3891
    %v3893 = vpop.f32.mrb[0].mxu0
    %3894 = vmatprep.mubr.f32.mxu0 0.0
    %3895 = vmatmul.mubr.f32.gmra.mrb[0].mxu0 %v3795
    %v3896 = vpop.f32.mrb[0].mxu0
    %v3897 = vadd.f32 %v3775, %v3896
    %v3898 = vpop.f32.mrb[0].mxu0
    %3899 = vmatprep.mubr.f32.mxu0 0.0
    %3900 = vmatmul.mubr.f32.gmra.mrb[0].mxu0 %v3798
    %v3901 = vpop.f32.mrb[0].mxu0
    %v3902 = vadd.f32 %v3775, %v3901
    %v3903 = vpop.f32.mrb[0].mxu0
    %3904 = vdwg.mxu0
    %3913 = vrot.lane.b32.xlu0 %v3867, 96
    %v3914 = vpop.permute.xlu0 %3913
    %3915 = vrot.lane.b32.xlu0 %v3872, 96
    %v3916 = vpop.permute.xlu0 %3915
    %3917 = vrot.lane.b32.xlu0 %v3877, 96
    %v3918 = vpop.permute.xlu0 %3917
    %3919 = vrot.lane.b32.xlu0 %v3882, 96
    %v3920 = vpop.permute.xlu0 %3919
    %3921 = vrot.lane.b32.xlu0 %v3887, 96
    %v3922 = vpop.permute.xlu0 %3921
    %3923 = vrot.lane.b32.xlu0 %v3892, 96
    %v3924 = vpop.permute.xlu0 %3923
    %3925 = vrot.lane.b32.xlu0 %v3897, 96
    %v3926 = vpop.permute.xlu0 %3925
    %3927 = vrot.lane.b32.xlu0 %v3902, 96
    %v3928 = vpop.permute.xlu0 %3927
    %v3929 = vsel %vm1232, %v3867, 0
    %v3931 = vsel %vm1232, %v3872, 0
    %v3933 = vsel %vm1232, %v3877, 0
    %v3935 = vsel %vm1232, %v3882, 0
    %v3937 = vsel %vm1232, %v3887, 0
    %v3939 = vsel %vm1232, %v3892, 0
    %v3941 = vsel %vm1232, %v3897, 0
    %v3943 = vsel %vm1232, %v3902, 0
    %v3945 = vsel %vm1232, %v3914, 0
    %v3947 = vsel %vm1232, %v3916, 0
    %v3949 = vsel %vm1232, %v3918, 0
    %v3951 = vsel %vm1232, %v3920, 0
    %v3953 = vsel %vm1232, %v3922, 0
    %v3955 = vsel %vm1232, %v3924, 0
    %v3957 = vsel %vm1232, %v3926, 0
    %v3959 = vsel %vm1232, %v3928, 0
    %3961 = vmatprep.subr.mxu0 0.0
    %3962 = vmatpush1.xpose.msra.mxu0 %v3945
    %3963 = vmatprep.subr.mxu0 0.0
    %3964 = vmatpush1.xpose.msra.mxu0 %v3947
    %3965 = vmatprep.subr.mxu0 0.0
    %3966 = vmatpush1.xpose.msra.mxu0 %v3949
    %3967 = vmatprep.subr.mxu0 0.0
    %3968 = vmatpush1.xpose.msra.mxu0 %v3951
    %3969 = vmatprep.subr.mxu0 0.0
    %3970 = vmatpush1.xpose.msra.mxu0 %v3953
    %3971 = vmatprep.subr.mxu0 0.0
    %3972 = vmatpush1.xpose.msra.mxu0 %v3955
    %3973 = vmatprep.subr.mxu0 0.0
    %3974 = vmatpush1.xpose.msra.mxu0 %v3957
    %3975 = vmatprep.subr.mxu0 0.0
    %3976 = vmatpush1.xpose.msra.mxu0 %v3959
    %3977 = vmatprep.subr.mxu0 0.0
    %3978 = vmatpush1.xpose.msra.mxu0 0.0
    %3979 = vmatprep.subr.mxu0 0.0
    %3980 = vmatpush1.xpose.msra.mxu0 0.0
    %3981 = vmatprep.subr.mxu0 0.0
    %3982 = vmatpush1.xpose.msra.mxu0 0.0
    %3983 = vmatprep.subr.mxu0 0.0
    %3984 = vmatpush1.xpose.msra.mxu0 0.0
    %3985 = vmatprep.subr.mxu0 0.0
    %3986 = vmatpush1.xpose.msra.mxu0 0.0
    %3987 = vmatprep.subr.mxu0 0.0
    %3988 = vmatpush1.xpose.msra.mxu0 0.0
    %3989 = vmatprep.subr.mxu0 0.0
    %3990 = vmatpush1.xpose.msra.mxu0 0.0
    %3991 = vmatprep.subr.mxu0 0.0
    %3992 = vmatpush1.xpose.msra.mxu0 0.0
    %3993 = vmatprep.subr.mxu0 0.0
    %3994 = vmatpush1.xpose.msra.mxu0 0.0
    %3995 = vmatprep.subr.mxu0 0.0
    %3996 = vmatpush1.xpose.msra.mxu0 0.0
    %3997 = vmatprep.subr.mxu0 0.0
    %3998 = vmatpush1.xpose.msra.mxu0 0.0
    %3999 = vmatprep.subr.mxu0 0.0
    %4000 = vmatpush1.xpose.msra.mxu0 0.0
    %4001 = vmatprep.subr.mxu0 0.0
    %4002 = vmatpush1.xpose.msra.mxu0 0.0
    %4003 = vmatprep.subr.mxu0 0.0
    %4004 = vmatpush1.xpose.msra.mxu0 0.0
    %4005 = vmatprep.subr.mxu0 0.0
    %4006 = vmatpush1.xpose.msra.mxu0 0.0
    %4007 = vmatprep.subr.mxu0 0.0
    %4008 = vmatpush1.xpose.msra.mxu0 0.0
    %4009 = vmatprep.subr.mxu0 0.0
    %4010 = vmatpush1.xpose.msra.mxu0 0.0
    %4011 = vmatprep.subr.mxu0 0.0
    %4012 = vmatpush1.xpose.msra.mxu0 0.0
    %4013 = vmatprep.subr.mxu0 0.0
    %4014 = vmatpush1.xpose.msra.mxu0 0.0
    %4015 = vmatprep.subr.mxu0 0.0
    %4016 = vmatpush1.xpose.msra.mxu0 0.0
    %4017 = vmatprep.subr.mxu0 0.0
    %4018 = vmatpush1.xpose.msra.mxu0 0.0
    %4019 = vmatprep.subr.mxu0 0.0
    %4020 = vmatpush1.xpose.msra.mxu0 0.0
    %4021 = vmatprep.subr.mxu0 0.0
    %4022 = vmatpush1.xpose.msra.mxu0 0.0
    %4023 = vmatprep.subr.mxu0 0.0
    %4024 = vmatpush1.xpose.msra.mxu0 0.0
    %4025 = vmatprep.mubr.f32.mxu0 0.0
    %4026 = vmatmul.mubr.f32.gmra.mrb[0].mxu0 %v3929
    %v4027 = vpop.f32.mrb[0].mxu0
    %v4028 = vadd.f32 %v916, %v4027
    %v4029 = vpop.f32.mrb[0].mxu0
    %4030 = vmatprep.mubr.f32.mxu0 0.0
    %4031 = vmatmul.mubr.f32.gmra.mrb[0].mxu0 %v3931
    %v4032 = vpop.f32.mrb[0].mxu0
    %v4033 = vadd.f32 %v917, %v4032
    %v4034 = vpop.f32.mrb[0].mxu0
    %4035 = vmatprep.mubr.f32.mxu0 0.0
    %4036 = vmatmul.mubr.f32.gmra.mrb[0].mxu0 %v3933
    %v4037 = vpop.f32.mrb[0].mxu0
    %v4038 = vadd.f32 %v918, %v4037
    %v4039 = vpop.f32.mrb[0].mxu0
    %4040 = vmatprep.mubr.f32.mxu0 0.0
    %4041 = vmatmul.mubr.f32.gmra.mrb[0].mxu0 %v3935
    %v4042 = vpop.f32.mrb[0].mxu0
    %v4043 = vadd.f32 %v919, %v4042
    %v4044 = vpop.f32.mrb[0].mxu0
    %4045 = vmatprep.mubr.f32.mxu0 0.0
    %4046 = vmatmul.mubr.f32.gmra.mrb[0].mxu0 %v3937
    %v4047 = vpop.f32.mrb[0].mxu0
    %v4048 = vadd.f32 %v920, %v4047
    %v4049 = vpop.f32.mrb[0].mxu0
    %4050 = vmatprep.mubr.f32.mxu0 0.0
    %4051 = vmatmul.mubr.f32.gmra.mrb[0].mxu0 %v3939
    %v4052 = vpop.f32.mrb[0].mxu0
    %v4053 = vadd.f32 %v921, %v4052
    %v4054 = vpop.f32.mrb[0].mxu0
    %4055 = vmatprep.mubr.f32.mxu0 0.0
    %4056 = vmatmul.mubr.f32.gmra.mrb[0].mxu0 %v3941
    %v4057 = vpop.f32.mrb[0].mxu0
    %v4058 = vadd.f32 %v922, %v4057
    %v4059 = vpop.f32.mrb[0].mxu0
    %4060 = vmatprep.mubr.f32.mxu0 0.0
    %4061 = vmatmul.mubr.f32.gmra.mrb[0].mxu0 %v3943
    %v4062 = vpop.f32.mrb[0].mxu0
    %v4063 = vadd.f32 %v923, %v4062
    %v4064 = vpop.f32.mrb[0].mxu0
    %4065 = vdwg.mxu0
    %v4066 = vsel %vm1370, %v4028, -inf
    %4067 = vmax.xlane.f32.xlu0 %v4066
    %v4068 = vpop.xlane.xlu0 %4067
    %v4069 = vsel %vm1370, %v4033, -inf
    %4070 = vmax.xlane.f32.xlu0 %v4069
    %v4071 = vpop.xlane.xlu0 %4070
    %v4072 = vsel %vm1370, %v4038, -inf
    %4073 = vmax.xlane.f32.xlu0 %v4072
    %v4074 = vpop.xlane.xlu0 %4073
    %v4075 = vsel %vm1370, %v4043, -inf
    %4076 = vmax.xlane.f32.xlu0 %v4075
    %v4077 = vpop.xlane.xlu0 %4076
    %v4078 = vsel %vm1370, %v4048, -inf
    %4079 = vmax.xlane.f32.xlu0 %v4078
    %v4080 = vpop.xlane.xlu0 %4079
    %v4081 = vsel %vm1370, %v4053, -inf
    %4082 = vmax.xlane.f32.xlu0 %v4081
    %v4083 = vpop.xlane.xlu0 %4082
    %v4084 = vsel %vm1370, %v4058, -inf
    %4085 = vmax.xlane.f32.xlu0 %v4084
    %v4086 = vpop.xlane.xlu0 %4085
    %v4087 = vsel %vm1370, %v4063, -inf
    %4088 = vmax.xlane.f32.xlu0 %v4087
    %v4089 = vpop.xlane.xlu0 %4088
    %v4090 = vsub.f32 %v4028, %v4068
    %v4091 = vsub.f32 %v4033, %v4071
    %v4092 = vsub.f32 %v4038, %v4074
    %v4093 = vsub.f32 %v4043, %v4077
    %v4094 = vsub.f32 %v4048, %v4080
    %v4095 = vsub.f32 %v4053, %v4083
    %v4096 = vsub.f32 %v4058, %v4086
    %v4097 = vsub.f32 %v4063, %v4089
    %v4098 = vmul.f32 %v4090, 1.442695
    %v4099 = vpow.pop %v4098
    %v4100 = vmul.f32 %v4091, 1.442695
    %v4101 = vpow.pop %v4100
    %v4102 = vmul.f32 %v4092, 1.442695
    %v4103 = vpow.pop %v4102
    %v4104 = vmul.f32 %v4093, 1.442695
    %v4105 = vpow.pop %v4104
    %v4106 = vmul.f32 %v4094, 1.442695
    %v4107 = vpow.pop %v4106
    %v4108 = vmul.f32 %v4095, 1.442695
    %v4109 = vpow.pop %v4108
    %v4110 = vmul.f32 %v4096, 1.442695
    %v4111 = vpow.pop %v4110
    %v4112 = vmul.f32 %v4097, 1.442695
    %v4113 = vpow.pop %v4112
    %v4114 = vsel %vm1370, %v4099, 0.0
    %4115 = vadd.xlane.f32.xlu0 %v4114
    %v4116 = vpop.xlane.xlu0 %4115
    %v4117 = vsel %vm1370, %v4101, 0.0
    %4118 = vadd.xlane.f32.xlu0 %v4117
    %v4119 = vpop.xlane.xlu0 %4118
    %v4120 = vsel %vm1370, %v4103, 0.0
    %4121 = vadd.xlane.f32.xlu0 %v4120
    %v4122 = vpop.xlane.xlu0 %4121
    %v4123 = vsel %vm1370, %v4105, 0.0
    %4124 = vadd.xlane.f32.xlu0 %v4123
    %v4125 = vpop.xlane.xlu0 %4124
    %v4126 = vsel %vm1370, %v4107, 0.0
    %4127 = vadd.xlane.f32.xlu0 %v4126
    %v4128 = vpop.xlane.xlu0 %4127
    %v4129 = vsel %vm1370, %v4109, 0.0
    %4130 = vadd.xlane.f32.xlu0 %v4129
    %v4131 = vpop.xlane.xlu0 %4130
    %v4132 = vsel %vm1370, %v4111, 0.0
    %4133 = vadd.xlane.f32.xlu0 %v4132
    %v4134 = vpop.xlane.xlu0 %4133
    %v4135 = vsel %vm1370, %v4113, 0.0
    %4136 = vadd.xlane.f32.xlu0 %v4135
    %v4137 = vpop.xlane.xlu0 %4136
    %v4138 = vrcp.pop %v4116
    %v4139 = vrcp.pop %v4119
    %v4140 = vrcp.pop %v4122
    %v4141 = vrcp.pop %v4125
    %v4142 = vrcp.pop %v4128
    %v4143 = vrcp.pop %v4131
    %v4144 = vrcp.pop %v4134
    %v4145 = vrcp.pop %v4137
    %v4146 = vmul.f32 %v4099, %v4138
    %v4147 = vmul.f32 %v4101, %v4139
    %v4148 = vmul.f32 %v4103, %v4140
    %v4149 = vmul.f32 %v4105, %v4141
    %v4150 = vmul.f32 %v4107, %v4142
    %v4151 = vmul.f32 %v4109, %v4143
    %v4152 = vmul.f32 %v4111, %v4144
    %v4153 = vmul.f32 %v4113, %v4145
    %4154 = vrot.lane.b32.xlu0 %v3867, 64
    %v4155 = vpop.permute.xlu0 %4154
    %4156 = vrot.lane.b32.xlu0 %v3872, 64
    %v4157 = vpop.permute.xlu0 %4156
    %4158 = vrot.lane.b32.xlu0 %v3877, 64
    %v4159 = vpop.permute.xlu0 %4158
    %4160 = vrot.lane.b32.xlu0 %v3882, 64
    %v4161 = vpop.permute.xlu0 %4160
    %4162 = vrot.lane.b32.xlu0 %v3887, 64
    %v4163 = vpop.permute.xlu0 %4162
    %4164 = vrot.lane.b32.xlu0 %v3892, 64
    %v4165 = vpop.permute.xlu0 %4164
    %4166 = vrot.lane.b32.xlu0 %v3897, 64
    %v4167 = vpop.permute.xlu0 %4166
    %4168 = vrot.lane.b32.xlu0 %v3902, 64
    %v4169 = vpop.permute.xlu0 %4168
    %v4179 = vsel %vm1370, %v4146, 0
    %v4182 = vsel %vm1370, %v4147, 0
    %v4185 = vsel %vm1370, %v4148, 0
    %v4188 = vsel %vm1370, %v4149, 0
    %v4191 = vsel %vm1370, %v4150, 0
    %v4194 = vsel %vm1370, %v4151, 0
    %v4197 = vsel %vm1370, %v4152, 0
    %v4200 = vsel %vm1370, %v4153, 0
    %4202 = vmatprep.subr.mxu0 0.0
    %4203 = vmatpush1.msra.mxu0 %v4155
    %4204 = vmatprep.subr.mxu0 0.0
    %4205 = vmatpush1.msra.mxu0 %v4157
    %4206 = vmatprep.subr.mxu0 0.0
    %4207 = vmatpush1.msra.mxu0 %v4159
    %4208 = vmatprep.subr.mxu0 0.0
    %4209 = vmatpush1.msra.mxu0 %v4161
    %4210 = vmatprep.subr.mxu0 0.0
    %4211 = vmatpush1.msra.mxu0 %v4163
    %4212 = vmatprep.subr.mxu0 0.0
    %4213 = vmatpush1.msra.mxu0 %v4165
    %4214 = vmatprep.subr.mxu0 0.0
    %4215 = vmatpush1.msra.mxu0 %v4167
    %4216 = vmatprep.subr.mxu0 0.0
    %4217 = vmatpush1.msra.mxu0 %v4169
    %4218 = vmatprep.subr.mxu0 0.0
    %4219 = vmatpush1.msra.mxu0 0.0
    %4220 = vmatprep.subr.mxu0 0.0
    %4221 = vmatpush1.msra.mxu0 0.0
    %4222 = vmatprep.subr.mxu0 0.0
    %4223 = vmatpush1.msra.mxu0 0.0
    %4224 = vmatprep.subr.mxu0 0.0
    %4225 = vmatpush1.msra.mxu0 0.0
    %4226 = vmatprep.subr.mxu0 0.0
    %4227 = vmatpush1.msra.mxu0 0.0
    %4228 = vmatprep.subr.mxu0 0.0
    %4229 = vmatpush1.msra.mxu0 0.0
    %4230 = vmatprep.subr.mxu0 0.0
    %4231 = vmatpush1.msra.mxu0 0.0
    %4232 = vmatprep.subr.mxu0 0.0
    %4233 = vmatpush1.msra.mxu0 0.0
    %4234 = vmatprep.subr.mxu0 0.0
    %4235 = vmatpush1.msra.mxu0 0.0
    %4236 = vmatprep.subr.mxu0 0.0
    %4237 = vmatpush1.msra.mxu0 0.0
    %4238 = vmatprep.subr.mxu0 0.0
    %4239 = vmatpush1.msra.mxu0 0.0
    %4240 = vmatprep.subr.mxu0 0.0
    %4241 = vmatpush1.msra.mxu0 0.0
    %4242 = vmatprep.subr.mxu0 0.0
    %4243 = vmatpush1.msra.mxu0 0.0
    %4244 = vmatprep.subr.mxu0 0.0
    %4245 = vmatpush1.msra.mxu0 0.0
    %4246 = vmatprep.subr.mxu0 0.0
    %4247 = vmatpush1.msra.mxu0 0.0
    %4248 = vmatprep.subr.mxu0 0.0
    %4249 = vmatpush1.msra.mxu0 0.0
    %4250 = vmatprep.subr.mxu0 0.0
    %4251 = vmatpush1.msra.mxu0 0.0
    %4252 = vmatprep.subr.mxu0 0.0
    %4253 = vmatpush1.msra.mxu0 0.0
    %4254 = vmatprep.subr.mxu0 0.0
    %4255 = vmatpush1.msra.mxu0 0.0
    %4256 = vmatprep.subr.mxu0 0.0
    %4257 = vmatpush1.msra.mxu0 0.0
    %4258 = vmatprep.subr.mxu0 0.0
    %4259 = vmatpush1.msra.mxu0 0.0
    %4260 = vmatprep.subr.mxu0 0.0
    %4261 = vmatpush1.msra.mxu0 0.0
    %4262 = vmatprep.subr.mxu0 0.0
    %4263 = vmatpush1.msra.mxu0 0.0
    %4264 = vmatprep.subr.mxu0 0.0
    %4265 = vmatpush1.msra.mxu0 0.0
    %4266 = vmatprep.mubr.f32.mxu0 0.0
    %4267 = vmatmul.mubr.f32.gmra.mrb[0].mxu0 %v4179
    %v4268 = vpop.f32.mrb[0].mxu0
    %v4269 = vadd.f32 0.0, %v4268
    %v4270 = vpop.f32.mrb[0].mxu0
    %4271 = vmatprep.mubr.f32.mxu0 0.0
    %4272 = vmatmul.mubr.f32.gmra.mrb[0].mxu0 %v4182
    %v4273 = vpop.f32.mrb[0].mxu0
    %v4274 = vadd.f32 0.0, %v4273
    %v4275 = vpop.f32.mrb[0].mxu0
    %4276 = vmatprep.mubr.f32.mxu0 0.0
    %4277 = vmatmul.mubr.f32.gmra.mrb[0].mxu0 %v4185
    %v4278 = vpop.f32.mrb[0].mxu0
    %v4279 = vadd.f32 0.0, %v4278
    %v4280 = vpop.f32.mrb[0].mxu0
    %4281 = vmatprep.mubr.f32.mxu0 0.0
    %4282 = vmatmul.mubr.f32.gmra.mrb[0].mxu0 %v4188
    %v4283 = vpop.f32.mrb[0].mxu0
    %v4284 = vadd.f32 0.0, %v4283
    %v4285 = vpop.f32.mrb[0].mxu0
    %4286 = vmatprep.mubr.f32.mxu0 0.0
    %4287 = vmatmul.mubr.f32.gmra.mrb[0].mxu0 %v4191
    %v4288 = vpop.f32.mrb[0].mxu0
    %v4289 = vadd.f32 0.0, %v4288
    %v4290 = vpop.f32.mrb[0].mxu0
    %4291 = vmatprep.mubr.f32.mxu0 0.0
    %4292 = vmatmul.mubr.f32.gmra.mrb[0].mxu0 %v4194
    %v4293 = vpop.f32.mrb[0].mxu0
    %v4294 = vadd.f32 0.0, %v4293
    %v4295 = vpop.f32.mrb[0].mxu0
    %4296 = vmatprep.mubr.f32.mxu0 0.0
    %4297 = vmatmul.mubr.f32.gmra.mrb[0].mxu0 %v4197
    %v4298 = vpop.f32.mrb[0].mxu0
    %v4299 = vadd.f32 0.0, %v4298
    %v4300 = vpop.f32.mrb[0].mxu0
    %4301 = vmatprep.mubr.f32.mxu0 0.0
    %4302 = vmatmul.mubr.f32.gmra.mrb[0].mxu0 %v4200
    %v4303 = vpop.f32.mrb[0].mxu0
    %v4304 = vadd.f32 0.0, %v4303
    %v4305 = vpop.f32.mrb[0].mxu0
    %4306 = vdwg.mxu0
    %4307 = vrot.lane.b32.xlu0 %v3867, 120
    %v4308 = vpop.permute.xlu0 %4307
    %4309 = vrot.lane.b32.xlu0 %v3872, 120
    %v4310 = vpop.permute.xlu0 %4309
    %4311 = vrot.lane.b32.xlu0 %v3877, 120
    %v4312 = vpop.permute.xlu0 %4311
    %4313 = vrot.lane.b32.xlu0 %v3882, 120
    %v4314 = vpop.permute.xlu0 %4313
    %4315 = vrot.lane.b32.xlu0 %v3887, 120
    %v4316 = vpop.permute.xlu0 %4315
    %4317 = vrot.lane.b32.xlu0 %v3892, 120
    %v4318 = vpop.permute.xlu0 %4317
    %4319 = vrot.lane.b32.xlu0 %v3897, 120
    %v4320 = vpop.permute.xlu0 %4319
    %4321 = vrot.lane.b32.xlu0 %v3902, 120
    %v4322 = vpop.permute.xlu0 %4321
    %4323 = vrot.lane.b32.xlu0 %v3867, 88
    %v4324 = vpop.permute.xlu0 %4323
    %4325 = vrot.lane.b32.xlu0 %v3872, 88
    %v4326 = vpop.permute.xlu0 %4325
    %4327 = vrot.lane.b32.xlu0 %v3877, 88
    %v4328 = vpop.permute.xlu0 %4327
    %4329 = vrot.lane.b32.xlu0 %v3882, 88
    %v4330 = vpop.permute.xlu0 %4329
    %4331 = vrot.lane.b32.xlu0 %v3887, 88
    %v4332 = vpop.permute.xlu0 %4331
    %4333 = vrot.lane.b32.xlu0 %v3892, 88
    %v4334 = vpop.permute.xlu0 %4333
    %4335 = vrot.lane.b32.xlu0 %v3897, 88
    %v4336 = vpop.permute.xlu0 %4335
    %4337 = vrot.lane.b32.xlu0 %v3902, 88
    %v4338 = vpop.permute.xlu0 %4337
    %v4339 = vsel %vm1232, %v4308, 0
    %v4341 = vsel %vm1232, %v4310, 0
    %v4343 = vsel %vm1232, %v4312, 0
    %v4345 = vsel %vm1232, %v4314, 0
    %v4347 = vsel %vm1232, %v4316, 0
    %v4349 = vsel %vm1232, %v4318, 0
    %v4351 = vsel %vm1232, %v4320, 0
    %v4353 = vsel %vm1232, %v4322, 0
    %v4355 = vsel %vm1232, %v4324, 0
    %v4357 = vsel %vm1232, %v4326, 0
    %v4359 = vsel %vm1232, %v4328, 0
    %v4361 = vsel %vm1232, %v4330, 0
    %v4363 = vsel %vm1232, %v4332, 0
    %v4365 = vsel %vm1232, %v4334, 0
    %v4367 = vsel %vm1232, %v4336, 0
    %v4369 = vsel %vm1232, %v4338, 0
    %4371 = vmatprep.subr.mxu0 0.0
    %4372 = vmatpush1.xpose.msra.mxu0 %v4355
    %4373 = vmatprep.subr.mxu0 0.0
    %4374 = vmatpush1.xpose.msra.mxu0 %v4357
    %4375 = vmatprep.subr.mxu0 0.0
    %4376 = vmatpush1.xpose.msra.mxu0 %v4359
    %4377 = vmatprep.subr.mxu0 0.0
    %4378 = vmatpush1.xpose.msra.mxu0 %v4361
    %4379 = vmatprep.subr.mxu0 0.0
    %4380 = vmatpush1.xpose.msra.mxu0 %v4363
    %4381 = vmatprep.subr.mxu0 0.0
    %4382 = vmatpush1.xpose.msra.mxu0 %v4365
    %4383 = vmatprep.subr.mxu0 0.0
    %4384 = vmatpush1.xpose.msra.mxu0 %v4367
    %4385 = vmatprep.subr.mxu0 0.0
    %4386 = vmatpush1.xpose.msra.mxu0 %v4369
    %4387 = vmatprep.subr.mxu0 0.0
    %4388 = vmatpush1.xpose.msra.mxu0 0.0
    %4389 = vmatprep.subr.mxu0 0.0
    %4390 = vmatpush1.xpose.msra.mxu0 0.0
    %4391 = vmatprep.subr.mxu0 0.0
    %4392 = vmatpush1.xpose.msra.mxu0 0.0
    %4393 = vmatprep.subr.mxu0 0.0
    %4394 = vmatpush1.xpose.msra.mxu0 0.0
    %4395 = vmatprep.subr.mxu0 0.0
    %4396 = vmatpush1.xpose.msra.mxu0 0.0
    %4397 = vmatprep.subr.mxu0 0.0
    %4398 = vmatpush1.xpose.msra.mxu0 0.0
    %4399 = vmatprep.subr.mxu0 0.0
    %4400 = vmatpush1.xpose.msra.mxu0 0.0
    %4401 = vmatprep.subr.mxu0 0.0
    %4402 = vmatpush1.xpose.msra.mxu0 0.0
    %4403 = vmatprep.subr.mxu0 0.0
    %4404 = vmatpush1.xpose.msra.mxu0 0.0
    %4405 = vmatprep.subr.mxu0 0.0
    %4406 = vmatpush1.xpose.msra.mxu0 0.0
    %4407 = vmatprep.subr.mxu0 0.0
    %4408 = vmatpush1.xpose.msra.mxu0 0.0
    %4409 = vmatprep.subr.mxu0 0.0
    %4410 = vmatpush1.xpose.msra.mxu0 0.0
    %4411 = vmatprep.subr.mxu0 0.0
    %4412 = vmatpush1.xpose.msra.mxu0 0.0
    %4413 = vmatprep.subr.mxu0 0.0
    %4414 = vmatpush1.xpose.msra.mxu0 0.0
    %4415 = vmatprep.subr.mxu0 0.0
    %4416 = vmatpush1.xpose.msra.mxu0 0.0
    %4417 = vmatprep.subr.mxu0 0.0
    %4418 = vmatpush1.xpose.msra.mxu0 0.0
    %4419 = vmatprep.subr.mxu0 0.0
    %4420 = vmatpush1.xpose.msra.mxu0 0.0
    %4421 = vmatprep.subr.mxu0 0.0
    %4422 = vmatpush1.xpose.msra.mxu0 0.0
    %4423 = vmatprep.subr.mxu0 0.0
    %4424 = vmatpush1.xpose.msra.mxu0 0.0
    %4425 = vmatprep.subr.mxu0 0.0
    %4426 = vmatpush1.xpose.msra.mxu0 0.0
    %4427 = vmatprep.subr.mxu0 0.0
    %4428 = vmatpush1.xpose.msra.mxu0 0.0
    %4429 = vmatprep.subr.mxu0 0.0
    %4430 = vmatpush1.xpose.msra.mxu0 0.0
    %4431 = vmatprep.subr.mxu0 0.0
    %4432 = vmatpush1.xpose.msra.mxu0 0.0
    %4433 = vmatprep.subr.mxu0 0.0
    %4434 = vmatpush1.xpose.msra.mxu0 0.0
    %4435 = vmatprep.mubr.f32.mxu0 0.0
    %4436 = vmatmul.mubr.f32.gmra.mrb[0].mxu0 %v4339
    %v4437 = vpop.f32.mrb[0].mxu0
    %v4438 = vadd.f32 %v916, %v4437
    %v4439 = vpop.f32.mrb[0].mxu0
    %4440 = vmatprep.mubr.f32.mxu0 0.0
    %4441 = vmatmul.mubr.f32.gmra.mrb[0].mxu0 %v4341
    %v4442 = vpop.f32.mrb[0].mxu0
    %v4443 = vadd.f32 %v917, %v4442
    %v4444 = vpop.f32.mrb[0].mxu0
    %4445 = vmatprep.mubr.f32.mxu0 0.0
    %4446 = vmatmul.mubr.f32.gmra.mrb[0].mxu0 %v4343
    %v4447 = vpop.f32.mrb[0].mxu0
    %v4448 = vadd.f32 %v918, %v4447
    %v4449 = vpop.f32.mrb[0].mxu0
    %4450 = vmatprep.mubr.f32.mxu0 0.0
    %4451 = vmatmul.mubr.f32.gmra.mrb[0].mxu0 %v4345
    %v4452 = vpop.f32.mrb[0].mxu0
    %v4453 = vadd.f32 %v919, %v4452
    %v4454 = vpop.f32.mrb[0].mxu0
    %4455 = vmatprep.mubr.f32.mxu0 0.0
    %4456 = vmatmul.mubr.f32.gmra.mrb[0].mxu0 %v4347
    %v4457 = vpop.f32.mrb[0].mxu0
    %v4458 = vadd.f32 %v920, %v4457
    %v4459 = vpop.f32.mrb[0].mxu0
    %4460 = vmatprep.mubr.f32.mxu0 0.0
    %4461 = vmatmul.mubr.f32.gmra.mrb[0].mxu0 %v4349
    %v4462 = vpop.f32.mrb[0].mxu0
    %v4463 = vadd.f32 %v921, %v4462
    %v4464 = vpop.f32.mrb[0].mxu0
    %4465 = vmatprep.mubr.f32.mxu0 0.0
    %4466 = vmatmul.mubr.f32.gmra.mrb[0].mxu0 %v4351
    %v4467 = vpop.f32.mrb[0].mxu0
    %v4468 = vadd.f32 %v922, %v4467
    %v4469 = vpop.f32.mrb[0].mxu0
    %4470 = vmatprep.mubr.f32.mxu0 0.0
    %4471 = vmatmul.mubr.f32.gmra.mrb[0].mxu0 %v4353
    %v4472 = vpop.f32.mrb[0].mxu0
    %v4473 = vadd.f32 %v923, %v4472
    %v4474 = vpop.f32.mrb[0].mxu0
    %4475 = vdwg.mxu0
    %v4476 = vsel %vm1370, %v4438, -inf
    %4477 = vmax.xlane.f32.xlu0 %v4476
    %v4478 = vpop.xlane.xlu0 %4477
    %v4479 = vsel %vm1370, %v4443, -inf
    %4480 = vmax.xlane.f32.xlu0 %v4479
    %v4481 = vpop.xlane.xlu0 %4480
    %v4482 = vsel %vm1370, %v4448, -inf
    %4483 = vmax.xlane.f32.xlu0 %v4482
    %v4484 = vpop.xlane.xlu0 %4483
    %v4485 = vsel %vm1370, %v4453, -inf
    %4486 = vmax.xlane.f32.xlu0 %v4485
    %v4487 = vpop.xlane.xlu0 %4486
    %v4488 = vsel %vm1370, %v4458, -inf
    %4489 = vmax.xlane.f32.xlu0 %v4488
    %v4490 = vpop.xlane.xlu0 %4489
    %v4491 = vsel %vm1370, %v4463, -inf
    %4492 = vmax.xlane.f32.xlu0 %v4491
    %v4493 = vpop.xlane.xlu0 %4492
    %v4494 = vsel %vm1370, %v4468, -inf
    %4495 = vmax.xlane.f32.xlu0 %v4494
    %v4496 = vpop.xlane.xlu0 %4495
    %v4497 = vsel %vm1370, %v4473, -inf
    %4498 = vmax.xlane.f32.xlu0 %v4497
    %v4499 = vpop.xlane.xlu0 %4498
    %v4500 = vsub.f32 %v4438, %v4478
    %v4501 = vsub.f32 %v4443, %v4481
    %v4502 = vsub.f32 %v4448, %v4484
    %v4503 = vsub.f32 %v4453, %v4487
    %v4504 = vsub.f32 %v4458, %v4490
    %v4505 = vsub.f32 %v4463, %v4493
    %v4506 = vsub.f32 %v4468, %v4496
    %v4507 = vsub.f32 %v4473, %v4499
    %v4508 = vmul.f32 %v4500, 1.442695
    %v4509 = vpow.pop %v4508
    %v4510 = vmul.f32 %v4501, 1.442695
    %v4511 = vpow.pop %v4510
    %v4512 = vmul.f32 %v4502, 1.442695
    %v4513 = vpow.pop %v4512
    %v4514 = vmul.f32 %v4503, 1.442695
    %v4515 = vpow.pop %v4514
    %v4516 = vmul.f32 %v4504, 1.442695
    %v4517 = vpow.pop %v4516
    %v4518 = vmul.f32 %v4505, 1.442695
    %v4519 = vpow.pop %v4518
    %v4520 = vmul.f32 %v4506, 1.442695
    %v4521 = vpow.pop %v4520
    %v4522 = vmul.f32 %v4507, 1.442695
    %v4523 = vpow.pop %v4522
    %v4524 = vsel %vm1370, %v4509, 0.0
    %4525 = vadd.xlane.f32.xlu0 %v4524
    %v4526 = vpop.xlane.xlu0 %4525
    %v4527 = vsel %vm1370, %v4511, 0.0
    %4528 = vadd.xlane.f32.xlu0 %v4527
    %v4529 = vpop.xlane.xlu0 %4528
    %v4530 = vsel %vm1370, %v4513, 0.0
    %4531 = vadd.xlane.f32.xlu0 %v4530
    %v4532 = vpop.xlane.xlu0 %4531
    %v4533 = vsel %vm1370, %v4515, 0.0
    %4534 = vadd.xlane.f32.xlu0 %v4533
    %v4535 = vpop.xlane.xlu0 %4534
    %v4536 = vsel %vm1370, %v4517, 0.0
    %4537 = vadd.xlane.f32.xlu0 %v4536
    %v4538 = vpop.xlane.xlu0 %4537
    %v4539 = vsel %vm1370, %v4519, 0.0
    %4540 = vadd.xlane.f32.xlu0 %v4539
    %v4541 = vpop.xlane.xlu0 %4540
    %v4542 = vsel %vm1370, %v4521, 0.0
    %4543 = vadd.xlane.f32.xlu0 %v4542
    %v4544 = vpop.xlane.xlu0 %4543
    %v4545 = vsel %vm1370, %v4523, 0.0
    %4546 = vadd.xlane.f32.xlu0 %v4545
    %v4547 = vpop.xlane.xlu0 %4546
    %v4548 = vrcp.pop %v4526
    %v4549 = vrcp.pop %v4529
    %v4550 = vrcp.pop %v4532
    %v4551 = vrcp.pop %v4535
    %v4552 = vrcp.pop %v4538
    %v4553 = vrcp.pop %v4541
    %v4554 = vrcp.pop %v4544
    %v4555 = vrcp.pop %v4547
    %v4556 = vmul.f32 %v4509, %v4548
    %v4557 = vmul.f32 %v4511, %v4549
    %v4558 = vmul.f32 %v4513, %v4550
    %v4559 = vmul.f32 %v4515, %v4551
    %v4560 = vmul.f32 %v4517, %v4552
    %v4561 = vmul.f32 %v4519, %v4553
    %v4562 = vmul.f32 %v4521, %v4554
    %v4563 = vmul.f32 %v4523, %v4555
    %4564 = vrot.lane.b32.xlu0 %v3867, 56
    %v4565 = vpop.permute.xlu0 %4564
    %4566 = vrot.lane.b32.xlu0 %v3872, 56
    %v4567 = vpop.permute.xlu0 %4566
    %4568 = vrot.lane.b32.xlu0 %v3877, 56
    %v4569 = vpop.permute.xlu0 %4568
    %4570 = vrot.lane.b32.xlu0 %v3882, 56
    %v4571 = vpop.permute.xlu0 %4570
    %4572 = vrot.lane.b32.xlu0 %v3887, 56
    %v4573 = vpop.permute.xlu0 %4572
    %4574 = vrot.lane.b32.xlu0 %v3892, 56
    %v4575 = vpop.permute.xlu0 %4574
    %4576 = vrot.lane.b32.xlu0 %v3897, 56
    %v4577 = vpop.permute.xlu0 %4576
    %4578 = vrot.lane.b32.xlu0 %v3902, 56
    %v4579 = vpop.permute.xlu0 %4578
    %v4589 = vsel %vm1370, %v4556, 0
    %v4592 = vsel %vm1370, %v4557, 0
    %v4595 = vsel %vm1370, %v4558, 0
    %v4598 = vsel %vm1370, %v4559, 0
    %v4601 = vsel %vm1370, %v4560, 0
    %v4604 = vsel %vm1370, %v4561, 0
    %v4607 = vsel %vm1370, %v4562, 0
    %v4610 = vsel %vm1370, %v4563, 0
    %4612 = vmatprep.subr.mxu0 0.0
    %4613 = vmatpush1.msra.mxu0 %v4565
    %4614 = vmatprep.subr.mxu0 0.0
    %4615 = vmatpush1.msra.mxu0 %v4567
    %4616 = vmatprep.subr.mxu0 0.0
    %4617 = vmatpush1.msra.mxu0 %v4569
    %4618 = vmatprep.subr.mxu0 0.0
    %4619 = vmatpush1.msra.mxu0 %v4571
    %4620 = vmatprep.subr.mxu0 0.0
    %4621 = vmatpush1.msra.mxu0 %v4573
    %4622 = vmatprep.subr.mxu0 0.0
    %4623 = vmatpush1.msra.mxu0 %v4575
    %4624 = vmatprep.subr.mxu0 0.0
    %4625 = vmatpush1.msra.mxu0 %v4577
    %4626 = vmatprep.subr.mxu0 0.0
    %4627 = vmatpush1.msra.mxu0 %v4579
    %4628 = vmatprep.subr.mxu0 0.0
    %4629 = vmatpush1.msra.mxu0 0.0
    %4630 = vmatprep.subr.mxu0 0.0
    %4631 = vmatpush1.msra.mxu0 0.0
    %4632 = vmatprep.subr.mxu0 0.0
    %4633 = vmatpush1.msra.mxu0 0.0
    %4634 = vmatprep.subr.mxu0 0.0
    %4635 = vmatpush1.msra.mxu0 0.0
    %4636 = vmatprep.subr.mxu0 0.0
    %4637 = vmatpush1.msra.mxu0 0.0
    %4638 = vmatprep.subr.mxu0 0.0
    %4639 = vmatpush1.msra.mxu0 0.0
    %4640 = vmatprep.subr.mxu0 0.0
    %4641 = vmatpush1.msra.mxu0 0.0
    %4642 = vmatprep.subr.mxu0 0.0
    %4643 = vmatpush1.msra.mxu0 0.0
    %4644 = vmatprep.subr.mxu0 0.0
    %4645 = vmatpush1.msra.mxu0 0.0
    %4646 = vmatprep.subr.mxu0 0.0
    %4647 = vmatpush1.msra.mxu0 0.0
    %4648 = vmatprep.subr.mxu0 0.0
    %4649 = vmatpush1.msra.mxu0 0.0
    %4650 = vmatprep.subr.mxu0 0.0
    %4651 = vmatpush1.msra.mxu0 0.0
    %4652 = vmatprep.subr.mxu0 0.0
    %4653 = vmatpush1.msra.mxu0 0.0
    %4654 = vmatprep.subr.mxu0 0.0
    %4655 = vmatpush1.msra.mxu0 0.0
    %4656 = vmatprep.subr.mxu0 0.0
    %4657 = vmatpush1.msra.mxu0 0.0
    %4658 = vmatprep.subr.mxu0 0.0
    %4659 = vmatpush1.msra.mxu0 0.0
    %4660 = vmatprep.subr.mxu0 0.0
    %4661 = vmatpush1.msra.mxu0 0.0
    %4662 = vmatprep.subr.mxu0 0.0
    %4663 = vmatpush1.msra.mxu0 0.0
    %4664 = vmatprep.subr.mxu0 0.0
    %4665 = vmatpush1.msra.mxu0 0.0
    %4666 = vmatprep.subr.mxu0 0.0
    %4667 = vmatpush1.msra.mxu0 0.0
    %4668 = vmatprep.subr.mxu0 0.0
    %4669 = vmatpush1.msra.mxu0 0.0
    %4670 = vmatprep.subr.mxu0 0.0
    %4671 = vmatpush1.msra.mxu0 0.0
    %4672 = vmatprep.subr.mxu0 0.0
    %4673 = vmatpush1.msra.mxu0 0.0
    %4674 = vmatprep.subr.mxu0 0.0
    %4675 = vmatpush1.msra.mxu0 0.0
    %4676 = vmatprep.mubr.f32.mxu0 0.0
    %4677 = vmatmul.mubr.f32.gmra.mrb[0].mxu0 %v4589
    %v4678 = vpop.f32.mrb[0].mxu0
    %v4679 = vadd.f32 0.0, %v4678
    %v4680 = vpop.f32.mrb[0].mxu0
    %4681 = vmatprep.mubr.f32.mxu0 0.0
    %4682 = vmatmul.mubr.f32.gmra.mrb[0].mxu0 %v4592
    %v4683 = vpop.f32.mrb[0].mxu0
    %v4684 = vadd.f32 0.0, %v4683
    %v4685 = vpop.f32.mrb[0].mxu0
    %4686 = vmatprep.mubr.f32.mxu0 0.0
    %4687 = vmatmul.mubr.f32.gmra.mrb[0].mxu0 %v4595
    %v4688 = vpop.f32.mrb[0].mxu0
    %v4689 = vadd.f32 0.0, %v4688
    %v4690 = vpop.f32.mrb[0].mxu0
    %4691 = vmatprep.mubr.f32.mxu0 0.0
    %4692 = vmatmul.mubr.f32.gmra.mrb[0].mxu0 %v4598
    %v4693 = vpop.f32.mrb[0].mxu0
    %v4694 = vadd.f32 0.0, %v4693
    %v4695 = vpop.f32.mrb[0].mxu0
    %4696 = vmatprep.mubr.f32.mxu0 0.0
    %4697 = vmatmul.mubr.f32.gmra.mrb[0].mxu0 %v4601
    %v4698 = vpop.f32.mrb[0].mxu0
    %v4699 = vadd.f32 0.0, %v4698
    %v4700 = vpop.f32.mrb[0].mxu0
    %4701 = vmatprep.mubr.f32.mxu0 0.0
    %4702 = vmatmul.mubr.f32.gmra.mrb[0].mxu0 %v4604
    %v4703 = vpop.f32.mrb[0].mxu0
    %v4704 = vadd.f32 0.0, %v4703
    %v4705 = vpop.f32.mrb[0].mxu0
    %4706 = vmatprep.mubr.f32.mxu0 0.0
    %4707 = vmatmul.mubr.f32.gmra.mrb[0].mxu0 %v4607
    %v4708 = vpop.f32.mrb[0].mxu0
    %v4709 = vadd.f32 0.0, %v4708
    %v4710 = vpop.f32.mrb[0].mxu0
    %4711 = vmatprep.mubr.f32.mxu0 0.0
    %4712 = vmatmul.mubr.f32.gmra.mrb[0].mxu0 %v4610
    %v4713 = vpop.f32.mrb[0].mxu0
    %v4714 = vadd.f32 0.0, %v4713
    %v4715 = vpop.f32.mrb[0].mxu0
    %4716 = vdwg.mxu0
    %4717 = vrot.lane.b32.xlu0 %v3867, 112
    %v4718 = vpop.permute.xlu0 %4717
    %4719 = vrot.lane.b32.xlu0 %v3872, 112
    %v4720 = vpop.permute.xlu0 %4719
    %4721 = vrot.lane.b32.xlu0 %v3877, 112
    %v4722 = vpop.permute.xlu0 %4721
    %4723 = vrot.lane.b32.xlu0 %v3882, 112
    %v4724 = vpop.permute.xlu0 %4723
    %4725 = vrot.lane.b32.xlu0 %v3887, 112
    %v4726 = vpop.permute.xlu0 %4725
    %4727 = vrot.lane.b32.xlu0 %v3892, 112
    %v4728 = vpop.permute.xlu0 %4727
    %4729 = vrot.lane.b32.xlu0 %v3897, 112
    %v4730 = vpop.permute.xlu0 %4729
    %4731 = vrot.lane.b32.xlu0 %v3902, 112
    %v4732 = vpop.permute.xlu0 %4731
    %4733 = vrot.lane.b32.xlu0 %v3867, 80
    %v4734 = vpop.permute.xlu0 %4733
    %4735 = vrot.lane.b32.xlu0 %v3872, 80
    %v4736 = vpop.permute.xlu0 %4735
    %4737 = vrot.lane.b32.xlu0 %v3877, 80
    %v4738 = vpop.permute.xlu0 %4737
    %4739 = vrot.lane.b32.xlu0 %v3882, 80
    %v4740 = vpop.permute.xlu0 %4739
    %4741 = vrot.lane.b32.xlu0 %v3887, 80
    %v4742 = vpop.permute.xlu0 %4741
    %4743 = vrot.lane.b32.xlu0 %v3892, 80
    %v4744 = vpop.permute.xlu0 %4743
    %4745 = vrot.lane.b32.xlu0 %v3897, 80
    %v4746 = vpop.permute.xlu0 %4745
    %4747 = vrot.lane.b32.xlu0 %v3902, 80
    %v4748 = vpop.permute.xlu0 %4747
    %v4749 = vsel %vm1232, %v4718, 0
    %v4751 = vsel %vm1232, %v4720, 0
    %v4753 = vsel %vm1232, %v4722, 0
    %v4755 = vsel %vm1232, %v4724, 0
    %v4757 = vsel %vm1232, %v4726, 0
    %v4759 = vsel %vm1232, %v4728, 0
    %v4761 = vsel %vm1232, %v4730, 0
    %v4763 = vsel %vm1232, %v4732, 0
    %v4765 = vsel %vm1232, %v4734, 0
    %v4767 = vsel %vm1232, %v4736, 0
    %v4769 = vsel %vm1232, %v4738, 0
    %v4771 = vsel %vm1232, %v4740, 0
    %v4773 = vsel %vm1232, %v4742, 0
    %v4775 = vsel %vm1232, %v4744, 0
    %v4777 = vsel %vm1232, %v4746, 0
    %v4779 = vsel %vm1232, %v4748, 0
    %4781 = vmatprep.subr.mxu0 0.0
    %4782 = vmatpush1.xpose.msra.mxu0 %v4765
    %4783 = vmatprep.subr.mxu0 0.0
    %4784 = vmatpush1.xpose.msra.mxu0 %v4767
    %4785 = vmatprep.subr.mxu0 0.0
    %4786 = vmatpush1.xpose.msra.mxu0 %v4769
    %4787 = vmatprep.subr.mxu0 0.0
    %4788 = vmatpush1.xpose.msra.mxu0 %v4771
    %4789 = vmatprep.subr.mxu0 0.0
    %4790 = vmatpush1.xpose.msra.mxu0 %v4773
    %4791 = vmatprep.subr.mxu0 0.0
    %4792 = vmatpush1.xpose.msra.mxu0 %v4775
    %4793 = vmatprep.subr.mxu0 0.0
    %4794 = vmatpush1.xpose.msra.mxu0 %v4777
    %4795 = vmatprep.subr.mxu0 0.0
    %4796 = vmatpush1.xpose.msra.mxu0 %v4779
    %4797 = vmatprep.subr.mxu0 0.0
    %4798 = vmatpush1.xpose.msra.mxu0 0.0
    %4799 = vmatprep.subr.mxu0 0.0
    %4800 = vmatpush1.xpose.msra.mxu0 0.0
    %4801 = vmatprep.subr.mxu0 0.0
    %4802 = vmatpush1.xpose.msra.mxu0 0.0
    %4803 = vmatprep.subr.mxu0 0.0
    %4804 = vmatpush1.xpose.msra.mxu0 0.0
    %4805 = vmatprep.subr.mxu0 0.0
    %4806 = vmatpush1.xpose.msra.mxu0 0.0
    %4807 = vmatprep.subr.mxu0 0.0
    %4808 = vmatpush1.xpose.msra.mxu0 0.0
    %4809 = vmatprep.subr.mxu0 0.0
    %4810 = vmatpush1.xpose.msra.mxu0 0.0
    %4811 = vmatprep.subr.mxu0 0.0
    %4812 = vmatpush1.xpose.msra.mxu0 0.0
    %4813 = vmatprep.subr.mxu0 0.0
    %4814 = vmatpush1.xpose.msra.mxu0 0.0
    %4815 = vmatprep.subr.mxu0 0.0
    %4816 = vmatpush1.xpose.msra.mxu0 0.0
    %4817 = vmatprep.subr.mxu0 0.0
    %4818 = vmatpush1.xpose.msra.mxu0 0.0
    %4819 = vmatprep.subr.mxu0 0.0
    %4820 = vmatpush1.xpose.msra.mxu0 0.0
    %4821 = vmatprep.subr.mxu0 0.0
    %4822 = vmatpush1.xpose.msra.mxu0 0.0
    %4823 = vmatprep.subr.mxu0 0.0
    %4824 = vmatpush1.xpose.msra.mxu0 0.0
    %4825 = vmatprep.subr.mxu0 0.0
    %4826 = vmatpush1.xpose.msra.mxu0 0.0
    %4827 = vmatprep.subr.mxu0 0.0
    %4828 = vmatpush1.xpose.msra.mxu0 0.0
    %4829 = vmatprep.subr.mxu0 0.0
    %4830 = vmatpush1.xpose.msra.mxu0 0.0
    %4831 = vmatprep.subr.mxu0 0.0
    %4832 = vmatpush1.xpose.msra.mxu0 0.0
    %4833 = vmatprep.subr.mxu0 0.0
    %4834 = vmatpush1.xpose.msra.mxu0 0.0
    %4835 = vmatprep.subr.mxu0 0.0
    %4836 = vmatpush1.xpose.msra.mxu0 0.0
    %4837 = vmatprep.subr.mxu0 0.0
    %4838 = vmatpush1.xpose.msra.mxu0 0.0
    %4839 = vmatprep.subr.mxu0 0.0
    %4840 = vmatpush1.xpose.msra.mxu0 0.0
    %4841 = vmatprep.subr.mxu0 0.0
    %4842 = vmatpush1.xpose.msra.mxu0 0.0
    %4843 = vmatprep.subr.mxu0 0.0
    %4844 = vmatpush1.xpose.msra.mxu0 0.0
    %4845 = vmatprep.mubr.f32.mxu0 0.0
    %4846 = vmatmul.mubr.f32.gmra.mrb[0].mxu0 %v4749
    %v4847 = vpop.f32.mrb[0].mxu0
    %v4848 = vadd.f32 %v916, %v4847
    %v4849 = vpop.f32.mrb[0].mxu0
    %4850 = vmatprep.mubr.f32.mxu0 0.0
    %4851 = vmatmul.mubr.f32.gmra.mrb[0].mxu0 %v4751
    %v4852 = vpop.f32.mrb[0].mxu0
    %v4853 = vadd.f32 %v917, %v4852
    %v4854 = vpop.f32.mrb[0].mxu0
    %4855 = vmatprep.mubr.f32.mxu0 0.0
    %4856 = vmatmul.mubr.f32.gmra.mrb[0].mxu0 %v4753
    %v4857 = vpop.f32.mrb[0].mxu0
    %v4858 = vadd.f32 %v918, %v4857
    %v4859 = vpop.f32.mrb[0].mxu0
    %4860 = vmatprep.mubr.f32.mxu0 0.0
    %4861 = vmatmul.mubr.f32.gmra.mrb[0].mxu0 %v4755
    %v4862 = vpop.f32.mrb[0].mxu0
    %v4863 = vadd.f32 %v919, %v4862
    %v4864 = vpop.f32.mrb[0].mxu0
    %4865 = vmatprep.mubr.f32.mxu0 0.0
    %4866 = vmatmul.mubr.f32.gmra.mrb[0].mxu0 %v4757
    %v4867 = vpop.f32.mrb[0].mxu0
    %v4868 = vadd.f32 %v920, %v4867
    %v4869 = vpop.f32.mrb[0].mxu0
    %4870 = vmatprep.mubr.f32.mxu0 0.0
    %4871 = vmatmul.mubr.f32.gmra.mrb[0].mxu0 %v4759
    %v4872 = vpop.f32.mrb[0].mxu0
    %v4873 = vadd.f32 %v921, %v4872
    %v4874 = vpop.f32.mrb[0].mxu0
    %4875 = vmatprep.mubr.f32.mxu0 0.0
    %4876 = vmatmul.mubr.f32.gmra.mrb[0].mxu0 %v4761
    %v4877 = vpop.f32.mrb[0].mxu0
    %v4878 = vadd.f32 %v922, %v4877
    %v4879 = vpop.f32.mrb[0].mxu0
    %4880 = vmatprep.mubr.f32.mxu0 0.0
    %4881 = vmatmul.mubr.f32.gmra.mrb[0].mxu0 %v4763
    %v4882 = vpop.f32.mrb[0].mxu0
    %v4883 = vadd.f32 %v923, %v4882
    %v4884 = vpop.f32.mrb[0].mxu0
    %4885 = vdwg.mxu0
    %v4886 = vsel %vm1370, %v4848, -inf
    %4887 = vmax.xlane.f32.xlu0 %v4886
    %v4888 = vpop.xlane.xlu0 %4887
    %v4889 = vsel %vm1370, %v4853, -inf
    %4890 = vmax.xlane.f32.xlu0 %v4889
    %v4891 = vpop.xlane.xlu0 %4890
    %v4892 = vsel %vm1370, %v4858, -inf
    %4893 = vmax.xlane.f32.xlu0 %v4892
    %v4894 = vpop.xlane.xlu0 %4893
    %v4895 = vsel %vm1370, %v4863, -inf
    %4896 = vmax.xlane.f32.xlu0 %v4895
    %v4897 = vpop.xlane.xlu0 %4896
    %v4898 = vsel %vm1370, %v4868, -inf
    %4899 = vmax.xlane.f32.xlu0 %v4898
    %v4900 = vpop.xlane.xlu0 %4899
    %v4901 = vsel %vm1370, %v4873, -inf
    %4902 = vmax.xlane.f32.xlu0 %v4901
    %v4903 = vpop.xlane.xlu0 %4902
    %v4904 = vsel %vm1370, %v4878, -inf
    %4905 = vmax.xlane.f32.xlu0 %v4904
    %v4906 = vpop.xlane.xlu0 %4905
    %v4907 = vsel %vm1370, %v4883, -inf
    %4908 = vmax.xlane.f32.xlu0 %v4907
    %v4909 = vpop.xlane.xlu0 %4908
    %v4910 = vsub.f32 %v4848, %v4888
    %v4911 = vsub.f32 %v4853, %v4891
    %v4912 = vsub.f32 %v4858, %v4894
    %v4913 = vsub.f32 %v4863, %v4897
    %v4914 = vsub.f32 %v4868, %v4900
    %v4915 = vsub.f32 %v4873, %v4903
    %v4916 = vsub.f32 %v4878, %v4906
    %v4917 = vsub.f32 %v4883, %v4909
    %v4918 = vmul.f32 %v4910, 1.442695
    %v4919 = vpow.pop %v4918
    %v4920 = vmul.f32 %v4911, 1.442695
    %v4921 = vpow.pop %v4920
    %v4922 = vmul.f32 %v4912, 1.442695
    %v4923 = vpow.pop %v4922
    %v4924 = vmul.f32 %v4913, 1.442695
    %v4925 = vpow.pop %v4924
    %v4926 = vmul.f32 %v4914, 1.442695
    %v4927 = vpow.pop %v4926
    %v4928 = vmul.f32 %v4915, 1.442695
    %v4929 = vpow.pop %v4928
    %v4930 = vmul.f32 %v4916, 1.442695
    %v4931 = vpow.pop %v4930
    %v4932 = vmul.f32 %v4917, 1.442695
    %v4933 = vpow.pop %v4932
    %v4934 = vsel %vm1370, %v4919, 0.0
    %4935 = vadd.xlane.f32.xlu0 %v4934
    %v4936 = vpop.xlane.xlu0 %4935
    %v4937 = vsel %vm1370, %v4921, 0.0
    %4938 = vadd.xlane.f32.xlu0 %v4937
    %v4939 = vpop.xlane.xlu0 %4938
    %v4940 = vsel %vm1370, %v4923, 0.0
    %4941 = vadd.xlane.f32.xlu0 %v4940
    %v4942 = vpop.xlane.xlu0 %4941
    %v4943 = vsel %vm1370, %v4925, 0.0
    %4944 = vadd.xlane.f32.xlu0 %v4943
    %v4945 = vpop.xlane.xlu0 %4944
    %v4946 = vsel %vm1370, %v4927, 0.0
    %4947 = vadd.xlane.f32.xlu0 %v4946
    %v4948 = vpop.xlane.xlu0 %4947
    %v4949 = vsel %vm1370, %v4929, 0.0
    %4950 = vadd.xlane.f32.xlu0 %v4949
    %v4951 = vpop.xlane.xlu0 %4950
    %v4952 = vsel %vm1370, %v4931, 0.0
    %4953 = vadd.xlane.f32.xlu0 %v4952
    %v4954 = vpop.xlane.xlu0 %4953
    %v4955 = vsel %vm1370, %v4933, 0.0
    %4956 = vadd.xlane.f32.xlu0 %v4955
    %v4957 = vpop.xlane.xlu0 %4956
    %v4958 = vrcp.pop %v4936
    %v4959 = vrcp.pop %v4939
    %v4960 = vrcp.pop %v4942
    %v4961 = vrcp.pop %v4945
    %v4962 = vrcp.pop %v4948
    %v4963 = vrcp.pop %v4951
    %v4964 = vrcp.pop %v4954
    %v4965 = vrcp.pop %v4957
    %v4966 = vmul.f32 %v4919, %v4958
    %v4967 = vmul.f32 %v4921, %v4959
    %v4968 = vmul.f32 %v4923, %v4960
    %v4969 = vmul.f32 %v4925, %v4961
    %v4970 = vmul.f32 %v4927, %v4962
    %v4971 = vmul.f32 %v4929, %v4963
    %v4972 = vmul.f32 %v4931, %v4964
    %v4973 = vmul.f32 %v4933, %v4965
    %4974 = vrot.lane.b32.xlu0 %v3867, 48
    %v4975 = vpop.permute.xlu0 %4974
    %4976 = vrot.lane.b32.xlu0 %v3872, 48
    %v4977 = vpop.permute.xlu0 %4976
    %4978 = vrot.lane.b32.xlu0 %v3877, 48
    %v4979 = vpop.permute.xlu0 %4978
    %4980 = vrot.lane.b32.xlu0 %v3882, 48
    %v4981 = vpop.permute.xlu0 %4980
    %4982 = vrot.lane.b32.xlu0 %v3887, 48
    %v4983 = vpop.permute.xlu0 %4982
    %4984 = vrot.lane.b32.xlu0 %v3892, 48
    %v4985 = vpop.permute.xlu0 %4984
    %4986 = vrot.lane.b32.xlu0 %v3897, 48
    %v4987 = vpop.permute.xlu0 %4986
    %4988 = vrot.lane.b32.xlu0 %v3902, 48
    %v4989 = vpop.permute.xlu0 %4988
    %v4999 = vsel %vm1370, %v4966, 0
    %v5002 = vsel %vm1370, %v4967, 0
    %v5005 = vsel %vm1370, %v4968, 0
    %v5008 = vsel %vm1370, %v4969, 0
    %v5011 = vsel %vm1370, %v4970, 0
    %v5014 = vsel %vm1370, %v4971, 0
    %v5017 = vsel %vm1370, %v4972, 0
    %v5020 = vsel %vm1370, %v4973, 0
    %5022 = vmatprep.subr.mxu0 0.0
    %5023 = vmatpush1.msra.mxu0 %v4975
    %5024 = vmatprep.subr.mxu0 0.0
    %5025 = vmatpush1.msra.mxu0 %v4977
    %5026 = vmatprep.subr.mxu0 0.0
    %5027 = vmatpush1.msra.mxu0 %v4979
    %5028 = vmatprep.subr.mxu0 0.0
    %5029 = vmatpush1.msra.mxu0 %v4981
    %5030 = vmatprep.subr.mxu0 0.0
    %5031 = vmatpush1.msra.mxu0 %v4983
    %5032 = vmatprep.subr.mxu0 0.0
    %5033 = vmatpush1.msra.mxu0 %v4985
    %5034 = vmatprep.subr.mxu0 0.0
    %5035 = vmatpush1.msra.mxu0 %v4987
    %5036 = vmatprep.subr.mxu0 0.0
    %5037 = vmatpush1.msra.mxu0 %v4989
    %5038 = vmatprep.subr.mxu0 0.0
    %5039 = vmatpush1.msra.mxu0 0.0
    %5040 = vmatprep.subr.mxu0 0.0
    %5041 = vmatpush1.msra.mxu0 0.0
    %5042 = vmatprep.subr.mxu0 0.0
    %5043 = vmatpush1.msra.mxu0 0.0
    %5044 = vmatprep.subr.mxu0 0.0
    %5045 = vmatpush1.msra.mxu0 0.0
    %5046 = vmatprep.subr.mxu0 0.0
    %5047 = vmatpush1.msra.mxu0 0.0
    %5048 = vmatprep.subr.mxu0 0.0
    %5049 = vmatpush1.msra.mxu0 0.0
    %5050 = vmatprep.subr.mxu0 0.0
    %5051 = vmatpush1.msra.mxu0 0.0
    %5052 = vmatprep.subr.mxu0 0.0
    %5053 = vmatpush1.msra.mxu0 0.0
    %5054 = vmatprep.subr.mxu0 0.0
    %5055 = vmatpush1.msra.mxu0 0.0
    %5056 = vmatprep.subr.mxu0 0.0
    %5057 = vmatpush1.msra.mxu0 0.0
    %5058 = vmatprep.subr.mxu0 0.0
    %5059 = vmatpush1.msra.mxu0 0.0
    %5060 = vmatprep.subr.mxu0 0.0
    %5061 = vmatpush1.msra.mxu0 0.0
    %5062 = vmatprep.subr.mxu0 0.0
    %5063 = vmatpush1.msra.mxu0 0.0
    %5064 = vmatprep.subr.mxu0 0.0
    %5065 = vmatpush1.msra.mxu0 0.0
    %5066 = vmatprep.subr.mxu0 0.0
    %5067 = vmatpush1.msra.mxu0 0.0
    %5068 = vmatprep.subr.mxu0 0.0
    %5069 = vmatpush1.msra.mxu0 0.0
    %5070 = vmatprep.subr.mxu0 0.0
    %5071 = vmatpush1.msra.mxu0 0.0
    %5072 = vmatprep.subr.mxu0 0.0
    %5073 = vmatpush1.msra.mxu0 0.0
    %5074 = vmatprep.subr.mxu0 0.0
    %5075 = vmatpush1.msra.mxu0 0.0
    %5076 = vmatprep.subr.mxu0 0.0
    %5077 = vmatpush1.msra.mxu0 0.0
    %5078 = vmatprep.subr.mxu0 0.0
    %5079 = vmatpush1.msra.mxu0 0.0
    %5080 = vmatprep.subr.mxu0 0.0
    %5081 = vmatpush1.msra.mxu0 0.0
    %5082 = vmatprep.subr.mxu0 0.0
    %5083 = vmatpush1.msra.mxu0 0.0
    %5084 = vmatprep.subr.mxu0 0.0
    %5085 = vmatpush1.msra.mxu0 0.0
    %5086 = vmatprep.mubr.f32.mxu0 0.0
    %5087 = vmatmul.mubr.f32.gmra.mrb[0].mxu0 %v4999
    %v5088 = vpop.f32.mrb[0].mxu0
    %v5089 = vadd.f32 0.0, %v5088
    %v5090 = vpop.f32.mrb[0].mxu0
    %5091 = vmatprep.mubr.f32.mxu0 0.0
    %5092 = vmatmul.mubr.f32.gmra.mrb[0].mxu0 %v5002
    %v5093 = vpop.f32.mrb[0].mxu0
    %v5094 = vadd.f32 0.0, %v5093
    %v5095 = vpop.f32.mrb[0].mxu0
    %5096 = vmatprep.mubr.f32.mxu0 0.0
    %5097 = vmatmul.mubr.f32.gmra.mrb[0].mxu0 %v5005
    %v5098 = vpop.f32.mrb[0].mxu0
    %v5099 = vadd.f32 0.0, %v5098
    %v5100 = vpop.f32.mrb[0].mxu0
    %5101 = vmatprep.mubr.f32.mxu0 0.0
    %5102 = vmatmul.mubr.f32.gmra.mrb[0].mxu0 %v5008
    %v5103 = vpop.f32.mrb[0].mxu0
    %v5104 = vadd.f32 0.0, %v5103
    %v5105 = vpop.f32.mrb[0].mxu0
    %5106 = vmatprep.mubr.f32.mxu0 0.0
    %5107 = vmatmul.mubr.f32.gmra.mrb[0].mxu0 %v5011
    %v5108 = vpop.f32.mrb[0].mxu0
    %v5109 = vadd.f32 0.0, %v5108
    %v5110 = vpop.f32.mrb[0].mxu0
    %5111 = vmatprep.mubr.f32.mxu0 0.0
    %5112 = vmatmul.mubr.f32.gmra.mrb[0].mxu0 %v5014
    %v5113 = vpop.f32.mrb[0].mxu0
    %v5114 = vadd.f32 0.0, %v5113
    %v5115 = vpop.f32.mrb[0].mxu0
    %5116 = vmatprep.mubr.f32.mxu0 0.0
    %5117 = vmatmul.mubr.f32.gmra.mrb[0].mxu0 %v5017
    %v5118 = vpop.f32.mrb[0].mxu0
    %v5119 = vadd.f32 0.0, %v5118
    %v5120 = vpop.f32.mrb[0].mxu0
    %5121 = vmatprep.mubr.f32.mxu0 0.0
    %5122 = vmatmul.mubr.f32.gmra.mrb[0].mxu0 %v5020
    %v5123 = vpop.f32.mrb[0].mxu0
    %v5124 = vadd.f32 0.0, %v5123
    %v5125 = vpop.f32.mrb[0].mxu0
    %5126 = vdwg.mxu0
    %5127 = vrot.lane.b32.xlu0 %v3867, 104
    %v5128 = vpop.permute.xlu0 %5127
    %5129 = vrot.lane.b32.xlu0 %v3872, 104
    %v5130 = vpop.permute.xlu0 %5129
    %5131 = vrot.lane.b32.xlu0 %v3877, 104
    %v5132 = vpop.permute.xlu0 %5131
    %5133 = vrot.lane.b32.xlu0 %v3882, 104
    %v5134 = vpop.permute.xlu0 %5133
    %5135 = vrot.lane.b32.xlu0 %v3887, 104
    %v5136 = vpop.permute.xlu0 %5135
    %5137 = vrot.lane.b32.xlu0 %v3892, 104
    %v5138 = vpop.permute.xlu0 %5137
    %5139 = vrot.lane.b32.xlu0 %v3897, 104
    %v5140 = vpop.permute.xlu0 %5139
    %5141 = vrot.lane.b32.xlu0 %v3902, 104
    %v5142 = vpop.permute.xlu0 %5141
    %5143 = vrot.lane.b32.xlu0 %v3867, 72
    %v5144 = vpop.permute.xlu0 %5143
    %5145 = vrot.lane.b32.xlu0 %v3872, 72
    %v5146 = vpop.permute.xlu0 %5145
    %5147 = vrot.lane.b32.xlu0 %v3877, 72
    %v5148 = vpop.permute.xlu0 %5147
    %5149 = vrot.lane.b32.xlu0 %v3882, 72
    %v5150 = vpop.permute.xlu0 %5149
    %5151 = vrot.lane.b32.xlu0 %v3887, 72
    %v5152 = vpop.permute.xlu0 %5151
    %5153 = vrot.lane.b32.xlu0 %v3892, 72
    %v5154 = vpop.permute.xlu0 %5153
    %5155 = vrot.lane.b32.xlu0 %v3897, 72
    %v5156 = vpop.permute.xlu0 %5155
    %5157 = vrot.lane.b32.xlu0 %v3902, 72
    %v5158 = vpop.permute.xlu0 %5157
    %v5159 = vsel %vm1232, %v5128, 0
    %v5161 = vsel %vm1232, %v5130, 0
    %v5163 = vsel %vm1232, %v5132, 0
    %v5165 = vsel %vm1232, %v5134, 0
    %v5167 = vsel %vm1232, %v5136, 0
    %v5169 = vsel %vm1232, %v5138, 0
    %v5171 = vsel %vm1232, %v5140, 0
    %v5173 = vsel %vm1232, %v5142, 0
    %v5175 = vsel %vm1232, %v5144, 0
    %v5177 = vsel %vm1232, %v5146, 0
    %v5179 = vsel %vm1232, %v5148, 0
    %v5181 = vsel %vm1232, %v5150, 0
    %v5183 = vsel %vm1232, %v5152, 0
    %v5185 = vsel %vm1232, %v5154, 0
    %v5187 = vsel %vm1232, %v5156, 0
    %v5189 = vsel %vm1232, %v5158, 0
    %5191 = vmatprep.subr.mxu0 0.0
    %5192 = vmatpush1.xpose.msra.mxu0 %v5175
    %5193 = vmatprep.subr.mxu0 0.0
    %5194 = vmatpush1.xpose.msra.mxu0 %v5177
    %5195 = vmatprep.subr.mxu0 0.0
    %5196 = vmatpush1.xpose.msra.mxu0 %v5179
    %5197 = vmatprep.subr.mxu0 0.0
    %5198 = vmatpush1.xpose.msra.mxu0 %v5181
    %5199 = vmatprep.subr.mxu0 0.0
    %5200 = vmatpush1.xpose.msra.mxu0 %v5183
    %5201 = vmatprep.subr.mxu0 0.0
    %5202 = vmatpush1.xpose.msra.mxu0 %v5185
    %5203 = vmatprep.subr.mxu0 0.0
    %5204 = vmatpush1.xpose.msra.mxu0 %v5187
    %5205 = vmatprep.subr.mxu0 0.0
    %5206 = vmatpush1.xpose.msra.mxu0 %v5189
    %5207 = vmatprep.subr.mxu0 0.0
    %5208 = vmatpush1.xpose.msra.mxu0 0.0
    %5209 = vmatprep.subr.mxu0 0.0
    %5210 = vmatpush1.xpose.msra.mxu0 0.0
    %5211 = vmatprep.subr.mxu0 0.0
    %5212 = vmatpush1.xpose.msra.mxu0 0.0
    %5213 = vmatprep.subr.mxu0 0.0
    %5214 = vmatpush1.xpose.msra.mxu0 0.0
    %5215 = vmatprep.subr.mxu0 0.0
    %5216 = vmatpush1.xpose.msra.mxu0 0.0
    %5217 = vmatprep.subr.mxu0 0.0
    %5218 = vmatpush1.xpose.msra.mxu0 0.0
    %5219 = vmatprep.subr.mxu0 0.0
    %5220 = vmatpush1.xpose.msra.mxu0 0.0
    %5221 = vmatprep.subr.mxu0 0.0
    %5222 = vmatpush1.xpose.msra.mxu0 0.0
    %5223 = vmatprep.subr.mxu0 0.0
    %5224 = vmatpush1.xpose.msra.mxu0 0.0
    %5225 = vmatprep.subr.mxu0 0.0
    %5226 = vmatpush1.xpose.msra.mxu0 0.0
    %5227 = vmatprep.subr.mxu0 0.0
    %5228 = vmatpush1.xpose.msra.mxu0 0.0
    %5229 = vmatprep.subr.mxu0 0.0
    %5230 = vmatpush1.xpose.msra.mxu0 0.0
    %5231 = vmatprep.subr.mxu0 0.0
    %5232 = vmatpush1.xpose.msra.mxu0 0.0
    %5233 = vmatprep.subr.mxu0 0.0
    %5234 = vmatpush1.xpose.msra.mxu0 0.0
    %5235 = vmatprep.subr.mxu0 0.0
    %5236 = vmatpush1.xpose.msra.mxu0 0.0
    %5237 = vmatprep.subr.mxu0 0.0
    %5238 = vmatpush1.xpose.msra.mxu0 0.0
    %5239 = vmatprep.subr.mxu0 0.0
    %5240 = vmatpush1.xpose.msra.mxu0 0.0
    %5241 = vmatprep.subr.mxu0 0.0
    %5242 = vmatpush1.xpose.msra.mxu0 0.0
    %5243 = vmatprep.subr.mxu0 0.0
    %5244 = vmatpush1.xpose.msra.mxu0 0.0
    %5245 = vmatprep.subr.mxu0 0.0
    %5246 = vmatpush1.xpose.msra.mxu0 0.0
    %5247 = vmatprep.subr.mxu0 0.0
    %5248 = vmatpush1.xpose.msra.mxu0 0.0
    %5249 = vmatprep.subr.mxu0 0.0
    %5250 = vmatpush1.xpose.msra.mxu0 0.0
    %5251 = vmatprep.subr.mxu0 0.0
    %5252 = vmatpush1.xpose.msra.mxu0 0.0
    %5253 = vmatprep.subr.mxu0 0.0
    %5254 = vmatpush1.xpose.msra.mxu0 0.0
    %5255 = vmatprep.mubr.f32.mxu0 0.0
    %5256 = vmatmul.mubr.f32.gmra.mrb[0].mxu0 %v5159
    %v5257 = vpop.f32.mrb[0].mxu0
    %v5258 = vadd.f32 %v916, %v5257
    %v5259 = vpop.f32.mrb[0].mxu0
    %5260 = vmatprep.mubr.f32.mxu0 0.0
    %5261 = vmatmul.mubr.f32.gmra.mrb[0].mxu0 %v5161
    %v5262 = vpop.f32.mrb[0].mxu0
    %v5263 = vadd.f32 %v917, %v5262
    %v5264 = vpop.f32.mrb[0].mxu0
    %5265 = vmatprep.mubr.f32.mxu0 0.0
    %5266 = vmatmul.mubr.f32.gmra.mrb[0].mxu0 %v5163
    %v5267 = vpop.f32.mrb[0].mxu0
    %v5268 = vadd.f32 %v918, %v5267
    %v5269 = vpop.f32.mrb[0].mxu0
    %5270 = vmatprep.mubr.f32.mxu0 0.0
    %5271 = vmatmul.mubr.f32.gmra.mrb[0].mxu0 %v5165
    %v5272 = vpop.f32.mrb[0].mxu0
    %v5273 = vadd.f32 %v919, %v5272
    %v5274 = vpop.f32.mrb[0].mxu0
    %5275 = vmatprep.mubr.f32.mxu0 0.0
    %5276 = vmatmul.mubr.f32.gmra.mrb[0].mxu0 %v5167
    %v5277 = vpop.f32.mrb[0].mxu0
    %v5278 = vadd.f32 %v920, %v5277
    %v5279 = vpop.f32.mrb[0].mxu0
    %5280 = vmatprep.mubr.f32.mxu0 0.0
    %5281 = vmatmul.mubr.f32.gmra.mrb[0].mxu0 %v5169
    %v5282 = vpop.f32.mrb[0].mxu0
    %v5283 = vadd.f32 %v921, %v5282
    %v5284 = vpop.f32.mrb[0].mxu0
    %5285 = vmatprep.mubr.f32.mxu0 0.0
    %5286 = vmatmul.mubr.f32.gmra.mrb[0].mxu0 %v5171
    %v5287 = vpop.f32.mrb[0].mxu0
    %v5288 = vadd.f32 %v922, %v5287
    %v5289 = vpop.f32.mrb[0].mxu0
    %5290 = vmatprep.mubr.f32.mxu0 0.0
    %5291 = vmatmul.mubr.f32.gmra.mrb[0].mxu0 %v5173
    %v5292 = vpop.f32.mrb[0].mxu0
    %v5293 = vadd.f32 %v923, %v5292
    %v5294 = vpop.f32.mrb[0].mxu0
    %5295 = vdwg.mxu0
    %v5296 = vsel %vm1370, %v5258, -inf
    %5297 = vmax.xlane.f32.xlu0 %v5296
    %v5298 = vpop.xlane.xlu0 %5297
    %v5299 = vsel %vm1370, %v5263, -inf
    %5300 = vmax.xlane.f32.xlu0 %v5299
    %v5301 = vpop.xlane.xlu0 %5300
    %v5302 = vsel %vm1370, %v5268, -inf
    %5303 = vmax.xlane.f32.xlu0 %v5302
    %v5304 = vpop.xlane.xlu0 %5303
    %v5305 = vsel %vm1370, %v5273, -inf
    %5306 = vmax.xlane.f32.xlu0 %v5305
    %v5307 = vpop.xlane.xlu0 %5306
    %v5308 = vsel %vm1370, %v5278, -inf
    %5309 = vmax.xlane.f32.xlu0 %v5308
    %v5310 = vpop.xlane.xlu0 %5309
    %v5311 = vsel %vm1370, %v5283, -inf
    %5312 = vmax.xlane.f32.xlu0 %v5311
    %v5313 = vpop.xlane.xlu0 %5312
    %v5314 = vsel %vm1370, %v5288, -inf
    %5315 = vmax.xlane.f32.xlu0 %v5314
    %v5316 = vpop.xlane.xlu0 %5315
    %v5317 = vsel %vm1370, %v5293, -inf
    %5318 = vmax.xlane.f32.xlu0 %v5317
    %v5319 = vpop.xlane.xlu0 %5318
    %v5320 = vsub.f32 %v5258, %v5298
    %v5321 = vsub.f32 %v5263, %v5301
    %v5322 = vsub.f32 %v5268, %v5304
    %v5323 = vsub.f32 %v5273, %v5307
    %v5324 = vsub.f32 %v5278, %v5310
    %v5325 = vsub.f32 %v5283, %v5313
    %v5326 = vsub.f32 %v5288, %v5316
    %v5327 = vsub.f32 %v5293, %v5319
    %v5328 = vmul.f32 %v5320, 1.442695
    %v5329 = vpow.pop %v5328
    %v5330 = vmul.f32 %v5321, 1.442695
    %v5331 = vpow.pop %v5330
    %v5332 = vmul.f32 %v5322, 1.442695
    %v5333 = vpow.pop %v5332
    %v5334 = vmul.f32 %v5323, 1.442695
    %v5335 = vpow.pop %v5334
    %v5336 = vmul.f32 %v5324, 1.442695
    %v5337 = vpow.pop %v5336
    %v5338 = vmul.f32 %v5325, 1.442695
    %v5339 = vpow.pop %v5338
    %v5340 = vmul.f32 %v5326, 1.442695
    %v5341 = vpow.pop %v5340
    %v5342 = vmul.f32 %v5327, 1.442695
    %v5343 = vpow.pop %v5342
    %v5344 = vsel %vm1370, %v5329, 0.0
    %5345 = vadd.xlane.f32.xlu0 %v5344
    %v5346 = vpop.xlane.xlu0 %5345
    %v5347 = vsel %vm1370, %v5331, 0.0
    %5348 = vadd.xlane.f32.xlu0 %v5347
    %v5349 = vpop.xlane.xlu0 %5348
    %v5350 = vsel %vm1370, %v5333, 0.0
    %5351 = vadd.xlane.f32.xlu0 %v5350
    %v5352 = vpop.xlane.xlu0 %5351
    %v5353 = vsel %vm1370, %v5335, 0.0
    %5354 = vadd.xlane.f32.xlu0 %v5353
    %v5355 = vpop.xlane.xlu0 %5354
    %v5356 = vsel %vm1370, %v5337, 0.0
    %5357 = vadd.xlane.f32.xlu0 %v5356
    %v5358 = vpop.xlane.xlu0 %5357
    %v5359 = vsel %vm1370, %v5339, 0.0
    %5360 = vadd.xlane.f32.xlu0 %v5359
    %v5361 = vpop.xlane.xlu0 %5360
    %v5362 = vsel %vm1370, %v5341, 0.0
    %5363 = vadd.xlane.f32.xlu0 %v5362
    %v5364 = vpop.xlane.xlu0 %5363
    %v5365 = vsel %vm1370, %v5343, 0.0
    %5366 = vadd.xlane.f32.xlu0 %v5365
    %v5367 = vpop.xlane.xlu0 %5366
    %v5368 = vrcp.pop %v5346
    %v5369 = vrcp.pop %v5349
    %v5370 = vrcp.pop %v5352
    %v5371 = vrcp.pop %v5355
    %v5372 = vrcp.pop %v5358
    %v5373 = vrcp.pop %v5361
    %v5374 = vrcp.pop %v5364
    %v5375 = vrcp.pop %v5367
    %v5376 = vmul.f32 %v5329, %v5368
    %v5377 = vmul.f32 %v5331, %v5369
    %v5378 = vmul.f32 %v5333, %v5370
    %v5379 = vmul.f32 %v5335, %v5371
    %v5380 = vmul.f32 %v5337, %v5372
    %v5381 = vmul.f32 %v5339, %v5373
    %v5382 = vmul.f32 %v5341, %v5374
    %v5383 = vmul.f32 %v5343, %v5375
    %5384 = vrot.lane.b32.xlu0 %v3867, 40
    %v5385 = vpop.permute.xlu0 %5384
    %5386 = vrot.lane.b32.xlu0 %v3872, 40
    %v5387 = vpop.permute.xlu0 %5386
    %5388 = vrot.lane.b32.xlu0 %v3877, 40
    %v5389 = vpop.permute.xlu0 %5388
    %5390 = vrot.lane.b32.xlu0 %v3882, 40
    %v5391 = vpop.permute.xlu0 %5390
    %5392 = vrot.lane.b32.xlu0 %v3887, 40
    %v5393 = vpop.permute.xlu0 %5392
    %5394 = vrot.lane.b32.xlu0 %v3892, 40
    %v5395 = vpop.permute.xlu0 %5394
    %5396 = vrot.lane.b32.xlu0 %v3897, 40
    %v5397 = vpop.permute.xlu0 %5396
    %5398 = vrot.lane.b32.xlu0 %v3902, 40
    %v5399 = vpop.permute.xlu0 %5398
    %v5409 = vsel %vm1370, %v5376, 0
    %v5412 = vsel %vm1370, %v5377, 0
    %v5415 = vsel %vm1370, %v5378, 0
    %v5418 = vsel %vm1370, %v5379, 0
    %v5421 = vsel %vm1370, %v5380, 0
    %v5424 = vsel %vm1370, %v5381, 0
    %v5427 = vsel %vm1370, %v5382, 0
    %v5430 = vsel %vm1370, %v5383, 0
    %5432 = vmatprep.subr.mxu0 0.0
    %5433 = vmatpush1.msra.mxu0 %v5385
    %5434 = vmatprep.subr.mxu0 0.0
    %5435 = vmatpush1.msra.mxu0 %v5387
    %5436 = vmatprep.subr.mxu0 0.0
    %5437 = vmatpush1.msra.mxu0 %v5389
    %5438 = vmatprep.subr.mxu0 0.0
    %5439 = vmatpush1.msra.mxu0 %v5391
    %5440 = vmatprep.subr.mxu0 0.0
    %5441 = vmatpush1.msra.mxu0 %v5393
    %5442 = vmatprep.subr.mxu0 0.0
    %5443 = vmatpush1.msra.mxu0 %v5395
    %5444 = vmatprep.subr.mxu0 0.0
    %5445 = vmatpush1.msra.mxu0 %v5397
    %5446 = vmatprep.subr.mxu0 0.0
    %5447 = vmatpush1.msra.mxu0 %v5399
    %5448 = vmatprep.subr.mxu0 0.0
    %5449 = vmatpush1.msra.mxu0 0.0
    %5450 = vmatprep.subr.mxu0 0.0
    %5451 = vmatpush1.msra.mxu0 0.0
    %5452 = vmatprep.subr.mxu0 0.0
    %5453 = vmatpush1.msra.mxu0 0.0
    %5454 = vmatprep.subr.mxu0 0.0
    %5455 = vmatpush1.msra.mxu0 0.0
    %5456 = vmatprep.subr.mxu0 0.0
    %5457 = vmatpush1.msra.mxu0 0.0
    %5458 = vmatprep.subr.mxu0 0.0
    %5459 = vmatpush1.msra.mxu0 0.0
    %5460 = vmatprep.subr.mxu0 0.0
    %5461 = vmatpush1.msra.mxu0 0.0
    %5462 = vmatprep.subr.mxu0 0.0
    %5463 = vmatpush1.msra.mxu0 0.0
    %5464 = vmatprep.subr.mxu0 0.0
    %5465 = vmatpush1.msra.mxu0 0.0
    %5466 = vmatprep.subr.mxu0 0.0
    %5467 = vmatpush1.msra.mxu0 0.0
    %5468 = vmatprep.subr.mxu0 0.0
    %5469 = vmatpush1.msra.mxu0 0.0
    %5470 = vmatprep.subr.mxu0 0.0
    %5471 = vmatpush1.msra.mxu0 0.0
    %5472 = vmatprep.subr.mxu0 0.0
    %5473 = vmatpush1.msra.mxu0 0.0
    %5474 = vmatprep.subr.mxu0 0.0
    %5475 = vmatpush1.msra.mxu0 0.0
    %5476 = vmatprep.subr.mxu0 0.0
    %5477 = vmatpush1.msra.mxu0 0.0
    %5478 = vmatprep.subr.mxu0 0.0
    %5479 = vmatpush1.msra.mxu0 0.0
    %5480 = vmatprep.subr.mxu0 0.0
    %5481 = vmatpush1.msra.mxu0 0.0
    %5482 = vmatprep.subr.mxu0 0.0
    %5483 = vmatpush1.msra.mxu0 0.0
    %5484 = vmatprep.subr.mxu0 0.0
    %5485 = vmatpush1.msra.mxu0 0.0
    %5486 = vmatprep.subr.mxu0 0.0
    %5487 = vmatpush1.msra.mxu0 0.0
    %5488 = vmatprep.subr.mxu0 0.0
    %5489 = vmatpush1.msra.mxu0 0.0
    %5490 = vmatprep.subr.mxu0 0.0
    %5491 = vmatpush1.msra.mxu0 0.0
    %5492 = vmatprep.subr.mxu0 0.0
    %5493 = vmatpush1.msra.mxu0 0.0
    %5494 = vmatprep.subr.mxu0 0.0
    %5495 = vmatpush1.msra.mxu0 0.0
    %5496 = vmatprep.mubr.f32.mxu0 0.0
    %5497 = vmatmul.mubr.f32.gmra.mrb[0].mxu0 %v5409
    %v5498 = vpop.f32.mrb[0].mxu0
    %v5499 = vadd.f32 0.0, %v5498
    %v5500 = vpop.f32.mrb[0].mxu0
    %5501 = vmatprep.mubr.f32.mxu0 0.0
    %5502 = vmatmul.mubr.f32.gmra.mrb[0].mxu0 %v5412
    %v5503 = vpop.f32.mrb[0].mxu0
    %v5504 = vadd.f32 0.0, %v5503
    %v5505 = vpop.f32.mrb[0].mxu0
    %5506 = vmatprep.mubr.f32.mxu0 0.0
    %5507 = vmatmul.mubr.f32.gmra.mrb[0].mxu0 %v5415
    %v5508 = vpop.f32.mrb[0].mxu0
    %v5509 = vadd.f32 0.0, %v5508
    %v5510 = vpop.f32.mrb[0].mxu0
    %5511 = vmatprep.mubr.f32.mxu0 0.0
    %5512 = vmatmul.mubr.f32.gmra.mrb[0].mxu0 %v5418
    %v5513 = vpop.f32.mrb[0].mxu0
    %v5514 = vadd.f32 0.0, %v5513
    %v5515 = vpop.f32.mrb[0].mxu0
    %5516 = vmatprep.mubr.f32.mxu0 0.0
    %5517 = vmatmul.mubr.f32.gmra.mrb[0].mxu0 %v5421
    %v5518 = vpop.f32.mrb[0].mxu0
    %v5519 = vadd.f32 0.0, %v5518
    %v5520 = vpop.f32.mrb[0].mxu0
    %5521 = vmatprep.mubr.f32.mxu0 0.0
    %5522 = vmatmul.mubr.f32.gmra.mrb[0].mxu0 %v5424
    %v5523 = vpop.f32.mrb[0].mxu0
    %v5524 = vadd.f32 0.0, %v5523
    %v5525 = vpop.f32.mrb[0].mxu0
    %5526 = vmatprep.mubr.f32.mxu0 0.0
    %5527 = vmatmul.mubr.f32.gmra.mrb[0].mxu0 %v5427
    %v5528 = vpop.f32.mrb[0].mxu0
    %v5529 = vadd.f32 0.0, %v5528
    %v5530 = vpop.f32.mrb[0].mxu0
    %5531 = vmatprep.mubr.f32.mxu0 0.0
    %5532 = vmatmul.mubr.f32.gmra.mrb[0].mxu0 %v5430
    %v5533 = vpop.f32.mrb[0].mxu0
    %v5534 = vadd.f32 0.0, %v5533
    %v5535 = vpop.f32.mrb[0].mxu0
    %5536 = vdwg.mxu0
    %5545 = vrot.lane.b32.xlu0 %v4679, 8
    %v5546 = vpop.permute.xlu0 %5545
    %5547 = vrot.lane.b32.xlu0 %v4684, 8
    %v5548 = vpop.permute.xlu0 %5547
    %5549 = vrot.lane.b32.xlu0 %v4689, 8
    %v5550 = vpop.permute.xlu0 %5549
    %5551 = vrot.lane.b32.xlu0 %v4694, 8
    %v5552 = vpop.permute.xlu0 %5551
    %5553 = vrot.lane.b32.xlu0 %v4699, 8
    %v5554 = vpop.permute.xlu0 %5553
    %5555 = vrot.lane.b32.xlu0 %v4704, 8
    %v5556 = vpop.permute.xlu0 %5555
    %5557 = vrot.lane.b32.xlu0 %v4709, 8
    %v5558 = vpop.permute.xlu0 %5557
    %5559 = vrot.lane.b32.xlu0 %v4714, 8
    %v5560 = vpop.permute.xlu0 %5559
    %5577 = vrot.lane.b32.xlu0 %v5089, 16
    %v5578 = vpop.permute.xlu0 %5577
    %5579 = vrot.lane.b32.xlu0 %v5094, 16
    %v5580 = vpop.permute.xlu0 %5579
    %5581 = vrot.lane.b32.xlu0 %v5099, 16
    %v5582 = vpop.permute.xlu0 %5581
    %5583 = vrot.lane.b32.xlu0 %v5104, 16
    %v5584 = vpop.permute.xlu0 %5583
    %5585 = vrot.lane.b32.xlu0 %v5109, 16
    %v5586 = vpop.permute.xlu0 %5585
    %5587 = vrot.lane.b32.xlu0 %v5114, 16
    %v5588 = vpop.permute.xlu0 %5587
    %5589 = vrot.lane.b32.xlu0 %v5119, 16
    %v5590 = vpop.permute.xlu0 %5589
    %5591 = vrot.lane.b32.xlu0 %v5124, 16
    %v5592 = vpop.permute.xlu0 %5591
    %5609 = vrot.lane.b32.xlu0 %v5499, 24
    %v5610 = vpop.permute.xlu0 %5609
    %5611 = vrot.lane.b32.xlu0 %v5504, 24
    %v5612 = vpop.permute.xlu0 %5611
    %5613 = vrot.lane.b32.xlu0 %v5509, 24
    %v5614 = vpop.permute.xlu0 %5613
    %5615 = vrot.lane.b32.xlu0 %v5514, 24
    %v5616 = vpop.permute.xlu0 %5615
    %5617 = vrot.lane.b32.xlu0 %v5519, 24
    %v5618 = vpop.permute.xlu0 %5617
    %5619 = vrot.lane.b32.xlu0 %v5524, 24
    %v5620 = vpop.permute.xlu0 %5619
    %5621 = vrot.lane.b32.xlu0 %v5529, 24
    %v5622 = vpop.permute.xlu0 %5621
    %5623 = vrot.lane.b32.xlu0 %v5534, 24
    %v5624 = vpop.permute.xlu0 %5623
    %v5633 = vsel %vm1232, %v4269, %v5546
    %v5634 = vsel %vm1232, %v4274, %v5548
    %v5635 = vsel %vm1232, %v4279, %v5550
    %v5636 = vsel %vm1232, %v4284, %v5552
    %v5637 = vsel %vm1232, %v4289, %v5554
    %v5638 = vsel %vm1232, %v4294, %v5556
    %v5639 = vsel %vm1232, %v4299, %v5558
    %v5640 = vsel %vm1232, %v4304, %v5560
    %v5641 = vsel %vm2946, %v5633, %v5578
    %v5642 = vsel %vm2946, %v5634, %v5580
    %v5643 = vsel %vm2946, %v5635, %v5582
    %v5644 = vsel %vm2946, %v5636, %v5584
    %v5645 = vsel %vm2946, %v5637, %v5586
    %v5646 = vsel %vm2946, %v5638, %v5588
    %v5647 = vsel %vm2946, %v5639, %v5590
    %v5648 = vsel %vm2946, %v5640, %v5592
    %v5649 = vsel %vm2955, %v5641, %v5610
    %v5650 = vsel %vm2955, %v5642, %v5612
    %v5651 = vsel %vm2955, %v5643, %v5614
    %v5652 = vsel %vm2955, %v5644, %v5616
    %v5653 = vsel %vm2955, %v5645, %v5618
    %v5654 = vsel %vm2955, %v5646, %v5620
    %v5655 = vsel %vm2955, %v5647, %v5622
    %v5656 = vsel %vm2955, %v5648, %v5624
    %5661 = vrot.lane.b32.xlu0 %v3767, 32
    %v5662 = vpop.permute.xlu0 %5661
    %5663 = vrot.lane.b32.xlu0 %v3768, 32
    %v5664 = vpop.permute.xlu0 %5663
    %5665 = vrot.lane.b32.xlu0 %v3769, 32
    %v5666 = vpop.permute.xlu0 %5665
    %5667 = vrot.lane.b32.xlu0 %v3770, 32
    %v5668 = vpop.permute.xlu0 %5667
    %v5674 = vsel %vm770, %v5649, 0
    %v5677 = vsel %vm770, %v5650, 0
    %v5680 = vsel %vm770, %v5651, 0
    %v5683 = vsel %vm770, %v5652, 0
    %v5686 = vsel %vm770, %v5653, 0
    %v5689 = vsel %vm770, %v5654, 0
    %v5692 = vsel %vm770, %v5655, 0
    %v5695 = vsel %vm770, %v5656, 0
    %5697 = vmatprep.subr.mxu0 0.0
    %5698 = vmatpush1.msra.mxu0 %v5662
    %5699 = vmatprep.subr.mxu0 0.0
    %5700 = vmatpush1.msra.mxu0 %v5664
    %5701 = vmatprep.subr.mxu0 0.0
    %5702 = vmatpush1.msra.mxu0 %v5666
    %5703 = vmatprep.subr.mxu0 0.0
    %5704 = vmatpush1.msra.mxu0 %v5668
    %5705 = vmatprep.subr.mxu0 0.0
    %5706 = vmatpush1.msra.mxu0 0.0
    %5707 = vmatprep.subr.mxu0 0.0
    %5708 = vmatpush1.msra.mxu0 0.0
    %5709 = vmatprep.subr.mxu0 0.0
    %5710 = vmatpush1.msra.mxu0 0.0
    %5711 = vmatprep.subr.mxu0 0.0
    %5712 = vmatpush1.msra.mxu0 0.0
    %5713 = vmatprep.subr.mxu0 0.0
    %5714 = vmatpush1.msra.mxu0 0.0
    %5715 = vmatprep.subr.mxu0 0.0
    %5716 = vmatpush1.msra.mxu0 0.0
    %5717 = vmatprep.subr.mxu0 0.0
    %5718 = vmatpush1.msra.mxu0 0.0
    %5719 = vmatprep.subr.mxu0 0.0
    %5720 = vmatpush1.msra.mxu0 0.0
    %5721 = vmatprep.subr.mxu0 0.0
    %5722 = vmatpush1.msra.mxu0 0.0
    %5723 = vmatprep.subr.mxu0 0.0
    %5724 = vmatpush1.msra.mxu0 0.0
    %5725 = vmatprep.subr.mxu0 0.0
    %5726 = vmatpush1.msra.mxu0 0.0
    %5727 = vmatprep.subr.mxu0 0.0
    %5728 = vmatpush1.msra.mxu0 0.0
    %5729 = vmatprep.subr.mxu0 0.0
    %5730 = vmatpush1.msra.mxu0 0.0
    %5731 = vmatprep.subr.mxu0 0.0
    %5732 = vmatpush1.msra.mxu0 0.0
    %5733 = vmatprep.subr.mxu0 0.0
    %5734 = vmatpush1.msra.mxu0 0.0
    %5735 = vmatprep.subr.mxu0 0.0
    %5736 = vmatpush1.msra.mxu0 0.0
    %5737 = vmatprep.subr.mxu0 0.0
    %5738 = vmatpush1.msra.mxu0 0.0
    %5739 = vmatprep.subr.mxu0 0.0
    %5740 = vmatpush1.msra.mxu0 0.0
    %5741 = vmatprep.subr.mxu0 0.0
    %5742 = vmatpush1.msra.mxu0 0.0
    %5743 = vmatprep.subr.mxu0 0.0
    %5744 = vmatpush1.msra.mxu0 0.0
    %5745 = vmatprep.subr.mxu0 0.0
    %5746 = vmatpush1.msra.mxu0 0.0
    %5747 = vmatprep.subr.mxu0 0.0
    %5748 = vmatpush1.msra.mxu0 0.0
    %5749 = vmatprep.subr.mxu0 0.0
    %5750 = vmatpush1.msra.mxu0 0.0
    %5751 = vmatprep.subr.mxu0 0.0
    %5752 = vmatpush1.msra.mxu0 0.0
    %5753 = vmatprep.subr.mxu0 0.0
    %5754 = vmatpush1.msra.mxu0 0.0
    %5755 = vmatprep.subr.mxu0 0.0
    %5756 = vmatpush1.msra.mxu0 0.0
    %5757 = vmatprep.subr.mxu0 0.0
    %5758 = vmatpush1.msra.mxu0 0.0
    %5759 = vmatprep.subr.mxu0 0.0
    %5760 = vmatpush1.msra.mxu0 0.0
    %5761 = vmatprep.mubr.f32.mxu0 0.0
    %5762 = vmatmul.mubr.f32.gmra.mrb[0].mxu0 %v5674
    %v5763 = vpop.f32.mrb[0].mxu0
    %v5764 = vadd.f32 0.0, %v5763
    %v5765 = vpop.f32.mrb[0].mxu0
    %5766 = vmatprep.mubr.f32.mxu0 0.0
    %5767 = vmatmul.mubr.f32.gmra.mrb[0].mxu0 %v5677
    %v5768 = vpop.f32.mrb[0].mxu0
    %v5769 = vadd.f32 0.0, %v5768
    %v5770 = vpop.f32.mrb[0].mxu0
    %5771 = vmatprep.mubr.f32.mxu0 0.0
    %5772 = vmatmul.mubr.f32.gmra.mrb[0].mxu0 %v5680
    %v5773 = vpop.f32.mrb[0].mxu0
    %v5774 = vadd.f32 0.0, %v5773
    %v5775 = vpop.f32.mrb[0].mxu0
    %5776 = vmatprep.mubr.f32.mxu0 0.0
    %5777 = vmatmul.mubr.f32.gmra.mrb[0].mxu0 %v5683
    %v5778 = vpop.f32.mrb[0].mxu0
    %v5779 = vadd.f32 0.0, %v5778
    %v5780 = vpop.f32.mrb[0].mxu0
    %5781 = vmatprep.mubr.f32.mxu0 0.0
    %5782 = vmatmul.mubr.f32.gmra.mrb[0].mxu0 %v5686
    %v5783 = vpop.f32.mrb[0].mxu0
    %v5784 = vadd.f32 0.0, %v5783
    %v5785 = vpop.f32.mrb[0].mxu0
    %5786 = vmatprep.mubr.f32.mxu0 0.0
    %5787 = vmatmul.mubr.f32.gmra.mrb[0].mxu0 %v5689
    %v5788 = vpop.f32.mrb[0].mxu0
    %v5789 = vadd.f32 0.0, %v5788
    %v5790 = vpop.f32.mrb[0].mxu0
    %5791 = vmatprep.mubr.f32.mxu0 0.0
    %5792 = vmatmul.mubr.f32.gmra.mrb[0].mxu0 %v5692
    %v5793 = vpop.f32.mrb[0].mxu0
    %v5794 = vadd.f32 0.0, %v5793
    %v5795 = vpop.f32.mrb[0].mxu0
    %5796 = vmatprep.mubr.f32.mxu0 0.0
    %5797 = vmatmul.mubr.f32.gmra.mrb[0].mxu0 %v5695
    %v5798 = vpop.f32.mrb[0].mxu0
    %v5799 = vadd.f32 0.0, %v5798
    %v5800 = vpop.f32.mrb[0].mxu0
    %5801 = vdwg.mxu0
    %v5802 = vadd.f32 %v3612, %v5764
    %v5803 = vadd.f32 %v3613, %v5769
    %v5804 = vadd.f32 %v3614, %v5774
    %v5805 = vadd.f32 %v3615, %v5779
    %v5806 = vadd.f32 %v3616, %v5784
    %v5807 = vadd.f32 %v3617, %v5789
    %v5808 = vadd.f32 %v3618, %v5794
    %v5809 = vadd.f32 %v3619, %v5799
    %v5810 = vld [vmem:[%s8 + $0x11] sm:$0x1]
    %v5811 = vlaneseq
    %v5812 = vshrl.u32 %v5811, 7
    %v5813 = vsub.s32 0, %v5812
    %v5814 = vrot.slane %v5810, %v5813
    %v5815 = vadd.f32 %v5802, %v5814
    %v5816 = vadd.f32 %v5803, %v5814
    %v5817 = vadd.f32 %v5804, %v5814
    %v5818 = vadd.f32 %v5805, %v5814
    %v5819 = vadd.f32 %v5806, %v5814
    %v5820 = vadd.f32 %v5807, %v5814
    %v5821 = vadd.f32 %v5808, %v5814
    %v5822 = vadd.f32 %v5809, %v5814
    %v5823 = vld [vmem:[%s8 + $0xe] sm:$0x1]
    %v5824 = vld [vmem:[%s8 + $0xf] sm:$0x1]
    %v5825 = vsel %vm770, %v5815, 0.0
    %5826 = vadd.xlane.f32.xlu0 %v5825
    %v5827 = vpop.xlane.xlu0 %5826
    %v5828 = vsel %vm770, %v5816, 0.0
    %5829 = vadd.xlane.f32.xlu0 %v5828
    %v5830 = vpop.xlane.xlu0 %5829
    %v5831 = vsel %vm770, %v5817, 0.0
    %5832 = vadd.xlane.f32.xlu0 %v5831
    %v5833 = vpop.xlane.xlu0 %5832
    %v5834 = vsel %vm770, %v5818, 0.0
    %5835 = vadd.xlane.f32.xlu0 %v5834
    %v5836 = vpop.xlane.xlu0 %5835
    %v5837 = vsel %vm770, %v5819, 0.0
    %5838 = vadd.xlane.f32.xlu0 %v5837
    %v5839 = vpop.xlane.xlu0 %5838
    %v5840 = vsel %vm770, %v5820, 0.0
    %5841 = vadd.xlane.f32.xlu0 %v5840
    %v5842 = vpop.xlane.xlu0 %5841
    %v5843 = vsel %vm770, %v5821, 0.0
    %5844 = vadd.xlane.f32.xlu0 %v5843
    %v5845 = vpop.xlane.xlu0 %5844
    %v5846 = vsel %vm770, %v5822, 0.0
    %5847 = vadd.xlane.f32.xlu0 %v5846
    %v5848 = vpop.xlane.xlu0 %5847
    %v5849 = vmul.f32 %v5827, %v795
    %v5850 = vmul.f32 %v5830, %v795
    %v5851 = vmul.f32 %v5833, %v795
    %v5852 = vmul.f32 %v5836, %v795
    %v5853 = vmul.f32 %v5839, %v795
    %v5854 = vmul.f32 %v5842, %v795
    %v5855 = vmul.f32 %v5845, %v795
    %v5856 = vmul.f32 %v5848, %v795
    %v5857 = vmul.f32 %v5815, %v5815
    %v5858 = vmul.f32 %v5816, %v5816
    %v5859 = vmul.f32 %v5817, %v5817
    %v5860 = vmul.f32 %v5818, %v5818
    %v5861 = vmul.f32 %v5819, %v5819
    %v5862 = vmul.f32 %v5820, %v5820
    %v5863 = vmul.f32 %v5821, %v5821
    %v5864 = vmul.f32 %v5822, %v5822
    %v5865 = vsel %vm770, %v5857, 0.0
    %5866 = vadd.xlane.f32.xlu0 %v5865
    %v5867 = vpop.xlane.xlu0 %5866
    %v5868 = vsel %vm770, %v5858, 0.0
    %5869 = vadd.xlane.f32.xlu0 %v5868
    %v5870 = vpop.xlane.xlu0 %5869
    %v5871 = vsel %vm770, %v5859, 0.0
    %5872 = vadd.xlane.f32.xlu0 %v5871
    %v5873 = vpop.xlane.xlu0 %5872
    %v5874 = vsel %vm770, %v5860, 0.0
    %5875 = vadd.xlane.f32.xlu0 %v5874
    %v5876 = vpop.xlane.xlu0 %5875
    %v5877 = vsel %vm770, %v5861, 0.0
    %5878 = vadd.xlane.f32.xlu0 %v5877
    %v5879 = vpop.xlane.xlu0 %5878
    %v5880 = vsel %vm770, %v5862, 0.0
    %5881 = vadd.xlane.f32.xlu0 %v5880
    %v5882 = vpop.xlane.xlu0 %5881
    %v5883 = vsel %vm770, %v5863, 0.0
    %5884 = vadd.xlane.f32.xlu0 %v5883
    %v5885 = vpop.xlane.xlu0 %5884
    %v5886 = vsel %vm770, %v5864, 0.0
    %5887 = vadd.xlane.f32.xlu0 %v5886
    %v5888 = vpop.xlane.xlu0 %5887
    %v5889 = vmul.f32 %v5867, %v795
    %v5890 = vmul.f32 %v5870, %v795
    %v5891 = vmul.f32 %v5873, %v795
    %v5892 = vmul.f32 %v5876, %v795
    %v5893 = vmul.f32 %v5879, %v795
    %v5894 = vmul.f32 %v5882, %v795
    %v5895 = vmul.f32 %v5885, %v795
    %v5896 = vmul.f32 %v5888, %v795
    %v5897 = vmul.f32 %v5849, %v5849
    %v5898 = vmul.f32 %v5850, %v5850
    %v5899 = vmul.f32 %v5851, %v5851
    %v5900 = vmul.f32 %v5852, %v5852
    %v5901 = vmul.f32 %v5853, %v5853
    %v5902 = vmul.f32 %v5854, %v5854
    %v5903 = vmul.f32 %v5855, %v5855
    %v5904 = vmul.f32 %v5856, %v5856
    %v5905 = vsub.f32 %v5889, %v5897
    %v5906 = vsub.f32 %v5890, %v5898
    %v5907 = vsub.f32 %v5891, %v5899
    %v5908 = vsub.f32 %v5892, %v5900
    %v5909 = vsub.f32 %v5893, %v5901
    %v5910 = vsub.f32 %v5894, %v5902
    %v5911 = vsub.f32 %v5895, %v5903
    %v5912 = vsub.f32 %v5896, %v5904
    %v5913 = vsub.f32 %v5815, %v5849
    %v5914 = vsub.f32 %v5816, %v5850
    %v5915 = vsub.f32 %v5817, %v5851
    %v5916 = vsub.f32 %v5818, %v5852
    %v5917 = vsub.f32 %v5819, %v5853
    %v5918 = vsub.f32 %v5820, %v5854
    %v5919 = vsub.f32 %v5821, %v5855
    %v5920 = vsub.f32 %v5822, %v5856
    %v5921 = vadd.f32 %v5905, 1e-05
    %v5922 = vadd.f32 %v5906, 1e-05
    %v5923 = vadd.f32 %v5907, 1e-05
    %v5924 = vadd.f32 %v5908, 1e-05
    %v5925 = vadd.f32 %v5909, 1e-05
    %v5926 = vadd.f32 %v5910, 1e-05
    %v5927 = vadd.f32 %v5911, 1e-05
    %v5928 = vadd.f32 %v5912, 1e-05
    %v5929 = vrsqrt.pop %v5921
    %v5930 = vrsqrt.pop %v5922
    %v5931 = vrsqrt.pop %v5923
    %v5932 = vrsqrt.pop %v5924
    %v5933 = vrsqrt.pop %v5925
    %v5934 = vrsqrt.pop %v5926
    %v5935 = vrsqrt.pop %v5927
    %v5936 = vrsqrt.pop %v5928
    %v5937 = vmul.f32 %v5913, %v5929
    %v5938 = vmul.f32 %v5914, %v5930
    %v5939 = vmul.f32 %v5915, %v5931
    %v5940 = vmul.f32 %v5916, %v5932
    %v5941 = vmul.f32 %v5917, %v5933
    %v5942 = vmul.f32 %v5918, %v5934
    %v5943 = vmul.f32 %v5919, %v5935
    %v5944 = vmul.f32 %v5920, %v5936
    %v5945 = vlaneseq
    %v5946 = vshrl.u32 %v5945, 7
    %v5947 = vsub.s32 0, %v5946
    %v5948 = vrot.slane %v5823, %v5947
    %v5949 = vmul.f32 %v5937, %v5948
    %v5950 = vmul.f32 %v5938, %v5948
    %v5951 = vmul.f32 %v5939, %v5948
    %v5952 = vmul.f32 %v5940, %v5948
    %v5953 = vmul.f32 %v5941, %v5948
    %v5954 = vmul.f32 %v5942, %v5948
    %v5955 = vmul.f32 %v5943, %v5948
    %v5956 = vmul.f32 %v5944, %v5948
    %v5957 = vlaneseq
    %v5958 = vshrl.u32 %v5957, 7
    %v5959 = vsub.s32 0, %v5958
    %v5960 = vrot.slane %v5824, %v5959
    %v5961 = vadd.f32 %v5949, %v5960
    %v5962 = vadd.f32 %v5950, %v5960
    %v5963 = vadd.f32 %v5951, %v5960
    %v5964 = vadd.f32 %v5952, %v5960
    %v5965 = vadd.f32 %v5953, %v5960
    %v5966 = vadd.f32 %v5954, %v5960
    %v5967 = vadd.f32 %v5955, %v5960
    %v5968 = vadd.f32 %v5956, %v5960
    %s5969 = scalar_lea.vmem %s6, 32
    %v5970 = vld [vmem:[%s5969] sm:$0xff]
    %v5971 = vld [vmem:[%s5969 + $0x8] sm:$0xff]
    %v5972 = vld [vmem:[%s5969 + $0x10] sm:$0xff]
    %v5973 = vld [vmem:[%s5969 + $0x18] sm:$0xff]
    %v5974 = vld [vmem:[%s8 + $0x12] sm:$0x1]
    %v5975 = vlaneseq
    %v5976 = vshrl.u32 %v5975, 7
    %v5977 = vsub.s32 0, %v5976
    %v5978 = vrot.slane %v5974, %v5977
    %v5980 = vsel %vm770, %v5961, 0
    %v5983 = vsel %vm770, %v5962, 0
    %v5986 = vsel %vm770, %v5963, 0
    %v5989 = vsel %vm770, %v5964, 0
    %v5992 = vsel %vm770, %v5965, 0
    %v5995 = vsel %vm770, %v5966, 0
    %v5998 = vsel %vm770, %v5967, 0
    %v6001 = vsel %vm770, %v5968, 0
    %6003 = vmatprep.subr.mxu0 0.0
    %6004 = vmatpush1.msra.mxu0 %v5970
    %6005 = vmatprep.subr.mxu0 0.0
    %6006 = vmatpush1.msra.mxu0 %v5971
    %6007 = vmatprep.subr.mxu0 0.0
    %6008 = vmatpush1.msra.mxu0 %v5972
    %6009 = vmatprep.subr.mxu0 0.0
    %6010 = vmatpush1.msra.mxu0 %v5973
    %6011 = vmatprep.subr.mxu0 0.0
    %6012 = vmatpush1.msra.mxu0 0.0
    %6013 = vmatprep.subr.mxu0 0.0
    %6014 = vmatpush1.msra.mxu0 0.0
    %6015 = vmatprep.subr.mxu0 0.0
    %6016 = vmatpush1.msra.mxu0 0.0
    %6017 = vmatprep.subr.mxu0 0.0
    %6018 = vmatpush1.msra.mxu0 0.0
    %6019 = vmatprep.subr.mxu0 0.0
    %6020 = vmatpush1.msra.mxu0 0.0
    %6021 = vmatprep.subr.mxu0 0.0
    %6022 = vmatpush1.msra.mxu0 0.0
    %6023 = vmatprep.subr.mxu0 0.0
    %6024 = vmatpush1.msra.mxu0 0.0
    %6025 = vmatprep.subr.mxu0 0.0
    %6026 = vmatpush1.msra.mxu0 0.0
    %6027 = vmatprep.subr.mxu0 0.0
    %6028 = vmatpush1.msra.mxu0 0.0
    %6029 = vmatprep.subr.mxu0 0.0
    %6030 = vmatpush1.msra.mxu0 0.0
    %6031 = vmatprep.subr.mxu0 0.0
    %6032 = vmatpush1.msra.mxu0 0.0
    %6033 = vmatprep.subr.mxu0 0.0
    %6034 = vmatpush1.msra.mxu0 0.0
    %6035 = vmatprep.subr.mxu0 0.0
    %6036 = vmatpush1.msra.mxu0 0.0
    %6037 = vmatprep.subr.mxu0 0.0
    %6038 = vmatpush1.msra.mxu0 0.0
    %6039 = vmatprep.subr.mxu0 0.0
    %6040 = vmatpush1.msra.mxu0 0.0
    %6041 = vmatprep.subr.mxu0 0.0
    %6042 = vmatpush1.msra.mxu0 0.0
    %6043 = vmatprep.subr.mxu0 0.0
    %6044 = vmatpush1.msra.mxu0 0.0
    %6045 = vmatprep.subr.mxu0 0.0
    %6046 = vmatpush1.msra.mxu0 0.0
    %6047 = vmatprep.subr.mxu0 0.0
    %6048 = vmatpush1.msra.mxu0 0.0
    %6049 = vmatprep.subr.mxu0 0.0
    %6050 = vmatpush1.msra.mxu0 0.0
    %6051 = vmatprep.subr.mxu0 0.0
    %6052 = vmatpush1.msra.mxu0 0.0
    %6053 = vmatprep.subr.mxu0 0.0
    %6054 = vmatpush1.msra.mxu0 0.0
    %6055 = vmatprep.subr.mxu0 0.0
    %6056 = vmatpush1.msra.mxu0 0.0
    %6057 = vmatprep.subr.mxu0 0.0
    %6058 = vmatpush1.msra.mxu0 0.0
    %6059 = vmatprep.subr.mxu0 0.0
    %6060 = vmatpush1.msra.mxu0 0.0
    %6061 = vmatprep.subr.mxu0 0.0
    %6062 = vmatpush1.msra.mxu0 0.0
    %6063 = vmatprep.subr.mxu0 0.0
    %6064 = vmatpush1.msra.mxu0 0.0
    %6065 = vmatprep.subr.mxu0 0.0
    %6066 = vmatpush1.msra.mxu0 0.0
    %6067 = vmatprep.mubr.f32.mxu0 0.0
    %6068 = vmatmul.mubr.f32.gmra.mrb[0].mxu0 %v5980
    %v6069 = vpop.f32.mrb[0].mxu0
    %v6070 = vadd.f32 %v5978, %v6069
    %v6071 = vpop.f32.mrb[0].mxu0
    %6072 = vmatprep.mubr.f32.mxu0 0.0
    %6073 = vmatmul.mubr.f32.gmra.mrb[0].mxu0 %v5983
    %v6074 = vpop.f32.mrb[0].mxu0
    %v6075 = vadd.f32 %v5978, %v6074
    %v6076 = vpop.f32.mrb[0].mxu0
    %6077 = vmatprep.mubr.f32.mxu0 0.0
    %6078 = vmatmul.mubr.f32.gmra.mrb[0].mxu0 %v5986
    %v6079 = vpop.f32.mrb[0].mxu0
    %v6080 = vadd.f32 %v5978, %v6079
    %v6081 = vpop.f32.mrb[0].mxu0
    %6082 = vmatprep.mubr.f32.mxu0 0.0
    %6083 = vmatmul.mubr.f32.gmra.mrb[0].mxu0 %v5989
    %v6084 = vpop.f32.mrb[0].mxu0
    %v6085 = vadd.f32 %v5978, %v6084
    %v6086 = vpop.f32.mrb[0].mxu0
    %6087 = vmatprep.mubr.f32.mxu0 0.0
    %6088 = vmatmul.mubr.f32.gmra.mrb[0].mxu0 %v5992
    %v6089 = vpop.f32.mrb[0].mxu0
    %v6090 = vadd.f32 %v5978, %v6089
    %v6091 = vpop.f32.mrb[0].mxu0
    %6092 = vmatprep.mubr.f32.mxu0 0.0
    %6093 = vmatmul.mubr.f32.gmra.mrb[0].mxu0 %v5995
    %v6094 = vpop.f32.mrb[0].mxu0
    %v6095 = vadd.f32 %v5978, %v6094
    %v6096 = vpop.f32.mrb[0].mxu0
    %6097 = vmatprep.mubr.f32.mxu0 0.0
    %6098 = vmatmul.mubr.f32.gmra.mrb[0].mxu0 %v5998
    %v6099 = vpop.f32.mrb[0].mxu0
    %v6100 = vadd.f32 %v5978, %v6099
    %v6101 = vpop.f32.mrb[0].mxu0
    %6102 = vmatprep.mubr.f32.mxu0 0.0
    %6103 = vmatmul.mubr.f32.gmra.mrb[0].mxu0 %v6001
    %v6104 = vpop.f32.mrb[0].mxu0
    %v6105 = vadd.f32 %v5978, %v6104
    %v6106 = vpop.f32.mrb[0].mxu0
    %6107 = vdwg.mxu0
    %v6108 = vmul.f32 %v6070, 1.702
    %v6109 = vmul.f32 %v6075, 1.702
    %v6110 = vmul.f32 %v6080, 1.702
    %v6111 = vmul.f32 %v6085, 1.702
    %v6112 = vmul.f32 %v6090, 1.702
    %v6113 = vmul.f32 %v6095, 1.702
    %v6114 = vmul.f32 %v6100, 1.702
    %v6115 = vmul.f32 %v6105, 1.702
    %v6116 = vxor.u32 %v6108, 2147483648
    %v6117 = vxor.u32 %v6109, 2147483648
    %v6118 = vxor.u32 %v6110, 2147483648
    %v6119 = vxor.u32 %v6111, 2147483648
    %v6120 = vxor.u32 %v6112, 2147483648
    %v6121 = vxor.u32 %v6113, 2147483648
    %v6122 = vxor.u32 %v6114, 2147483648
    %v6123 = vxor.u32 %v6115, 2147483648
    %v6124 = vmul.f32 %v6116, 1.442695
    %v6125 = vpow.pop %v6124
    %v6126 = vmul.f32 %v6117, 1.442695
    %v6127 = vpow.pop %v6126
    %v6128 = vmul.f32 %v6118, 1.442695
    %v6129 = vpow.pop %v6128
    %v6130 = vmul.f32 %v6119, 1.442695
    %v6131 = vpow.pop %v6130
    %v6132 = vmul.f32 %v6120, 1.442695
    %v6133 = vpow.pop %v6132
    %v6134 = vmul.f32 %v6121, 1.442695
    %v6135 = vpow.pop %v6134
    %v6136 = vmul.f32 %v6122, 1.442695
    %v6137 = vpow.pop %v6136
    %v6138 = vmul.f32 %v6123, 1.442695
    %v6139 = vpow.pop %v6138
    %v6140 = vadd.f32 %v6125, 1.0
    %v6141 = vadd.f32 %v6127, 1.0
    %v6142 = vadd.f32 %v6129, 1.0
    %v6143 = vadd.f32 %v6131, 1.0
    %v6144 = vadd.f32 %v6133, 1.0
    %v6145 = vadd.f32 %v6135, 1.0
    %v6146 = vadd.f32 %v6137, 1.0
    %v6147 = vadd.f32 %v6139, 1.0
    %v6148 = vrcp.pop %v6140
    %v6149 = vmul.f32 1.0, %v6148
    %v6150 = vrcp.pop %v6141
    %v6151 = vmul.f32 1.0, %v6150
    %v6152 = vrcp.pop %v6142
    %v6153 = vmul.f32 1.0, %v6152
    %v6154 = vrcp.pop %v6143
    %v6155 = vmul.f32 1.0, %v6154
    %v6156 = vrcp.pop %v6144
    %v6157 = vmul.f32 1.0, %v6156
    %v6158 = vrcp.pop %v6145
    %v6159 = vmul.f32 1.0, %v6158
    %v6160 = vrcp.pop %v6146
    %v6161 = vmul.f32 1.0, %v6160
    %v6162 = vrcp.pop %v6147
    %v6163 = vmul.f32 1.0, %v6162
    %v6164 = vmul.f32 %v6070, %v6149
    %v6165 = vmul.f32 %v6075, %v6151
    %v6166 = vmul.f32 %v6080, %v6153
    %v6167 = vmul.f32 %v6085, %v6155
    %v6168 = vmul.f32 %v6090, %v6157
    %v6169 = vmul.f32 %v6095, %v6159
    %v6170 = vmul.f32 %v6100, %v6161
    %v6171 = vmul.f32 %v6105, %v6163
    %s6172 = scalar_lea.vmem %s7, 128
    %v6173 = vld [vmem:[%s6172] sm:$0xff]
    %v6174 = vld [vmem:[%s6172 + $0x8] sm:$0xff]
    %v6175 = vld [vmem:[%s6172 + $0x10] sm:$0xff]
    %v6176 = vld [vmem:[%s6172 + $0x18] sm:$0xff]
    %v6177 = vld [vmem:[%s6172 + $0x20] sm:$0xff]
    %v6178 = vld [vmem:[%s6172 + $0x28] sm:$0xff]
    %v6179 = vld [vmem:[%s6172 + $0x30] sm:$0xff]
    %v6180 = vld [vmem:[%s6172 + $0x38] sm:$0xff]
    %v6181 = vld [vmem:[%s6172 + $0x40] sm:$0xff]
    %v6182 = vld [vmem:[%s6172 + $0x48] sm:$0xff]
    %v6183 = vld [vmem:[%s6172 + $0x50] sm:$0xff]
    %v6184 = vld [vmem:[%s6172 + $0x58] sm:$0xff]
    %v6185 = vld [vmem:[%s6172 + $0x60] sm:$0xff]
    %v6186 = vld [vmem:[%s6172 + $0x68] sm:$0xff]
    %v6187 = vld [vmem:[%s6172 + $0x70] sm:$0xff]
    %v6188 = vld [vmem:[%s6172 + $0x78] sm:$0xff]
    %6189 = vmatprep.subr.mxu0 0.0
    %6190 = vmatpush1.msra.mxu0 %v6173
    %6191 = vmatprep.subr.mxu0 0.0
    %6192 = vmatpush1.msra.mxu0 %v6174
    %6193 = vmatprep.subr.mxu0 0.0
    %6194 = vmatpush1.msra.mxu0 %v6175
    %6195 = vmatprep.subr.mxu0 0.0
    %6196 = vmatpush1.msra.mxu0 %v6176
    %6197 = vmatprep.subr.mxu0 0.0
    %6198 = vmatpush1.msra.mxu0 %v6177
    %6199 = vmatprep.subr.mxu0 0.0
    %6200 = vmatpush1.msra.mxu0 %v6178
    %6201 = vmatprep.subr.mxu0 0.0
    %6202 = vmatpush1.msra.mxu0 %v6179
    %6203 = vmatprep.subr.mxu0 0.0
    %6204 = vmatpush1.msra.mxu0 %v6180
    %6205 = vmatprep.subr.mxu0 0.0
    %6206 = vmatpush1.msra.mxu0 %v6181
    %6207 = vmatprep.subr.mxu0 0.0
    %6208 = vmatpush1.msra.mxu0 %v6182
    %6209 = vmatprep.subr.mxu0 0.0
    %6210 = vmatpush1.msra.mxu0 %v6183
    %6211 = vmatprep.subr.mxu0 0.0
    %6212 = vmatpush1.msra.mxu0 %v6184
    %6213 = vmatprep.subr.mxu0 0.0
    %6214 = vmatpush1.msra.mxu0 %v6185
    %6215 = vmatprep.subr.mxu0 0.0
    %6216 = vmatpush1.msra.mxu0 %v6186
    %6217 = vmatprep.subr.mxu0 0.0
    %6218 = vmatpush1.msra.mxu0 %v6187
    %6219 = vmatprep.subr.mxu0 0.0
    %6220 = vmatpush1.msra.mxu0 %v6188
    %6221 = vmatprep.subr.mxu0 0.0
    %6222 = vmatpush1.msra.mxu0 0.0
    %6223 = vmatprep.subr.mxu0 0.0
    %6224 = vmatpush1.msra.mxu0 0.0
    %6225 = vmatprep.subr.mxu0 0.0
    %6226 = vmatpush1.msra.mxu0 0.0
    %6227 = vmatprep.subr.mxu0 0.0
    %6228 = vmatpush1.msra.mxu0 0.0
    %6229 = vmatprep.subr.mxu0 0.0
    %6230 = vmatpush1.msra.mxu0 0.0
    %6231 = vmatprep.subr.mxu0 0.0
    %6232 = vmatpush1.msra.mxu0 0.0
    %6233 = vmatprep.subr.mxu0 0.0
    %6234 = vmatpush1.msra.mxu0 0.0
    %6235 = vmatprep.subr.mxu0 0.0
    %6236 = vmatpush1.msra.mxu0 0.0
    %6237 = vmatprep.subr.mxu0 0.0
    %6238 = vmatpush1.msra.mxu0 0.0
    %6239 = vmatprep.subr.mxu0 0.0
    %6240 = vmatpush1.msra.mxu0 0.0
    %6241 = vmatprep.subr.mxu0 0.0
    %6242 = vmatpush1.msra.mxu0 0.0
    %6243 = vmatprep.subr.mxu0 0.0
    %6244 = vmatpush1.msra.mxu0 0.0
    %6245 = vmatprep.subr.mxu0 0.0
    %6246 = vmatpush1.msra.mxu0 0.0
    %6247 = vmatprep.subr.mxu0 0.0
    %6248 = vmatpush1.msra.mxu0 0.0
    %6249 = vmatprep.subr.mxu0 0.0
    %6250 = vmatpush1.msra.mxu0 0.0
    %6251 = vmatprep.subr.mxu0 0.0
    %6252 = vmatpush1.msra.mxu0 0.0
    %6253 = vmatprep.mubr.f32.mxu0 0.0
    %6254 = vmatmul.mubr.f32.gmra.mrb[0].mxu0 %v6164
    %v6255 = vpop.f32.mrb[0].mxu0
    %v6256 = vadd.f32 0.0, %v6255
    %v6257 = vpop.f32.mrb[0].mxu0
    %6258 = vmatprep.mubr.f32.mxu0 0.0
    %6259 = vmatmul.mubr.f32.gmra.mrb[0].mxu0 %v6165
    %v6260 = vpop.f32.mrb[0].mxu0
    %v6261 = vadd.f32 0.0, %v6260
    %v6262 = vpop.f32.mrb[0].mxu0
    %6263 = vmatprep.mubr.f32.mxu0 0.0
    %6264 = vmatmul.mubr.f32.gmra.mrb[0].mxu0 %v6166
    %v6265 = vpop.f32.mrb[0].mxu0
    %v6266 = vadd.f32 0.0, %v6265
    %v6267 = vpop.f32.mrb[0].mxu0
    %6268 = vmatprep.mubr.f32.mxu0 0.0
    %6269 = vmatmul.mubr.f32.gmra.mrb[0].mxu0 %v6167
    %v6270 = vpop.f32.mrb[0].mxu0
    %v6271 = vadd.f32 0.0, %v6270
    %v6272 = vpop.f32.mrb[0].mxu0
    %6273 = vmatprep.mubr.f32.mxu0 0.0
    %6274 = vmatmul.mubr.f32.gmra.mrb[0].mxu0 %v6168
    %v6275 = vpop.f32.mrb[0].mxu0
    %v6276 = vadd.f32 0.0, %v6275
    %v6277 = vpop.f32.mrb[0].mxu0
    %6278 = vmatprep.mubr.f32.mxu0 0.0
    %6279 = vmatmul.mubr.f32.gmra.mrb[0].mxu0 %v6169
    %v6280 = vpop.f32.mrb[0].mxu0
    %v6281 = vadd.f32 0.0, %v6280
    %v6282 = vpop.f32.mrb[0].mxu0
    %6283 = vmatprep.mubr.f32.mxu0 0.0
    %6284 = vmatmul.mubr.f32.gmra.mrb[0].mxu0 %v6170
    %v6285 = vpop.f32.mrb[0].mxu0
    %v6286 = vadd.f32 0.0, %v6285
    %v6287 = vpop.f32.mrb[0].mxu0
    %6288 = vmatprep.mubr.f32.mxu0 0.0
    %6289 = vmatmul.mubr.f32.gmra.mrb[0].mxu0 %v6171
    %v6290 = vpop.f32.mrb[0].mxu0
    %v6291 = vadd.f32 0.0, %v6290
    %v6292 = vpop.f32.mrb[0].mxu0
    %6293 = vdwg.mxu0
    %v6294 = vadd.f32 %v5815, %v6256
    %v6295 = vadd.f32 %v5816, %v6261
    %v6296 = vadd.f32 %v5817, %v6266
    %v6297 = vadd.f32 %v5818, %v6271
    %v6298 = vadd.f32 %v5819, %v6276
    %v6299 = vadd.f32 %v5820, %v6281
    %v6300 = vadd.f32 %v5821, %v6286
    %v6301 = vadd.f32 %v5822, %v6291
    %v6302 = vld [vmem:[%s8 + $0x13] sm:$0x1]
    %v6303 = vlaneseq
    %v6304 = vshrl.u32 %v6303, 7
    %v6305 = vsub.s32 0, %v6304
    %v6306 = vrot.slane %v6302, %v6305
    %v6307 = vadd.f32 %v6294, %v6306
    %v6308 = vadd.f32 %v6295, %v6306
    %v6309 = vadd.f32 %v6296, %v6306
    %v6310 = vadd.f32 %v6297, %v6306
    %v6311 = vadd.f32 %v6298, %v6306
    %v6312 = vadd.f32 %v6299, %v6306
    %v6313 = vadd.f32 %v6300, %v6306
    %v6314 = vadd.f32 %v6301, %v6306
    %v6315 = vld [vmem:[%s3] sm:$0xff]
    %v6317 = vsel %vm1370, %v6315, 0
    %6319 = vmatprep.subr.mxu0 0.0
    %6320 = vmatpush1.msra.mxu0 %v6307
    %6321 = vmatprep.subr.mxu0 0.0
    %6322 = vmatpush1.msra.mxu0 %v6308
    %6323 = vmatprep.subr.mxu0 0.0
    %6324 = vmatpush1.msra.mxu0 %v6309
    %6325 = vmatprep.subr.mxu0 0.0
    %6326 = vmatpush1.msra.mxu0 %v6310
    %6327 = vmatprep.subr.mxu0 0.0
    %6328 = vmatpush1.msra.mxu0 %v6311
    %6329 = vmatprep.subr.mxu0 0.0
    %6330 = vmatpush1.msra.mxu0 %v6312
    %6331 = vmatprep.subr.mxu0 0.0
    %6332 = vmatpush1.msra.mxu0 %v6313
    %6333 = vmatprep.subr.mxu0 0.0
    %6334 = vmatpush1.msra.mxu0 %v6314
    %6335 = vmatprep.subr.mxu0 0.0
    %6336 = vmatpush1.msra.mxu0 0.0
    %6337 = vmatprep.subr.mxu0 0.0
    %6338 = vmatpush1.msra.mxu0 0.0
    %6339 = vmatprep.subr.mxu0 0.0
    %6340 = vmatpush1.msra.mxu0 0.0
    %6341 = vmatprep.subr.mxu0 0.0
    %6342 = vmatpush1.msra.mxu0 0.0
    %6343 = vmatprep.subr.mxu0 0.0
    %6344 = vmatpush1.msra.mxu0 0.0
    %6345 = vmatprep.subr.mxu0 0.0
    %6346 = vmatpush1.msra.mxu0 0.0
    %6347 = vmatprep.subr.mxu0 0.0
    %6348 = vmatpush1.msra.mxu0 0.0
    %6349 = vmatprep.subr.mxu0 0.0
    %6350 = vmatpush1.msra.mxu0 0.0
    %6351 = vmatprep.subr.mxu0 0.0
    %6352 = vmatpush1.msra.mxu0 0.0
    %6353 = vmatprep.subr.mxu0 0.0
    %6354 = vmatpush1.msra.mxu0 0.0
    %6355 = vmatprep.subr.mxu0 0.0
    %6356 = vmatpush1.msra.mxu0 0.0
    %6357 = vmatprep.subr.mxu0 0.0
    %6358 = vmatpush1.msra.mxu0 0.0
    %6359 = vmatprep.subr.mxu0 0.0
    %6360 = vmatpush1.msra.mxu0 0.0
    %6361 = vmatprep.subr.mxu0 0.0
    %6362 = vmatpush1.msra.mxu0 0.0
    %6363 = vmatprep.subr.mxu0 0.0
    %6364 = vmatpush1.msra.mxu0 0.0
    %6365 = vmatprep.subr.mxu0 0.0
    %6366 = vmatpush1.msra.mxu0 0.0
    %6367 = vmatprep.subr.mxu0 0.0
    %6368 = vmatpush1.msra.mxu0 0.0
    %6369 = vmatprep.subr.mxu0 0.0
    %6370 = vmatpush1.msra.mxu0 0.0
    %6371 = vmatprep.subr.mxu0 0.0
    %6372 = vmatpush1.msra.mxu0 0.0
    %6373 = vmatprep.subr.mxu0 0.0
    %6374 = vmatpush1.msra.mxu0 0.0
    %6375 = vmatprep.subr.mxu0 0.0
    %6376 = vmatpush1.msra.mxu0 0.0
    %6377 = vmatprep.subr.mxu0 0.0
    %6378 = vmatpush1.msra.mxu0 0.0
    %6379 = vmatprep.subr.mxu0 0.0
    %6380 = vmatpush1.msra.mxu0 0.0
    %6381 = vmatprep.subr.mxu0 0.0
    %6382 = vmatpush1.msra.mxu0 0.0
    %6383 = vmatprep.mubr.f32.mxu0 0.0
    %6384 = vmatmul.mubr.f32.gmra.mrb[0].mxu0 %v6317
    %v6385 = vpop.f32.mrb[0].mxu0
    %v6386 = vadd.f32 0.0, %v6385
    %v6387 = vpop.f32.mrb[0].mxu0
    %6388 = vdwg.mxu0
    %v6389 = vld [vmem:[%s8 + $0x2] sm:$0x1]
    %v6390 = vld [vmem:[%s8 + $0x3] sm:$0x1]
    %v6391 = vsel %vm770, %v6386, 0.0
    %6392 = vadd.xlane.f32.xlu0 %v6391
    %v6393 = vpop.xlane.xlu0 %6392
    %v6394 = vmul.f32 %v6393, %v795
    %v6395 = vmul.f32 %v6386, %v6386
    %v6396 = vsel %vm770, %v6395, 0.0
    %6397 = vadd.xlane.f32.xlu0 %v6396
    %v6398 = vpop.xlane.xlu0 %6397
    %v6399 = vmul.f32 %v6398, %v795
    %v6400 = vmul.f32 %v6394, %v6394
    %v6401 = vsub.f32 %v6399, %v6400
    %v6402 = vsub.f32 %v6386, %v6394
    %v6403 = vadd.f32 %v6401, 1e-05
    %v6404 = vrsqrt.pop %v6403
    %v6405 = vmul.f32 %v6402, %v6404
    %v6406 = vlaneseq
    %v6407 = vshrl.u32 %v6406, 7
    %v6408 = vsub.s32 0, %v6407
    %v6409 = vrot.slane %v6389, %v6408
    %v6410 = vmul.f32 %v6405, %v6409
    %v6411 = vlaneseq
    %v6412 = vshrl.u32 %v6411, 7
    %v6413 = vsub.s32 0, %v6412
    %v6414 = vrot.slane %v6390, %v6413
    %v6415 = vadd.f32 %v6410, %v6414
    %v6416 = vld [vmem:[%s9] sm:$0xff]
    %v6417 = vld [vmem:[%s9 + $0x8] sm:$0xff]
    %v6418 = vld [vmem:[%s9 + $0x10] sm:$0xff]
    %v6419 = vld [vmem:[%s9 + $0x18] sm:$0xff]
    %v6421 = vsel %vm770, %v6415, 0
    %6423 = vmatprep.subr.mxu0 0.0
    %6424 = vmatpush1.msra.mxu0 %v6416
    %6425 = vmatprep.subr.mxu0 0.0
    %6426 = vmatpush1.msra.mxu0 %v6417
    %6427 = vmatprep.subr.mxu0 0.0
    %6428 = vmatpush1.msra.mxu0 %v6418
    %6429 = vmatprep.subr.mxu0 0.0
    %6430 = vmatpush1.msra.mxu0 %v6419
    %6431 = vmatprep.subr.mxu0 0.0
    %6432 = vmatpush1.msra.mxu0 0.0
    %6433 = vmatprep.subr.mxu0 0.0
    %6434 = vmatpush1.msra.mxu0 0.0
    %6435 = vmatprep.subr.mxu0 0.0
    %6436 = vmatpush1.msra.mxu0 0.0
    %6437 = vmatprep.subr.mxu0 0.0
    %6438 = vmatpush1.msra.mxu0 0.0
    %6439 = vmatprep.subr.mxu0 0.0
    %6440 = vmatpush1.msra.mxu0 0.0
    %6441 = vmatprep.subr.mxu0 0.0
    %6442 = vmatpush1.msra.mxu0 0.0
    %6443 = vmatprep.subr.mxu0 0.0
    %6444 = vmatpush1.msra.mxu0 0.0
    %6445 = vmatprep.subr.mxu0 0.0
    %6446 = vmatpush1.msra.mxu0 0.0
    %6447 = vmatprep.subr.mxu0 0.0
    %6448 = vmatpush1.msra.mxu0 0.0
    %6449 = vmatprep.subr.mxu0 0.0
    %6450 = vmatpush1.msra.mxu0 0.0
    %6451 = vmatprep.subr.mxu0 0.0
    %6452 = vmatpush1.msra.mxu0 0.0
    %6453 = vmatprep.subr.mxu0 0.0
    %6454 = vmatpush1.msra.mxu0 0.0
    %6455 = vmatprep.subr.mxu0 0.0
    %6456 = vmatpush1.msra.mxu0 0.0
    %6457 = vmatprep.subr.mxu0 0.0
    %6458 = vmatpush1.msra.mxu0 0.0
    %6459 = vmatprep.subr.mxu0 0.0
    %6460 = vmatpush1.msra.mxu0 0.0
    %6461 = vmatprep.subr.mxu0 0.0
    %6462 = vmatpush1.msra.mxu0 0.0
    %6463 = vmatprep.subr.mxu0 0.0
    %6464 = vmatpush1.msra.mxu0 0.0
    %6465 = vmatprep.subr.mxu0 0.0
    %6466 = vmatpush1.msra.mxu0 0.0
    %6467 = vmatprep.subr.mxu0 0.0
    %6468 = vmatpush1.msra.mxu0 0.0
    %6469 = vmatprep.subr.mxu0 0.0
    %6470 = vmatpush1.msra.mxu0 0.0
    %6471 = vmatprep.subr.mxu0 0.0
    %6472 = vmatpush1.msra.mxu0 0.0
    %6473 = vmatprep.subr.mxu0 0.0
    %6474 = vmatpush1.msra.mxu0 0.0
    %6475 = vmatprep.subr.mxu0 0.0
    %6476 = vmatpush1.msra.mxu0 0.0
    %6477 = vmatprep.subr.mxu0 0.0
    %6478 = vmatpush1.msra.mxu0 0.0
    %6479 = vmatprep.subr.mxu0 0.0
    %6480 = vmatpush1.msra.mxu0 0.0
    %6481 = vmatprep.subr.mxu0 0.0
    %6482 = vmatpush1.msra.mxu0 0.0
    %6483 = vmatprep.subr.mxu0 0.0
    %6484 = vmatpush1.msra.mxu0 0.0
    %6485 = vmatprep.subr.mxu0 0.0
    %6486 = vmatpush1.msra.mxu0 0.0
    %6487 = vmatprep.mubr.f32.mxu0 0.0
    %6488 = vmatmul.mubr.f32.gmra.mrb[0].mxu0 %v6421
    %v6489 = vpop.f32.mrb[0].mxu0
    %v6490 = vadd.f32 0.0, %v6489
    %v6491 = vpop.f32.mrb[0].mxu0
    %6492 = vdwg.mxu0
    %6493 = vst [vmem:[#allocation2] sm:$0xff] %v6490
    // Predicated region
    $region42: #{tpu_custom_call.1} parent=1 // pred_check
      _
    $region43: #{tpu_custom_call.1} parent=1 // pred_check_branch
      %6495 = sbr.rel (0) target = $region45
    $region44: #{tpu_custom_call.1} parent=1 // pred_region
      %s6497 = ssub.s32 128, 128
      %6498 = vsyncadd [#allocation3], %s6497
      %s6500 = sshll.u32 [#allocation2], 4
      %s6501 = int_to_ptr.vmem [resolvable:$true] %s6500
      %6503 = dma.vmem_to_hbm [thread:$0]  %s6501, 128, %s10, [#allocation3]
    $region45: #{tpu_custom_call.1} parent=1 // pred_fallthru
      _
    // Predicated region
    $region46: #{tpu_custom_call.1} parent=1 // pred_check
      _
    $region47: #{tpu_custom_call.1} parent=1 // pred_check_branch
      %6505 = sbr.rel (0) target = $region49
    $region48: #{tpu_custom_call.1} parent=1 // pred_region
      %6506 = dma.done [#allocation3], 128
    $region49: #{tpu_custom_call.1} parent=1 // pred_fallthru
      _
    %6507 = vsyncpa [#allocation3], 1

</llo_original>
